<compile_context>
chip_gen: v7x
topology: tpu7x:2x2x1
jax: 0.10.0
libtpu: 0.0.40
codegen_flags: <defaults>
</compile_context>

<pallas_src>
import numpy as np
import jax
import jax.numpy as jnp
from jax import lax
from jax.experimental import pallas as pl
from jax.experimental.pallas import tpu as pltpu

BN_EPS = 1e-5
STRIDE = 2  # both convs use stride (2, 2)


def _vmem_spec():
    return pl.BlockSpec(memory_space=pltpu.MemorySpace.VMEM)


def _conv1_im2col(x, kh1, kw1, pw, h_order, wo1):
    """Full conv1 im2col RHS, bf16.  Columns ordered (h in h_order, w):
    R[dy*kw1+dx, hi*wo1+w] = xpad[2*h_order[hi]+dy, 2*w+dx]."""
    xp = jnp.pad(x[0, 0], ((0, 0), (pw, pw)))
    dy = np.repeat(np.arange(kh1, dtype=np.int32), kw1)
    dx = np.tile(np.arange(kw1, dtype=np.int32), kh1)
    hh = 2 * np.repeat(np.asarray(h_order, dtype=np.int32), wo1)
    ww = 2 * np.tile(np.arange(wo1, dtype=np.int32), len(h_order))
    rows = (dy[:, None] + hh[None, :]).astype(np.int32)
    cols = (dx[:, None] + ww[None, :]).astype(np.int32)
    return xp[rows, cols].astype(jnp.bfloat16)


def _make_fused_kernel(cfg):
    (kh1, kw1, ho1, wo1, c1, kh2, kw2, ho2, wo2, c2,
     t_steps, hidden, nfeat, n_even) = cfg

    def off(dy):
        # Lane offset of the (ho2*wo1)-wide window of conv1 output rows
        # {2*oh2 + dy : oh2} under the (parity, h//2, w) column ordering.
        return (dy % 2) * (n_even * wo1) + (dy // 2) * wo1

    def kernel(xcol_ref, w1_ref, b1_ref, g1_ref, bt1_ref,
               w2_ref, b2_ref, g2_ref, bt2_ref,
               dsel_ref, dmask_ref, bsum_ref, csum_ref,
               fmask_ref, hm_ref, b0_ref,
               whh0_ref, wih1_ref, whh1_ref, b1l1_ref,
               wfc_ref, bfc_ref,
               o_ref, rnn_scr):
        f32 = jnp.float32

        # ---- conv1 (+bias): ONE bf16 MXU matmul, lane-dense (c1, ho1*wo1) ----
        y1 = jnp.dot(w1_ref[...], xcol_ref[...],
                     preferred_element_type=f32) + b1_ref[...]

        # ---- BatchNorm2d(c1), training-mode batch stats (two-pass var) + Hardtanh
        mean1 = jnp.mean(y1, axis=1, keepdims=True)
        cen1 = y1 - mean1
        var1 = jnp.mean(cen1 * cen1, axis=1, keepdims=True)
        scale1 = g1_ref[...] * lax.rsqrt(var1 + BN_EPS)
        a1 = jnp.clip(cen1 * scale1 + bt1_ref[...], -1.0, 1.0)        # (c1, ho1*wo1)

        # ---- conv2 vertical im2col: kh2 contiguous lane slices, one sublane
        #      concat (f32, 8-row aligned), one bf16 cast ----
        a2 = jnp.concatenate(
            [a1[:, off(dy):off(dy) + ho2 * wo1] for dy in range(kh2)],
            axis=0).astype(jnp.bfloat16)                              # (kh2*c1, ho2*wo1)

        # ---- conv2: one bf16 matmul + dense 0/1-matrix selection of strided
        #      width taps (matmul, mask, matmul, matmul) ----
        c_full = jnp.dot(w2_ref[...], a2, preferred_element_type=f32)   # (c2*kw2, ho2*wo1)
        e = jnp.dot(c_full, dsel_ref[...], preferred_element_type=f32)  # (c2*kw2, ho2*kw2*wo2)
        e = e * dmask_ref[...]
        fsel = jnp.dot(bsum_ref[...], e, preferred_element_type=f32)    # (c2, ho2*kw2*wo2)
        y2 = jnp.dot(fsel, csum_ref[...],
                     preferred_element_type=f32) + b2_ref[...]          # (c2, ho2*wo2)

        # ---- BatchNorm2d(c2) (batch stats, two-pass var) + F.hardtanh ----
        mean2 = jnp.mean(y2, axis=1, keepdims=True)
        cen2 = y2 - mean2
        var2 = jnp.mean(cen2 * cen2, axis=1, keepdims=True)
        scale2 = g2_ref[...] * lax.rsqrt(var2 + BN_EPS)
        y2h = jnp.clip(cen2 * scale2 + bt2_ref[...], -1.0, 1.0)         # (c2, p2)

        # ---- torch reshape(1,-1,4) + RNN layer-0 input projection, all T steps:
        #      flatten (c2,p2)->(1,c2*p2) via 0/1 mask + sublane sum (no reshape),
        #      then ONE (1, c2*p2) @ (c2*p2, T*hidden) matmul.
        y2w = jnp.tile(y2h, (1, c2)) * fmask_ref[...]                    # (c2, c2*p2)
        y2flat = jnp.sum(y2w, axis=0, keepdims=True)                     # (1, c2*p2)
        ih = jnp.dot(y2flat, hm_ref[...],
                     preferred_element_type=f32) + b0_ref[...]           # (1, T*hidden)

        # ---- 2-layer ReLU RNN (batch 1), fully unrolled over T.
        # TODO(synk): the tiny recurrent dots could also be done on the VPU
        #   (broadcast-multiply + reduce); MXU dots kept for simplicity.
        whh0 = whh0_ref[...]
        wih1 = wih1_ref[...]
        whh1 = whh1_ref[...]
        b1l1 = b1l1_ref[...]
        h0 = jnp.zeros((1, hidden), f32)
        h1 = jnp.zeros((1, hidden), f32)
        for t in range(t_steps):
            pre0 = ih[:, hidden * t: hidden * t + hidden]
            h0 = jnp.maximum(pre0 + jnp.dot(h0, whh0, preferred_element_type=f32), 0.0)
            lat = jnp.dot(h1, whh1, preferred_element_type=f32) + b1l1   # off critical chain
            h1 = jnp.maximum(jnp.dot(h0, wih1, preferred_element_type=f32) + lat, 0.0)
            rnn_scr[pl.ds(t, 1), :] = h1                                  # static row store

        # ---- Linear(hidden, nfeat) + Softmax over the sequence axis (dim=1) ----
        rnn_out = rnn_scr[...]                                            # (T, hidden)
        logits = jnp.dot(rnn_out, wfc_ref[...],
                         preferred_element_type=f32) + bfc_ref[...]
        m = jnp.max(logits, axis=0, keepdims=True)
        ex = jnp.exp(logits - m)
        o_ref[...] = ex / jnp.sum(ex, axis=0, keepdims=True)

    return kernel


def cnn_forward(params, x):
    w1 = params["w1"]
    c1, cin1, kh1, kw1 = w1.shape
    assert cin1 == 1 and x.shape[0] == 1 and x.shape[1] == 1
    H, W = x.shape[2], x.shape[3]
    pw = 10  # conv1 padding (0, 10)
    ho1 = (H - kh1) // STRIDE + 1
    wo1 = (W + 2 * pw - kw1) // STRIDE + 1

    w2 = params["w2"]
    c2, _, kh2, kw2 = w2.shape
    ho2 = (ho1 - kh2) // STRIDE + 1
    wo2 = (wo1 - kw2) // STRIDE + 1
    p2 = ho2 * wo2
    nfeat = 4
    total = c2 * p2
    assert total % nfeat == 0
    t_steps = total // nfeat
    hidden = params["whh0"].shape[0]

    # conv1 output columns ordered (h parity, h//2, w) so conv2's vertical taps
    # are contiguous lane windows inside the kernel.
    h_order = list(range(0, ho1, 2)) + list(range(1, ho1, 2))
    n_even = (ho1 + 1) // 2
    xcol = _conv1_im2col(x, kh1, kw1, pw, h_order, wo1)                 # (kh1*kw1, ho1*wo1) bf16

    # Matmul-layout conv weights (bf16 operands, f32 accumulation in-kernel).
    w1m = w1.reshape(c1, kh1 * kw1).astype(jnp.bfloat16)
    w2r = jnp.transpose(w2, (0, 3, 2, 1)).reshape(c2 * kw2, kh2 * c1).astype(jnp.bfloat16)

    # Host 0/1 matrices for conv2's strided width-tap selection.
    dsel = np.zeros((ho2 * wo1, ho2 * kw2 * wo2), np.float32)
    dmask = np.zeros((c2 * kw2, ho2 * kw2 * wo2), np.float32)
    bsum = np.zeros((c2, c2 * kw2), np.float32)
    csum = np.zeros((ho2 * kw2 * wo2, p2), np.float32)
    for oh2 in range(ho2):
        for dx in range(kw2):
            for ow2 in range(wo2):
                col = (oh2 * kw2 + dx) * wo2 + ow2
                dsel[oh2 * wo1 + 2 * ow2 + dx, col] = 1.0
                for co in range(c2):
                    dmask[co * kw2 + dx, col] = 1.0
                csum[col, oh2 * wo2 + ow2] = 1.0
    for co in range(c2):
        bsum[co, co * kw2: (co + 1) * kw2] = 1.0

    # 0/1 mask flattening (c2, p2) -> (1, c2*p2) without an in-kernel reshape.
    fmask = np.zeros((c2, c2 * p2), np.float32)
    for co in range(c2):
        fmask[co, co * p2: (co + 1) * p2] = 1.0

    # Layer-0 input projection folded with torch's C-order (1,-1,4) scramble:
    # hm[q, t*hidden + j] = Wih0[j, f]  iff  q == 4*t + f.
    e_np = np.zeros((total, t_steps, nfeat), np.float32)
    for flat in range(total):
        e_np[flat, flat // nfeat, flat % nfeat] = 1.0
    hm = jnp.einsum("qtf,jf->qtj", jnp.asarray(e_np),
                    params["wih0"]).reshape(total, t_steps * hidden)
    b0rep = jnp.tile(params["bih0"] + params["bhh0"],
                     (t_steps,)).reshape(1, t_steps * hidden)
    whh0t = params["whh0"].T
    wih1t = params["wih1"].T
    whh1t = params["whh1"].T
    b1l1 = (params["bih1"] + params["bhh1"]).reshape(1, hidden)
    wfct = params["wfc"].T
    bfc = params["bfc"].reshape(1, nfeat)

    cfg = (kh1, kw1, ho1, wo1, c1, kh2, kw2, ho2, wo2, c2,
           t_steps, hidden, nfeat, n_even)
    out = pl.pallas_call(
        _make_fused_kernel(cfg),
        out_shape=jax.ShapeDtypeStruct((t_steps, nfeat), jnp.float32),
        in_specs=[_vmem_spec()] * 22,
        out_specs=_vmem_spec(),
        scratch_shapes=[pltpu.VMEM((t_steps, hidden), jnp.float32)],
    )(xcol, w1m,
      params["b1"].reshape(c1, 1), params["g1"].reshape(c1, 1),
      params["beta1"].reshape(c1, 1),
      w2r, params["b2"].reshape(c2, 1), params["g2"].reshape(c2, 1),
      params["beta2"].reshape(c2, 1),
      jnp.asarray(dsel), jnp.asarray(dmask), jnp.asarray(bsum), jnp.asarray(csum),
      jnp.asarray(fmask), hm, b0rep,
      whh0t, wih1t, whh1t, b1l1, wfct, bfc)
    return out.reshape(1, t_steps, nfeat)


def init_params(key):
    ks = jax.random.split(key, 14)

    def u(k, shape, scale):
        return jax.random.uniform(k, shape, jnp.float32, -scale, scale)

    return {
        # layer1: Conv2d(1 -> 8, (41, 11), stride 2, pad (0, 10)), BatchNorm2d(8)
        "w1": u(ks[0], (8, 1, 41, 11), 0.05), "b1": u(ks[1], (8,), 0.05),
        "g1": jnp.ones((8,), jnp.float32), "beta1": jnp.zeros((8,), jnp.float32),
        # layer2: Conv2d(8 -> 4, (21, 11), stride 2), BatchNorm2d(4)
        "w2": u(ks[2], (4, 8, 21, 11), 0.02), "b2": u(ks[3], (4,), 0.02),
        "g2": jnp.ones((4,), jnp.float32), "beta2": jnp.zeros((4,), jnp.float32),
        # RNN layer 0 (input 4 -> hidden 8), relu
        "wih0": u(ks[4], (8, 4), 0.3), "whh0": u(ks[5], (8, 8), 0.3),
        "bih0": u(ks[6], (8,), 0.3), "bhh0": u(ks[7], (8,), 0.3),
        # RNN layer 1 (8 -> 8), relu
        "wih1": u(ks[8], (8, 8), 0.3), "whh1": u(ks[9], (8, 8), 0.3),
        "bih1": u(ks[10], (8,), 0.3), "bhh1": u(ks[11], (8,), 0.3),
        # fcc: Linear(8, 4)
        "wfc": u(ks[12], (4, 8), 0.3), "bfc": u(ks[13], (4,), 0.3),
    }


if __name__ == "__main__":
    key = jax.random.PRNGKey(0)
    pkey, xkey = jax.random.split(key)
    params = init_params(pkey)
    # Small NCHW input consistent with the module: H >= 81 (two big-kernel
    # stride-2 convs on H), W padded by 10 on each side for conv1.
    x = jax.random.normal(xkey, (1, 1, 101, 21), jnp.float32)
    fwd = jax.jit(cnn_forward)
    out = fwd(params, x)                 # -> (1, 18, 4), softmax over dim=1
    out = jax.block_until_ready(out)
    assert out.shape == (1, 18, 4)
    assert bool(jnp.all(jnp.isfinite(out)))
    print("KERNEL_OK")
</pallas_src>

<mosaic_0001>
module attributes {stable_mosaic.version = 11 : i64} {
  func.func @kernel(%arg0: memref<451x496xbf16, #tpu.memory_space<vmem>>, %arg1: memref<8x451xbf16, #tpu.memory_space<vmem>>, %arg2: memref<8x1xf32, #tpu.memory_space<vmem>>, %arg3: memref<8x1xf32, #tpu.memory_space<vmem>>, %arg4: memref<8x1xf32, #tpu.memory_space<vmem>>, %arg5: memref<44x168xbf16, #tpu.memory_space<vmem>>, %arg6: memref<4x1xf32, #tpu.memory_space<vmem>>, %arg7: memref<4x1xf32, #tpu.memory_space<vmem>>, %arg8: memref<4x1xf32, #tpu.memory_space<vmem>>, %arg9: memref<96x198xf32, #tpu.memory_space<vmem>>, %arg10: memref<44x198xf32, #tpu.memory_space<vmem>>, %arg11: memref<4x44xf32, #tpu.memory_space<vmem>>, %arg12: memref<198x18xf32, #tpu.memory_space<vmem>>, %arg13: memref<4x72xf32, #tpu.memory_space<vmem>>, %arg14: memref<72x144xf32, #tpu.memory_space<vmem>>, %arg15: memref<1x144xf32, #tpu.memory_space<vmem>>, %arg16: memref<8x8xf32, #tpu.memory_space<vmem>>, %arg17: memref<8x8xf32, #tpu.memory_space<vmem>>, %arg18: memref<8x8xf32, #tpu.memory_space<vmem>>, %arg19: memref<1x8xf32, #tpu.memory_space<vmem>>, %arg20: memref<8x4xf32, #tpu.memory_space<vmem>>, %arg21: memref<1x4xf32, #tpu.memory_space<vmem>>, %arg22: memref<18x4xf32, #tpu.memory_space<vmem>>, %arg23: memref<18x8xf32, #tpu.memory_space<vmem>>) attributes {dimension_semantics = [], scalar_prefetch = 0 : i64, scratch_operands = 1 : i64, tpu.core_type = #tpu.core_type<tc>} {
    %c0 = arith.constant 0 : index
    %c0_0 = arith.constant 0 : index
    %0 = vector.load %arg1[%c0, %c0_0] : memref<8x451xbf16, #tpu.memory_space<vmem>>, vector<8x451xbf16>
    %c0_1 = arith.constant 0 : index
    %c0_2 = arith.constant 0 : index
    %1 = vector.load %arg0[%c0_1, %c0_2] : memref<451x496xbf16, #tpu.memory_space<vmem>>, vector<451x496xbf16>
    %cst = arith.constant dense<0.000000e+00> : vector<8x496xf32>
    %2 = tpu.matmul %0, %1, %cst {dimension_numbers = #tpu.dot_dimension_numbers<[1], [0], [0], [1], [0, 0, 1, 1], [], []>} : vector<8x451xbf16>, vector<451x496xbf16>, vector<8x496xf32> -> vector<8x496xf32>
    %c0_3 = arith.constant 0 : index
    %c0_4 = arith.constant 0 : index
    %3 = vector.load %arg2[%c0_3, %c0_4] : memref<8x1xf32, #tpu.memory_space<vmem>>, vector<8x1xf32>
    %4 = vector.broadcast %3 : vector<8x1xf32> to vector<8x496xf32>
    %5 = arith.addf %2, %4 : vector<8x496xf32>
    %cst_5 = arith.constant dense<0.000000e+00> : vector<8xf32>
    %6 = vector.multi_reduction <add>, %5, %cst_5 [1] : vector<8x496xf32> to vector<8xf32>
    %7 = vector.shape_cast %6 : vector<8xf32> to vector<8x1xf32>
    %cst_6 = arith.constant 4.960000e+02 : f32
    %8 = vector.broadcast %cst_6 : f32 to vector<8x1xf32>
    %9 = arith.divf %7, %8 : vector<8x1xf32>
    %10 = vector.broadcast %9 : vector<8x1xf32> to vector<8x496xf32>
    %11 = arith.subf %5, %10 : vector<8x496xf32>
    %12 = arith.mulf %11, %11 : vector<8x496xf32>
    %cst_7 = arith.constant dense<0.000000e+00> : vector<8xf32>
    %13 = vector.multi_reduction <add>, %12, %cst_7 [1] : vector<8x496xf32> to vector<8xf32>
    %14 = vector.shape_cast %13 : vector<8xf32> to vector<8x1xf32>
    %cst_8 = arith.constant 4.960000e+02 : f32
    %15 = vector.broadcast %cst_8 : f32 to vector<8x1xf32>
    %16 = arith.divf %14, %15 : vector<8x1xf32>
    %c0_9 = arith.constant 0 : index
    %c0_10 = arith.constant 0 : index
    %17 = vector.load %arg3[%c0_9, %c0_10] : memref<8x1xf32, #tpu.memory_space<vmem>>, vector<8x1xf32>
    %cst_11 = arith.constant 9.99999974E-6 : f32
    %18 = vector.broadcast %cst_11 : f32 to vector<8x1xf32>
    %19 = arith.addf %16, %18 : vector<8x1xf32>
    %20 = math.rsqrt %19 : vector<8x1xf32>
    %21 = arith.mulf %17, %20 : vector<8x1xf32>
    %22 = vector.broadcast %21 : vector<8x1xf32> to vector<8x496xf32>
    %23 = arith.mulf %11, %22 : vector<8x496xf32>
    %c0_12 = arith.constant 0 : index
    %c0_13 = arith.constant 0 : index
    %24 = vector.load %arg4[%c0_12, %c0_13] : memref<8x1xf32, #tpu.memory_space<vmem>>, vector<8x1xf32>
    %25 = vector.broadcast %24 : vector<8x1xf32> to vector<8x496xf32>
    %26 = arith.addf %23, %25 : vector<8x496xf32>
    %cst_14 = arith.constant -1.000000e+00 : f32
    %cst_15 = arith.constant 1.000000e+00 : f32
    %27 = vector.broadcast %cst_14 : f32 to vector<8x496xf32>
    %28 = arith.maximumf %27, %26 : vector<8x496xf32>
    %29 = vector.broadcast %cst_15 : f32 to vector<8x496xf32>
    %30 = arith.minimumf %29, %28 : vector<8x496xf32>
    %31 = vector.extract_strided_slice %30 {offsets = [0, 0], sizes = [8, 96], strides = [1, 1]} : vector<8x496xf32> to vector<8x96xf32>
    %32 = vector.extract_strided_slice %30 {offsets = [0, 256], sizes = [8, 96], strides = [1, 1]} : vector<8x496xf32> to vector<8x96xf32>
    %33 = vector.extract_strided_slice %30 {offsets = [0, 16], sizes = [8, 96], strides = [1, 1]} : vector<8x496xf32> to vector<8x96xf32>
    %34 = vector.extract_strided_slice %30 {offsets = [0, 272], sizes = [8, 96], strides = [1, 1]} : vector<8x496xf32> to vector<8x96xf32>
    %35 = vector.extract_strided_slice %30 {offsets = [0, 32], sizes = [8, 96], strides = [1, 1]} : vector<8x496xf32> to vector<8x96xf32>
    %36 = vector.extract_strided_slice %30 {offsets = [0, 288], sizes = [8, 96], strides = [1, 1]} : vector<8x496xf32> to vector<8x96xf32>
    %37 = vector.extract_strided_slice %30 {offsets = [0, 48], sizes = [8, 96], strides = [1, 1]} : vector<8x496xf32> to vector<8x96xf32>
    %38 = vector.extract_strided_slice %30 {offsets = [0, 304], sizes = [8, 96], strides = [1, 1]} : vector<8x496xf32> to vector<8x96xf32>
    %39 = vector.extract_strided_slice %30 {offsets = [0, 64], sizes = [8, 96], strides = [1, 1]} : vector<8x496xf32> to vector<8x96xf32>
    %40 = vector.extract_strided_slice %30 {offsets = [0, 320], sizes = [8, 96], strides = [1, 1]} : vector<8x496xf32> to vector<8x96xf32>
    %41 = vector.extract_strided_slice %30 {offsets = [0, 80], sizes = [8, 96], strides = [1, 1]} : vector<8x496xf32> to vector<8x96xf32>
    %42 = vector.extract_strided_slice %30 {offsets = [0, 336], sizes = [8, 96], strides = [1, 1]} : vector<8x496xf32> to vector<8x96xf32>
    %43 = vector.extract_strided_slice %30 {offsets = [0, 96], sizes = [8, 96], strides = [1, 1]} : vector<8x496xf32> to vector<8x96xf32>
    %44 = vector.extract_strided_slice %30 {offsets = [0, 352], sizes = [8, 96], strides = [1, 1]} : vector<8x496xf32> to vector<8x96xf32>
    %45 = vector.extract_strided_slice %30 {offsets = [0, 112], sizes = [8, 96], strides = [1, 1]} : vector<8x496xf32> to vector<8x96xf32>
    %46 = vector.extract_strided_slice %30 {offsets = [0, 368], sizes = [8, 96], strides = [1, 1]} : vector<8x496xf32> to vector<8x96xf32>
    %47 = vector.extract_strided_slice %30 {offsets = [0, 128], sizes = [8, 96], strides = [1, 1]} : vector<8x496xf32> to vector<8x96xf32>
    %48 = vector.extract_strided_slice %30 {offsets = [0, 384], sizes = [8, 96], strides = [1, 1]} : vector<8x496xf32> to vector<8x96xf32>
    %49 = vector.extract_strided_slice %30 {offsets = [0, 144], sizes = [8, 96], strides = [1, 1]} : vector<8x496xf32> to vector<8x96xf32>
    %50 = vector.extract_strided_slice %30 {offsets = [0, 400], sizes = [8, 96], strides = [1, 1]} : vector<8x496xf32> to vector<8x96xf32>
    %51 = vector.extract_strided_slice %30 {offsets = [0, 160], sizes = [8, 96], strides = [1, 1]} : vector<8x496xf32> to vector<8x96xf32>
    %52 = tpu.concatenate %31, %32, %33, %34, %35, %36, %37, %38, %39, %40, %41, %42, %43, %44, %45, %46 in 0 : vector<8x96xf32>, vector<8x96xf32>, vector<8x96xf32>, vector<8x96xf32>, vector<8x96xf32>, vector<8x96xf32>, vector<8x96xf32>, vector<8x96xf32>, vector<8x96xf32>, vector<8x96xf32>, vector<8x96xf32>, vector<8x96xf32>, vector<8x96xf32>, vector<8x96xf32>, vector<8x96xf32>, vector<8x96xf32> -> vector<128x96xf32>
    %53 = tpu.concatenate %47, %48, %49, %50, %51 in 0 : vector<8x96xf32>, vector<8x96xf32>, vector<8x96xf32>, vector<8x96xf32>, vector<8x96xf32> -> vector<40x96xf32>
    %54 = tpu.concatenate %52, %53 in 0 : vector<128x96xf32>, vector<40x96xf32> -> vector<168x96xf32>
    %55 = arith.truncf %54 : vector<168x96xf32> to vector<168x96xbf16>
    %c0_16 = arith.constant 0 : index
    %c0_17 = arith.constant 0 : index
    %56 = vector.load %arg5[%c0_16, %c0_17] : memref<44x168xbf16, #tpu.memory_space<vmem>>, vector<44x168xbf16>
    %cst_18 = arith.constant dense<0.000000e+00> : vector<44x96xf32>
    %57 = tpu.matmul %56, %55, %cst_18 {dimension_numbers = #tpu.dot_dimension_numbers<[1], [0], [0], [1], [0, 0, 1, 1], [], []>} : vector<44x168xbf16>, vector<168x96xbf16>, vector<44x96xf32> -> vector<44x96xf32>
    %c0_19 = arith.constant 0 : index
    %c0_20 = arith.constant 0 : index
    %58 = vector.load %arg9[%c0_19, %c0_20] : memref<96x198xf32, #tpu.memory_space<vmem>>, vector<96x198xf32>
    %cst_21 = arith.constant dense<0.000000e+00> : vector<44x198xf32>
    %59 = tpu.matmul %57, %58, %cst_21 {dimension_numbers = #tpu.dot_dimension_numbers<[1], [0], [0], [1], [0, 0, 1, 1], [], []>} : vector<44x96xf32>, vector<96x198xf32>, vector<44x198xf32> -> vector<44x198xf32>
    %c0_22 = arith.constant 0 : index
    %c0_23 = arith.constant 0 : index
    %60 = vector.load %arg10[%c0_22, %c0_23] : memref<44x198xf32, #tpu.memory_space<vmem>>, vector<44x198xf32>
    %61 = arith.mulf %59, %60 : vector<44x198xf32>
    %c0_24 = arith.constant 0 : index
    %c0_25 = arith.constant 0 : index
    %62 = vector.load %arg11[%c0_24, %c0_25] : memref<4x44xf32, #tpu.memory_space<vmem>>, vector<4x44xf32>
    %cst_26 = arith.constant dense<0.000000e+00> : vector<4x198xf32>
    %63 = tpu.matmul %62, %61, %cst_26 {dimension_numbers = #tpu.dot_dimension_numbers<[1], [0], [0], [1], [0, 0, 1, 1], [], []>} : vector<4x44xf32>, vector<44x198xf32>, vector<4x198xf32> -> vector<4x198xf32>
    %c0_27 = arith.constant 0 : index
    %c0_28 = arith.constant 0 : index
    %64 = vector.load %arg12[%c0_27, %c0_28] : memref<198x18xf32, #tpu.memory_space<vmem>>, vector<198x18xf32>
    %cst_29 = arith.constant dense<0.000000e+00> : vector<4x18xf32>
    %65 = tpu.matmul %63, %64, %cst_29 {dimension_numbers = #tpu.dot_dimension_numbers<[1], [0], [0], [1], [0, 0, 1, 1], [], []>} : vector<4x198xf32>, vector<198x18xf32>, vector<4x18xf32> -> vector<4x18xf32>
    %c0_30 = arith.constant 0 : index
    %c0_31 = arith.constant 0 : index
    %66 = vector.load %arg6[%c0_30, %c0_31] : memref<4x1xf32, #tpu.memory_space<vmem>>, vector<4x1xf32>
    %67 = vector.broadcast %66 : vector<4x1xf32> to vector<4x18xf32>
    %68 = arith.addf %65, %67 : vector<4x18xf32>
    %cst_32 = arith.constant dense<0.000000e+00> : vector<4xf32>
    %69 = vector.multi_reduction <add>, %68, %cst_32 [1] : vector<4x18xf32> to vector<4xf32>
    %70 = vector.shape_cast %69 : vector<4xf32> to vector<4x1xf32>
    %cst_33 = arith.constant 1.800000e+01 : f32
    %71 = vector.broadcast %cst_33 : f32 to vector<4x1xf32>
    %72 = arith.divf %70, %71 : vector<4x1xf32>
    %73 = vector.broadcast %72 : vector<4x1xf32> to vector<4x18xf32>
    %74 = arith.subf %68, %73 : vector<4x18xf32>
    %75 = arith.mulf %74, %74 : vector<4x18xf32>
    %cst_34 = arith.constant dense<0.000000e+00> : vector<4xf32>
    %76 = vector.multi_reduction <add>, %75, %cst_34 [1] : vector<4x18xf32> to vector<4xf32>
    %77 = vector.shape_cast %76 : vector<4xf32> to vector<4x1xf32>
    %cst_35 = arith.constant 1.800000e+01 : f32
    %78 = vector.broadcast %cst_35 : f32 to vector<4x1xf32>
    %79 = arith.divf %77, %78 : vector<4x1xf32>
    %c0_36 = arith.constant 0 : index
    %c0_37 = arith.constant 0 : index
    %80 = vector.load %arg7[%c0_36, %c0_37] : memref<4x1xf32, #tpu.memory_space<vmem>>, vector<4x1xf32>
    %cst_38 = arith.constant 9.99999974E-6 : f32
    %81 = vector.broadcast %cst_38 : f32 to vector<4x1xf32>
    %82 = arith.addf %79, %81 : vector<4x1xf32>
    %83 = math.rsqrt %82 : vector<4x1xf32>
    %84 = arith.mulf %80, %83 : vector<4x1xf32>
    %85 = vector.broadcast %84 : vector<4x1xf32> to vector<4x18xf32>
    %86 = arith.mulf %74, %85 : vector<4x18xf32>
    %c0_39 = arith.constant 0 : index
    %c0_40 = arith.constant 0 : index
    %87 = vector.load %arg8[%c0_39, %c0_40] : memref<4x1xf32, #tpu.memory_space<vmem>>, vector<4x1xf32>
    %88 = vector.broadcast %87 : vector<4x1xf32> to vector<4x18xf32>
    %89 = arith.addf %86, %88 : vector<4x18xf32>
    %cst_41 = arith.constant -1.000000e+00 : f32
    %cst_42 = arith.constant 1.000000e+00 : f32
    %90 = vector.broadcast %cst_41 : f32 to vector<4x18xf32>
    %91 = arith.maximumf %90, %89 : vector<4x18xf32>
    %92 = vector.broadcast %cst_42 : f32 to vector<4x18xf32>
    %93 = arith.minimumf %92, %91 : vector<4x18xf32>
    %94 = tpu.concatenate %93, %93, %93, %93 in 1 : vector<4x18xf32>, vector<4x18xf32>, vector<4x18xf32>, vector<4x18xf32> -> vector<4x72xf32>
    %c0_43 = arith.constant 0 : index
    %c0_44 = arith.constant 0 : index
    %95 = vector.load %arg13[%c0_43, %c0_44] : memref<4x72xf32, #tpu.memory_space<vmem>>, vector<4x72xf32>
    %96 = arith.mulf %94, %95 : vector<4x72xf32>
    %cst_45 = arith.constant dense<0.000000e+00> : vector<72xf32>
    %97 = vector.multi_reduction <add>, %96, %cst_45 [0] : vector<4x72xf32> to vector<72xf32>
    %98 = vector.shape_cast %97 : vector<72xf32> to vector<1x72xf32>
    %c0_46 = arith.constant 0 : index
    %c0_47 = arith.constant 0 : index
    %99 = vector.load %arg14[%c0_46, %c0_47] : memref<72x144xf32, #tpu.memory_space<vmem>>, vector<72x144xf32>
    %cst_48 = arith.constant dense<0.000000e+00> : vector<1x144xf32>
    %100 = tpu.matmul %98, %99, %cst_48 {dimension_numbers = #tpu.dot_dimension_numbers<[1], [0], [0], [1], [0, 0, 1, 1], [], []>} : vector<1x72xf32>, vector<72x144xf32>, vector<1x144xf32> -> vector<1x144xf32>
    %c0_49 = arith.constant 0 : index
    %c0_50 = arith.constant 0 : index
    %101 = vector.load %arg15[%c0_49, %c0_50] : memref<1x144xf32, #tpu.memory_space<vmem>>, vector<1x144xf32>
    %102 = arith.addf %100, %101 : vector<1x144xf32>
    %c0_51 = arith.constant 0 : index
    %c0_52 = arith.constant 0 : index
    %103 = vector.load %arg16[%c0_51, %c0_52] : memref<8x8xf32, #tpu.memory_space<vmem>>, vector<8x8xf32>
    %c0_53 = arith.constant 0 : index
    %c0_54 = arith.constant 0 : index
    %104 = vector.load %arg17[%c0_53, %c0_54] : memref<8x8xf32, #tpu.memory_space<vmem>>, vector<8x8xf32>
    %c0_55 = arith.constant 0 : index
    %c0_56 = arith.constant 0 : index
    %105 = vector.load %arg18[%c0_55, %c0_56] : memref<8x8xf32, #tpu.memory_space<vmem>>, vector<8x8xf32>
    %c0_57 = arith.constant 0 : index
    %c0_58 = arith.constant 0 : index
    %106 = vector.load %arg19[%c0_57, %c0_58] : memref<1x8xf32, #tpu.memory_space<vmem>>, vector<1x8xf32>
    %cst_59 = arith.constant 0.000000e+00 : f32
    %107 = vector.broadcast %cst_59 : f32 to vector<1x8xf32>
    %cst_60 = arith.constant 0.000000e+00 : f32
    %108 = vector.broadcast %cst_60 : f32 to vector<1x8xf32>
    %109 = vector.extract_strided_slice %102 {offsets = [0, 0], sizes = [1, 8], strides = [1, 1]} : vector<1x144xf32> to vector<1x8xf32>
    %cst_61 = arith.constant dense<0.000000e+00> : vector<1x8xf32>
    %110 = tpu.matmul %107, %103, %cst_61 {dimension_numbers = #tpu.dot_dimension_numbers<[1], [0], [0], [1], [0, 0, 1, 1], [], []>} : vector<1x8xf32>, vector<8x8xf32>, vector<1x8xf32> -> vector<1x8xf32>
    %111 = arith.addf %109, %110 : vector<1x8xf32>
    %cst_62 = arith.constant 0.000000e+00 : f32
    %112 = vector.broadcast %cst_62 : f32 to vector<1x8xf32>
    %113 = arith.maximumf %111, %112 : vector<1x8xf32>
    %cst_63 = arith.constant dense<0.000000e+00> : vector<1x8xf32>
    %114 = tpu.matmul %108, %105, %cst_63 {dimension_numbers = #tpu.dot_dimension_numbers<[1], [0], [0], [1], [0, 0, 1, 1], [], []>} : vector<1x8xf32>, vector<8x8xf32>, vector<1x8xf32> -> vector<1x8xf32>
    %115 = arith.addf %114, %106 : vector<1x8xf32>
    %cst_64 = arith.constant dense<0.000000e+00> : vector<1x8xf32>
    %116 = tpu.matmul %113, %104, %cst_64 {dimension_numbers = #tpu.dot_dimension_numbers<[1], [0], [0], [1], [0, 0, 1, 1], [], []>} : vector<1x8xf32>, vector<8x8xf32>, vector<1x8xf32> -> vector<1x8xf32>
    %117 = arith.addf %116, %115 : vector<1x8xf32>
    %cst_65 = arith.constant 0.000000e+00 : f32
    %118 = vector.broadcast %cst_65 : f32 to vector<1x8xf32>
    %119 = arith.maximumf %117, %118 : vector<1x8xf32>
    %c0_66 = arith.constant 0 : index
    %c0_67 = arith.constant 0 : index
    %120 = vector.load %arg23[%c0_66, %c0_67] : memref<18x8xf32, #tpu.memory_space<vmem>>, vector<1x8xf32>
    tpu.vector_store %arg23[%c0_66, %c0_67], %119 {strides = array<i32>} : memref<18x8xf32, #tpu.memory_space<vmem>>, vector<1x8xf32>,
    %121 = vector.extract_strided_slice %102 {offsets = [0, 8], sizes = [1, 8], strides = [1, 1]} : vector<1x144xf32> to vector<1x8xf32>
    %cst_68 = arith.constant dense<0.000000e+00> : vector<1x8xf32>
    %122 = tpu.matmul %113, %103, %cst_68 {dimension_numbers = #tpu.dot_dimension_numbers<[1], [0], [0], [1], [0, 0, 1, 1], [], []>} : vector<1x8xf32>, vector<8x8xf32>, vector<1x8xf32> -> vector<1x8xf32>
    %123 = arith.addf %121, %122 : vector<1x8xf32>
    %cst_69 = arith.constant 0.000000e+00 : f32
    %124 = vector.broadcast %cst_69 : f32 to vector<1x8xf32>
    %125 = arith.maximumf %123, %124 : vector<1x8xf32>
    %cst_70 = arith.constant dense<0.000000e+00> : vector<1x8xf32>
    %126 = tpu.matmul %119, %105, %cst_70 {dimension_numbers = #tpu.dot_dimension_numbers<[1], [0], [0], [1], [0, 0, 1, 1], [], []>} : vector<1x8xf32>, vector<8x8xf32>, vector<1x8xf32> -> vector<1x8xf32>
    %127 = arith.addf %126, %106 : vector<1x8xf32>
    %cst_71 = arith.constant dense<0.000000e+00> : vector<1x8xf32>
    %128 = tpu.matmul %125, %104, %cst_71 {dimension_numbers = #tpu.dot_dimension_numbers<[1], [0], [0], [1], [0, 0, 1, 1], [], []>} : vector<1x8xf32>, vector<8x8xf32>, vector<1x8xf32> -> vector<1x8xf32>
    %129 = arith.addf %128, %127 : vector<1x8xf32>
    %cst_72 = arith.constant 0.000000e+00 : f32
    %130 = vector.broadcast %cst_72 : f32 to vector<1x8xf32>
    %131 = arith.maximumf %129, %130 : vector<1x8xf32>
    %c1 = arith.constant 1 : index
    %c0_73 = arith.constant 0 : index
    %132 = vector.load %arg23[%c1, %c0_73] : memref<18x8xf32, #tpu.memory_space<vmem>>, vector<1x8xf32>
    tpu.vector_store %arg23[%c1, %c0_73], %131 {strides = array<i32>} : memref<18x8xf32, #tpu.memory_space<vmem>>, vector<1x8xf32>,
    %133 = vector.extract_strided_slice %102 {offsets = [0, 16], sizes = [1, 8], strides = [1, 1]} : vector<1x144xf32> to vector<1x8xf32>
    %cst_74 = arith.constant dense<0.000000e+00> : vector<1x8xf32>
    %134 = tpu.matmul %125, %103, %cst_74 {dimension_numbers = #tpu.dot_dimension_numbers<[1], [0], [0], [1], [0, 0, 1, 1], [], []>} : vector<1x8xf32>, vector<8x8xf32>, vector<1x8xf32> -> vector<1x8xf32>
    %135 = arith.addf %133, %134 : vector<1x8xf32>
    %cst_75 = arith.constant 0.000000e+00 : f32
    %136 = vector.broadcast %cst_75 : f32 to vector<1x8xf32>
    %137 = arith.maximumf %135, %136 : vector<1x8xf32>
    %cst_76 = arith.constant dense<0.000000e+00> : vector<1x8xf32>
    %138 = tpu.matmul %131, %105, %cst_76 {dimension_numbers = #tpu.dot_dimension_numbers<[1], [0], [0], [1], [0, 0, 1, 1], [], []>} : vector<1x8xf32>, vector<8x8xf32>, vector<1x8xf32> -> vector<1x8xf32>
    %139 = arith.addf %138, %106 : vector<1x8xf32>
    %cst_77 = arith.constant dense<0.000000e+00> : vector<1x8xf32>
    %140 = tpu.matmul %137, %104, %cst_77 {dimension_numbers = #tpu.dot_dimension_numbers<[1], [0], [0], [1], [0, 0, 1, 1], [], []>} : vector<1x8xf32>, vector<8x8xf32>, vector<1x8xf32> -> vector<1x8xf32>
    %141 = arith.addf %140, %139 : vector<1x8xf32>
    %cst_78 = arith.constant 0.000000e+00 : f32
    %142 = vector.broadcast %cst_78 : f32 to vector<1x8xf32>
    %143 = arith.maximumf %141, %142 : vector<1x8xf32>
    %c2 = arith.constant 2 : index
    %c0_79 = arith.constant 0 : index
    %144 = vector.load %arg23[%c2, %c0_79] : memref<18x8xf32, #tpu.memory_space<vmem>>, vector<1x8xf32>
    tpu.vector_store %arg23[%c2, %c0_79], %143 {strides = array<i32>} : memref<18x8xf32, #tpu.memory_space<vmem>>, vector<1x8xf32>,
    %145 = vector.extract_strided_slice %102 {offsets = [0, 24], sizes = [1, 8], strides = [1, 1]} : vector<1x144xf32> to vector<1x8xf32>
    %cst_80 = arith.constant dense<0.000000e+00> : vector<1x8xf32>
    %146 = tpu.matmul %137, %103, %cst_80 {dimension_numbers = #tpu.dot_dimension_numbers<[1], [0], [0], [1], [0, 0, 1, 1], [], []>} : vector<1x8xf32>, vector<8x8xf32>, vector<1x8xf32> -> vector<1x8xf32>
    %147 = arith.addf %145, %146 : vector<1x8xf32>
    %cst_81 = arith.constant 0.000000e+00 : f32
    %148 = vector.broadcast %cst_81 : f32 to vector<1x8xf32>
    %149 = arith.maximumf %147, %148 : vector<1x8xf32>
    %cst_82 = arith.constant dense<0.000000e+00> : vector<1x8xf32>
    %150 = tpu.matmul %143, %105, %cst_82 {dimension_numbers = #tpu.dot_dimension_numbers<[1], [0], [0], [1], [0, 0, 1, 1], [], []>} : vector<1x8xf32>, vector<8x8xf32>, vector<1x8xf32> -> vector<1x8xf32>
    %151 = arith.addf %150, %106 : vector<1x8xf32>
    %cst_83 = arith.constant dense<0.000000e+00> : vector<1x8xf32>
    %152 = tpu.matmul %149, %104, %cst_83 {dimension_numbers = #tpu.dot_dimension_numbers<[1], [0], [0], [1], [0, 0, 1, 1], [], []>} : vector<1x8xf32>, vector<8x8xf32>, vector<1x8xf32> -> vector<1x8xf32>
    %153 = arith.addf %152, %151 : vector<1x8xf32>
    %cst_84 = arith.constant 0.000000e+00 : f32
    %154 = vector.broadcast %cst_84 : f32 to vector<1x8xf32>
    %155 = arith.maximumf %153, %154 : vector<1x8xf32>
    %c3 = arith.constant 3 : index
    %c0_85 = arith.constant 0 : index
    %156 = vector.load %arg23[%c3, %c0_85] : memref<18x8xf32, #tpu.memory_space<vmem>>, vector<1x8xf32>
    tpu.vector_store %arg23[%c3, %c0_85], %155 {strides = array<i32>} : memref<18x8xf32, #tpu.memory_space<vmem>>, vector<1x8xf32>,
    %157 = vector.extract_strided_slice %102 {offsets = [0, 32], sizes = [1, 8], strides = [1, 1]} : vector<1x144xf32> to vector<1x8xf32>
    %cst_86 = arith.constant dense<0.000000e+00> : vector<1x8xf32>
    %158 = tpu.matmul %149, %103, %cst_86 {dimension_numbers = #tpu.dot_dimension_numbers<[1], [0], [0], [1], [0, 0, 1, 1], [], []>} : vector<1x8xf32>, vector<8x8xf32>, vector<1x8xf32> -> vector<1x8xf32>
    %159 = arith.addf %157, %158 : vector<1x8xf32>
    %cst_87 = arith.constant 0.000000e+00 : f32
    %160 = vector.broadcast %cst_87 : f32 to vector<1x8xf32>
    %161 = arith.maximumf %159, %160 : vector<1x8xf32>
    %cst_88 = arith.constant dense<0.000000e+00> : vector<1x8xf32>
    %162 = tpu.matmul %155, %105, %cst_88 {dimension_numbers = #tpu.dot_dimension_numbers<[1], [0], [0], [1], [0, 0, 1, 1], [], []>} : vector<1x8xf32>, vector<8x8xf32>, vector<1x8xf32> -> vector<1x8xf32>
    %163 = arith.addf %162, %106 : vector<1x8xf32>
    %cst_89 = arith.constant dense<0.000000e+00> : vector<1x8xf32>
    %164 = tpu.matmul %161, %104, %cst_89 {dimension_numbers = #tpu.dot_dimension_numbers<[1], [0], [0], [1], [0, 0, 1, 1], [], []>} : vector<1x8xf32>, vector<8x8xf32>, vector<1x8xf32> -> vector<1x8xf32>
    %165 = arith.addf %164, %163 : vector<1x8xf32>
    %cst_90 = arith.constant 0.000000e+00 : f32
    %166 = vector.broadcast %cst_90 : f32 to vector<1x8xf32>
    %167 = arith.maximumf %165, %166 : vector<1x8xf32>
    %c4 = arith.constant 4 : index
    %c0_91 = arith.constant 0 : index
    %168 = vector.load %arg23[%c4, %c0_91] : memref<18x8xf32, #tpu.memory_space<vmem>>, vector<1x8xf32>
    tpu.vector_store %arg23[%c4, %c0_91], %167 {strides = array<i32>} : memref<18x8xf32, #tpu.memory_space<vmem>>, vector<1x8xf32>,
    %169 = vector.extract_strided_slice %102 {offsets = [0, 40], sizes = [1, 8], strides = [1, 1]} : vector<1x144xf32> to vector<1x8xf32>
    %cst_92 = arith.constant dense<0.000000e+00> : vector<1x8xf32>
    %170 = tpu.matmul %161, %103, %cst_92 {dimension_numbers = #tpu.dot_dimension_numbers<[1], [0], [0], [1], [0, 0, 1, 1], [], []>} : vector<1x8xf32>, vector<8x8xf32>, vector<1x8xf32> -> vector<1x8xf32>
    %171 = arith.addf %169, %170 : vector<1x8xf32>
    %cst_93 = arith.constant 0.000000e+00 : f32
    %172 = vector.broadcast %cst_93 : f32 to vector<1x8xf32>
    %173 = arith.maximumf %171, %172 : vector<1x8xf32>
    %cst_94 = arith.constant dense<0.000000e+00> : vector<1x8xf32>
    %174 = tpu.matmul %167, %105, %cst_94 {dimension_numbers = #tpu.dot_dimension_numbers<[1], [0], [0], [1], [0, 0, 1, 1], [], []>} : vector<1x8xf32>, vector<8x8xf32>, vector<1x8xf32> -> vector<1x8xf32>
    %175 = arith.addf %174, %106 : vector<1x8xf32>
    %cst_95 = arith.constant dense<0.000000e+00> : vector<1x8xf32>
    %176 = tpu.matmul %173, %104, %cst_95 {dimension_numbers = #tpu.dot_dimension_numbers<[1], [0], [0], [1], [0, 0, 1, 1], [], []>} : vector<1x8xf32>, vector<8x8xf32>, vector<1x8xf32> -> vector<1x8xf32>
    %177 = arith.addf %176, %175 : vector<1x8xf32>
    %cst_96 = arith.constant 0.000000e+00 : f32
    %178 = vector.broadcast %cst_96 : f32 to vector<1x8xf32>
    %179 = arith.maximumf %177, %178 : vector<1x8xf32>
    %c5 = arith.constant 5 : index
    %c0_97 = arith.constant 0 : index
    %180 = vector.load %arg23[%c5, %c0_97] : memref<18x8xf32, #tpu.memory_space<vmem>>, vector<1x8xf32>
    tpu.vector_store %arg23[%c5, %c0_97], %179 {strides = array<i32>} : memref<18x8xf32, #tpu.memory_space<vmem>>, vector<1x8xf32>,
    %181 = vector.extract_strided_slice %102 {offsets = [0, 48], sizes = [1, 8], strides = [1, 1]} : vector<1x144xf32> to vector<1x8xf32>
    %cst_98 = arith.constant dense<0.000000e+00> : vector<1x8xf32>
    %182 = tpu.matmul %173, %103, %cst_98 {dimension_numbers = #tpu.dot_dimension_numbers<[1], [0], [0], [1], [0, 0, 1, 1], [], []>} : vector<1x8xf32>, vector<8x8xf32>, vector<1x8xf32> -> vector<1x8xf32>
    %183 = arith.addf %181, %182 : vector<1x8xf32>
    %cst_99 = arith.constant 0.000000e+00 : f32
    %184 = vector.broadcast %cst_99 : f32 to vector<1x8xf32>
    %185 = arith.maximumf %183, %184 : vector<1x8xf32>
    %cst_100 = arith.constant dense<0.000000e+00> : vector<1x8xf32>
    %186 = tpu.matmul %179, %105, %cst_100 {dimension_numbers = #tpu.dot_dimension_numbers<[1], [0], [0], [1], [0, 0, 1, 1], [], []>} : vector<1x8xf32>, vector<8x8xf32>, vector<1x8xf32> -> vector<1x8xf32>
    %187 = arith.addf %186, %106 : vector<1x8xf32>
    %cst_101 = arith.constant dense<0.000000e+00> : vector<1x8xf32>
    %188 = tpu.matmul %185, %104, %cst_101 {dimension_numbers = #tpu.dot_dimension_numbers<[1], [0], [0], [1], [0, 0, 1, 1], [], []>} : vector<1x8xf32>, vector<8x8xf32>, vector<1x8xf32> -> vector<1x8xf32>
    %189 = arith.addf %188, %187 : vector<1x8xf32>
    %cst_102 = arith.constant 0.000000e+00 : f32
    %190 = vector.broadcast %cst_102 : f32 to vector<1x8xf32>
    %191 = arith.maximumf %189, %190 : vector<1x8xf32>
    %c6 = arith.constant 6 : index
    %c0_103 = arith.constant 0 : index
    %192 = vector.load %arg23[%c6, %c0_103] : memref<18x8xf32, #tpu.memory_space<vmem>>, vector<1x8xf32>
    tpu.vector_store %arg23[%c6, %c0_103], %191 {strides = array<i32>} : memref<18x8xf32, #tpu.memory_space<vmem>>, vector<1x8xf32>,
    %193 = vector.extract_strided_slice %102 {offsets = [0, 56], sizes = [1, 8], strides = [1, 1]} : vector<1x144xf32> to vector<1x8xf32>
    %cst_104 = arith.constant dense<0.000000e+00> : vector<1x8xf32>
    %194 = tpu.matmul %185, %103, %cst_104 {dimension_numbers = #tpu.dot_dimension_numbers<[1], [0], [0], [1], [0, 0, 1, 1], [], []>} : vector<1x8xf32>, vector<8x8xf32>, vector<1x8xf32> -> vector<1x8xf32>
    %195 = arith.addf %193, %194 : vector<1x8xf32>
    %cst_105 = arith.constant 0.000000e+00 : f32
    %196 = vector.broadcast %cst_105 : f32 to vector<1x8xf32>
    %197 = arith.maximumf %195, %196 : vector<1x8xf32>
    %cst_106 = arith.constant dense<0.000000e+00> : vector<1x8xf32>
    %198 = tpu.matmul %191, %105, %cst_106 {dimension_numbers = #tpu.dot_dimension_numbers<[1], [0], [0], [1], [0, 0, 1, 1], [], []>} : vector<1x8xf32>, vector<8x8xf32>, vector<1x8xf32> -> vector<1x8xf32>
    %199 = arith.addf %198, %106 : vector<1x8xf32>
    %cst_107 = arith.constant dense<0.000000e+00> : vector<1x8xf32>
    %200 = tpu.matmul %197, %104, %cst_107 {dimension_numbers = #tpu.dot_dimension_numbers<[1], [0], [0], [1], [0, 0, 1, 1], [], []>} : vector<1x8xf32>, vector<8x8xf32>, vector<1x8xf32> -> vector<1x8xf32>
    %201 = arith.addf %200, %199 : vector<1x8xf32>
    %cst_108 = arith.constant 0.000000e+00 : f32
    %202 = vector.broadcast %cst_108 : f32 to vector<1x8xf32>
    %203 = arith.maximumf %201, %202 : vector<1x8xf32>
    %c7 = arith.constant 7 : index
    %c0_109 = arith.constant 0 : index
    %204 = vector.load %arg23[%c7, %c0_109] : memref<18x8xf32, #tpu.memory_space<vmem>>, vector<1x8xf32>
    tpu.vector_store %arg23[%c7, %c0_109], %203 {strides = array<i32>} : memref<18x8xf32, #tpu.memory_space<vmem>>, vector<1x8xf32>,
    %205 = vector.extract_strided_slice %102 {offsets = [0, 64], sizes = [1, 8], strides = [1, 1]} : vector<1x144xf32> to vector<1x8xf32>
    %cst_110 = arith.constant dense<0.000000e+00> : vector<1x8xf32>
    %206 = tpu.matmul %197, %103, %cst_110 {dimension_numbers = #tpu.dot_dimension_numbers<[1], [0], [0], [1], [0, 0, 1, 1], [], []>} : vector<1x8xf32>, vector<8x8xf32>, vector<1x8xf32> -> vector<1x8xf32>
    %207 = arith.addf %205, %206 : vector<1x8xf32>
    %cst_111 = arith.constant 0.000000e+00 : f32
    %208 = vector.broadcast %cst_111 : f32 to vector<1x8xf32>
    %209 = arith.maximumf %207, %208 : vector<1x8xf32>
    %cst_112 = arith.constant dense<0.000000e+00> : vector<1x8xf32>
    %210 = tpu.matmul %203, %105, %cst_112 {dimension_numbers = #tpu.dot_dimension_numbers<[1], [0], [0], [1], [0, 0, 1, 1], [], []>} : vector<1x8xf32>, vector<8x8xf32>, vector<1x8xf32> -> vector<1x8xf32>
    %211 = arith.addf %210, %106 : vector<1x8xf32>
    %cst_113 = arith.constant dense<0.000000e+00> : vector<1x8xf32>
    %212 = tpu.matmul %209, %104, %cst_113 {dimension_numbers = #tpu.dot_dimension_numbers<[1], [0], [0], [1], [0, 0, 1, 1], [], []>} : vector<1x8xf32>, vector<8x8xf32>, vector<1x8xf32> -> vector<1x8xf32>
    %213 = arith.addf %212, %211 : vector<1x8xf32>
    %cst_114 = arith.constant 0.000000e+00 : f32
    %214 = vector.broadcast %cst_114 : f32 to vector<1x8xf32>
    %215 = arith.maximumf %213, %214 : vector<1x8xf32>
    %c8 = arith.constant 8 : index
    %c0_115 = arith.constant 0 : index
    %216 = vector.load %arg23[%c8, %c0_115] : memref<18x8xf32, #tpu.memory_space<vmem>>, vector<1x8xf32>
    tpu.vector_store %arg23[%c8, %c0_115], %215 {strides = array<i32>} : memref<18x8xf32, #tpu.memory_space<vmem>>, vector<1x8xf32>,
    %217 = vector.extract_strided_slice %102 {offsets = [0, 72], sizes = [1, 8], strides = [1, 1]} : vector<1x144xf32> to vector<1x8xf32>
    %cst_116 = arith.constant dense<0.000000e+00> : vector<1x8xf32>
    %218 = tpu.matmul %209, %103, %cst_116 {dimension_numbers = #tpu.dot_dimension_numbers<[1], [0], [0], [1], [0, 0, 1, 1], [], []>} : vector<1x8xf32>, vector<8x8xf32>, vector<1x8xf32> -> vector<1x8xf32>
    %219 = arith.addf %217, %218 : vector<1x8xf32>
    %cst_117 = arith.constant 0.000000e+00 : f32
    %220 = vector.broadcast %cst_117 : f32 to vector<1x8xf32>
    %221 = arith.maximumf %219, %220 : vector<1x8xf32>
    %cst_118 = arith.constant dense<0.000000e+00> : vector<1x8xf32>
    %222 = tpu.matmul %215, %105, %cst_118 {dimension_numbers = #tpu.dot_dimension_numbers<[1], [0], [0], [1], [0, 0, 1, 1], [], []>} : vector<1x8xf32>, vector<8x8xf32>, vector<1x8xf32> -> vector<1x8xf32>
    %223 = arith.addf %222, %106 : vector<1x8xf32>
    %cst_119 = arith.constant dense<0.000000e+00> : vector<1x8xf32>
    %224 = tpu.matmul %221, %104, %cst_119 {dimension_numbers = #tpu.dot_dimension_numbers<[1], [0], [0], [1], [0, 0, 1, 1], [], []>} : vector<1x8xf32>, vector<8x8xf32>, vector<1x8xf32> -> vector<1x8xf32>
    %225 = arith.addf %224, %223 : vector<1x8xf32>
    %cst_120 = arith.constant 0.000000e+00 : f32
    %226 = vector.broadcast %cst_120 : f32 to vector<1x8xf32>
    %227 = arith.maximumf %225, %226 : vector<1x8xf32>
    %c9 = arith.constant 9 : index
    %c0_121 = arith.constant 0 : index
    %228 = vector.load %arg23[%c9, %c0_121] : memref<18x8xf32, #tpu.memory_space<vmem>>, vector<1x8xf32>
    tpu.vector_store %arg23[%c9, %c0_121], %227 {strides = array<i32>} : memref<18x8xf32, #tpu.memory_space<vmem>>, vector<1x8xf32>,
    %229 = vector.extract_strided_slice %102 {offsets = [0, 80], sizes = [1, 8], strides = [1, 1]} : vector<1x144xf32> to vector<1x8xf32>
    %cst_122 = arith.constant dense<0.000000e+00> : vector<1x8xf32>
    %230 = tpu.matmul %221, %103, %cst_122 {dimension_numbers = #tpu.dot_dimension_numbers<[1], [0], [0], [1], [0, 0, 1, 1], [], []>} : vector<1x8xf32>, vector<8x8xf32>, vector<1x8xf32> -> vector<1x8xf32>
    %231 = arith.addf %229, %230 : vector<1x8xf32>
    %cst_123 = arith.constant 0.000000e+00 : f32
    %232 = vector.broadcast %cst_123 : f32 to vector<1x8xf32>
    %233 = arith.maximumf %231, %232 : vector<1x8xf32>
    %cst_124 = arith.constant dense<0.000000e+00> : vector<1x8xf32>
    %234 = tpu.matmul %227, %105, %cst_124 {dimension_numbers = #tpu.dot_dimension_numbers<[1], [0], [0], [1], [0, 0, 1, 1], [], []>} : vector<1x8xf32>, vector<8x8xf32>, vector<1x8xf32> -> vector<1x8xf32>
    %235 = arith.addf %234, %106 : vector<1x8xf32>
    %cst_125 = arith.constant dense<0.000000e+00> : vector<1x8xf32>
    %236 = tpu.matmul %233, %104, %cst_125 {dimension_numbers = #tpu.dot_dimension_numbers<[1], [0], [0], [1], [0, 0, 1, 1], [], []>} : vector<1x8xf32>, vector<8x8xf32>, vector<1x8xf32> -> vector<1x8xf32>
    %237 = arith.addf %236, %235 : vector<1x8xf32>
    %cst_126 = arith.constant 0.000000e+00 : f32
    %238 = vector.broadcast %cst_126 : f32 to vector<1x8xf32>
    %239 = arith.maximumf %237, %238 : vector<1x8xf32>
    %c10 = arith.constant 10 : index
    %c0_127 = arith.constant 0 : index
    %240 = vector.load %arg23[%c10, %c0_127] : memref<18x8xf32, #tpu.memory_space<vmem>>, vector<1x8xf32>
    tpu.vector_store %arg23[%c10, %c0_127], %239 {strides = array<i32>} : memref<18x8xf32, #tpu.memory_space<vmem>>, vector<1x8xf32>,
    %241 = vector.extract_strided_slice %102 {offsets = [0, 88], sizes = [1, 8], strides = [1, 1]} : vector<1x144xf32> to vector<1x8xf32>
    %cst_128 = arith.constant dense<0.000000e+00> : vector<1x8xf32>
    %242 = tpu.matmul %233, %103, %cst_128 {dimension_numbers = #tpu.dot_dimension_numbers<[1], [0], [0], [1], [0, 0, 1, 1], [], []>} : vector<1x8xf32>, vector<8x8xf32>, vector<1x8xf32> -> vector<1x8xf32>
    %243 = arith.addf %241, %242 : vector<1x8xf32>
    %cst_129 = arith.constant 0.000000e+00 : f32
    %244 = vector.broadcast %cst_129 : f32 to vector<1x8xf32>
    %245 = arith.maximumf %243, %244 : vector<1x8xf32>
    %cst_130 = arith.constant dense<0.000000e+00> : vector<1x8xf32>
    %246 = tpu.matmul %239, %105, %cst_130 {dimension_numbers = #tpu.dot_dimension_numbers<[1], [0], [0], [1], [0, 0, 1, 1], [], []>} : vector<1x8xf32>, vector<8x8xf32>, vector<1x8xf32> -> vector<1x8xf32>
    %247 = arith.addf %246, %106 : vector<1x8xf32>
    %cst_131 = arith.constant dense<0.000000e+00> : vector<1x8xf32>
    %248 = tpu.matmul %245, %104, %cst_131 {dimension_numbers = #tpu.dot_dimension_numbers<[1], [0], [0], [1], [0, 0, 1, 1], [], []>} : vector<1x8xf32>, vector<8x8xf32>, vector<1x8xf32> -> vector<1x8xf32>
    %249 = arith.addf %248, %247 : vector<1x8xf32>
    %cst_132 = arith.constant 0.000000e+00 : f32
    %250 = vector.broadcast %cst_132 : f32 to vector<1x8xf32>
    %251 = arith.maximumf %249, %250 : vector<1x8xf32>
    %c11 = arith.constant 11 : index
    %c0_133 = arith.constant 0 : index
    %252 = vector.load %arg23[%c11, %c0_133] : memref<18x8xf32, #tpu.memory_space<vmem>>, vector<1x8xf32>
    tpu.vector_store %arg23[%c11, %c0_133], %251 {strides = array<i32>} : memref<18x8xf32, #tpu.memory_space<vmem>>, vector<1x8xf32>,
    %253 = vector.extract_strided_slice %102 {offsets = [0, 96], sizes = [1, 8], strides = [1, 1]} : vector<1x144xf32> to vector<1x8xf32>
    %cst_134 = arith.constant dense<0.000000e+00> : vector<1x8xf32>
    %254 = tpu.matmul %245, %103, %cst_134 {dimension_numbers = #tpu.dot_dimension_numbers<[1], [0], [0], [1], [0, 0, 1, 1], [], []>} : vector<1x8xf32>, vector<8x8xf32>, vector<1x8xf32> -> vector<1x8xf32>
    %255 = arith.addf %253, %254 : vector<1x8xf32>
    %cst_135 = arith.constant 0.000000e+00 : f32
    %256 = vector.broadcast %cst_135 : f32 to vector<1x8xf32>
    %257 = arith.maximumf %255, %256 : vector<1x8xf32>
    %cst_136 = arith.constant dense<0.000000e+00> : vector<1x8xf32>
    %258 = tpu.matmul %251, %105, %cst_136 {dimension_numbers = #tpu.dot_dimension_numbers<[1], [0], [0], [1], [0, 0, 1, 1], [], []>} : vector<1x8xf32>, vector<8x8xf32>, vector<1x8xf32> -> vector<1x8xf32>
    %259 = arith.addf %258, %106 : vector<1x8xf32>
    %cst_137 = arith.constant dense<0.000000e+00> : vector<1x8xf32>
    %260 = tpu.matmul %257, %104, %cst_137 {dimension_numbers = #tpu.dot_dimension_numbers<[1], [0], [0], [1], [0, 0, 1, 1], [], []>} : vector<1x8xf32>, vector<8x8xf32>, vector<1x8xf32> -> vector<1x8xf32>
    %261 = arith.addf %260, %259 : vector<1x8xf32>
    %cst_138 = arith.constant 0.000000e+00 : f32
    %262 = vector.broadcast %cst_138 : f32 to vector<1x8xf32>
    %263 = arith.maximumf %261, %262 : vector<1x8xf32>
    %c12 = arith.constant 12 : index
    %c0_139 = arith.constant 0 : index
    %264 = vector.load %arg23[%c12, %c0_139] : memref<18x8xf32, #tpu.memory_space<vmem>>, vector<1x8xf32>
    tpu.vector_store %arg23[%c12, %c0_139], %263 {strides = array<i32>} : memref<18x8xf32, #tpu.memory_space<vmem>>, vector<1x8xf32>,
    %265 = vector.extract_strided_slice %102 {offsets = [0, 104], sizes = [1, 8], strides = [1, 1]} : vector<1x144xf32> to vector<1x8xf32>
    %cst_140 = arith.constant dense<0.000000e+00> : vector<1x8xf32>
    %266 = tpu.matmul %257, %103, %cst_140 {dimension_numbers = #tpu.dot_dimension_numbers<[1], [0], [0], [1], [0, 0, 1, 1], [], []>} : vector<1x8xf32>, vector<8x8xf32>, vector<1x8xf32> -> vector<1x8xf32>
    %267 = arith.addf %265, %266 : vector<1x8xf32>
    %cst_141 = arith.constant 0.000000e+00 : f32
    %268 = vector.broadcast %cst_141 : f32 to vector<1x8xf32>
    %269 = arith.maximumf %267, %268 : vector<1x8xf32>
    %cst_142 = arith.constant dense<0.000000e+00> : vector<1x8xf32>
    %270 = tpu.matmul %263, %105, %cst_142 {dimension_numbers = #tpu.dot_dimension_numbers<[1], [0], [0], [1], [0, 0, 1, 1], [], []>} : vector<1x8xf32>, vector<8x8xf32>, vector<1x8xf32> -> vector<1x8xf32>
    %271 = arith.addf %270, %106 : vector<1x8xf32>
    %cst_143 = arith.constant dense<0.000000e+00> : vector<1x8xf32>
    %272 = tpu.matmul %269, %104, %cst_143 {dimension_numbers = #tpu.dot_dimension_numbers<[1], [0], [0], [1], [0, 0, 1, 1], [], []>} : vector<1x8xf32>, vector<8x8xf32>, vector<1x8xf32> -> vector<1x8xf32>
    %273 = arith.addf %272, %271 : vector<1x8xf32>
    %cst_144 = arith.constant 0.000000e+00 : f32
    %274 = vector.broadcast %cst_144 : f32 to vector<1x8xf32>
    %275 = arith.maximumf %273, %274 : vector<1x8xf32>
    %c13 = arith.constant 13 : index
    %c0_145 = arith.constant 0 : index
    %276 = vector.load %arg23[%c13, %c0_145] : memref<18x8xf32, #tpu.memory_space<vmem>>, vector<1x8xf32>
    tpu.vector_store %arg23[%c13, %c0_145], %275 {strides = array<i32>} : memref<18x8xf32, #tpu.memory_space<vmem>>, vector<1x8xf32>,
    %277 = vector.extract_strided_slice %102 {offsets = [0, 112], sizes = [1, 8], strides = [1, 1]} : vector<1x144xf32> to vector<1x8xf32>
    %cst_146 = arith.constant dense<0.000000e+00> : vector<1x8xf32>
    %278 = tpu.matmul %269, %103, %cst_146 {dimension_numbers = #tpu.dot_dimension_numbers<[1], [0], [0], [1], [0, 0, 1, 1], [], []>} : vector<1x8xf32>, vector<8x8xf32>, vector<1x8xf32> -> vector<1x8xf32>
    %279 = arith.addf %277, %278 : vector<1x8xf32>
    %cst_147 = arith.constant 0.000000e+00 : f32
    %280 = vector.broadcast %cst_147 : f32 to vector<1x8xf32>
    %281 = arith.maximumf %279, %280 : vector<1x8xf32>
    %cst_148 = arith.constant dense<0.000000e+00> : vector<1x8xf32>
    %282 = tpu.matmul %275, %105, %cst_148 {dimension_numbers = #tpu.dot_dimension_numbers<[1], [0], [0], [1], [0, 0, 1, 1], [], []>} : vector<1x8xf32>, vector<8x8xf32>, vector<1x8xf32> -> vector<1x8xf32>
    %283 = arith.addf %282, %106 : vector<1x8xf32>
    %cst_149 = arith.constant dense<0.000000e+00> : vector<1x8xf32>
    %284 = tpu.matmul %281, %104, %cst_149 {dimension_numbers = #tpu.dot_dimension_numbers<[1], [0], [0], [1], [0, 0, 1, 1], [], []>} : vector<1x8xf32>, vector<8x8xf32>, vector<1x8xf32> -> vector<1x8xf32>
    %285 = arith.addf %284, %283 : vector<1x8xf32>
    %cst_150 = arith.constant 0.000000e+00 : f32
    %286 = vector.broadcast %cst_150 : f32 to vector<1x8xf32>
    %287 = arith.maximumf %285, %286 : vector<1x8xf32>
    %c14 = arith.constant 14 : index
    %c0_151 = arith.constant 0 : index
    %288 = vector.load %arg23[%c14, %c0_151] : memref<18x8xf32, #tpu.memory_space<vmem>>, vector<1x8xf32>
    tpu.vector_store %arg23[%c14, %c0_151], %287 {strides = array<i32>} : memref<18x8xf32, #tpu.memory_space<vmem>>, vector<1x8xf32>,
    %289 = vector.extract_strided_slice %102 {offsets = [0, 120], sizes = [1, 8], strides = [1, 1]} : vector<1x144xf32> to vector<1x8xf32>
    %cst_152 = arith.constant dense<0.000000e+00> : vector<1x8xf32>
    %290 = tpu.matmul %281, %103, %cst_152 {dimension_numbers = #tpu.dot_dimension_numbers<[1], [0], [0], [1], [0, 0, 1, 1], [], []>} : vector<1x8xf32>, vector<8x8xf32>, vector<1x8xf32> -> vector<1x8xf32>
    %291 = arith.addf %289, %290 : vector<1x8xf32>
    %cst_153 = arith.constant 0.000000e+00 : f32
    %292 = vector.broadcast %cst_153 : f32 to vector<1x8xf32>
    %293 = arith.maximumf %291, %292 : vector<1x8xf32>
    %cst_154 = arith.constant dense<0.000000e+00> : vector<1x8xf32>
    %294 = tpu.matmul %287, %105, %cst_154 {dimension_numbers = #tpu.dot_dimension_numbers<[1], [0], [0], [1], [0, 0, 1, 1], [], []>} : vector<1x8xf32>, vector<8x8xf32>, vector<1x8xf32> -> vector<1x8xf32>
    %295 = arith.addf %294, %106 : vector<1x8xf32>
    %cst_155 = arith.constant dense<0.000000e+00> : vector<1x8xf32>
    %296 = tpu.matmul %293, %104, %cst_155 {dimension_numbers = #tpu.dot_dimension_numbers<[1], [0], [0], [1], [0, 0, 1, 1], [], []>} : vector<1x8xf32>, vector<8x8xf32>, vector<1x8xf32> -> vector<1x8xf32>
    %297 = arith.addf %296, %295 : vector<1x8xf32>
    %cst_156 = arith.constant 0.000000e+00 : f32
    %298 = vector.broadcast %cst_156 : f32 to vector<1x8xf32>
    %299 = arith.maximumf %297, %298 : vector<1x8xf32>
    %c15 = arith.constant 15 : index
    %c0_157 = arith.constant 0 : index
    %300 = vector.load %arg23[%c15, %c0_157] : memref<18x8xf32, #tpu.memory_space<vmem>>, vector<1x8xf32>
    tpu.vector_store %arg23[%c15, %c0_157], %299 {strides = array<i32>} : memref<18x8xf32, #tpu.memory_space<vmem>>, vector<1x8xf32>,
    %301 = vector.extract_strided_slice %102 {offsets = [0, 128], sizes = [1, 8], strides = [1, 1]} : vector<1x144xf32> to vector<1x8xf32>
    %cst_158 = arith.constant dense<0.000000e+00> : vector<1x8xf32>
    %302 = tpu.matmul %293, %103, %cst_158 {dimension_numbers = #tpu.dot_dimension_numbers<[1], [0], [0], [1], [0, 0, 1, 1], [], []>} : vector<1x8xf32>, vector<8x8xf32>, vector<1x8xf32> -> vector<1x8xf32>
    %303 = arith.addf %301, %302 : vector<1x8xf32>
    %cst_159 = arith.constant 0.000000e+00 : f32
    %304 = vector.broadcast %cst_159 : f32 to vector<1x8xf32>
    %305 = arith.maximumf %303, %304 : vector<1x8xf32>
    %cst_160 = arith.constant dense<0.000000e+00> : vector<1x8xf32>
    %306 = tpu.matmul %299, %105, %cst_160 {dimension_numbers = #tpu.dot_dimension_numbers<[1], [0], [0], [1], [0, 0, 1, 1], [], []>} : vector<1x8xf32>, vector<8x8xf32>, vector<1x8xf32> -> vector<1x8xf32>
    %307 = arith.addf %306, %106 : vector<1x8xf32>
    %cst_161 = arith.constant dense<0.000000e+00> : vector<1x8xf32>
    %308 = tpu.matmul %305, %104, %cst_161 {dimension_numbers = #tpu.dot_dimension_numbers<[1], [0], [0], [1], [0, 0, 1, 1], [], []>} : vector<1x8xf32>, vector<8x8xf32>, vector<1x8xf32> -> vector<1x8xf32>
    %309 = arith.addf %308, %307 : vector<1x8xf32>
    %cst_162 = arith.constant 0.000000e+00 : f32
    %310 = vector.broadcast %cst_162 : f32 to vector<1x8xf32>
    %311 = arith.maximumf %309, %310 : vector<1x8xf32>
    %c16 = arith.constant 16 : index
    %c0_163 = arith.constant 0 : index
    %312 = vector.load %arg23[%c16, %c0_163] : memref<18x8xf32, #tpu.memory_space<vmem>>, vector<1x8xf32>
    tpu.vector_store %arg23[%c16, %c0_163], %311 {strides = array<i32>} : memref<18x8xf32, #tpu.memory_space<vmem>>, vector<1x8xf32>,
    %313 = vector.extract_strided_slice %102 {offsets = [0, 136], sizes = [1, 8], strides = [1, 1]} : vector<1x144xf32> to vector<1x8xf32>
    %cst_164 = arith.constant dense<0.000000e+00> : vector<1x8xf32>
    %314 = tpu.matmul %305, %103, %cst_164 {dimension_numbers = #tpu.dot_dimension_numbers<[1], [0], [0], [1], [0, 0, 1, 1], [], []>} : vector<1x8xf32>, vector<8x8xf32>, vector<1x8xf32> -> vector<1x8xf32>
    %315 = arith.addf %313, %314 : vector<1x8xf32>
    %cst_165 = arith.constant 0.000000e+00 : f32
    %316 = vector.broadcast %cst_165 : f32 to vector<1x8xf32>
    %317 = arith.maximumf %315, %316 : vector<1x8xf32>
    %cst_166 = arith.constant dense<0.000000e+00> : vector<1x8xf32>
    %318 = tpu.matmul %311, %105, %cst_166 {dimension_numbers = #tpu.dot_dimension_numbers<[1], [0], [0], [1], [0, 0, 1, 1], [], []>} : vector<1x8xf32>, vector<8x8xf32>, vector<1x8xf32> -> vector<1x8xf32>
    %319 = arith.addf %318, %106 : vector<1x8xf32>
    %cst_167 = arith.constant dense<0.000000e+00> : vector<1x8xf32>
    %320 = tpu.matmul %317, %104, %cst_167 {dimension_numbers = #tpu.dot_dimension_numbers<[1], [0], [0], [1], [0, 0, 1, 1], [], []>} : vector<1x8xf32>, vector<8x8xf32>, vector<1x8xf32> -> vector<1x8xf32>
    %321 = arith.addf %320, %319 : vector<1x8xf32>
    %cst_168 = arith.constant 0.000000e+00 : f32
    %322 = vector.broadcast %cst_168 : f32 to vector<1x8xf32>
    %323 = arith.maximumf %321, %322 : vector<1x8xf32>
    %c17 = arith.constant 17 : index
    %c0_169 = arith.constant 0 : index
    %324 = vector.load %arg23[%c17, %c0_169] : memref<18x8xf32, #tpu.memory_space<vmem>>, vector<1x8xf32>
    tpu.vector_store %arg23[%c17, %c0_169], %323 {strides = array<i32>} : memref<18x8xf32, #tpu.memory_space<vmem>>, vector<1x8xf32>,
    %c0_170 = arith.constant 0 : index
    %c0_171 = arith.constant 0 : index
    %325 = vector.load %arg23[%c0_170, %c0_171] : memref<18x8xf32, #tpu.memory_space<vmem>>, vector<18x8xf32>
    %c0_172 = arith.constant 0 : index
    %c0_173 = arith.constant 0 : index
    %326 = vector.load %arg20[%c0_172, %c0_173] : memref<8x4xf32, #tpu.memory_space<vmem>>, vector<8x4xf32>
    %cst_174 = arith.constant dense<0.000000e+00> : vector<18x4xf32>
    %327 = tpu.matmul %325, %326, %cst_174 {dimension_numbers = #tpu.dot_dimension_numbers<[1], [0], [0], [1], [0, 0, 1, 1], [], []>} : vector<18x8xf32>, vector<8x4xf32>, vector<18x4xf32> -> vector<18x4xf32>
    %c0_175 = arith.constant 0 : index
    %c0_176 = arith.constant 0 : index
    %328 = vector.load %arg21[%c0_175, %c0_176] : memref<1x4xf32, #tpu.memory_space<vmem>>, vector<1x4xf32>
    %329 = vector.broadcast %328 : vector<1x4xf32> to vector<18x4xf32>
    %330 = arith.addf %327, %329 : vector<18x4xf32>
    %cst_177 = arith.constant dense<0xFF800000> : vector<4xf32>
    %331 = vector.multi_reduction <maximumf>, %330, %cst_177 [0] : vector<18x4xf32> to vector<4xf32>
    %332 = vector.shape_cast %331 : vector<4xf32> to vector<1x4xf32>
    %333 = vector.broadcast %332 : vector<1x4xf32> to vector<18x4xf32>
    %334 = arith.subf %330, %333 : vector<18x4xf32>
    %335 = math.exp %334 : vector<18x4xf32>
    %cst_178 = arith.constant dense<0.000000e+00> : vector<4xf32>
    %336 = vector.multi_reduction <add>, %335, %cst_178 [0] : vector<18x4xf32> to vector<4xf32>
    %337 = vector.shape_cast %336 : vector<4xf32> to vector<1x4xf32>
    %338 = vector.broadcast %337 : vector<1x4xf32> to vector<18x4xf32>
    %339 = arith.divf %335, %338 : vector<18x4xf32>
    %c0_179 = arith.constant 0 : index
    %c0_180 = arith.constant 0 : index
    %340 = vector.load %arg22[%c0_179, %c0_180] : memref<18x4xf32, #tpu.memory_space<vmem>>, vector<18x4xf32>
    tpu.vector_store %arg22[%c0_179, %c0_180], %339 {strides = array<i32>} : memref<18x4xf32, #tpu.memory_space<vmem>>, vector<18x4xf32>,
    return
  }
}

</mosaic_0001>

<llo_original>
// kernel: tile.8
$region0: #{tile.8}
  #allocation0 [shape = 's32[1]{0}', space=sflag, size = 0x4, scoped, tag = 'scoped memory for tile.8']
  %s0 = inlined_call_operand.vmem [shape: f32[8], index: 0, kind: input, shape index: {}]
  %s1 = inlined_call_operand.vmem [shape: f32[18,8], index: 1, kind: output, shape index: {}]
  // Predicated region
  $region2: #{tile.8} parent=0 // pred_check
    _
  $region3: #{tile.8} parent=0 // pred_check_branch
    %3 = sbr.rel (0) target = $region5
  $region4: #{tile.8} parent=0 // pred_region
    _
  $region5: #{tile.8} parent=0 // pred_fallthru
    _
  %v4 = vld [vmem:[%s0] ss:$0 sm:$0xff]
  %5 = vst [vmem:[%s1] sm:$0xff] %v4
  %s6 = scalar_lea.vmem %s1, 8
  %7 = vst [vmem:[%s6] sm:$0xff] %v4
  %s8 = scalar_lea.vmem %s1, 16
  %9 = vst [vmem:[%s8] sm:$0xff] %v4

// kernel: tile.9
$region0: #{tile.9}
  %s0 = inlined_call_operand.vmem [shape: f32[18,8], index: 0, kind: input, shape index: {}]
  %s1 = inlined_call_operand.vmem [shape: f32[1,144], index: 1, kind: output, shape index: {}]
  $region1: #{tile.9} parent=0
    #allocation0 [shape = 'u8[8192]{0}', space=vmem, size = 0x2000, scoped, tag = 'scoped mem for output reshape']
    %s2 = smov 3
    %v3 = vld [vmem:[%s0] ss:$16 sm:%s2]
    %vm4 = vcmask 64512
    %5 = vst.msk [vmem:[#allocation0] ss:$8 sm:$0x3] %vm4, %v3
    %s6 = scalar_lea.vmem %s0, 15
    %v7 = vld [vmem:[%s6] sm:$0x1]
    %8 = vrot.lane.b32.xlu0 %v7, 120
    %v9 = vpop.permute.xlu0 %8
    %vm10 = vcmask 1048512
    %11 = vst.msk [vmem:[#allocation0] sm:$0x1] %vm10, %v9
    %s12 = scalar_lea.vmem %s0, 14
    %v13 = vld [vmem:[%s12] sm:$0x1]
    %14 = vrot.lane.b32.xlu0 %v13, 112
    %v15 = vpop.permute.xlu0 %14
    %vm16 = vcmask 982912
    %17 = vst.msk [vmem:[#allocation0] sm:$0x1] %vm16, %v15
    %s18 = scalar_lea.vmem %s0, 13
    %v19 = vld [vmem:[%s18] sm:$0x1]
    %20 = vrot.lane.b32.xlu0 %v19, 104
    %v21 = vpop.permute.xlu0 %20
    %vm22 = vcmask 917312
    %23 = vst.msk [vmem:[#allocation0] sm:$0x1] %vm22, %v21
    %s24 = scalar_lea.vmem %s0, 12
    %v25 = vld [vmem:[%s24] sm:$0x1]
    %26 = vrot.lane.b32.xlu0 %v25, 96
    %v27 = vpop.permute.xlu0 %26
    %vm28 = vcmask 851712
    %29 = vst.msk [vmem:[#allocation0] sm:$0x1] %vm28, %v27
    %s30 = scalar_lea.vmem %s0, 11
    %v31 = vld [vmem:[%s30] sm:$0x1]
    %32 = vrot.lane.b32.xlu0 %v31, 88
    %v33 = vpop.permute.xlu0 %32
    %vm34 = vcmask 786112
    %35 = vst.msk [vmem:[#allocation0] sm:$0x1] %vm34, %v33
    %s36 = scalar_lea.vmem %s0, 10
    %v37 = vld [vmem:[%s36] sm:$0x1]
    %38 = vrot.lane.b32.xlu0 %v37, 80
    %v39 = vpop.permute.xlu0 %38
    %vm40 = vcmask 720512
    %41 = vst.msk [vmem:[#allocation0] sm:$0x1] %vm40, %v39
    %s42 = scalar_lea.vmem %s0, 9
    %v43 = vld [vmem:[%s42] sm:$0x1]
    %44 = vrot.lane.b32.xlu0 %v43, 72
    %v45 = vpop.permute.xlu0 %44
    %vm46 = vcmask 654912
    %47 = vst.msk [vmem:[#allocation0] sm:$0x1] %vm46, %v45
    %s48 = scalar_lea.vmem %s0, 8
    %v49 = vld [vmem:[%s48] sm:$0x1]
    %50 = vrot.lane.b32.xlu0 %v49, 64
    %v51 = vpop.permute.xlu0 %50
    %vm52 = vcmask 589312
    %53 = vst.msk [vmem:[#allocation0] sm:$0x1] %vm52, %v51
    %s54 = scalar_lea.vmem %s0, 7
    %v55 = vld [vmem:[%s54] sm:$0x1]
    %56 = vrot.lane.b32.xlu0 %v55, 56
    %v57 = vpop.permute.xlu0 %56
    %vm58 = vcmask 523712
    %59 = vst.msk [vmem:[#allocation0] sm:$0x1] %vm58, %v57
    %s60 = scalar_lea.vmem %s0, 6
    %v61 = vld [vmem:[%s60] sm:$0x1]
    %62 = vrot.lane.b32.xlu0 %v61, 48
    %v63 = vpop.permute.xlu0 %62
    %vm64 = vcmask 458112
    %65 = vst.msk [vmem:[#allocation0] sm:$0x1] %vm64, %v63
    %s66 = scalar_lea.vmem %s0, 5
    %v67 = vld [vmem:[%s66] sm:$0x1]
    %68 = vrot.lane.b32.xlu0 %v67, 40
    %v69 = vpop.permute.xlu0 %68
    %vm70 = vcmask 392512
    %71 = vst.msk [vmem:[#allocation0] sm:$0x1] %vm70, %v69
    %s72 = scalar_lea.vmem %s0, 4
    %v73 = vld [vmem:[%s72] sm:$0x1]
    %74 = vrot.lane.b32.xlu0 %v73, 32
    %v75 = vpop.permute.xlu0 %74
    %vm76 = vcmask 326912
    %77 = vst.msk [vmem:[#allocation0] sm:$0x1] %vm76, %v75
    %s78 = scalar_lea.vmem %s0, 3
    %v79 = vld [vmem:[%s78] sm:$0x1]
    %80 = vrot.lane.b32.xlu0 %v79, 24
    %v81 = vpop.permute.xlu0 %80
    %vm82 = vcmask 261312
    %83 = vst.msk [vmem:[#allocation0] sm:$0x1] %vm82, %v81
    %s84 = scalar_lea.vmem %s0, 2
    %v85 = vld [vmem:[%s84] sm:$0x1]
    %86 = vrot.lane.b32.xlu0 %v85, 16
    %v87 = vpop.permute.xlu0 %86
    %vm88 = vcmask 195712
    %89 = vst.msk [vmem:[#allocation0] sm:$0x1] %vm88, %v87
    %s90 = scalar_lea.vmem %s0, 1
    %s91 = smov 3
    %v92 = vld [vmem:[%s90] ss:$16 sm:%s91]
    %93 = vrot.lane.b32.xlu0 %v92, 8
    %v94 = vpop.permute.xlu0 %93
    %vm95 = vcmask 130112
    %96 = vst.msk [vmem:[#allocation0] ss:$8 sm:$0x3] %vm95, %v94
    %s98 = sshllo.u32 0, 1
    %v100 = vld [vmem:[#allocation0] sm:%s98]
    %s101 = sshllo.u32 0, 1
    %102 = vst [vmem:[%s1] sm:%s101] %v100
    %s103 = scalar_lea.vmem [#allocation0], 8
    %v104 = vld [vmem:[%s103] sm:%s98]
    %s105 = sshllo.u32 0, 1
    %s106 = scalar_lea.vmem %s1, 1
    %107 = vst [vmem:[%s106] sm:%s105] %v104

// kernel: cnn_forward.1
$region0: #{cnn_forward.1}
  #allocation0 [shape = 'u32[]', space=smem, size = 0x4, offset = 0x4, fixed_abs, tag = 'smem constant byte address 0x4 - core index']
  #allocation1 [shape = 'u32[144,128]{1,0:T(1,128)}', space=vmem, size = 0x12000, scoped, tag = 'internal scratch']
  #allocation2 [shape = 'f32[18,8]{1,0:T(8,128)}', space=vmem, size = 0x3000, scoped, tag = 'scratch operand']
  %s0 = inlined_call_operand.vmem [shape: bf16[451,496], index: 0, kind: input, shape index: {}]
  %s1 = inlined_call_operand.vmem [shape: bf16[8,451], index: 1, kind: input, shape index: {}]
  %s2 = inlined_call_operand.vmem [shape: f32[8,1], index: 2, kind: input, shape index: {}]
  %s3 = inlined_call_operand.vmem [shape: f32[8,1], index: 3, kind: input, shape index: {}]
  %s4 = inlined_call_operand.vmem [shape: f32[8,1], index: 4, kind: input, shape index: {}]
  %s5 = inlined_call_operand.vmem [shape: bf16[44,168], index: 5, kind: input, shape index: {}]
  %s6 = inlined_call_operand.vmem [shape: f32[4,1], index: 6, kind: input, shape index: {}]
  %s7 = inlined_call_operand.vmem [shape: f32[4,1], index: 7, kind: input, shape index: {}]
  %s8 = inlined_call_operand.vmem [shape: f32[4,1], index: 8, kind: input, shape index: {}]
  %s9 = inlined_call_operand.vmem [shape: f32[96,198], index: 9, kind: input, shape index: {}]
  %s10 = inlined_call_operand.vmem [shape: f32[44,198], index: 10, kind: input, shape index: {}]
  %s11 = inlined_call_operand.vmem [shape: f32[4,44], index: 11, kind: input, shape index: {}]
  %s12 = inlined_call_operand.vmem [shape: f32[198,18], index: 12, kind: input, shape index: {}]
  %s13 = inlined_call_operand.vmem [shape: f32[4,72], index: 13, kind: input, shape index: {}]
  %s14 = inlined_call_operand.vmem [shape: f32[72,144], index: 14, kind: input, shape index: {}]
  %s15 = inlined_call_operand.vmem [shape: f32[1,144], index: 15, kind: input, shape index: {}]
  %s16 = inlined_call_operand.vmem [shape: f32[8,8], index: 16, kind: input, shape index: {}]
  %s17 = inlined_call_operand.vmem [shape: f32[8,8], index: 17, kind: input, shape index: {}]
  %s18 = inlined_call_operand.vmem [shape: f32[8,8], index: 18, kind: input, shape index: {}]
  %s19 = inlined_call_operand.vmem [shape: f32[1,8], index: 19, kind: input, shape index: {}]
  %s20 = inlined_call_operand.vmem [shape: f32[8,4], index: 20, kind: input, shape index: {}]
  %s21 = inlined_call_operand.vmem [shape: f32[1,4], index: 21, kind: input, shape index: {}]
  %s22 = inlined_call_operand.vmem [shape: f32[18,4], index: 22, kind: output, shape index: {}]
  %s23 = sld [smem:[#allocation0]]
  $region98: #{cnn_forward.1} parent=0
    _
  %s25 = ssub.s32 1, %s23
  %s26 = scalar_select 0, %s25, %s23
  // Predicated region
  $region2: #{cnn_forward.1} parent=0 // pred_check
    _
  $region3: #{cnn_forward.1} parent=0 // pred_check_branch
    %28 = sbr.rel (0) target = $region5
  $region4: #{cnn_forward.1} parent=0 // pred_region
    _
  $region5: #{cnn_forward.1} parent=0 // pred_fallthru
    _
  // Predicated region
  $region6: #{cnn_forward.1} parent=0 // pred_check
    _
  $region7: #{cnn_forward.1} parent=0 // pred_check_branch
    %30 = sbr.rel (0) target = $region9
  $region8: #{cnn_forward.1} parent=0 // pred_region
    _
  $region9: #{cnn_forward.1} parent=0 // pred_fallthru
    _
  // Predicated region
  $region10: #{cnn_forward.1} parent=0 // pred_check
    _
  $region11: #{cnn_forward.1} parent=0 // pred_check_branch
    %32 = sbr.rel (0) target = $region13
  $region12: #{cnn_forward.1} parent=0 // pred_region
    _
  $region13: #{cnn_forward.1} parent=0 // pred_fallthru
    _
  // Predicated region
  $region14: #{cnn_forward.1} parent=0 // pred_check
    _
  $region15: #{cnn_forward.1} parent=0 // pred_check_branch
    %34 = sbr.rel (0) target = $region17
  $region16: #{cnn_forward.1} parent=0 // pred_region
    _
  $region17: #{cnn_forward.1} parent=0 // pred_fallthru
    _
  // Predicated region
  $region18: #{cnn_forward.1} parent=0 // pred_check
    _
  $region19: #{cnn_forward.1} parent=0 // pred_check_branch
    %36 = sbr.rel (0) target = $region21
  $region20: #{cnn_forward.1} parent=0 // pred_region
    _
  $region21: #{cnn_forward.1} parent=0 // pred_fallthru
    _
  // Predicated region
  $region22: #{cnn_forward.1} parent=0 // pred_check
    _
  $region23: #{cnn_forward.1} parent=0 // pred_check_branch
    %38 = sbr.rel (0) target = $region25
  $region24: #{cnn_forward.1} parent=0 // pred_region
    _
  $region25: #{cnn_forward.1} parent=0 // pred_fallthru
    _
  // Predicated region
  $region26: #{cnn_forward.1} parent=0 // pred_check
    _
  $region27: #{cnn_forward.1} parent=0 // pred_check_branch
    %40 = sbr.rel (0) target = $region29
  $region28: #{cnn_forward.1} parent=0 // pred_region
    _
  $region29: #{cnn_forward.1} parent=0 // pred_fallthru
    _
  // Predicated region
  $region30: #{cnn_forward.1} parent=0 // pred_check
    _
  $region31: #{cnn_forward.1} parent=0 // pred_check_branch
    %42 = sbr.rel (0) target = $region33
  $region32: #{cnn_forward.1} parent=0 // pred_region
    _
  $region33: #{cnn_forward.1} parent=0 // pred_fallthru
    _
  // Predicated region
  $region34: #{cnn_forward.1} parent=0 // pred_check
    _
  $region35: #{cnn_forward.1} parent=0 // pred_check_branch
    %44 = sbr.rel (0) target = $region37
  $region36: #{cnn_forward.1} parent=0 // pred_region
    _
  $region37: #{cnn_forward.1} parent=0 // pred_fallthru
    _
  // Predicated region
  $region38: #{cnn_forward.1} parent=0 // pred_check
    _
  $region39: #{cnn_forward.1} parent=0 // pred_check_branch
    %46 = sbr.rel (0) target = $region41
  $region40: #{cnn_forward.1} parent=0 // pred_region
    _
  $region41: #{cnn_forward.1} parent=0 // pred_fallthru
    _
  // Predicated region
  $region42: #{cnn_forward.1} parent=0 // pred_check
    _
  $region43: #{cnn_forward.1} parent=0 // pred_check_branch
    %48 = sbr.rel (0) target = $region45
  $region44: #{cnn_forward.1} parent=0 // pred_region
    _
  $region45: #{cnn_forward.1} parent=0 // pred_fallthru
    _
  // Predicated region
  $region46: #{cnn_forward.1} parent=0 // pred_check
    _
  $region47: #{cnn_forward.1} parent=0 // pred_check_branch
    %50 = sbr.rel (0) target = $region49
  $region48: #{cnn_forward.1} parent=0 // pred_region
    _
  $region49: #{cnn_forward.1} parent=0 // pred_fallthru
    _
  // Predicated region
  $region50: #{cnn_forward.1} parent=0 // pred_check
    _
  $region51: #{cnn_forward.1} parent=0 // pred_check_branch
    %52 = sbr.rel (0) target = $region53
  $region52: #{cnn_forward.1} parent=0 // pred_region
    _
  $region53: #{cnn_forward.1} parent=0 // pred_fallthru
    _
  // Predicated region
  $region54: #{cnn_forward.1} parent=0 // pred_check
    _
  $region55: #{cnn_forward.1} parent=0 // pred_check_branch
    %54 = sbr.rel (0) target = $region57
  $region56: #{cnn_forward.1} parent=0 // pred_region
    _
  $region57: #{cnn_forward.1} parent=0 // pred_fallthru
    _
  // Predicated region
  $region58: #{cnn_forward.1} parent=0 // pred_check
    _
  $region59: #{cnn_forward.1} parent=0 // pred_check_branch
    %56 = sbr.rel (0) target = $region61
  $region60: #{cnn_forward.1} parent=0 // pred_region
    _
  $region61: #{cnn_forward.1} parent=0 // pred_fallthru
    _
  // Predicated region
  $region62: #{cnn_forward.1} parent=0 // pred_check
    _
  $region63: #{cnn_forward.1} parent=0 // pred_check_branch
    %58 = sbr.rel (0) target = $region65
  $region64: #{cnn_forward.1} parent=0 // pred_region
    _
  $region65: #{cnn_forward.1} parent=0 // pred_fallthru
    _
  // Predicated region
  $region66: #{cnn_forward.1} parent=0 // pred_check
    _
  $region67: #{cnn_forward.1} parent=0 // pred_check_branch
    %60 = sbr.rel (0) target = $region69
  $region68: #{cnn_forward.1} parent=0 // pred_region
    _
  $region69: #{cnn_forward.1} parent=0 // pred_fallthru
    _
  // Predicated region
  $region70: #{cnn_forward.1} parent=0 // pred_check
    _
  $region71: #{cnn_forward.1} parent=0 // pred_check_branch
    %62 = sbr.rel (0) target = $region73
  $region72: #{cnn_forward.1} parent=0 // pred_region
    _
  $region73: #{cnn_forward.1} parent=0 // pred_fallthru
    _
  // Predicated region
  $region74: #{cnn_forward.1} parent=0 // pred_check
    _
  $region75: #{cnn_forward.1} parent=0 // pred_check_branch
    %64 = sbr.rel (0) target = $region77
  $region76: #{cnn_forward.1} parent=0 // pred_region
    _
  $region77: #{cnn_forward.1} parent=0 // pred_fallthru
    _
  // Predicated region
  $region78: #{cnn_forward.1} parent=0 // pred_check
    _
  $region79: #{cnn_forward.1} parent=0 // pred_check_branch
    %66 = sbr.rel (0) target = $region81
  $region80: #{cnn_forward.1} parent=0 // pred_region
    _
  $region81: #{cnn_forward.1} parent=0 // pred_fallthru
    _
  // Predicated region
  $region82: #{cnn_forward.1} parent=0 // pred_check
    _
  $region83: #{cnn_forward.1} parent=0 // pred_check_branch
    %68 = sbr.rel (0) target = $region85
  $region84: #{cnn_forward.1} parent=0 // pred_region
    _
  $region85: #{cnn_forward.1} parent=0 // pred_fallthru
    _
  // Predicated region
  $region86: #{cnn_forward.1} parent=0 // pred_check
    _
  $region87: #{cnn_forward.1} parent=0 // pred_check_branch
    %70 = sbr.rel (0) target = $region89
  $region88: #{cnn_forward.1} parent=0 // pred_region
    _
  $region89: #{cnn_forward.1} parent=0 // pred_fallthru
    _
  %v72 = vld [vmem:[%s1] sm:$0xff]
  %v73 = vld [vmem:[%s1 + $0x8] sm:$0xff]
  %v74 = vld [vmem:[%s0] sm:$0xff]
  %v75 = vld [vmem:[%s0 + $0x8] sm:$0xff]
  %v76 = vld [vmem:[%s0 + $0x10] sm:$0xff]
  %v77 = vld [vmem:[%s0 + $0x18] sm:$0xff]
  %v78 = vld [vmem:[%s0 + $0x20] sm:$0xff]
  %v79 = vld [vmem:[%s0 + $0x28] sm:$0xff]
  %v80 = vld [vmem:[%s0 + $0x30] sm:$0xff]
  %v81 = vld [vmem:[%s0 + $0x38] sm:$0xff]
  %v82 = vld [vmem:[%s0 + $0x40] sm:$0xff]
  %v83 = vld [vmem:[%s0 + $0x48] sm:$0xff]
  %v84 = vld [vmem:[%s0 + $0x50] sm:$0xff]
  %v85 = vld [vmem:[%s0 + $0x58] sm:$0xff]
  %v86 = vld [vmem:[%s0 + $0x60] sm:$0xff]
  %v87 = vld [vmem:[%s0 + $0x68] sm:$0xff]
  %v88 = vld [vmem:[%s0 + $0x70] sm:$0xff]
  %v89 = vld [vmem:[%s0 + $0x78] sm:$0xff]
  %v90 = vld [vmem:[%s0 + $0x80] sm:$0xff]
  %v91 = vld [vmem:[%s0 + $0x88] sm:$0xff]
  %v92 = vld [vmem:[%s0 + $0x90] sm:$0xff]
  %v93 = vld [vmem:[%s0 + $0x98] sm:$0xff]
  %v94 = vld [vmem:[%s0 + $0xa0] sm:$0xff]
  %v95 = vld [vmem:[%s0 + $0xa8] sm:$0xff]
  %v96 = vld [vmem:[%s0 + $0xb0] sm:$0xff]
  %v97 = vld [vmem:[%s0 + $0xb8] sm:$0xff]
  %v98 = vld [vmem:[%s0 + $0xc0] sm:$0xff]
  %v99 = vld [vmem:[%s0 + $0xc8] sm:$0xff]
  %v100 = vld [vmem:[%s0 + $0xd0] sm:$0xff]
  %v101 = vld [vmem:[%s0 + $0xd8] sm:$0xff]
  %v102 = vld [vmem:[%s0 + $0xe0] sm:$0xff]
  %v103 = vld [vmem:[%s0 + $0xe8] sm:$0xff]
  %v104 = vld [vmem:[%s0 + $0xf0] sm:$0xff]
  %v105 = vld [vmem:[%s0 + $0xf8] sm:$0xff]
  %v106 = vld [vmem:[%s0 + $0x100] sm:$0xff]
  %v107 = vld [vmem:[%s0 + $0x108] sm:$0xff]
  %v108 = vld [vmem:[%s0 + $0x110] sm:$0xff]
  %v109 = vld [vmem:[%s0 + $0x118] sm:$0xff]
  %v110 = vld [vmem:[%s0 + $0x120] sm:$0xff]
  %v111 = vld [vmem:[%s0 + $0x128] sm:$0xff]
  %v112 = vld [vmem:[%s0 + $0x130] sm:$0xff]
  %v113 = vld [vmem:[%s0 + $0x138] sm:$0xff]
  %v114 = vld [vmem:[%s0 + $0x140] sm:$0xff]
  %v115 = vld [vmem:[%s0 + $0x148] sm:$0xff]
  %v116 = vld [vmem:[%s0 + $0x150] sm:$0xff]
  %v117 = vld [vmem:[%s0 + $0x158] sm:$0xff]
  %v118 = vld [vmem:[%s0 + $0x160] sm:$0xff]
  %v119 = vld [vmem:[%s0 + $0x168] sm:$0xff]
  %v120 = vld [vmem:[%s0 + $0x170] sm:$0xff]
  %v121 = vld [vmem:[%s0 + $0x178] sm:$0xff]
  %v122 = vld [vmem:[%s0 + $0x180] sm:$0xff]
  %v123 = vld [vmem:[%s0 + $0x188] sm:$0xff]
  %v124 = vld [vmem:[%s0 + $0x190] sm:$0xff]
  %v125 = vld [vmem:[%s0 + $0x198] sm:$0xff]
  %v126 = vld [vmem:[%s0 + $0x1a0] sm:$0xff]
  %v127 = vld [vmem:[%s0 + $0x1a8] sm:$0xff]
  %v128 = vld [vmem:[%s0 + $0x1b0] sm:$0xff]
  %v129 = vld [vmem:[%s0 + $0x1b8] sm:$0xff]
  %v130 = vld [vmem:[%s0 + $0x1c0] sm:$0xff]
  %v131 = vld [vmem:[%s0 + $0x1c8] sm:$0xff]
  %v132 = vld [vmem:[%s0 + $0x1d0] sm:$0xff]
  %v133 = vld [vmem:[%s0 + $0x1d8] sm:$0xff]
  %v134 = vld [vmem:[%s0 + $0x1e0] sm:$0xff]
  %v135 = vld [vmem:[%s0 + $0x1e8] sm:$0xff]
  %v136 = vld [vmem:[%s0 + $0x1f0] sm:$0xff]
  %v137 = vld [vmem:[%s0 + $0x1f8] sm:$0xff]
  %v138 = vld [vmem:[%s0 + $0x200] sm:$0xff]
  %v139 = vld [vmem:[%s0 + $0x208] sm:$0xff]
  %v140 = vld [vmem:[%s0 + $0x210] sm:$0xff]
  %v141 = vld [vmem:[%s0 + $0x218] sm:$0xff]
  %v142 = vld [vmem:[%s0 + $0x220] sm:$0xff]
  %v143 = vld [vmem:[%s0 + $0x228] sm:$0xff]
  %v144 = vld [vmem:[%s0 + $0x230] sm:$0xff]
  %v145 = vld [vmem:[%s0 + $0x238] sm:$0xff]
  %v146 = vld [vmem:[%s0 + $0x240] sm:$0xff]
  %v147 = vld [vmem:[%s0 + $0x248] sm:$0xff]
  %v148 = vld [vmem:[%s0 + $0x250] sm:$0xff]
  %v149 = vld [vmem:[%s0 + $0x258] sm:$0xff]
  %v150 = vld [vmem:[%s0 + $0x260] sm:$0xff]
  %v151 = vld [vmem:[%s0 + $0x268] sm:$0xff]
  %v152 = vld [vmem:[%s0 + $0x270] sm:$0xff]
  %v153 = vld [vmem:[%s0 + $0x278] sm:$0xff]
  %v154 = vld [vmem:[%s0 + $0x280] sm:$0xff]
  %v155 = vld [vmem:[%s0 + $0x288] sm:$0xff]
  %v156 = vld [vmem:[%s0 + $0x290] sm:$0xff]
  %v157 = vld [vmem:[%s0 + $0x298] sm:$0xff]
  %v158 = vld [vmem:[%s0 + $0x2a0] sm:$0xff]
  %v159 = vld [vmem:[%s0 + $0x2a8] sm:$0xff]
  %v160 = vld [vmem:[%s0 + $0x2b0] sm:$0xff]
  %v161 = vld [vmem:[%s0 + $0x2b8] sm:$0xff]
  %v162 = vld [vmem:[%s0 + $0x2c0] sm:$0xff]
  %v163 = vld [vmem:[%s0 + $0x2c8] sm:$0xff]
  %v164 = vld [vmem:[%s0 + $0x2d0] sm:$0xff]
  %v165 = vld [vmem:[%s0 + $0x2d8] sm:$0xff]
  %v166 = vld [vmem:[%s0 + $0x2e0] sm:$0xff]
  %v167 = vld [vmem:[%s0 + $0x2e8] sm:$0xff]
  %v168 = vld [vmem:[%s0 + $0x2f0] sm:$0xff]
  %v169 = vld [vmem:[%s0 + $0x2f8] sm:$0xff]
  %v170 = vld [vmem:[%s0 + $0x300] sm:$0xff]
  %v171 = vld [vmem:[%s0 + $0x308] sm:$0xff]
  %v172 = vld [vmem:[%s0 + $0x310] sm:$0xff]
  %v173 = vld [vmem:[%s0 + $0x318] sm:$0xff]
  %v174 = vld [vmem:[%s0 + $0x320] sm:$0xff]
  %v175 = vld [vmem:[%s0 + $0x328] sm:$0xff]
  %v176 = vld [vmem:[%s0 + $0x330] sm:$0xff]
  %v177 = vld [vmem:[%s0 + $0x338] sm:$0xff]
  %v178 = vld [vmem:[%s0 + $0x340] sm:$0xff]
  %v179 = vld [vmem:[%s0 + $0x348] sm:$0xff]
  %v180 = vld [vmem:[%s0 + $0x350] sm:$0xff]
  %v181 = vld [vmem:[%s0 + $0x358] sm:$0xff]
  %v182 = vld [vmem:[%s0 + $0x360] sm:$0xff]
  %v183 = vld [vmem:[%s0 + $0x368] sm:$0xff]
  %v184 = vld [vmem:[%s0 + $0x370] sm:$0xff]
  %v185 = vld [vmem:[%s0 + $0x378] sm:$0xff]
  %v186 = vld [vmem:[%s0 + $0x380] sm:$0x33]
  %v187 = vld [vmem:[%s0 + $0x388] sm:$0x33]
  %v188 = vld [vmem:[%s2] sm:$0xff]
  %190 = vset.pattern.permute.xlu0 0
  %191 = vperm.xlu0 %190, %v188
  %v192 = vpop.permute.xlu0 %191
  %v196 = vunpack.c.l.b16 %v72
  %v197 = vunpack.c.h.b16 %v72
  %v198 = vunpack.c.l.b16 %v73
  %v199 = vunpack.c.h.b16 %v73
  %v200 = vpack.c.b16 %v196, %v196
  %v201 = vpack.c.b16 %v197, %v197
  %v202 = vpack.c.b16 %v198, %v198
  %v203 = vpack.c.b16 %v199, %v199
  %v321 = vunpack.c.l.b16 %v74
  %v322 = vunpack.c.h.b16 %v74
  %v323 = vunpack.c.l.b16 %v75
  %v324 = vunpack.c.h.b16 %v75
  %v325 = vunpack.c.l.b16 %v76
  %v326 = vunpack.c.h.b16 %v76
  %v327 = vunpack.c.l.b16 %v77
  %v328 = vunpack.c.h.b16 %v77
  %v329 = vunpack.c.l.b16 %v78
  %v330 = vunpack.c.h.b16 %v78
  %v331 = vunpack.c.l.b16 %v79
  %v332 = vunpack.c.h.b16 %v79
  %v333 = vunpack.c.l.b16 %v80
  %v334 = vunpack.c.h.b16 %v80
  %v335 = vunpack.c.l.b16 %v81
  %v336 = vunpack.c.h.b16 %v81
  %v337 = vunpack.c.l.b16 %v82
  %v338 = vunpack.c.h.b16 %v82
  %v339 = vunpack.c.l.b16 %v83
  %v340 = vunpack.c.h.b16 %v83
  %v341 = vunpack.c.l.b16 %v84
  %v342 = vunpack.c.h.b16 %v84
  %v343 = vunpack.c.l.b16 %v85
  %v344 = vunpack.c.h.b16 %v85
  %v345 = vunpack.c.l.b16 %v86
  %v346 = vunpack.c.h.b16 %v86
  %v347 = vunpack.c.l.b16 %v87
  %v348 = vunpack.c.h.b16 %v87
  %v349 = vunpack.c.l.b16 %v88
  %v350 = vunpack.c.h.b16 %v88
  %v351 = vunpack.c.l.b16 %v89
  %v352 = vunpack.c.h.b16 %v89
  %v353 = vunpack.c.l.b16 %v90
  %v354 = vunpack.c.h.b16 %v90
  %v355 = vunpack.c.l.b16 %v91
  %v356 = vunpack.c.h.b16 %v91
  %v357 = vunpack.c.l.b16 %v92
  %v358 = vunpack.c.h.b16 %v92
  %v359 = vunpack.c.l.b16 %v93
  %v360 = vunpack.c.h.b16 %v93
  %v361 = vunpack.c.l.b16 %v94
  %v362 = vunpack.c.h.b16 %v94
  %v363 = vunpack.c.l.b16 %v95
  %v364 = vunpack.c.h.b16 %v95
  %v365 = vunpack.c.l.b16 %v96
  %v366 = vunpack.c.h.b16 %v96
  %v367 = vunpack.c.l.b16 %v97
  %v368 = vunpack.c.h.b16 %v97
  %v369 = vunpack.c.l.b16 %v98
  %v370 = vunpack.c.h.b16 %v98
  %v371 = vunpack.c.l.b16 %v99
  %v372 = vunpack.c.h.b16 %v99
  %v373 = vunpack.c.l.b16 %v100
  %v374 = vunpack.c.h.b16 %v100
  %v375 = vunpack.c.l.b16 %v101
  %v376 = vunpack.c.h.b16 %v101
  %v377 = vunpack.c.l.b16 %v102
  %v378 = vunpack.c.h.b16 %v102
  %v379 = vunpack.c.l.b16 %v103
  %v380 = vunpack.c.h.b16 %v103
  %v381 = vunpack.c.l.b16 %v104
  %v382 = vunpack.c.h.b16 %v104
  %v383 = vunpack.c.l.b16 %v105
  %v384 = vunpack.c.h.b16 %v105
  %v385 = vunpack.c.l.b16 %v106
  %v386 = vunpack.c.h.b16 %v106
  %v387 = vunpack.c.l.b16 %v107
  %v388 = vunpack.c.h.b16 %v107
  %v389 = vunpack.c.l.b16 %v108
  %v390 = vunpack.c.h.b16 %v108
  %v391 = vunpack.c.l.b16 %v109
  %v392 = vunpack.c.h.b16 %v109
  %v393 = vunpack.c.l.b16 %v110
  %v394 = vunpack.c.h.b16 %v110
  %v395 = vunpack.c.l.b16 %v111
  %v396 = vunpack.c.h.b16 %v111
  %v397 = vunpack.c.l.b16 %v112
  %v398 = vunpack.c.h.b16 %v112
  %v399 = vunpack.c.l.b16 %v113
  %v400 = vunpack.c.h.b16 %v113
  %v401 = vunpack.c.l.b16 %v114
  %v402 = vunpack.c.h.b16 %v114
  %v403 = vunpack.c.l.b16 %v115
  %v404 = vunpack.c.h.b16 %v115
  %v405 = vunpack.c.l.b16 %v116
  %v406 = vunpack.c.h.b16 %v116
  %v407 = vunpack.c.l.b16 %v117
  %v408 = vunpack.c.h.b16 %v117
  %v409 = vunpack.c.l.b16 %v118
  %v410 = vunpack.c.h.b16 %v118
  %v411 = vunpack.c.l.b16 %v119
  %v412 = vunpack.c.h.b16 %v119
  %v413 = vunpack.c.l.b16 %v120
  %v414 = vunpack.c.h.b16 %v120
  %v415 = vunpack.c.l.b16 %v121
  %v416 = vunpack.c.h.b16 %v121
  %v417 = vunpack.c.l.b16 %v122
  %v418 = vunpack.c.h.b16 %v122
  %v419 = vunpack.c.l.b16 %v123
  %v420 = vunpack.c.h.b16 %v123
  %v421 = vunpack.c.l.b16 %v124
  %v422 = vunpack.c.h.b16 %v124
  %v423 = vunpack.c.l.b16 %v125
  %v424 = vunpack.c.h.b16 %v125
  %v425 = vunpack.c.l.b16 %v126
  %v426 = vunpack.c.h.b16 %v126
  %v427 = vunpack.c.l.b16 %v127
  %v428 = vunpack.c.h.b16 %v127
  %v429 = vunpack.c.l.b16 %v128
  %v430 = vunpack.c.h.b16 %v128
  %v431 = vunpack.c.l.b16 %v129
  %v432 = vunpack.c.h.b16 %v129
  %v433 = vunpack.c.l.b16 %v130
  %v434 = vunpack.c.h.b16 %v130
  %v435 = vunpack.c.l.b16 %v131
  %v436 = vunpack.c.h.b16 %v131
  %v437 = vunpack.c.l.b16 %v132
  %v438 = vunpack.c.h.b16 %v132
  %v439 = vunpack.c.l.b16 %v133
  %v440 = vunpack.c.h.b16 %v133
  %v441 = vunpack.c.l.b16 %v134
  %v442 = vunpack.c.h.b16 %v134
  %v443 = vunpack.c.l.b16 %v135
  %v444 = vunpack.c.h.b16 %v135
  %v445 = vunpack.c.l.b16 %v136
  %v446 = vunpack.c.h.b16 %v136
  %v447 = vunpack.c.l.b16 %v137
  %v448 = vunpack.c.h.b16 %v137
  %v449 = vunpack.c.l.b16 %v138
  %v450 = vunpack.c.h.b16 %v138
  %v451 = vunpack.c.l.b16 %v139
  %v452 = vunpack.c.h.b16 %v139
  %v453 = vunpack.c.l.b16 %v140
  %v454 = vunpack.c.h.b16 %v140
  %v455 = vunpack.c.l.b16 %v141
  %v456 = vunpack.c.h.b16 %v141
  %v457 = vunpack.c.l.b16 %v142
  %v458 = vunpack.c.h.b16 %v142
  %v459 = vunpack.c.l.b16 %v143
  %v460 = vunpack.c.h.b16 %v143
  %v461 = vunpack.c.l.b16 %v144
  %v462 = vunpack.c.h.b16 %v144
  %v463 = vunpack.c.l.b16 %v145
  %v464 = vunpack.c.h.b16 %v145
  %v465 = vunpack.c.l.b16 %v146
  %v466 = vunpack.c.h.b16 %v146
  %v467 = vunpack.c.l.b16 %v147
  %v468 = vunpack.c.h.b16 %v147
  %v469 = vunpack.c.l.b16 %v148
  %v470 = vunpack.c.h.b16 %v148
  %v471 = vunpack.c.l.b16 %v149
  %v472 = vunpack.c.h.b16 %v149
  %v473 = vunpack.c.l.b16 %v150
  %v474 = vunpack.c.h.b16 %v150
  %v475 = vunpack.c.l.b16 %v151
  %v476 = vunpack.c.h.b16 %v151
  %v477 = vunpack.c.l.b16 %v152
  %v478 = vunpack.c.h.b16 %v152
  %v479 = vunpack.c.l.b16 %v153
  %v480 = vunpack.c.h.b16 %v153
  %v481 = vunpack.c.l.b16 %v154
  %v482 = vunpack.c.h.b16 %v154
  %v483 = vunpack.c.l.b16 %v155
  %v484 = vunpack.c.h.b16 %v155
  %v485 = vunpack.c.l.b16 %v156
  %v486 = vunpack.c.h.b16 %v156
  %v487 = vunpack.c.l.b16 %v157
  %v488 = vunpack.c.h.b16 %v157
  %v489 = vunpack.c.l.b16 %v158
  %v490 = vunpack.c.h.b16 %v158
  %v491 = vunpack.c.l.b16 %v159
  %v492 = vunpack.c.h.b16 %v159
  %v493 = vunpack.c.l.b16 %v160
  %v494 = vunpack.c.h.b16 %v160
  %v495 = vunpack.c.l.b16 %v161
  %v496 = vunpack.c.h.b16 %v161
  %v497 = vunpack.c.l.b16 %v162
  %v498 = vunpack.c.h.b16 %v162
  %v499 = vunpack.c.l.b16 %v163
  %v500 = vunpack.c.h.b16 %v163
  %v501 = vunpack.c.l.b16 %v164
  %v502 = vunpack.c.h.b16 %v164
  %v503 = vunpack.c.l.b16 %v165
  %v504 = vunpack.c.h.b16 %v165
  %v505 = vunpack.c.l.b16 %v166
  %v506 = vunpack.c.h.b16 %v166
  %v507 = vunpack.c.l.b16 %v167
  %v508 = vunpack.c.h.b16 %v167
  %v509 = vunpack.c.l.b16 %v168
  %v510 = vunpack.c.h.b16 %v168
  %v511 = vunpack.c.l.b16 %v169
  %v512 = vunpack.c.h.b16 %v169
  %v513 = vunpack.c.l.b16 %v170
  %v514 = vunpack.c.h.b16 %v170
  %v515 = vunpack.c.l.b16 %v171
  %v516 = vunpack.c.h.b16 %v171
  %v517 = vunpack.c.l.b16 %v172
  %v518 = vunpack.c.h.b16 %v172
  %v519 = vunpack.c.l.b16 %v173
  %v520 = vunpack.c.h.b16 %v173
  %v521 = vunpack.c.l.b16 %v174
  %v522 = vunpack.c.h.b16 %v174
  %v523 = vunpack.c.l.b16 %v175
  %v524 = vunpack.c.h.b16 %v175
  %v525 = vunpack.c.l.b16 %v176
  %v526 = vunpack.c.h.b16 %v176
  %v527 = vunpack.c.l.b16 %v177
  %v528 = vunpack.c.h.b16 %v177
  %v529 = vunpack.c.l.b16 %v178
  %v530 = vunpack.c.h.b16 %v178
  %v531 = vunpack.c.l.b16 %v179
  %v532 = vunpack.c.h.b16 %v179
  %v533 = vunpack.c.l.b16 %v180
  %v534 = vunpack.c.h.b16 %v180
  %v535 = vunpack.c.l.b16 %v181
  %v536 = vunpack.c.h.b16 %v181
  %v537 = vunpack.c.l.b16 %v182
  %v538 = vunpack.c.h.b16 %v182
  %v539 = vunpack.c.l.b16 %v183
  %v540 = vunpack.c.h.b16 %v183
  %v541 = vunpack.c.l.b16 %v184
  %v542 = vunpack.c.h.b16 %v184
  %v543 = vunpack.c.l.b16 %v185
  %v544 = vunpack.c.h.b16 %v185
  %v545 = vunpack.c.l.b16 %v186
  %v546 = vunpack.c.h.b16 %v186
  %v547 = vunpack.c.l.b16 %v187
  %v548 = vunpack.c.h.b16 %v187
  %v549 = vpack.c.b16 %v325, %v321
  %v550 = vpack.c.b16 %v326, %v322
  %v551 = vpack.c.b16 %v327, %v323
  %v552 = vpack.c.b16 %v328, %v324
  %v553 = vpack.c.b16 %v333, %v329
  %v554 = vpack.c.b16 %v334, %v330
  %v555 = vpack.c.b16 %v335, %v331
  %v556 = vpack.c.b16 %v336, %v332
  %v557 = vpack.c.b16 %v341, %v337
  %v558 = vpack.c.b16 %v342, %v338
  %v559 = vpack.c.b16 %v343, %v339
  %v560 = vpack.c.b16 %v344, %v340
  %v561 = vpack.c.b16 %v349, %v345
  %v562 = vpack.c.b16 %v350, %v346
  %v563 = vpack.c.b16 %v351, %v347
  %v564 = vpack.c.b16 %v352, %v348
  %v565 = vpack.c.b16 %v357, %v353
  %v566 = vpack.c.b16 %v358, %v354
  %v567 = vpack.c.b16 %v359, %v355
  %v568 = vpack.c.b16 %v360, %v356
  %v569 = vpack.c.b16 %v365, %v361
  %v570 = vpack.c.b16 %v366, %v362
  %v571 = vpack.c.b16 %v367, %v363
  %v572 = vpack.c.b16 %v368, %v364
  %v573 = vpack.c.b16 %v373, %v369
  %v574 = vpack.c.b16 %v374, %v370
  %v575 = vpack.c.b16 %v375, %v371
  %v576 = vpack.c.b16 %v376, %v372
  %v577 = vpack.c.b16 %v381, %v377
  %v578 = vpack.c.b16 %v382, %v378
  %v579 = vpack.c.b16 %v383, %v379
  %v580 = vpack.c.b16 %v384, %v380
  %v581 = vpack.c.b16 %v389, %v385
  %v582 = vpack.c.b16 %v390, %v386
  %v583 = vpack.c.b16 %v391, %v387
  %v584 = vpack.c.b16 %v392, %v388
  %v585 = vpack.c.b16 %v397, %v393
  %v586 = vpack.c.b16 %v398, %v394
  %v587 = vpack.c.b16 %v399, %v395
  %v588 = vpack.c.b16 %v400, %v396
  %v589 = vpack.c.b16 %v405, %v401
  %v590 = vpack.c.b16 %v406, %v402
  %v591 = vpack.c.b16 %v407, %v403
  %v592 = vpack.c.b16 %v408, %v404
  %v593 = vpack.c.b16 %v413, %v409
  %v594 = vpack.c.b16 %v414, %v410
  %v595 = vpack.c.b16 %v415, %v411
  %v596 = vpack.c.b16 %v416, %v412
  %v597 = vpack.c.b16 %v421, %v417
  %v598 = vpack.c.b16 %v422, %v418
  %v599 = vpack.c.b16 %v423, %v419
  %v600 = vpack.c.b16 %v424, %v420
  %v601 = vpack.c.b16 %v429, %v425
  %v602 = vpack.c.b16 %v430, %v426
  %v603 = vpack.c.b16 %v431, %v427
  %v604 = vpack.c.b16 %v432, %v428
  %v605 = vpack.c.b16 %v437, %v433
  %v606 = vpack.c.b16 %v438, %v434
  %v607 = vpack.c.b16 %v439, %v435
  %v608 = vpack.c.b16 %v440, %v436
  %v609 = vpack.c.b16 %v445, %v441
  %v610 = vpack.c.b16 %v446, %v442
  %v611 = vpack.c.b16 %v447, %v443
  %v612 = vpack.c.b16 %v448, %v444
  %v613 = vpack.c.b16 %v453, %v449
  %v614 = vpack.c.b16 %v454, %v450
  %v615 = vpack.c.b16 %v455, %v451
  %v616 = vpack.c.b16 %v456, %v452
  %v617 = vpack.c.b16 %v461, %v457
  %v618 = vpack.c.b16 %v462, %v458
  %v619 = vpack.c.b16 %v463, %v459
  %v620 = vpack.c.b16 %v464, %v460
  %v621 = vpack.c.b16 %v469, %v465
  %v622 = vpack.c.b16 %v470, %v466
  %v623 = vpack.c.b16 %v471, %v467
  %v624 = vpack.c.b16 %v472, %v468
  %v625 = vpack.c.b16 %v477, %v473
  %v626 = vpack.c.b16 %v478, %v474
  %v627 = vpack.c.b16 %v479, %v475
  %v628 = vpack.c.b16 %v480, %v476
  %v629 = vpack.c.b16 %v485, %v481
  %v630 = vpack.c.b16 %v486, %v482
  %v631 = vpack.c.b16 %v487, %v483
  %v632 = vpack.c.b16 %v488, %v484
  %v633 = vpack.c.b16 %v493, %v489
  %v634 = vpack.c.b16 %v494, %v490
  %v635 = vpack.c.b16 %v495, %v491
  %v636 = vpack.c.b16 %v496, %v492
  %v637 = vpack.c.b16 %v501, %v497
  %v638 = vpack.c.b16 %v502, %v498
  %v639 = vpack.c.b16 %v503, %v499
  %v640 = vpack.c.b16 %v504, %v500
  %v641 = vpack.c.b16 %v509, %v505
  %v642 = vpack.c.b16 %v510, %v506
  %v643 = vpack.c.b16 %v511, %v507
  %v644 = vpack.c.b16 %v512, %v508
  %v645 = vpack.c.b16 %v517, %v513
  %v646 = vpack.c.b16 %v518, %v514
  %v647 = vpack.c.b16 %v519, %v515
  %v648 = vpack.c.b16 %v520, %v516
  %v649 = vpack.c.b16 %v525, %v521
  %v650 = vpack.c.b16 %v526, %v522
  %v651 = vpack.c.b16 %v527, %v523
  %v652 = vpack.c.b16 %v528, %v524
  %v653 = vpack.c.b16 %v533, %v529
  %v654 = vpack.c.b16 %v534, %v530
  %v655 = vpack.c.b16 %v535, %v531
  %v656 = vpack.c.b16 %v536, %v532
  %v657 = vpack.c.b16 %v541, %v537
  %v658 = vpack.c.b16 %v542, %v538
  %v659 = vpack.c.b16 %v543, %v539
  %v660 = vpack.c.b16 %v544, %v540
  %v661 = vpack.c.b16 %v545, %v545
  %v662 = vpack.c.b16 %v546, %v546
  %v663 = vpack.c.b16 %v547, %v547
  %v664 = vpack.c.b16 %v548, %v548
  %vm777 = vcmask 547840
  %v779 = vsel %vm777, %v203, 0
  %vm781 = vcmask 1040384
  %vm782 = vcmask 1041408
  %v783 = vsel %vm781, 4294967295, 65535
  %v784 = vsel %vm782, %v783, 0
  %v786 = vand.u32 %v661, %v784
  %v789 = vand.u32 %v662, %v784
  %v792 = vand.u32 %v663, %v784
  %v795 = vand.u32 %v664, %v784
  %797 = vmatprep.subr.bf16.mxu0 %v550
  %798 = vmatpush1.bf16.msra.mxu0 %v549
  %799 = vmatprep.subr.bf16.mxu0 %v554
  %800 = vmatpush1.bf16.msra.mxu0 %v553
  %801 = vmatprep.subr.bf16.mxu0 %v558
  %802 = vmatpush1.bf16.msra.mxu0 %v557
  %803 = vmatprep.subr.bf16.mxu0 %v562
  %804 = vmatpush1.bf16.msra.mxu0 %v561
  %805 = vmatprep.subr.bf16.mxu0 %v566
  %806 = vmatpush1.bf16.msra.mxu0 %v565
  %807 = vmatprep.subr.bf16.mxu0 %v570
  %808 = vmatpush1.bf16.msra.mxu0 %v569
  %809 = vmatprep.subr.bf16.mxu0 %v574
  %810 = vmatpush1.bf16.msra.mxu0 %v573
  %811 = vmatprep.subr.bf16.mxu0 %v578
  %812 = vmatpush1.bf16.msra.mxu0 %v577
  %813 = vmatprep.subr.bf16.mxu0 %v582
  %814 = vmatpush1.bf16.msra.mxu0 %v581
  %815 = vmatprep.subr.bf16.mxu0 %v586
  %816 = vmatpush1.bf16.msra.mxu0 %v585
  %817 = vmatprep.subr.bf16.mxu0 %v590
  %818 = vmatpush1.bf16.msra.mxu0 %v589
  %819 = vmatprep.subr.bf16.mxu0 %v594
  %820 = vmatpush1.bf16.msra.mxu0 %v593
  %821 = vmatprep.subr.bf16.mxu0 %v598
  %822 = vmatpush1.bf16.msra.mxu0 %v597
  %823 = vmatprep.subr.bf16.mxu0 %v602
  %824 = vmatpush1.bf16.msra.mxu0 %v601
  %825 = vmatprep.subr.bf16.mxu0 %v606
  %826 = vmatpush1.bf16.msra.mxu0 %v605
  %827 = vmatprep.subr.bf16.mxu0 %v610
  %828 = vmatpush1.bf16.msra.mxu0 %v609
  %829 = vmatprep.mubr.bf16.mxu0 %v201
  %830 = vmatmul.mubr.bf16.gmra.mrb[0].mxu0 %v200
  %v831 = vpop.f32.mrb[0].mxu0
  %v832 = vadd.f32 %v192, %v831
  %v833 = vpop.f32.mrb[0].mxu0
  %v834 = vadd.f32 %v192, %v833
  %v835 = vpop.f32.mrb[0].mxu0
  %v836 = vpop.f32.mrb[0].mxu0
  %837 = vdwg.mxu0
  %838 = vmatprep.subr.bf16.mxu0 %v614
  %839 = vmatpush1.bf16.msra.mxu0 %v613
  %840 = vmatprep.subr.bf16.mxu0 %v618
  %841 = vmatpush1.bf16.msra.mxu0 %v617
  %842 = vmatprep.subr.bf16.mxu0 %v622
  %843 = vmatpush1.bf16.msra.mxu0 %v621
  %844 = vmatprep.subr.bf16.mxu0 %v626
  %845 = vmatpush1.bf16.msra.mxu0 %v625
  %846 = vmatprep.subr.bf16.mxu0 %v630
  %847 = vmatpush1.bf16.msra.mxu0 %v629
  %848 = vmatprep.subr.bf16.mxu0 %v634
  %849 = vmatpush1.bf16.msra.mxu0 %v633
  %850 = vmatprep.subr.bf16.mxu0 %v638
  %851 = vmatpush1.bf16.msra.mxu0 %v637
  %852 = vmatprep.subr.bf16.mxu0 %v642
  %853 = vmatpush1.bf16.msra.mxu0 %v641
  %854 = vmatprep.subr.bf16.mxu0 %v646
  %855 = vmatpush1.bf16.msra.mxu0 %v645
  %856 = vmatprep.subr.bf16.mxu0 %v650
  %857 = vmatpush1.bf16.msra.mxu0 %v649
  %858 = vmatprep.subr.bf16.mxu0 %v654
  %859 = vmatpush1.bf16.msra.mxu0 %v653
  %860 = vmatprep.subr.bf16.mxu0 %v658
  %861 = vmatpush1.bf16.msra.mxu0 %v657
  %862 = vmatprep.subr.bf16.mxu0 %v789
  %863 = vmatpush1.bf16.msra.mxu0 %v786
  %864 = vmatprep.subr.bf16.mxu0 0
  %865 = vmatpush1.bf16.msra.mxu0 0
  %866 = vmatprep.subr.bf16.mxu0 0
  %867 = vmatpush1.bf16.msra.mxu0 0
  %868 = vmatprep.subr.bf16.mxu0 0
  %869 = vmatpush1.bf16.msra.mxu0 0
  %870 = vmatprep.mubr.bf16.mxu0 %v779
  %871 = vmatmul.mubr.bf16.gmra.mrb[0].mxu0 %v202
  %v872 = vpop.f32.mrb[0].mxu0
  %v873 = vadd.f32 %v832, %v872
  %v874 = vpop.f32.mrb[0].mxu0
  %v875 = vadd.f32 %v834, %v874
  %v876 = vpop.f32.mrb[0].mxu0
  %v877 = vpop.f32.mrb[0].mxu0
  %878 = vdwg.mxu0
  %879 = vmatprep.subr.bf16.mxu0 %v552
  %880 = vmatpush1.bf16.msra.mxu0 %v551
  %881 = vmatprep.subr.bf16.mxu0 %v556
  %882 = vmatpush1.bf16.msra.mxu0 %v555
  %883 = vmatprep.subr.bf16.mxu0 %v560
  %884 = vmatpush1.bf16.msra.mxu0 %v559
  %885 = vmatprep.subr.bf16.mxu0 %v564
  %886 = vmatpush1.bf16.msra.mxu0 %v563
  %887 = vmatprep.subr.bf16.mxu0 %v568
  %888 = vmatpush1.bf16.msra.mxu0 %v567
  %889 = vmatprep.subr.bf16.mxu0 %v572
  %890 = vmatpush1.bf16.msra.mxu0 %v571
  %891 = vmatprep.subr.bf16.mxu0 %v576
  %892 = vmatpush1.bf16.msra.mxu0 %v575
  %893 = vmatprep.subr.bf16.mxu0 %v580
  %894 = vmatpush1.bf16.msra.mxu0 %v579
  %895 = vmatprep.subr.bf16.mxu0 %v584
  %896 = vmatpush1.bf16.msra.mxu0 %v583
  %897 = vmatprep.subr.bf16.mxu0 %v588
  %898 = vmatpush1.bf16.msra.mxu0 %v587
  %899 = vmatprep.subr.bf16.mxu0 %v592
  %900 = vmatpush1.bf16.msra.mxu0 %v591
  %901 = vmatprep.subr.bf16.mxu0 %v596
  %902 = vmatpush1.bf16.msra.mxu0 %v595
  %903 = vmatprep.subr.bf16.mxu0 %v600
  %904 = vmatpush1.bf16.msra.mxu0 %v599
  %905 = vmatprep.subr.bf16.mxu0 %v604
  %906 = vmatpush1.bf16.msra.mxu0 %v603
  %907 = vmatprep.subr.bf16.mxu0 %v608
  %908 = vmatpush1.bf16.msra.mxu0 %v607
  %909 = vmatprep.subr.bf16.mxu0 %v612
  %910 = vmatpush1.bf16.msra.mxu0 %v611
  %911 = vmatprep.mubr.bf16.mxu0 %v201
  %912 = vmatmul.mubr.bf16.gmra.mrb[0].mxu0 %v200
  %v913 = vpop.f32.mrb[0].mxu0
  %v914 = vadd.f32 %v192, %v913
  %v915 = vpop.f32.mrb[0].mxu0
  %v916 = vadd.f32 %v192, %v915
  %v917 = vpop.f32.mrb[0].mxu0
  %v918 = vpop.f32.mrb[0].mxu0
  %919 = vdwg.mxu0
  %920 = vmatprep.subr.bf16.mxu0 %v616
  %921 = vmatpush1.bf16.msra.mxu0 %v615
  %922 = vmatprep.subr.bf16.mxu0 %v620
  %923 = vmatpush1.bf16.msra.mxu0 %v619
  %924 = vmatprep.subr.bf16.mxu0 %v624
  %925 = vmatpush1.bf16.msra.mxu0 %v623
  %926 = vmatprep.subr.bf16.mxu0 %v628
  %927 = vmatpush1.bf16.msra.mxu0 %v627
  %928 = vmatprep.subr.bf16.mxu0 %v632
  %929 = vmatpush1.bf16.msra.mxu0 %v631
  %930 = vmatprep.subr.bf16.mxu0 %v636
  %931 = vmatpush1.bf16.msra.mxu0 %v635
  %932 = vmatprep.subr.bf16.mxu0 %v640
  %933 = vmatpush1.bf16.msra.mxu0 %v639
  %934 = vmatprep.subr.bf16.mxu0 %v644
  %935 = vmatpush1.bf16.msra.mxu0 %v643
  %936 = vmatprep.subr.bf16.mxu0 %v648
  %937 = vmatpush1.bf16.msra.mxu0 %v647
  %938 = vmatprep.subr.bf16.mxu0 %v652
  %939 = vmatpush1.bf16.msra.mxu0 %v651
  %940 = vmatprep.subr.bf16.mxu0 %v656
  %941 = vmatpush1.bf16.msra.mxu0 %v655
  %942 = vmatprep.subr.bf16.mxu0 %v660
  %943 = vmatpush1.bf16.msra.mxu0 %v659
  %944 = vmatprep.subr.bf16.mxu0 %v795
  %945 = vmatpush1.bf16.msra.mxu0 %v792
  %946 = vmatprep.subr.bf16.mxu0 0
  %947 = vmatpush1.bf16.msra.mxu0 0
  %948 = vmatprep.subr.bf16.mxu0 0
  %949 = vmatpush1.bf16.msra.mxu0 0
  %950 = vmatprep.subr.bf16.mxu0 0
  %951 = vmatpush1.bf16.msra.mxu0 0
  %952 = vmatprep.mubr.bf16.mxu0 %v779
  %953 = vmatmul.mubr.bf16.gmra.mrb[0].mxu0 %v202
  %v954 = vpop.f32.mrb[0].mxu0
  %v955 = vadd.f32 %v914, %v954
  %v956 = vpop.f32.mrb[0].mxu0
  %v957 = vadd.f32 %v916, %v956
  %v958 = vpop.f32.mrb[0].mxu0
  %v959 = vpop.f32.mrb[0].mxu0
  %960 = vdwg.mxu0
  %v961 = vadd.f32 %v873, %v875
  %v962 = vadd.f32 %v961, %v955
  %vm963 = vcmask 916480
  %v964 = vsel %vm963, %v957, 0.0
  %v965 = vadd.f32 %v962, %v964
  %966 = vadd.xlane.f32.xlu0 %v965
  %v967 = vpop.xlane.xlu0 %966
  %v968 = vrcp.pop 496.0
  %v969 = vmul.f32 %v967, %v968
  %v970 = vsub.f32 %v873, %v969
  %v971 = vsub.f32 %v875, %v969
  %v972 = vsub.f32 %v955, %v969
  %v973 = vsub.f32 %v957, %v969
  %v974 = vmul.f32 %v970, %v970
  %v975 = vmul.f32 %v971, %v971
  %v976 = vmul.f32 %v972, %v972
  %v977 = vmul.f32 %v973, %v973
  %v978 = vadd.f32 %v974, %v975
  %v979 = vadd.f32 %v978, %v976
  %v980 = vsel %vm963, %v977, 0.0
  %v981 = vadd.f32 %v979, %v980
  %982 = vadd.xlane.f32.xlu0 %v981
  %v983 = vpop.xlane.xlu0 %982
  %v984 = vmul.f32 %v983, %v968
  %v985 = vld [vmem:[%s3] sm:$0xff]
  %v986 = vadd.f32 %v984, 1e-05
  %v987 = vrsqrt.pop %v986
  %v988 = vmul.f32 %v985, %v987
  %990 = vset.pattern.permute.xlu0 0
  %991 = vperm.xlu0 %990, %v988
  %v992 = vpop.permute.xlu0 %991
  %v994 = vmul.f32 %v970, %v992
  %v995 = vmul.f32 %v971, %v992
  %v996 = vmul.f32 %v972, %v992
  %v997 = vmul.f32 %v973, %v992
  %v998 = vld [vmem:[%s4] sm:$0xff]
  %1000 = vset.pattern.permute.xlu0 0
  %1001 = vperm.xlu0 %1000, %v998
  %v1002 = vpop.permute.xlu0 %1001
  %v1004 = vadd.f32 %v994, %v1002
  %v1005 = vadd.f32 %v995, %v1002
  %v1006 = vadd.f32 %v996, %v1002
  %v1007 = vadd.f32 %v997, %v1002
  %v1008 = vmax.f32 %v1004, -1.0
  %v1009 = vmax.f32 %v1005, -1.0
  %v1010 = vmax.f32 %v1006, -1.0
  %v1011 = vmax.f32 %v1007, -1.0
  %v1012 = vmin.f32 %v1008, 1.0
  %v1013 = vmin.f32 %v1009, 1.0
  %v1014 = vmin.f32 %v1010, 1.0
  %v1015 = vmin.f32 %v1011, 1.0
  %1017 = vrot.lane.b32.xlu0 %v1012, 112
  %v1018 = vpop.permute.xlu0 %1017
  %1021 = vrot.lane.b32.xlu0 %v1014, 112
  %v1022 = vpop.permute.xlu0 %1021
  %1024 = vrot.lane.b32.xlu0 %v1012, 96
  %v1025 = vpop.permute.xlu0 %1024
  %1027 = vrot.lane.b32.xlu0 %v1014, 96
  %v1028 = vpop.permute.xlu0 %1027
  %1031 = vrot.lane.b32.xlu0 %v1012, 80
  %v1032 = vpop.permute.xlu0 %1031
  %1033 = vrot.lane.b32.xlu0 %v1013, 80
  %v1034 = vpop.permute.xlu0 %1033
  %vm1035 = vcmask 654336
  %v1036 = vsel %vm1035, %v1032, %v1034
  %1039 = vrot.lane.b32.xlu0 %v1014, 80
  %v1040 = vpop.permute.xlu0 %1039
  %1041 = vrot.lane.b32.xlu0 %v1015, 80
  %v1042 = vpop.permute.xlu0 %1041
  %v1043 = vsel %vm1035, %v1040, %v1042
  %1045 = vrot.lane.b32.xlu0 %v1012, 64
  %v1046 = vpop.permute.xlu0 %1045
  %1047 = vrot.lane.b32.xlu0 %v1013, 64
  %v1048 = vpop.permute.xlu0 %1047
  %vm1049 = vcmask 523264
  %v1050 = vsel %vm1049, %v1046, %v1048
  %1052 = vrot.lane.b32.xlu0 %v1014, 64
  %v1053 = vpop.permute.xlu0 %1052
  %1054 = vrot.lane.b32.xlu0 %v1015, 64
  %v1055 = vpop.permute.xlu0 %1054
  %v1056 = vsel %vm1049, %v1053, %v1055
  %1058 = vrot.lane.b32.xlu0 %v1012, 48
  %v1059 = vpop.permute.xlu0 %1058
  %1060 = vrot.lane.b32.xlu0 %v1013, 48
  %v1061 = vpop.permute.xlu0 %1060
  %vm1062 = vcmask 392192
  %v1063 = vsel %vm1062, %v1059, %v1061
  %1065 = vrot.lane.b32.xlu0 %v1014, 48
  %v1066 = vpop.permute.xlu0 %1065
  %1067 = vrot.lane.b32.xlu0 %v1015, 48
  %v1068 = vpop.permute.xlu0 %1067
  %v1069 = vsel %vm1062, %v1066, %v1068
  %1071 = vrot.lane.b32.xlu0 %v1012, 32
  %v1072 = vpop.permute.xlu0 %1071
  %1073 = vrot.lane.b32.xlu0 %v1013, 32
  %v1074 = vpop.permute.xlu0 %1073
  %vm1075 = vcmask 261120
  %v1076 = vsel %vm1075, %v1072, %v1074
  %1078 = vrot.lane.b32.xlu0 %v1014, 32
  %v1079 = vpop.permute.xlu0 %1078
  %1080 = vrot.lane.b32.xlu0 %v1015, 32
  %v1081 = vpop.permute.xlu0 %1080
  %v1082 = vsel %vm1075, %v1079, %v1081
  %1084 = vrot.lane.b32.xlu0 %v1012, 16
  %v1085 = vpop.permute.xlu0 %1084
  %1086 = vrot.lane.b32.xlu0 %v1013, 16
  %v1087 = vpop.permute.xlu0 %1086
  %vm1088 = vcmask 130048
  %v1089 = vsel %vm1088, %v1085, %v1087
  %1091 = vrot.lane.b32.xlu0 %v1014, 16
  %v1092 = vpop.permute.xlu0 %1091
  %1093 = vrot.lane.b32.xlu0 %v1015, 16
  %v1094 = vpop.permute.xlu0 %1093
  %v1095 = vsel %vm1088, %v1092, %v1094
  %1097 = vrot.lane.b32.xlu0 %v1013, 112
  %v1098 = vpop.permute.xlu0 %1097
  %1100 = vrot.lane.b32.xlu0 %v1015, 112
  %v1101 = vpop.permute.xlu0 %1100
  %1103 = vrot.lane.b32.xlu0 %v1013, 96
  %v1104 = vpop.permute.xlu0 %1103
  %v1106 = vpack.c.bf16 %v1014, %v1012
  %v1107 = vpack.c.bf16 %v1022, %v1018
  %v1108 = vpack.c.bf16 %v1028, %v1025
  %v1109 = vpack.c.bf16 %v1043, %v1036
  %v1110 = vpack.c.bf16 %v1056, %v1050
  %v1111 = vpack.c.bf16 %v1069, %v1063
  %v1112 = vpack.c.bf16 %v1082, %v1076
  %v1113 = vpack.c.bf16 %v1095, %v1089
  %v1114 = vpack.c.bf16 %v1015, %v1013
  %v1115 = vpack.c.bf16 %v1101, %v1098
  %v1116 = vpack.c.bf16 %v1104, %v1104
  %v1117 = vld [vmem:[%s5] sm:$0xff]
  %v1118 = vld [vmem:[%s5 + $0x8] sm:$0xff]
  %v1119 = vld [vmem:[%s5 + $0x10] sm:$0xff]
  %v1120 = vld [vmem:[%s5 + $0x18] sm:$0xff]
  %v1121 = vld [vmem:[%s5 + $0x20] sm:$0xff]
  %v1122 = vld [vmem:[%s5 + $0x28] sm:$0x33]
  %v1129 = vunpack.c.l.b16 %v1117
  %v1130 = vunpack.c.h.b16 %v1117
  %v1131 = vunpack.c.l.b16 %v1118
  %v1132 = vunpack.c.h.b16 %v1118
  %v1133 = vunpack.c.l.b16 %v1119
  %v1134 = vunpack.c.h.b16 %v1119
  %v1135 = vunpack.c.l.b16 %v1120
  %v1136 = vunpack.c.h.b16 %v1120
  %v1137 = vunpack.c.l.b16 %v1121
  %v1138 = vunpack.c.h.b16 %v1121
  %v1139 = vunpack.c.l.b16 %v1122
  %v1140 = vunpack.c.h.b16 %v1122
  %v1141 = vpack.c.b16 %v1131, %v1129
  %v1142 = vpack.c.b16 %v1132, %v1130
  %v1143 = vpack.c.b16 %v1135, %v1133
  %v1144 = vpack.c.b16 %v1136, %v1134
  %v1145 = vpack.c.b16 %v1139, %v1137
  %v1146 = vpack.c.b16 %v1140, %v1138
  %vm1150 = vcmask 326656
  %v1152 = vsel %vm1150, %v1142, 0
  %v1155 = vsel %vm1150, %v1144, 0
  %v1158 = vsel %vm1150, %v1146, 0
  %vm1160 = vcmask 1043456
  %v1162 = vsel %vm1160, %v1116, 0
  %1164 = vmatprep.subr.bf16.mxu0 0
  %1165 = vmatpush1.bf16.msra.mxu0 %v1106
  %1166 = vmatprep.subr.bf16.mxu0 0
  %1167 = vmatpush1.bf16.msra.mxu0 %v1107
  %1168 = vmatprep.subr.bf16.mxu0 0
  %1169 = vmatpush1.bf16.msra.mxu0 %v1108
  %1170 = vmatprep.subr.bf16.mxu0 0
  %1171 = vmatpush1.bf16.msra.mxu0 %v1109
  %1172 = vmatprep.subr.bf16.mxu0 0
  %1173 = vmatpush1.bf16.msra.mxu0 %v1110
  %1174 = vmatprep.subr.bf16.mxu0 0
  %1175 = vmatpush1.bf16.msra.mxu0 %v1111
  %1176 = vmatprep.subr.bf16.mxu0 0
  %1177 = vmatpush1.bf16.msra.mxu0 %v1112
  %1178 = vmatprep.subr.bf16.mxu0 0
  %1179 = vmatpush1.bf16.msra.mxu0 %v1113
  %1180 = vmatprep.subr.bf16.mxu0 0
  %1181 = vmatpush1.bf16.msra.mxu0 %v1114
  %1182 = vmatprep.subr.bf16.mxu0 0
  %1183 = vmatpush1.bf16.msra.mxu0 %v1115
  %1184 = vmatprep.subr.bf16.mxu0 0
  %1185 = vmatpush1.bf16.msra.mxu0 %v1162
  %1186 = vmatprep.subr.bf16.mxu0 0
  %1187 = vmatpush1.bf16.msra.mxu0 0
  %1188 = vmatprep.subr.bf16.mxu0 0
  %1189 = vmatpush1.bf16.msra.mxu0 0
  %1190 = vmatprep.subr.bf16.mxu0 0
  %1191 = vmatpush1.bf16.msra.mxu0 0
  %1192 = vmatprep.subr.bf16.mxu0 0
  %1193 = vmatpush1.bf16.msra.mxu0 0
  %1194 = vmatprep.subr.bf16.mxu0 0
  %1195 = vmatpush1.bf16.msra.mxu0 0
  %1196 = vmatprep.mubr.bf16.mxu0 %v1152
  %1197 = vmatmul.mubr.bf16.gmra.mrb[0].mxu0 %v1141
  %v1198 = vpop.f32.mrb[0].mxu0
  %v1199 = vadd.f32 0.0, %v1198
  %v1200 = vpop.f32.mrb[0].mxu0
  %v1201 = vpop.f32.mrb[0].mxu0
  %v1202 = vadd.f32 0.0, %v1201
  %v1203 = vpop.f32.mrb[0].mxu0
  %1204 = vmatprep.mubr.bf16.mxu0 %v1155
  %1205 = vmatmul.mubr.bf16.gmra.mrb[0].mxu0 %v1143
  %v1206 = vpop.f32.mrb[0].mxu0
  %v1207 = vadd.f32 0.0, %v1206
  %v1208 = vpop.f32.mrb[0].mxu0
  %v1209 = vpop.f32.mrb[0].mxu0
  %v1210 = vadd.f32 0.0, %v1209
  %v1211 = vpop.f32.mrb[0].mxu0
  %1212 = vmatprep.mubr.bf16.mxu0 %v1158
  %1213 = vmatmul.mubr.bf16.gmra.mrb[0].mxu0 %v1145
  %v1214 = vpop.f32.mrb[0].mxu0
  %v1215 = vadd.f32 0.0, %v1214
  %v1216 = vpop.f32.mrb[0].mxu0
  %v1217 = vpop.f32.mrb[0].mxu0
  %v1218 = vadd.f32 0.0, %v1217
  %v1219 = vpop.f32.mrb[0].mxu0
  %1220 = vdwg.mxu0
  %v1221 = vld [vmem:[%s9] sm:$0xff]
  %v1222 = vld [vmem:[%s9 + $0x8] sm:$0xff]
  %v1223 = vld [vmem:[%s9 + $0x10] sm:$0xff]
  %v1224 = vld [vmem:[%s9 + $0x18] sm:$0xff]
  %v1225 = vld [vmem:[%s9 + $0x20] sm:$0xff]
  %v1226 = vld [vmem:[%s9 + $0x28] sm:$0xff]
  %v1227 = vld [vmem:[%s9 + $0x30] sm:$0xff]
  %v1228 = vld [vmem:[%s9 + $0x38] sm:$0xff]
  %v1229 = vld [vmem:[%s9 + $0x40] sm:$0xff]
  %v1230 = vld [vmem:[%s9 + $0x48] sm:$0xff]
  %v1231 = vld [vmem:[%s9 + $0x50] sm:$0xff]
  %v1232 = vld [vmem:[%s9 + $0x58] sm:$0xff]
  %v1233 = vld [vmem:[%s9 + $0x60] sm:$0xff]
  %v1234 = vld [vmem:[%s9 + $0x68] sm:$0xff]
  %v1235 = vld [vmem:[%s9 + $0x70] sm:$0xff]
  %v1236 = vld [vmem:[%s9 + $0x78] sm:$0xff]
  %v1237 = vld [vmem:[%s9 + $0x80] sm:$0xff]
  %v1238 = vld [vmem:[%s9 + $0x88] sm:$0xff]
  %v1239 = vld [vmem:[%s9 + $0x90] sm:$0xff]
  %v1240 = vld [vmem:[%s9 + $0x98] sm:$0xff]
  %v1241 = vld [vmem:[%s9 + $0xa0] sm:$0xff]
  %v1242 = vld [vmem:[%s9 + $0xa8] sm:$0xff]
  %v1243 = vld [vmem:[%s9 + $0xb0] sm:$0xff]
  %v1244 = vld [vmem:[%s9 + $0xb8] sm:$0xff]
  %vm1245 = vcmask 785408
  %v1247 = vsel %vm1245, %v1199, 0
  %v1250 = vsel %vm1245, %v1202, 0
  %v1253 = vsel %vm1245, %v1207, 0
  %v1256 = vsel %vm1245, %v1210, 0
  %v1259 = vsel %vm1245, %v1215, 0
  %v1262 = vsel %vm1245, %v1218, 0
  %1264 = vmatprep.subr.mxu0 %v1222
  %1265 = vmatpush1.msra.mxu0 %v1221
  %1266 = vmatprep.subr.mxu0 %v1224
  %1267 = vmatpush1.msra.mxu0 %v1223
  %1268 = vmatprep.subr.mxu0 %v1226
  %1269 = vmatpush1.msra.mxu0 %v1225
  %1270 = vmatprep.subr.mxu0 %v1228
  %1271 = vmatpush1.msra.mxu0 %v1227
  %1272 = vmatprep.subr.mxu0 %v1230
  %1273 = vmatpush1.msra.mxu0 %v1229
  %1274 = vmatprep.subr.mxu0 %v1232
  %1275 = vmatpush1.msra.mxu0 %v1231
  %1276 = vmatprep.subr.mxu0 %v1234
  %1277 = vmatpush1.msra.mxu0 %v1233
  %1278 = vmatprep.subr.mxu0 %v1236
  %1279 = vmatpush1.msra.mxu0 %v1235
  %1280 = vmatprep.subr.mxu0 %v1238
  %1281 = vmatpush1.msra.mxu0 %v1237
  %1282 = vmatprep.subr.mxu0 %v1240
  %1283 = vmatpush1.msra.mxu0 %v1239
  %1284 = vmatprep.subr.mxu0 %v1242
  %1285 = vmatpush1.msra.mxu0 %v1241
  %1286 = vmatprep.subr.mxu0 %v1244
  %1287 = vmatpush1.msra.mxu0 %v1243
  %1288 = vmatprep.subr.mxu0 0.0
  %1289 = vmatpush1.msra.mxu0 0.0
  %1290 = vmatprep.subr.mxu0 0.0
  %1291 = vmatpush1.msra.mxu0 0.0
  %1292 = vmatprep.subr.mxu0 0.0
  %1293 = vmatpush1.msra.mxu0 0.0
  %1294 = vmatprep.subr.mxu0 0.0
  %1295 = vmatpush1.msra.mxu0 0.0
  %1296 = vmatprep.subr.mxu0 0.0
  %1297 = vmatpush1.msra.mxu0 0.0
  %1298 = vmatprep.subr.mxu0 0.0
  %1299 = vmatpush1.msra.mxu0 0.0
  %1300 = vmatprep.subr.mxu0 0.0
  %1301 = vmatpush1.msra.mxu0 0.0
  %1302 = vmatprep.subr.mxu0 0.0
  %1303 = vmatpush1.msra.mxu0 0.0
  %1304 = vmatprep.subr.mxu0 0.0
  %1305 = vmatpush1.msra.mxu0 0.0
  %1306 = vmatprep.subr.mxu0 0.0
  %1307 = vmatpush1.msra.mxu0 0.0
  %1308 = vmatprep.subr.mxu0 0.0
  %1309 = vmatpush1.msra.mxu0 0.0
  %1310 = vmatprep.subr.mxu0 0.0
  %1311 = vmatpush1.msra.mxu0 0.0
  %1312 = vmatprep.subr.mxu0 0.0
  %1313 = vmatpush1.msra.mxu0 0.0
  %1314 = vmatprep.subr.mxu0 0.0
  %1315 = vmatpush1.msra.mxu0 0.0
  %1316 = vmatprep.subr.mxu0 0.0
  %1317 = vmatpush1.msra.mxu0 0.0
  %1318 = vmatprep.subr.mxu0 0.0
  %1319 = vmatpush1.msra.mxu0 0.0
  %1320 = vmatprep.subr.mxu0 0.0
  %1321 = vmatpush1.msra.mxu0 0.0
  %1322 = vmatprep.subr.mxu0 0.0
  %1323 = vmatpush1.msra.mxu0 0.0
  %1324 = vmatprep.subr.mxu0 0.0
  %1325 = vmatpush1.msra.mxu0 0.0
  %1326 = vmatprep.subr.mxu0 0.0
  %1327 = vmatpush1.msra.mxu0 0.0
  %1328 = vmatprep.mubr.f32.mxu0 0.0
  %1329 = vmatmul.mubr.f32.gmra.mrb[0].mxu0 %v1247
  %v1330 = vpop.f32.mrb[0].mxu0
  %v1331 = vadd.f32 0.0, %v1330
  %v1332 = vpop.f32.mrb[0].mxu0
  %v1333 = vadd.f32 0.0, %v1332
  %1334 = vmatprep.mubr.f32.mxu0 0.0
  %1335 = vmatmul.mubr.f32.gmra.mrb[0].mxu0 %v1250
  %v1336 = vpop.f32.mrb[0].mxu0
  %v1337 = vadd.f32 0.0, %v1336
  %v1338 = vpop.f32.mrb[0].mxu0
  %v1339 = vadd.f32 0.0, %v1338
  %1340 = vmatprep.mubr.f32.mxu0 0.0
  %1341 = vmatmul.mubr.f32.gmra.mrb[0].mxu0 %v1253
  %v1342 = vpop.f32.mrb[0].mxu0
  %v1343 = vadd.f32 0.0, %v1342
  %v1344 = vpop.f32.mrb[0].mxu0
  %v1345 = vadd.f32 0.0, %v1344
  %1346 = vmatprep.mubr.f32.mxu0 0.0
  %1347 = vmatmul.mubr.f32.gmra.mrb[0].mxu0 %v1256
  %v1348 = vpop.f32.mrb[0].mxu0
  %v1349 = vadd.f32 0.0, %v1348
  %v1350 = vpop.f32.mrb[0].mxu0
  %v1351 = vadd.f32 0.0, %v1350
  %1352 = vmatprep.mubr.f32.mxu0 0.0
  %1353 = vmatmul.mubr.f32.gmra.mrb[0].mxu0 %v1259
  %v1354 = vpop.f32.mrb[0].mxu0
  %v1355 = vadd.f32 0.0, %v1354
  %v1356 = vpop.f32.mrb[0].mxu0
  %v1357 = vadd.f32 0.0, %v1356
  %1358 = vmatprep.mubr.f32.mxu0 0.0
  %1359 = vmatmul.mubr.f32.gmra.mrb[0].mxu0 %v1262
  %v1360 = vpop.f32.mrb[0].mxu0
  %v1361 = vadd.f32 0.0, %v1360
  %v1362 = vpop.f32.mrb[0].mxu0
  %v1363 = vadd.f32 0.0, %v1362
  %1364 = vdwg.mxu0
  %v1365 = vld [vmem:[%s10] sm:$0xff]
  %v1366 = vld [vmem:[%s10 + $0x8] sm:$0xff]
  %v1367 = vld [vmem:[%s10 + $0x10] sm:$0xff]
  %v1368 = vld [vmem:[%s10 + $0x18] sm:$0xff]
  %v1369 = vld [vmem:[%s10 + $0x20] sm:$0xff]
  %v1370 = vld [vmem:[%s10 + $0x28] sm:$0xff]
  %v1371 = vld [vmem:[%s10 + $0x30] sm:$0xff]
  %v1372 = vld [vmem:[%s10 + $0x38] sm:$0xff]
  %v1373 = vld [vmem:[%s10 + $0x40] sm:$0xff]
  %v1374 = vld [vmem:[%s10 + $0x48] sm:$0xff]
  %v1375 = vld [vmem:[%s10 + $0x50] sm:$0xf]
  %v1376 = vld [vmem:[%s10 + $0x58] sm:$0xf]
  %v1377 = vmul.f32 %v1331, %v1365
  %v1378 = vmul.f32 %v1333, %v1366
  %v1379 = vmul.f32 %v1337, %v1367
  %v1380 = vmul.f32 %v1339, %v1368
  %v1381 = vmul.f32 %v1343, %v1369
  %v1382 = vmul.f32 %v1345, %v1370
  %v1383 = vmul.f32 %v1349, %v1371
  %v1384 = vmul.f32 %v1351, %v1372
  %v1385 = vmul.f32 %v1355, %v1373
  %v1386 = vmul.f32 %v1357, %v1374
  %v1387 = vmul.f32 %v1361, %v1375
  %v1388 = vmul.f32 %v1363, %v1376
  %v1389 = vld [vmem:[%s11] sm:$0xf]
  %vm1390 = vcmask 359424
  %v1392 = vsel %vm1390, %v1389, 0
  %v1395 = vsel %vm1160, %v1387, 0
  %v1398 = vsel %vm1160, %v1388, 0
  %1400 = vmatprep.subr.mxu0 %v1378
  %1401 = vmatpush1.msra.mxu0 %v1377
  %1402 = vmatprep.subr.mxu0 %v1380
  %1403 = vmatpush1.msra.mxu0 %v1379
  %1404 = vmatprep.subr.mxu0 %v1382
  %1405 = vmatpush1.msra.mxu0 %v1381
  %1406 = vmatprep.subr.mxu0 %v1384
  %1407 = vmatpush1.msra.mxu0 %v1383
  %1408 = vmatprep.subr.mxu0 %v1386
  %1409 = vmatpush1.msra.mxu0 %v1385
  %1410 = vmatprep.subr.mxu0 %v1398
  %1411 = vmatpush1.msra.mxu0 %v1395
  %1412 = vmatprep.subr.mxu0 0.0
  %1413 = vmatpush1.msra.mxu0 0.0
  %1414 = vmatprep.subr.mxu0 0.0
  %1415 = vmatpush1.msra.mxu0 0.0
  %1416 = vmatprep.subr.mxu0 0.0
  %1417 = vmatpush1.msra.mxu0 0.0
  %1418 = vmatprep.subr.mxu0 0.0
  %1419 = vmatpush1.msra.mxu0 0.0
  %1420 = vmatprep.subr.mxu0 0.0
  %1421 = vmatpush1.msra.mxu0 0.0
  %1422 = vmatprep.subr.mxu0 0.0
  %1423 = vmatpush1.msra.mxu0 0.0
  %1424 = vmatprep.subr.mxu0 0.0
  %1425 = vmatpush1.msra.mxu0 0.0
  %1426 = vmatprep.subr.mxu0 0.0
  %1427 = vmatpush1.msra.mxu0 0.0
  %1428 = vmatprep.subr.mxu0 0.0
  %1429 = vmatpush1.msra.mxu0 0.0
  %1430 = vmatprep.subr.mxu0 0.0
  %1431 = vmatpush1.msra.mxu0 0.0
  %1432 = vmatprep.subr.mxu0 0.0
  %1433 = vmatpush1.msra.mxu0 0.0
  %1434 = vmatprep.subr.mxu0 0.0
  %1435 = vmatpush1.msra.mxu0 0.0
  %1436 = vmatprep.subr.mxu0 0.0
  %1437 = vmatpush1.msra.mxu0 0.0
  %1438 = vmatprep.subr.mxu0 0.0
  %1439 = vmatpush1.msra.mxu0 0.0
  %1440 = vmatprep.subr.mxu0 0.0
  %1441 = vmatpush1.msra.mxu0 0.0
  %1442 = vmatprep.subr.mxu0 0.0
  %1443 = vmatpush1.msra.mxu0 0.0
  %1444 = vmatprep.subr.mxu0 0.0
  %1445 = vmatpush1.msra.mxu0 0.0
  %1446 = vmatprep.subr.mxu0 0.0
  %1447 = vmatpush1.msra.mxu0 0.0
  %1448 = vmatprep.subr.mxu0 0.0
  %1449 = vmatpush1.msra.mxu0 0.0
  %1450 = vmatprep.subr.mxu0 0.0
  %1451 = vmatpush1.msra.mxu0 0.0
  %1452 = vmatprep.subr.mxu0 0.0
  %1453 = vmatpush1.msra.mxu0 0.0
  %1454 = vmatprep.subr.mxu0 0.0
  %1455 = vmatpush1.msra.mxu0 0.0
  %1456 = vmatprep.subr.mxu0 0.0
  %1457 = vmatpush1.msra.mxu0 0.0
  %1458 = vmatprep.subr.mxu0 0.0
  %1459 = vmatpush1.msra.mxu0 0.0
  %1460 = vmatprep.subr.mxu0 0.0
  %1461 = vmatpush1.msra.mxu0 0.0
  %1462 = vmatprep.subr.mxu0 0.0
  %1463 = vmatpush1.msra.mxu0 0.0
  %1464 = vmatprep.mubr.f32.mxu0 0.0
  %1465 = vmatmul.mubr.f32.gmra.mrb[0].mxu0 %v1392
  %v1466 = vpop.f32.mrb[0].mxu0
  %v1467 = vadd.f32 0.0, %v1466
  %v1468 = vpop.f32.mrb[0].mxu0
  %v1469 = vadd.f32 0.0, %v1468
  %1470 = vdwg.mxu0
  %v1471 = vld [vmem:[%s12] sm:$0xff]
  %v1472 = vld [vmem:[%s12 + $0x8] sm:$0xff]
  %v1473 = vld [vmem:[%s12 + $0x10] sm:$0xff]
  %v1474 = vld [vmem:[%s12 + $0x18] sm:$0xff]
  %v1475 = vld [vmem:[%s12 + $0x20] sm:$0xff]
  %v1476 = vld [vmem:[%s12 + $0x28] sm:$0xff]
  %v1477 = vld [vmem:[%s12 + $0x30] sm:$0xff]
  %v1478 = vld [vmem:[%s12 + $0x38] sm:$0xff]
  %v1479 = vld [vmem:[%s12 + $0x40] sm:$0xff]
  %v1480 = vld [vmem:[%s12 + $0x48] sm:$0xff]
  %v1481 = vld [vmem:[%s12 + $0x50] sm:$0xff]
  %v1482 = vld [vmem:[%s12 + $0x58] sm:$0xff]
  %v1483 = vld [vmem:[%s12 + $0x60] sm:$0xff]
  %v1484 = vld [vmem:[%s12 + $0x68] sm:$0xff]
  %v1485 = vld [vmem:[%s12 + $0x70] sm:$0xff]
  %v1486 = vld [vmem:[%s12 + $0x78] sm:$0xff]
  %v1487 = vld [vmem:[%s12 + $0x80] sm:$0xff]
  %v1488 = vld [vmem:[%s12 + $0x88] sm:$0xff]
  %v1489 = vld [vmem:[%s12 + $0x90] sm:$0xff]
  %v1490 = vld [vmem:[%s12 + $0x98] sm:$0xff]
  %v1491 = vld [vmem:[%s12 + $0xa0] sm:$0xff]
  %v1492 = vld [vmem:[%s12 + $0xa8] sm:$0xff]
  %v1493 = vld [vmem:[%s12 + $0xb0] sm:$0xff]
  %v1494 = vld [vmem:[%s12 + $0xb8] sm:$0xff]
  %v1495 = vld [vmem:[%s12 + $0xc0] sm:$0x3f]
  %v1496 = vld [vmem:[%s6] sm:$0xf]
  %1498 = vset.pattern.permute.xlu0 0
  %1499 = vperm.xlu0 %1498, %v1496
  %v1500 = vpop.permute.xlu0 %1499
  %vm1502 = vcmask 572416
  %v1504 = vsel %vm1502, %v1469, 0
  %vm1506 = vcmask 1045504
  %v1508 = vsel %vm1506, %v1495, 0
  %1510 = vmatprep.subr.mxu0 0.0
  %1511 = vmatpush1.msra.mxu0 %v1471
  %1512 = vmatprep.subr.mxu0 0.0
  %1513 = vmatpush1.msra.mxu0 %v1472
  %1514 = vmatprep.subr.mxu0 0.0
  %1515 = vmatpush1.msra.mxu0 %v1473
  %1516 = vmatprep.subr.mxu0 0.0
  %1517 = vmatpush1.msra.mxu0 %v1474
  %1518 = vmatprep.subr.mxu0 0.0
  %1519 = vmatpush1.msra.mxu0 %v1475
  %1520 = vmatprep.subr.mxu0 0.0
  %1521 = vmatpush1.msra.mxu0 %v1476
  %1522 = vmatprep.subr.mxu0 0.0
  %1523 = vmatpush1.msra.mxu0 %v1477
  %1524 = vmatprep.subr.mxu0 0.0
  %1525 = vmatpush1.msra.mxu0 %v1478
  %1526 = vmatprep.subr.mxu0 0.0
  %1527 = vmatpush1.msra.mxu0 %v1479
  %1528 = vmatprep.subr.mxu0 0.0
  %1529 = vmatpush1.msra.mxu0 %v1480
  %1530 = vmatprep.subr.mxu0 0.0
  %1531 = vmatpush1.msra.mxu0 %v1481
  %1532 = vmatprep.subr.mxu0 0.0
  %1533 = vmatpush1.msra.mxu0 %v1482
  %1534 = vmatprep.subr.mxu0 0.0
  %1535 = vmatpush1.msra.mxu0 %v1483
  %1536 = vmatprep.subr.mxu0 0.0
  %1537 = vmatpush1.msra.mxu0 %v1484
  %1538 = vmatprep.subr.mxu0 0.0
  %1539 = vmatpush1.msra.mxu0 %v1485
  %1540 = vmatprep.subr.mxu0 0.0
  %1541 = vmatpush1.msra.mxu0 %v1486
  %1542 = vmatprep.subr.mxu0 0.0
  %1543 = vmatpush1.msra.mxu0 %v1487
  %1544 = vmatprep.subr.mxu0 0.0
  %1545 = vmatpush1.msra.mxu0 %v1488
  %1546 = vmatprep.subr.mxu0 0.0
  %1547 = vmatpush1.msra.mxu0 %v1489
  %1548 = vmatprep.subr.mxu0 0.0
  %1549 = vmatpush1.msra.mxu0 %v1490
  %1550 = vmatprep.subr.mxu0 0.0
  %1551 = vmatpush1.msra.mxu0 %v1491
  %1552 = vmatprep.subr.mxu0 0.0
  %1553 = vmatpush1.msra.mxu0 %v1492
  %1554 = vmatprep.subr.mxu0 0.0
  %1555 = vmatpush1.msra.mxu0 %v1493
  %1556 = vmatprep.subr.mxu0 0.0
  %1557 = vmatpush1.msra.mxu0 %v1494
  %1558 = vmatprep.subr.mxu0 0.0
  %1559 = vmatpush1.msra.mxu0 %v1508
  %1560 = vmatprep.subr.mxu0 0.0
  %1561 = vmatpush1.msra.mxu0 0.0
  %1562 = vmatprep.subr.mxu0 0.0
  %1563 = vmatpush1.msra.mxu0 0.0
  %1564 = vmatprep.subr.mxu0 0.0
  %1565 = vmatpush1.msra.mxu0 0.0
  %1566 = vmatprep.subr.mxu0 0.0
  %1567 = vmatpush1.msra.mxu0 0.0
  %1568 = vmatprep.subr.mxu0 0.0
  %1569 = vmatpush1.msra.mxu0 0.0
  %1570 = vmatprep.subr.mxu0 0.0
  %1571 = vmatpush1.msra.mxu0 0.0
  %1572 = vmatprep.subr.mxu0 0.0
  %1573 = vmatpush1.msra.mxu0 0.0
  %1574 = vmatprep.mubr.f32.mxu0 %v1504
  %1575 = vmatmul.mubr.f32.gmra.mrb[0].mxu0 %v1467
  %v1576 = vpop.f32.mrb[0].mxu0
  %v1577 = vadd.f32 %v1500, %v1576
  %v1578 = vpop.f32.mrb[0].mxu0
  %1579 = vdwg.mxu0
  %vm1580 = vcmask 142336
  %v1581 = vsel %vm1580, %v1577, 0.0
  %1582 = vadd.xlane.f32.xlu0 %v1581
  %v1583 = vpop.xlane.xlu0 %1582
  %v1584 = vrcp.pop 18.0
  %v1585 = vmul.f32 %v1583, %v1584
  %v1586 = vsub.f32 %v1577, %v1585
  %v1587 = vmul.f32 %v1586, %v1586
  %v1588 = vsel %vm1580, %v1587, 0.0
  %1589 = vadd.xlane.f32.xlu0 %v1588
  %v1590 = vpop.xlane.xlu0 %1589
  %v1591 = vmul.f32 %v1590, %v1584
  %v1592 = vld [vmem:[%s7] sm:$0xf]
  %v1593 = vadd.f32 %v1591, 1e-05
  %v1594 = vrsqrt.pop %v1593
  %v1595 = vmul.f32 %v1592, %v1594
  %1597 = vset.pattern.permute.xlu0 0
  %1598 = vperm.xlu0 %1597, %v1595
  %v1599 = vpop.permute.xlu0 %1598
  %v1601 = vmul.f32 %v1586, %v1599
  %v1602 = vld [vmem:[%s8] sm:$0xf]
  %1604 = vset.pattern.permute.xlu0 0
  %1605 = vperm.xlu0 %1604, %v1602
  %v1606 = vpop.permute.xlu0 %1605
  %v1608 = vadd.f32 %v1601, %v1606
  %v1609 = vmax.f32 %v1608, -1.0
  %v1610 = vmin.f32 %v1609, 1.0
  %1612 = vrot.lane.b32.xlu0 %v1610, 18
  %v1613 = vpop.permute.xlu0 %1612
  %1615 = vrot.lane.b32.xlu0 %v1610, 36
  %v1616 = vpop.permute.xlu0 %1615
  %1618 = vrot.lane.b32.xlu0 %v1610, 54
  %v1619 = vpop.permute.xlu0 %1618
  %vm1621 = vcmask 146432
  %v1622 = vsel %vm1621, %v1610, %v1613
  %vm1623 = vcmask 293888
  %v1624 = vsel %vm1623, %v1622, %v1616
  %vm1625 = vcmask 441344
  %v1626 = vsel %vm1625, %v1624, %v1619
  %v1627 = vld [vmem:[%s13] sm:$0xf]
  %v1628 = vmul.f32 %v1626, %v1627
  %vm1629 = vcmask 584704
  %v1630 = vsel %vm1629, %v1628, 0.0
  %v1631 = vrot.slane %v1630, 4
  %v1632 = vadd.f32 %v1630, %v1631
  %v1633 = vrot.slane %v1632, 2
  %v1634 = vadd.f32 %v1632, %v1633
  %v1635 = vrot.slane %v1634, 1
  %v1636 = vadd.f32 %v1634, %v1635
  %v1637 = vld [vmem:[%s14] sm:$0xff]
  %v1638 = vld [vmem:[%s14 + $0x8] sm:$0xff]
  %v1639 = vld [vmem:[%s14 + $0x10] sm:$0xff]
  %v1640 = vld [vmem:[%s14 + $0x18] sm:$0xff]
  %v1641 = vld [vmem:[%s14 + $0x20] sm:$0xff]
  %v1642 = vld [vmem:[%s14 + $0x28] sm:$0xff]
  %v1643 = vld [vmem:[%s14 + $0x30] sm:$0xff]
  %v1644 = vld [vmem:[%s14 + $0x38] sm:$0xff]
  %v1645 = vld [vmem:[%s14 + $0x40] sm:$0xff]
  %v1646 = vld [vmem:[%s14 + $0x48] sm:$0xff]
  %v1647 = vld [vmem:[%s14 + $0x50] sm:$0xff]
  %v1648 = vld [vmem:[%s14 + $0x58] sm:$0xff]
  %v1649 = vld [vmem:[%s14 + $0x60] sm:$0xff]
  %v1650 = vld [vmem:[%s14 + $0x68] sm:$0xff]
  %v1651 = vld [vmem:[%s14 + $0x70] sm:$0xff]
  %v1652 = vld [vmem:[%s14 + $0x78] sm:$0xff]
  %v1653 = vld [vmem:[%s14 + $0x80] sm:$0xff]
  %v1654 = vld [vmem:[%s14 + $0x88] sm:$0xff]
  %v1655 = vld [vmem:[%s15] sm:$0x3]
  %v1657 = vlaneseq
  %v1658 = vshrl.u32 %v1657, 7
  %v1659 = vsub.s32 0, %v1658
  %v1660 = vrot.slane %v1655, %v1659
  %v1661 = vlaneseq
  %v1662 = vshrl.u32 %v1661, 7
  %v1663 = vsub.s32 1, %v1662
  %v1664 = vrot.slane %v1655, %v1663
  %vm1667 = vcmask 588800
  %v1669 = vsel %vm1667, %v1636, 0
  %1671 = vmatprep.subr.mxu0 %v1638
  %1672 = vmatpush1.msra.mxu0 %v1637
  %1673 = vmatprep.subr.mxu0 %v1640
  %1674 = vmatpush1.msra.mxu0 %v1639
  %1675 = vmatprep.subr.mxu0 %v1642
  %1676 = vmatpush1.msra.mxu0 %v1641
  %1677 = vmatprep.subr.mxu0 %v1644
  %1678 = vmatpush1.msra.mxu0 %v1643
  %1679 = vmatprep.subr.mxu0 %v1646
  %1680 = vmatpush1.msra.mxu0 %v1645
  %1681 = vmatprep.subr.mxu0 %v1648
  %1682 = vmatpush1.msra.mxu0 %v1647
  %1683 = vmatprep.subr.mxu0 %v1650
  %1684 = vmatpush1.msra.mxu0 %v1649
  %1685 = vmatprep.subr.mxu0 %v1652
  %1686 = vmatpush1.msra.mxu0 %v1651
  %1687 = vmatprep.subr.mxu0 %v1654
  %1688 = vmatpush1.msra.mxu0 %v1653
  %1689 = vmatprep.subr.mxu0 0.0
  %1690 = vmatpush1.msra.mxu0 0.0
  %1691 = vmatprep.subr.mxu0 0.0
  %1692 = vmatpush1.msra.mxu0 0.0
  %1693 = vmatprep.subr.mxu0 0.0
  %1694 = vmatpush1.msra.mxu0 0.0
  %1695 = vmatprep.subr.mxu0 0.0
  %1696 = vmatpush1.msra.mxu0 0.0
  %1697 = vmatprep.subr.mxu0 0.0
  %1698 = vmatpush1.msra.mxu0 0.0
  %1699 = vmatprep.subr.mxu0 0.0
  %1700 = vmatpush1.msra.mxu0 0.0
  %1701 = vmatprep.subr.mxu0 0.0
  %1702 = vmatpush1.msra.mxu0 0.0
  %1703 = vmatprep.subr.mxu0 0.0
  %1704 = vmatpush1.msra.mxu0 0.0
  %1705 = vmatprep.subr.mxu0 0.0
  %1706 = vmatpush1.msra.mxu0 0.0
  %1707 = vmatprep.subr.mxu0 0.0
  %1708 = vmatpush1.msra.mxu0 0.0
  %1709 = vmatprep.subr.mxu0 0.0
  %1710 = vmatpush1.msra.mxu0 0.0
  %1711 = vmatprep.subr.mxu0 0.0
  %1712 = vmatpush1.msra.mxu0 0.0
  %1713 = vmatprep.subr.mxu0 0.0
  %1714 = vmatpush1.msra.mxu0 0.0
  %1715 = vmatprep.subr.mxu0 0.0
  %1716 = vmatpush1.msra.mxu0 0.0
  %1717 = vmatprep.subr.mxu0 0.0
  %1718 = vmatpush1.msra.mxu0 0.0
  %1719 = vmatprep.subr.mxu0 0.0
  %1720 = vmatpush1.msra.mxu0 0.0
  %1721 = vmatprep.subr.mxu0 0.0
  %1722 = vmatpush1.msra.mxu0 0.0
  %1723 = vmatprep.subr.mxu0 0.0
  %1724 = vmatpush1.msra.mxu0 0.0
  %1725 = vmatprep.subr.mxu0 0.0
  %1726 = vmatpush1.msra.mxu0 0.0
  %1727 = vmatprep.subr.mxu0 0.0
  %1728 = vmatpush1.msra.mxu0 0.0
  %1729 = vmatprep.subr.mxu0 0.0
  %1730 = vmatpush1.msra.mxu0 0.0
  %1731 = vmatprep.subr.mxu0 0.0
  %1732 = vmatpush1.msra.mxu0 0.0
  %1733 = vmatprep.subr.mxu0 0.0
  %1734 = vmatpush1.msra.mxu0 0.0
  %1735 = vmatprep.mubr.f32.mxu0 0.0
  %1736 = vmatmul.mubr.f32.gmra.mrb[0].mxu0 %v1669
  %v1737 = vpop.f32.mrb[0].mxu0
  %v1738 = vadd.f32 %v1660, %v1737
  %v1739 = vpop.f32.mrb[0].mxu0
  %v1740 = vadd.f32 %v1664, %v1739
  %1741 = vdwg.mxu0
  %v1742 = vld [vmem:[%s16] sm:$0xff]
  %v1743 = vld [vmem:[%s17] sm:$0xff]
  %v1744 = vld [vmem:[%s18] sm:$0xff]
  %v1745 = vld [vmem:[%s19] sm:$0x1]
  %vm1746 = vcmask 64512
  %v1748 = vsel %vm1746, 0.0, 0
  %1750 = vmatprep.subr.mxu0 0.0
  %1751 = vmatpush1.msra.mxu0 %v1742
  %1752 = vmatprep.subr.mxu0 0.0
  %1753 = vmatpush1.msra.mxu0 0.0
  %1754 = vmatprep.subr.mxu0 0.0
  %1755 = vmatpush1.msra.mxu0 0.0
  %1756 = vmatprep.subr.mxu0 0.0
  %1757 = vmatpush1.msra.mxu0 0.0
  %1758 = vmatprep.subr.mxu0 0.0
  %1759 = vmatpush1.msra.mxu0 0.0
  %1760 = vmatprep.subr.mxu0 0.0
  %1761 = vmatpush1.msra.mxu0 0.0
  %1762 = vmatprep.subr.mxu0 0.0
  %1763 = vmatpush1.msra.mxu0 0.0
  %1764 = vmatprep.subr.mxu0 0.0
  %1765 = vmatpush1.msra.mxu0 0.0
  %1766 = vmatprep.subr.mxu0 0.0
  %1767 = vmatpush1.msra.mxu0 0.0
  %1768 = vmatprep.subr.mxu0 0.0
  %1769 = vmatpush1.msra.mxu0 0.0
  %1770 = vmatprep.subr.mxu0 0.0
  %1771 = vmatpush1.msra.mxu0 0.0
  %1772 = vmatprep.subr.mxu0 0.0
  %1773 = vmatpush1.msra.mxu0 0.0
  %1774 = vmatprep.subr.mxu0 0.0
  %1775 = vmatpush1.msra.mxu0 0.0
  %1776 = vmatprep.subr.mxu0 0.0
  %1777 = vmatpush1.msra.mxu0 0.0
  %1778 = vmatprep.subr.mxu0 0.0
  %1779 = vmatpush1.msra.mxu0 0.0
  %1780 = vmatprep.subr.mxu0 0.0
  %1781 = vmatpush1.msra.mxu0 0.0
  %1782 = vmatprep.subr.mxu0 0.0
  %1783 = vmatpush1.msra.mxu0 0.0
  %1784 = vmatprep.subr.mxu0 0.0
  %1785 = vmatpush1.msra.mxu0 0.0
  %1786 = vmatprep.subr.mxu0 0.0
  %1787 = vmatpush1.msra.mxu0 0.0
  %1788 = vmatprep.subr.mxu0 0.0
  %1789 = vmatpush1.msra.mxu0 0.0
  %1790 = vmatprep.subr.mxu0 0.0
  %1791 = vmatpush1.msra.mxu0 0.0
  %1792 = vmatprep.subr.mxu0 0.0
  %1793 = vmatpush1.msra.mxu0 0.0
  %1794 = vmatprep.subr.mxu0 0.0
  %1795 = vmatpush1.msra.mxu0 0.0
  %1796 = vmatprep.subr.mxu0 0.0
  %1797 = vmatpush1.msra.mxu0 0.0
  %1798 = vmatprep.subr.mxu0 0.0
  %1799 = vmatpush1.msra.mxu0 0.0
  %1800 = vmatprep.subr.mxu0 0.0
  %1801 = vmatpush1.msra.mxu0 0.0
  %1802 = vmatprep.subr.mxu0 0.0
  %1803 = vmatpush1.msra.mxu0 0.0
  %1804 = vmatprep.subr.mxu0 0.0
  %1805 = vmatpush1.msra.mxu0 0.0
  %1806 = vmatprep.subr.mxu0 0.0
  %1807 = vmatpush1.msra.mxu0 0.0
  %1808 = vmatprep.subr.mxu0 0.0
  %1809 = vmatpush1.msra.mxu0 0.0
  %1810 = vmatprep.subr.mxu0 0.0
  %1811 = vmatpush1.msra.mxu0 0.0
  %1812 = vmatprep.subr.mxu0 0.0
  %1813 = vmatpush1.msra.mxu0 0.0
  %1814 = vmatprep.mubr.f32.mxu0 0.0
  %1815 = vmatmul.mubr.f32.gmra.mrb[0].mxu0 %v1748
  %v1816 = vpop.f32.mrb[0].mxu0
  %v1817 = vadd.f32 0.0, %v1816
  %v1818 = vpop.f32.mrb[0].mxu0
  %1819 = vdwg.mxu0
  %v1820 = vadd.f32 %v1738, %v1817
  %v1821 = vmax.f32 %v1820, 0.0
  %1822 = vmatprep.subr.mxu0 0.0
  %1823 = vmatpush1.msra.mxu0 %v1744
  %1824 = vmatprep.subr.mxu0 0.0
  %1825 = vmatpush1.msra.mxu0 0.0
  %1826 = vmatprep.subr.mxu0 0.0
  %1827 = vmatpush1.msra.mxu0 0.0
  %1828 = vmatprep.subr.mxu0 0.0
  %1829 = vmatpush1.msra.mxu0 0.0
  %1830 = vmatprep.subr.mxu0 0.0
  %1831 = vmatpush1.msra.mxu0 0.0
  %1832 = vmatprep.subr.mxu0 0.0
  %1833 = vmatpush1.msra.mxu0 0.0
  %1834 = vmatprep.subr.mxu0 0.0
  %1835 = vmatpush1.msra.mxu0 0.0
  %1836 = vmatprep.subr.mxu0 0.0
  %1837 = vmatpush1.msra.mxu0 0.0
  %1838 = vmatprep.subr.mxu0 0.0
  %1839 = vmatpush1.msra.mxu0 0.0
  %1840 = vmatprep.subr.mxu0 0.0
  %1841 = vmatpush1.msra.mxu0 0.0
  %1842 = vmatprep.subr.mxu0 0.0
  %1843 = vmatpush1.msra.mxu0 0.0
  %1844 = vmatprep.subr.mxu0 0.0
  %1845 = vmatpush1.msra.mxu0 0.0
  %1846 = vmatprep.subr.mxu0 0.0
  %1847 = vmatpush1.msra.mxu0 0.0
  %1848 = vmatprep.subr.mxu0 0.0
  %1849 = vmatpush1.msra.mxu0 0.0
  %1850 = vmatprep.subr.mxu0 0.0
  %1851 = vmatpush1.msra.mxu0 0.0
  %1852 = vmatprep.subr.mxu0 0.0
  %1853 = vmatpush1.msra.mxu0 0.0
  %1854 = vmatprep.subr.mxu0 0.0
  %1855 = vmatpush1.msra.mxu0 0.0
  %1856 = vmatprep.subr.mxu0 0.0
  %1857 = vmatpush1.msra.mxu0 0.0
  %1858 = vmatprep.subr.mxu0 0.0
  %1859 = vmatpush1.msra.mxu0 0.0
  %1860 = vmatprep.subr.mxu0 0.0
  %1861 = vmatpush1.msra.mxu0 0.0
  %1862 = vmatprep.subr.mxu0 0.0
  %1863 = vmatpush1.msra.mxu0 0.0
  %1864 = vmatprep.subr.mxu0 0.0
  %1865 = vmatpush1.msra.mxu0 0.0
  %1866 = vmatprep.subr.mxu0 0.0
  %1867 = vmatpush1.msra.mxu0 0.0
  %1868 = vmatprep.subr.mxu0 0.0
  %1869 = vmatpush1.msra.mxu0 0.0
  %1870 = vmatprep.subr.mxu0 0.0
  %1871 = vmatpush1.msra.mxu0 0.0
  %1872 = vmatprep.subr.mxu0 0.0
  %1873 = vmatpush1.msra.mxu0 0.0
  %1874 = vmatprep.subr.mxu0 0.0
  %1875 = vmatpush1.msra.mxu0 0.0
  %1876 = vmatprep.subr.mxu0 0.0
  %1877 = vmatpush1.msra.mxu0 0.0
  %1878 = vmatprep.subr.mxu0 0.0
  %1879 = vmatpush1.msra.mxu0 0.0
  %1880 = vmatprep.subr.mxu0 0.0
  %1881 = vmatpush1.msra.mxu0 0.0
  %1882 = vmatprep.subr.mxu0 0.0
  %1883 = vmatpush1.msra.mxu0 0.0
  %1884 = vmatprep.subr.mxu0 0.0
  %1885 = vmatpush1.msra.mxu0 0.0
  %1886 = vmatprep.mubr.f32.mxu0 0.0
  %1887 = vmatmul.mubr.f32.gmra.mrb[0].mxu0 %v1748
  %v1888 = vpop.f32.mrb[0].mxu0
  %v1889 = vadd.f32 %v1745, %v1888
  %v1890 = vpop.f32.mrb[0].mxu0
  %1891 = vdwg.mxu0
  %v1893 = vsel %vm1746, %v1821, 0
  %1895 = vmatprep.subr.mxu0 0.0
  %1896 = vmatpush1.msra.mxu0 %v1743
  %1897 = vmatprep.subr.mxu0 0.0
  %1898 = vmatpush1.msra.mxu0 0.0
  %1899 = vmatprep.subr.mxu0 0.0
  %1900 = vmatpush1.msra.mxu0 0.0
  %1901 = vmatprep.subr.mxu0 0.0
  %1902 = vmatpush1.msra.mxu0 0.0
  %1903 = vmatprep.subr.mxu0 0.0
  %1904 = vmatpush1.msra.mxu0 0.0
  %1905 = vmatprep.subr.mxu0 0.0
  %1906 = vmatpush1.msra.mxu0 0.0
  %1907 = vmatprep.subr.mxu0 0.0
  %1908 = vmatpush1.msra.mxu0 0.0
  %1909 = vmatprep.subr.mxu0 0.0
  %1910 = vmatpush1.msra.mxu0 0.0
  %1911 = vmatprep.subr.mxu0 0.0
  %1912 = vmatpush1.msra.mxu0 0.0
  %1913 = vmatprep.subr.mxu0 0.0
  %1914 = vmatpush1.msra.mxu0 0.0
  %1915 = vmatprep.subr.mxu0 0.0
  %1916 = vmatpush1.msra.mxu0 0.0
  %1917 = vmatprep.subr.mxu0 0.0
  %1918 = vmatpush1.msra.mxu0 0.0
  %1919 = vmatprep.subr.mxu0 0.0
  %1920 = vmatpush1.msra.mxu0 0.0
  %1921 = vmatprep.subr.mxu0 0.0
  %1922 = vmatpush1.msra.mxu0 0.0
  %1923 = vmatprep.subr.mxu0 0.0
  %1924 = vmatpush1.msra.mxu0 0.0
  %1925 = vmatprep.subr.mxu0 0.0
  %1926 = vmatpush1.msra.mxu0 0.0
  %1927 = vmatprep.subr.mxu0 0.0
  %1928 = vmatpush1.msra.mxu0 0.0
  %1929 = vmatprep.subr.mxu0 0.0
  %1930 = vmatpush1.msra.mxu0 0.0
  %1931 = vmatprep.subr.mxu0 0.0
  %1932 = vmatpush1.msra.mxu0 0.0
  %1933 = vmatprep.subr.mxu0 0.0
  %1934 = vmatpush1.msra.mxu0 0.0
  %1935 = vmatprep.subr.mxu0 0.0
  %1936 = vmatpush1.msra.mxu0 0.0
  %1937 = vmatprep.subr.mxu0 0.0
  %1938 = vmatpush1.msra.mxu0 0.0
  %1939 = vmatprep.subr.mxu0 0.0
  %1940 = vmatpush1.msra.mxu0 0.0
  %1941 = vmatprep.subr.mxu0 0.0
  %1942 = vmatpush1.msra.mxu0 0.0
  %1943 = vmatprep.subr.mxu0 0.0
  %1944 = vmatpush1.msra.mxu0 0.0
  %1945 = vmatprep.subr.mxu0 0.0
  %1946 = vmatpush1.msra.mxu0 0.0
  %1947 = vmatprep.subr.mxu0 0.0
  %1948 = vmatpush1.msra.mxu0 0.0
  %1949 = vmatprep.subr.mxu0 0.0
  %1950 = vmatpush1.msra.mxu0 0.0
  %1951 = vmatprep.subr.mxu0 0.0
  %1952 = vmatpush1.msra.mxu0 0.0
  %1953 = vmatprep.subr.mxu0 0.0
  %1954 = vmatpush1.msra.mxu0 0.0
  %1955 = vmatprep.subr.mxu0 0.0
  %1956 = vmatpush1.msra.mxu0 0.0
  %1957 = vmatprep.subr.mxu0 0.0
  %1958 = vmatpush1.msra.mxu0 0.0
  %1959 = vmatprep.mubr.f32.mxu0 0.0
  %1960 = vmatmul.mubr.f32.gmra.mrb[0].mxu0 %v1893
  %v1961 = vpop.f32.mrb[0].mxu0
  %v1962 = vadd.f32 %v1889, %v1961
  %v1963 = vpop.f32.mrb[0].mxu0
  %1964 = vdwg.mxu0
  %v1965 = vmax.f32 %v1962, 0.0
  %vm1966 = vcmask 57344
  %1967 = vst.msk [vmem:[#allocation2] sm:$0x1] %vm1966, %v1965
  %1968 = vmatprep.subr.mxu0 0.0
  %1969 = vmatpush1.msra.mxu0 %v1742
  %1970 = vmatprep.subr.mxu0 0.0
  %1971 = vmatpush1.msra.mxu0 0.0
  %1972 = vmatprep.subr.mxu0 0.0
  %1973 = vmatpush1.msra.mxu0 0.0
  %1974 = vmatprep.subr.mxu0 0.0
  %1975 = vmatpush1.msra.mxu0 0.0
  %1976 = vmatprep.subr.mxu0 0.0
  %1977 = vmatpush1.msra.mxu0 0.0
  %1978 = vmatprep.subr.mxu0 0.0
  %1979 = vmatpush1.msra.mxu0 0.0
  %1980 = vmatprep.subr.mxu0 0.0
  %1981 = vmatpush1.msra.mxu0 0.0
  %1982 = vmatprep.subr.mxu0 0.0
  %1983 = vmatpush1.msra.mxu0 0.0
  %1984 = vmatprep.subr.mxu0 0.0
  %1985 = vmatpush1.msra.mxu0 0.0
  %1986 = vmatprep.subr.mxu0 0.0
  %1987 = vmatpush1.msra.mxu0 0.0
  %1988 = vmatprep.subr.mxu0 0.0
  %1989 = vmatpush1.msra.mxu0 0.0
  %1990 = vmatprep.subr.mxu0 0.0
  %1991 = vmatpush1.msra.mxu0 0.0
  %1992 = vmatprep.subr.mxu0 0.0
  %1993 = vmatpush1.msra.mxu0 0.0
  %1994 = vmatprep.subr.mxu0 0.0
  %1995 = vmatpush1.msra.mxu0 0.0
  %1996 = vmatprep.subr.mxu0 0.0
  %1997 = vmatpush1.msra.mxu0 0.0
  %1998 = vmatprep.subr.mxu0 0.0
  %1999 = vmatpush1.msra.mxu0 0.0
  %2000 = vmatprep.subr.mxu0 0.0
  %2001 = vmatpush1.msra.mxu0 0.0
  %2002 = vmatprep.subr.mxu0 0.0
  %2003 = vmatpush1.msra.mxu0 0.0
  %2004 = vmatprep.subr.mxu0 0.0
  %2005 = vmatpush1.msra.mxu0 0.0
  %2006 = vmatprep.subr.mxu0 0.0
  %2007 = vmatpush1.msra.mxu0 0.0
  %2008 = vmatprep.subr.mxu0 0.0
  %2009 = vmatpush1.msra.mxu0 0.0
  %2010 = vmatprep.subr.mxu0 0.0
  %2011 = vmatpush1.msra.mxu0 0.0
  %2012 = vmatprep.subr.mxu0 0.0
  %2013 = vmatpush1.msra.mxu0 0.0
  %2014 = vmatprep.subr.mxu0 0.0
  %2015 = vmatpush1.msra.mxu0 0.0
  %2016 = vmatprep.subr.mxu0 0.0
  %2017 = vmatpush1.msra.mxu0 0.0
  %2018 = vmatprep.subr.mxu0 0.0
  %2019 = vmatpush1.msra.mxu0 0.0
  %2020 = vmatprep.subr.mxu0 0.0
  %2021 = vmatpush1.msra.mxu0 0.0
  %2022 = vmatprep.subr.mxu0 0.0
  %2023 = vmatpush1.msra.mxu0 0.0
  %2024 = vmatprep.subr.mxu0 0.0
  %2025 = vmatpush1.msra.mxu0 0.0
  %2026 = vmatprep.subr.mxu0 0.0
  %2027 = vmatpush1.msra.mxu0 0.0
  %2028 = vmatprep.subr.mxu0 0.0
  %2029 = vmatpush1.msra.mxu0 0.0
  %2030 = vmatprep.subr.mxu0 0.0
  %2031 = vmatpush1.msra.mxu0 0.0
  %2032 = vmatprep.mubr.f32.mxu0 0.0
  %2033 = vmatmul.mubr.f32.gmra.mrb[0].mxu0 %v1893
  %v2034 = vpop.f32.mrb[0].mxu0
  %v2035 = vadd.f32 0.0, %v2034
  %v2036 = vpop.f32.mrb[0].mxu0
  %2037 = vdwg.mxu0
  %2039 = vrot.lane.b32.xlu0 %v2035, 8
  %v2040 = vpop.permute.xlu0 %2039
  %v2042 = vadd.f32 %v1738, %v2040
  %v2043 = vmax.f32 %v2042, 0.0
  %v2045 = vsel %vm1746, %v1965, 0
  %2047 = vmatprep.subr.mxu0 0.0
  %2048 = vmatpush1.msra.mxu0 %v1744
  %2049 = vmatprep.subr.mxu0 0.0
  %2050 = vmatpush1.msra.mxu0 0.0
  %2051 = vmatprep.subr.mxu0 0.0
  %2052 = vmatpush1.msra.mxu0 0.0
  %2053 = vmatprep.subr.mxu0 0.0
  %2054 = vmatpush1.msra.mxu0 0.0
  %2055 = vmatprep.subr.mxu0 0.0
  %2056 = vmatpush1.msra.mxu0 0.0
  %2057 = vmatprep.subr.mxu0 0.0
  %2058 = vmatpush1.msra.mxu0 0.0
  %2059 = vmatprep.subr.mxu0 0.0
  %2060 = vmatpush1.msra.mxu0 0.0
  %2061 = vmatprep.subr.mxu0 0.0
  %2062 = vmatpush1.msra.mxu0 0.0
  %2063 = vmatprep.subr.mxu0 0.0
  %2064 = vmatpush1.msra.mxu0 0.0
  %2065 = vmatprep.subr.mxu0 0.0
  %2066 = vmatpush1.msra.mxu0 0.0
  %2067 = vmatprep.subr.mxu0 0.0
  %2068 = vmatpush1.msra.mxu0 0.0
  %2069 = vmatprep.subr.mxu0 0.0
  %2070 = vmatpush1.msra.mxu0 0.0
  %2071 = vmatprep.subr.mxu0 0.0
  %2072 = vmatpush1.msra.mxu0 0.0
  %2073 = vmatprep.subr.mxu0 0.0
  %2074 = vmatpush1.msra.mxu0 0.0
  %2075 = vmatprep.subr.mxu0 0.0
  %2076 = vmatpush1.msra.mxu0 0.0
  %2077 = vmatprep.subr.mxu0 0.0
  %2078 = vmatpush1.msra.mxu0 0.0
  %2079 = vmatprep.subr.mxu0 0.0
  %2080 = vmatpush1.msra.mxu0 0.0
  %2081 = vmatprep.subr.mxu0 0.0
  %2082 = vmatpush1.msra.mxu0 0.0
  %2083 = vmatprep.subr.mxu0 0.0
  %2084 = vmatpush1.msra.mxu0 0.0
  %2085 = vmatprep.subr.mxu0 0.0
  %2086 = vmatpush1.msra.mxu0 0.0
  %2087 = vmatprep.subr.mxu0 0.0
  %2088 = vmatpush1.msra.mxu0 0.0
  %2089 = vmatprep.subr.mxu0 0.0
  %2090 = vmatpush1.msra.mxu0 0.0
  %2091 = vmatprep.subr.mxu0 0.0
  %2092 = vmatpush1.msra.mxu0 0.0
  %2093 = vmatprep.subr.mxu0 0.0
  %2094 = vmatpush1.msra.mxu0 0.0
  %2095 = vmatprep.subr.mxu0 0.0
  %2096 = vmatpush1.msra.mxu0 0.0
  %2097 = vmatprep.subr.mxu0 0.0
  %2098 = vmatpush1.msra.mxu0 0.0
  %2099 = vmatprep.subr.mxu0 0.0
  %2100 = vmatpush1.msra.mxu0 0.0
  %2101 = vmatprep.subr.mxu0 0.0
  %2102 = vmatpush1.msra.mxu0 0.0
  %2103 = vmatprep.subr.mxu0 0.0
  %2104 = vmatpush1.msra.mxu0 0.0
  %2105 = vmatprep.subr.mxu0 0.0
  %2106 = vmatpush1.msra.mxu0 0.0
  %2107 = vmatprep.subr.mxu0 0.0
  %2108 = vmatpush1.msra.mxu0 0.0
  %2109 = vmatprep.subr.mxu0 0.0
  %2110 = vmatpush1.msra.mxu0 0.0
  %2111 = vmatprep.mubr.f32.mxu0 0.0
  %2112 = vmatmul.mubr.f32.gmra.mrb[0].mxu0 %v2045
  %v2113 = vpop.f32.mrb[0].mxu0
  %v2114 = vadd.f32 %v1745, %v2113
  %v2115 = vpop.f32.mrb[0].mxu0
  %2116 = vdwg.mxu0
  %2118 = vrot.lane.b32.xlu0 %v2043, 120
  %v2119 = vpop.permute.xlu0 %2118
  %v2120 = vsel %vm1746, %v2119, 0
  %2122 = vmatprep.subr.mxu0 0.0
  %2123 = vmatpush1.msra.mxu0 %v1743
  %2124 = vmatprep.subr.mxu0 0.0
  %2125 = vmatpush1.msra.mxu0 0.0
  %2126 = vmatprep.subr.mxu0 0.0
  %2127 = vmatpush1.msra.mxu0 0.0
  %2128 = vmatprep.subr.mxu0 0.0
  %2129 = vmatpush1.msra.mxu0 0.0
  %2130 = vmatprep.subr.mxu0 0.0
  %2131 = vmatpush1.msra.mxu0 0.0
  %2132 = vmatprep.subr.mxu0 0.0
  %2133 = vmatpush1.msra.mxu0 0.0
  %2134 = vmatprep.subr.mxu0 0.0
  %2135 = vmatpush1.msra.mxu0 0.0
  %2136 = vmatprep.subr.mxu0 0.0
  %2137 = vmatpush1.msra.mxu0 0.0
  %2138 = vmatprep.subr.mxu0 0.0
  %2139 = vmatpush1.msra.mxu0 0.0
  %2140 = vmatprep.subr.mxu0 0.0
  %2141 = vmatpush1.msra.mxu0 0.0
  %2142 = vmatprep.subr.mxu0 0.0
  %2143 = vmatpush1.msra.mxu0 0.0
  %2144 = vmatprep.subr.mxu0 0.0
  %2145 = vmatpush1.msra.mxu0 0.0
  %2146 = vmatprep.subr.mxu0 0.0
  %2147 = vmatpush1.msra.mxu0 0.0
  %2148 = vmatprep.subr.mxu0 0.0
  %2149 = vmatpush1.msra.mxu0 0.0
  %2150 = vmatprep.subr.mxu0 0.0
  %2151 = vmatpush1.msra.mxu0 0.0
  %2152 = vmatprep.subr.mxu0 0.0
  %2153 = vmatpush1.msra.mxu0 0.0
  %2154 = vmatprep.subr.mxu0 0.0
  %2155 = vmatpush1.msra.mxu0 0.0
  %2156 = vmatprep.subr.mxu0 0.0
  %2157 = vmatpush1.msra.mxu0 0.0
  %2158 = vmatprep.subr.mxu0 0.0
  %2159 = vmatpush1.msra.mxu0 0.0
  %2160 = vmatprep.subr.mxu0 0.0
  %2161 = vmatpush1.msra.mxu0 0.0
  %2162 = vmatprep.subr.mxu0 0.0
  %2163 = vmatpush1.msra.mxu0 0.0
  %2164 = vmatprep.subr.mxu0 0.0
  %2165 = vmatpush1.msra.mxu0 0.0
  %2166 = vmatprep.subr.mxu0 0.0
  %2167 = vmatpush1.msra.mxu0 0.0
  %2168 = vmatprep.subr.mxu0 0.0
  %2169 = vmatpush1.msra.mxu0 0.0
  %2170 = vmatprep.subr.mxu0 0.0
  %2171 = vmatpush1.msra.mxu0 0.0
  %2172 = vmatprep.subr.mxu0 0.0
  %2173 = vmatpush1.msra.mxu0 0.0
  %2174 = vmatprep.subr.mxu0 0.0
  %2175 = vmatpush1.msra.mxu0 0.0
  %2176 = vmatprep.subr.mxu0 0.0
  %2177 = vmatpush1.msra.mxu0 0.0
  %2178 = vmatprep.subr.mxu0 0.0
  %2179 = vmatpush1.msra.mxu0 0.0
  %2180 = vmatprep.subr.mxu0 0.0
  %2181 = vmatpush1.msra.mxu0 0.0
  %2182 = vmatprep.subr.mxu0 0.0
  %2183 = vmatpush1.msra.mxu0 0.0
  %2184 = vmatprep.subr.mxu0 0.0
  %2185 = vmatpush1.msra.mxu0 0.0
  %2186 = vmatprep.mubr.f32.mxu0 0.0
  %2187 = vmatmul.mubr.f32.gmra.mrb[0].mxu0 %v2120
  %v2188 = vpop.f32.mrb[0].mxu0
  %v2189 = vadd.f32 %v2114, %v2188
  %v2190 = vpop.f32.mrb[0].mxu0
  %2191 = vdwg.mxu0
  %v2192 = vmax.f32 %v2189, 0.0
  %2193 = vst.msk [vmem:[#allocation2 + $0x1] sm:$0x1] %vm1966, %v2192
  %2194 = vmatprep.subr.mxu0 0.0
  %2195 = vmatpush1.msra.mxu0 %v1742
  %2196 = vmatprep.subr.mxu0 0.0
  %2197 = vmatpush1.msra.mxu0 0.0
  %2198 = vmatprep.subr.mxu0 0.0
  %2199 = vmatpush1.msra.mxu0 0.0
  %2200 = vmatprep.subr.mxu0 0.0
  %2201 = vmatpush1.msra.mxu0 0.0
  %2202 = vmatprep.subr.mxu0 0.0
  %2203 = vmatpush1.msra.mxu0 0.0
  %2204 = vmatprep.subr.mxu0 0.0
  %2205 = vmatpush1.msra.mxu0 0.0
  %2206 = vmatprep.subr.mxu0 0.0
  %2207 = vmatpush1.msra.mxu0 0.0
  %2208 = vmatprep.subr.mxu0 0.0
  %2209 = vmatpush1.msra.mxu0 0.0
  %2210 = vmatprep.subr.mxu0 0.0
  %2211 = vmatpush1.msra.mxu0 0.0
  %2212 = vmatprep.subr.mxu0 0.0
  %2213 = vmatpush1.msra.mxu0 0.0
  %2214 = vmatprep.subr.mxu0 0.0
  %2215 = vmatpush1.msra.mxu0 0.0
  %2216 = vmatprep.subr.mxu0 0.0
  %2217 = vmatpush1.msra.mxu0 0.0
  %2218 = vmatprep.subr.mxu0 0.0
  %2219 = vmatpush1.msra.mxu0 0.0
  %2220 = vmatprep.subr.mxu0 0.0
  %2221 = vmatpush1.msra.mxu0 0.0
  %2222 = vmatprep.subr.mxu0 0.0
  %2223 = vmatpush1.msra.mxu0 0.0
  %2224 = vmatprep.subr.mxu0 0.0
  %2225 = vmatpush1.msra.mxu0 0.0
  %2226 = vmatprep.subr.mxu0 0.0
  %2227 = vmatpush1.msra.mxu0 0.0
  %2228 = vmatprep.subr.mxu0 0.0
  %2229 = vmatpush1.msra.mxu0 0.0
  %2230 = vmatprep.subr.mxu0 0.0
  %2231 = vmatpush1.msra.mxu0 0.0
  %2232 = vmatprep.subr.mxu0 0.0
  %2233 = vmatpush1.msra.mxu0 0.0
  %2234 = vmatprep.subr.mxu0 0.0
  %2235 = vmatpush1.msra.mxu0 0.0
  %2236 = vmatprep.subr.mxu0 0.0
  %2237 = vmatpush1.msra.mxu0 0.0
  %2238 = vmatprep.subr.mxu0 0.0
  %2239 = vmatpush1.msra.mxu0 0.0
  %2240 = vmatprep.subr.mxu0 0.0
  %2241 = vmatpush1.msra.mxu0 0.0
  %2242 = vmatprep.subr.mxu0 0.0
  %2243 = vmatpush1.msra.mxu0 0.0
  %2244 = vmatprep.subr.mxu0 0.0
  %2245 = vmatpush1.msra.mxu0 0.0
  %2246 = vmatprep.subr.mxu0 0.0
  %2247 = vmatpush1.msra.mxu0 0.0
  %2248 = vmatprep.subr.mxu0 0.0
  %2249 = vmatpush1.msra.mxu0 0.0
  %2250 = vmatprep.subr.mxu0 0.0
  %2251 = vmatpush1.msra.mxu0 0.0
  %2252 = vmatprep.subr.mxu0 0.0
  %2253 = vmatpush1.msra.mxu0 0.0
  %2254 = vmatprep.subr.mxu0 0.0
  %2255 = vmatpush1.msra.mxu0 0.0
  %2256 = vmatprep.subr.mxu0 0.0
  %2257 = vmatpush1.msra.mxu0 0.0
  %2258 = vmatprep.mubr.f32.mxu0 0.0
  %2259 = vmatmul.mubr.f32.gmra.mrb[0].mxu0 %v2120
  %v2260 = vpop.f32.mrb[0].mxu0
  %v2261 = vadd.f32 0.0, %v2260
  %v2262 = vpop.f32.mrb[0].mxu0
  %2263 = vdwg.mxu0
  %2265 = vrot.lane.b32.xlu0 %v2261, 16
  %v2266 = vpop.permute.xlu0 %2265
  %v2268 = vadd.f32 %v1738, %v2266
  %v2269 = vmax.f32 %v2268, 0.0
  %v2271 = vsel %vm1746, %v2192, 0
  %2273 = vmatprep.subr.mxu0 0.0
  %2274 = vmatpush1.msra.mxu0 %v1744
  %2275 = vmatprep.subr.mxu0 0.0
  %2276 = vmatpush1.msra.mxu0 0.0
  %2277 = vmatprep.subr.mxu0 0.0
  %2278 = vmatpush1.msra.mxu0 0.0
  %2279 = vmatprep.subr.mxu0 0.0
  %2280 = vmatpush1.msra.mxu0 0.0
  %2281 = vmatprep.subr.mxu0 0.0
  %2282 = vmatpush1.msra.mxu0 0.0
  %2283 = vmatprep.subr.mxu0 0.0
  %2284 = vmatpush1.msra.mxu0 0.0
  %2285 = vmatprep.subr.mxu0 0.0
  %2286 = vmatpush1.msra.mxu0 0.0
  %2287 = vmatprep.subr.mxu0 0.0
  %2288 = vmatpush1.msra.mxu0 0.0
  %2289 = vmatprep.subr.mxu0 0.0
  %2290 = vmatpush1.msra.mxu0 0.0
  %2291 = vmatprep.subr.mxu0 0.0
  %2292 = vmatpush1.msra.mxu0 0.0
  %2293 = vmatprep.subr.mxu0 0.0
  %2294 = vmatpush1.msra.mxu0 0.0
  %2295 = vmatprep.subr.mxu0 0.0
  %2296 = vmatpush1.msra.mxu0 0.0
  %2297 = vmatprep.subr.mxu0 0.0
  %2298 = vmatpush1.msra.mxu0 0.0
  %2299 = vmatprep.subr.mxu0 0.0
  %2300 = vmatpush1.msra.mxu0 0.0
  %2301 = vmatprep.subr.mxu0 0.0
  %2302 = vmatpush1.msra.mxu0 0.0
  %2303 = vmatprep.subr.mxu0 0.0
  %2304 = vmatpush1.msra.mxu0 0.0
  %2305 = vmatprep.subr.mxu0 0.0
  %2306 = vmatpush1.msra.mxu0 0.0
  %2307 = vmatprep.subr.mxu0 0.0
  %2308 = vmatpush1.msra.mxu0 0.0
  %2309 = vmatprep.subr.mxu0 0.0
  %2310 = vmatpush1.msra.mxu0 0.0
  %2311 = vmatprep.subr.mxu0 0.0
  %2312 = vmatpush1.msra.mxu0 0.0
  %2313 = vmatprep.subr.mxu0 0.0
  %2314 = vmatpush1.msra.mxu0 0.0
  %2315 = vmatprep.subr.mxu0 0.0
  %2316 = vmatpush1.msra.mxu0 0.0
  %2317 = vmatprep.subr.mxu0 0.0
  %2318 = vmatpush1.msra.mxu0 0.0
  %2319 = vmatprep.subr.mxu0 0.0
  %2320 = vmatpush1.msra.mxu0 0.0
  %2321 = vmatprep.subr.mxu0 0.0
  %2322 = vmatpush1.msra.mxu0 0.0
  %2323 = vmatprep.subr.mxu0 0.0
  %2324 = vmatpush1.msra.mxu0 0.0
  %2325 = vmatprep.subr.mxu0 0.0
  %2326 = vmatpush1.msra.mxu0 0.0
  %2327 = vmatprep.subr.mxu0 0.0
  %2328 = vmatpush1.msra.mxu0 0.0
  %2329 = vmatprep.subr.mxu0 0.0
  %2330 = vmatpush1.msra.mxu0 0.0
  %2331 = vmatprep.subr.mxu0 0.0
  %2332 = vmatpush1.msra.mxu0 0.0
  %2333 = vmatprep.subr.mxu0 0.0
  %2334 = vmatpush1.msra.mxu0 0.0
  %2335 = vmatprep.subr.mxu0 0.0
  %2336 = vmatpush1.msra.mxu0 0.0
  %2337 = vmatprep.mubr.f32.mxu0 0.0
  %2338 = vmatmul.mubr.f32.gmra.mrb[0].mxu0 %v2271
  %v2339 = vpop.f32.mrb[0].mxu0
  %v2340 = vadd.f32 %v1745, %v2339
  %v2341 = vpop.f32.mrb[0].mxu0
  %2342 = vdwg.mxu0
  %2344 = vrot.lane.b32.xlu0 %v2269, 112
  %v2345 = vpop.permute.xlu0 %2344
  %v2346 = vsel %vm1746, %v2345, 0
  %2348 = vmatprep.subr.mxu0 0.0
  %2349 = vmatpush1.msra.mxu0 %v1743
  %2350 = vmatprep.subr.mxu0 0.0
  %2351 = vmatpush1.msra.mxu0 0.0
  %2352 = vmatprep.subr.mxu0 0.0
  %2353 = vmatpush1.msra.mxu0 0.0
  %2354 = vmatprep.subr.mxu0 0.0
  %2355 = vmatpush1.msra.mxu0 0.0
  %2356 = vmatprep.subr.mxu0 0.0
  %2357 = vmatpush1.msra.mxu0 0.0
  %2358 = vmatprep.subr.mxu0 0.0
  %2359 = vmatpush1.msra.mxu0 0.0
  %2360 = vmatprep.subr.mxu0 0.0
  %2361 = vmatpush1.msra.mxu0 0.0
  %2362 = vmatprep.subr.mxu0 0.0
  %2363 = vmatpush1.msra.mxu0 0.0
  %2364 = vmatprep.subr.mxu0 0.0
  %2365 = vmatpush1.msra.mxu0 0.0
  %2366 = vmatprep.subr.mxu0 0.0
  %2367 = vmatpush1.msra.mxu0 0.0
  %2368 = vmatprep.subr.mxu0 0.0
  %2369 = vmatpush1.msra.mxu0 0.0
  %2370 = vmatprep.subr.mxu0 0.0
  %2371 = vmatpush1.msra.mxu0 0.0
  %2372 = vmatprep.subr.mxu0 0.0
  %2373 = vmatpush1.msra.mxu0 0.0
  %2374 = vmatprep.subr.mxu0 0.0
  %2375 = vmatpush1.msra.mxu0 0.0
  %2376 = vmatprep.subr.mxu0 0.0
  %2377 = vmatpush1.msra.mxu0 0.0
  %2378 = vmatprep.subr.mxu0 0.0
  %2379 = vmatpush1.msra.mxu0 0.0
  %2380 = vmatprep.subr.mxu0 0.0
  %2381 = vmatpush1.msra.mxu0 0.0
  %2382 = vmatprep.subr.mxu0 0.0
  %2383 = vmatpush1.msra.mxu0 0.0
  %2384 = vmatprep.subr.mxu0 0.0
  %2385 = vmatpush1.msra.mxu0 0.0
  %2386 = vmatprep.subr.mxu0 0.0
  %2387 = vmatpush1.msra.mxu0 0.0
  %2388 = vmatprep.subr.mxu0 0.0
  %2389 = vmatpush1.msra.mxu0 0.0
  %2390 = vmatprep.subr.mxu0 0.0
  %2391 = vmatpush1.msra.mxu0 0.0
  %2392 = vmatprep.subr.mxu0 0.0
  %2393 = vmatpush1.msra.mxu0 0.0
  %2394 = vmatprep.subr.mxu0 0.0
  %2395 = vmatpush1.msra.mxu0 0.0
  %2396 = vmatprep.subr.mxu0 0.0
  %2397 = vmatpush1.msra.mxu0 0.0
  %2398 = vmatprep.subr.mxu0 0.0
  %2399 = vmatpush1.msra.mxu0 0.0
  %2400 = vmatprep.subr.mxu0 0.0
  %2401 = vmatpush1.msra.mxu0 0.0
  %2402 = vmatprep.subr.mxu0 0.0
  %2403 = vmatpush1.msra.mxu0 0.0
  %2404 = vmatprep.subr.mxu0 0.0
  %2405 = vmatpush1.msra.mxu0 0.0
  %2406 = vmatprep.subr.mxu0 0.0
  %2407 = vmatpush1.msra.mxu0 0.0
  %2408 = vmatprep.subr.mxu0 0.0
  %2409 = vmatpush1.msra.mxu0 0.0
  %2410 = vmatprep.subr.mxu0 0.0
  %2411 = vmatpush1.msra.mxu0 0.0
  %2412 = vmatprep.mubr.f32.mxu0 0.0
  %2413 = vmatmul.mubr.f32.gmra.mrb[0].mxu0 %v2346
  %v2414 = vpop.f32.mrb[0].mxu0
  %v2415 = vadd.f32 %v2340, %v2414
  %v2416 = vpop.f32.mrb[0].mxu0
  %2417 = vdwg.mxu0
  %v2418 = vmax.f32 %v2415, 0.0
  %2419 = vst.msk [vmem:[#allocation2 + $0x2] sm:$0x1] %vm1966, %v2418
  %2420 = vmatprep.subr.mxu0 0.0
  %2421 = vmatpush1.msra.mxu0 %v1742
  %2422 = vmatprep.subr.mxu0 0.0
  %2423 = vmatpush1.msra.mxu0 0.0
  %2424 = vmatprep.subr.mxu0 0.0
  %2425 = vmatpush1.msra.mxu0 0.0
  %2426 = vmatprep.subr.mxu0 0.0
  %2427 = vmatpush1.msra.mxu0 0.0
  %2428 = vmatprep.subr.mxu0 0.0
  %2429 = vmatpush1.msra.mxu0 0.0
  %2430 = vmatprep.subr.mxu0 0.0
  %2431 = vmatpush1.msra.mxu0 0.0
  %2432 = vmatprep.subr.mxu0 0.0
  %2433 = vmatpush1.msra.mxu0 0.0
  %2434 = vmatprep.subr.mxu0 0.0
  %2435 = vmatpush1.msra.mxu0 0.0
  %2436 = vmatprep.subr.mxu0 0.0
  %2437 = vmatpush1.msra.mxu0 0.0
  %2438 = vmatprep.subr.mxu0 0.0
  %2439 = vmatpush1.msra.mxu0 0.0
  %2440 = vmatprep.subr.mxu0 0.0
  %2441 = vmatpush1.msra.mxu0 0.0
  %2442 = vmatprep.subr.mxu0 0.0
  %2443 = vmatpush1.msra.mxu0 0.0
  %2444 = vmatprep.subr.mxu0 0.0
  %2445 = vmatpush1.msra.mxu0 0.0
  %2446 = vmatprep.subr.mxu0 0.0
  %2447 = vmatpush1.msra.mxu0 0.0
  %2448 = vmatprep.subr.mxu0 0.0
  %2449 = vmatpush1.msra.mxu0 0.0
  %2450 = vmatprep.subr.mxu0 0.0
  %2451 = vmatpush1.msra.mxu0 0.0
  %2452 = vmatprep.subr.mxu0 0.0
  %2453 = vmatpush1.msra.mxu0 0.0
  %2454 = vmatprep.subr.mxu0 0.0
  %2455 = vmatpush1.msra.mxu0 0.0
  %2456 = vmatprep.subr.mxu0 0.0
  %2457 = vmatpush1.msra.mxu0 0.0
  %2458 = vmatprep.subr.mxu0 0.0
  %2459 = vmatpush1.msra.mxu0 0.0
  %2460 = vmatprep.subr.mxu0 0.0
  %2461 = vmatpush1.msra.mxu0 0.0
  %2462 = vmatprep.subr.mxu0 0.0
  %2463 = vmatpush1.msra.mxu0 0.0
  %2464 = vmatprep.subr.mxu0 0.0
  %2465 = vmatpush1.msra.mxu0 0.0
  %2466 = vmatprep.subr.mxu0 0.0
  %2467 = vmatpush1.msra.mxu0 0.0
  %2468 = vmatprep.subr.mxu0 0.0
  %2469 = vmatpush1.msra.mxu0 0.0
  %2470 = vmatprep.subr.mxu0 0.0
  %2471 = vmatpush1.msra.mxu0 0.0
  %2472 = vmatprep.subr.mxu0 0.0
  %2473 = vmatpush1.msra.mxu0 0.0
  %2474 = vmatprep.subr.mxu0 0.0
  %2475 = vmatpush1.msra.mxu0 0.0
  %2476 = vmatprep.subr.mxu0 0.0
  %2477 = vmatpush1.msra.mxu0 0.0
  %2478 = vmatprep.subr.mxu0 0.0
  %2479 = vmatpush1.msra.mxu0 0.0
  %2480 = vmatprep.subr.mxu0 0.0
  %2481 = vmatpush1.msra.mxu0 0.0
  %2482 = vmatprep.subr.mxu0 0.0
  %2483 = vmatpush1.msra.mxu0 0.0
  %2484 = vmatprep.mubr.f32.mxu0 0.0
  %2485 = vmatmul.mubr.f32.gmra.mrb[0].mxu0 %v2346
  %v2486 = vpop.f32.mrb[0].mxu0
  %v2487 = vadd.f32 0.0, %v2486
  %v2488 = vpop.f32.mrb[0].mxu0
  %2489 = vdwg.mxu0
  %2491 = vrot.lane.b32.xlu0 %v2487, 24
  %v2492 = vpop.permute.xlu0 %2491
  %v2494 = vadd.f32 %v1738, %v2492
  %v2495 = vmax.f32 %v2494, 0.0
  %v2497 = vsel %vm1746, %v2418, 0
  %2499 = vmatprep.subr.mxu0 0.0
  %2500 = vmatpush1.msra.mxu0 %v1744
  %2501 = vmatprep.subr.mxu0 0.0
  %2502 = vmatpush1.msra.mxu0 0.0
  %2503 = vmatprep.subr.mxu0 0.0
  %2504 = vmatpush1.msra.mxu0 0.0
  %2505 = vmatprep.subr.mxu0 0.0
  %2506 = vmatpush1.msra.mxu0 0.0
  %2507 = vmatprep.subr.mxu0 0.0
  %2508 = vmatpush1.msra.mxu0 0.0
  %2509 = vmatprep.subr.mxu0 0.0
  %2510 = vmatpush1.msra.mxu0 0.0
  %2511 = vmatprep.subr.mxu0 0.0
  %2512 = vmatpush1.msra.mxu0 0.0
  %2513 = vmatprep.subr.mxu0 0.0
  %2514 = vmatpush1.msra.mxu0 0.0
  %2515 = vmatprep.subr.mxu0 0.0
  %2516 = vmatpush1.msra.mxu0 0.0
  %2517 = vmatprep.subr.mxu0 0.0
  %2518 = vmatpush1.msra.mxu0 0.0
  %2519 = vmatprep.subr.mxu0 0.0
  %2520 = vmatpush1.msra.mxu0 0.0
  %2521 = vmatprep.subr.mxu0 0.0
  %2522 = vmatpush1.msra.mxu0 0.0
  %2523 = vmatprep.subr.mxu0 0.0
  %2524 = vmatpush1.msra.mxu0 0.0
  %2525 = vmatprep.subr.mxu0 0.0
  %2526 = vmatpush1.msra.mxu0 0.0
  %2527 = vmatprep.subr.mxu0 0.0
  %2528 = vmatpush1.msra.mxu0 0.0
  %2529 = vmatprep.subr.mxu0 0.0
  %2530 = vmatpush1.msra.mxu0 0.0
  %2531 = vmatprep.subr.mxu0 0.0
  %2532 = vmatpush1.msra.mxu0 0.0
  %2533 = vmatprep.subr.mxu0 0.0
  %2534 = vmatpush1.msra.mxu0 0.0
  %2535 = vmatprep.subr.mxu0 0.0
  %2536 = vmatpush1.msra.mxu0 0.0
  %2537 = vmatprep.subr.mxu0 0.0
  %2538 = vmatpush1.msra.mxu0 0.0
  %2539 = vmatprep.subr.mxu0 0.0
  %2540 = vmatpush1.msra.mxu0 0.0
  %2541 = vmatprep.subr.mxu0 0.0
  %2542 = vmatpush1.msra.mxu0 0.0
  %2543 = vmatprep.subr.mxu0 0.0
  %2544 = vmatpush1.msra.mxu0 0.0
  %2545 = vmatprep.subr.mxu0 0.0
  %2546 = vmatpush1.msra.mxu0 0.0
  %2547 = vmatprep.subr.mxu0 0.0
  %2548 = vmatpush1.msra.mxu0 0.0
  %2549 = vmatprep.subr.mxu0 0.0
  %2550 = vmatpush1.msra.mxu0 0.0
  %2551 = vmatprep.subr.mxu0 0.0
  %2552 = vmatpush1.msra.mxu0 0.0
  %2553 = vmatprep.subr.mxu0 0.0
  %2554 = vmatpush1.msra.mxu0 0.0
  %2555 = vmatprep.subr.mxu0 0.0
  %2556 = vmatpush1.msra.mxu0 0.0
  %2557 = vmatprep.subr.mxu0 0.0
  %2558 = vmatpush1.msra.mxu0 0.0
  %2559 = vmatprep.subr.mxu0 0.0
  %2560 = vmatpush1.msra.mxu0 0.0
  %2561 = vmatprep.subr.mxu0 0.0
  %2562 = vmatpush1.msra.mxu0 0.0
  %2563 = vmatprep.mubr.f32.mxu0 0.0
  %2564 = vmatmul.mubr.f32.gmra.mrb[0].mxu0 %v2497
  %v2565 = vpop.f32.mrb[0].mxu0
  %v2566 = vadd.f32 %v1745, %v2565
  %v2567 = vpop.f32.mrb[0].mxu0
  %2568 = vdwg.mxu0
  %2570 = vrot.lane.b32.xlu0 %v2495, 104
  %v2571 = vpop.permute.xlu0 %2570
  %v2572 = vsel %vm1746, %v2571, 0
  %2574 = vmatprep.subr.mxu0 0.0
  %2575 = vmatpush1.msra.mxu0 %v1743
  %2576 = vmatprep.subr.mxu0 0.0
  %2577 = vmatpush1.msra.mxu0 0.0
  %2578 = vmatprep.subr.mxu0 0.0
  %2579 = vmatpush1.msra.mxu0 0.0
  %2580 = vmatprep.subr.mxu0 0.0
  %2581 = vmatpush1.msra.mxu0 0.0
  %2582 = vmatprep.subr.mxu0 0.0
  %2583 = vmatpush1.msra.mxu0 0.0
  %2584 = vmatprep.subr.mxu0 0.0
  %2585 = vmatpush1.msra.mxu0 0.0
  %2586 = vmatprep.subr.mxu0 0.0
  %2587 = vmatpush1.msra.mxu0 0.0
  %2588 = vmatprep.subr.mxu0 0.0
  %2589 = vmatpush1.msra.mxu0 0.0
  %2590 = vmatprep.subr.mxu0 0.0
  %2591 = vmatpush1.msra.mxu0 0.0
  %2592 = vmatprep.subr.mxu0 0.0
  %2593 = vmatpush1.msra.mxu0 0.0
  %2594 = vmatprep.subr.mxu0 0.0
  %2595 = vmatpush1.msra.mxu0 0.0
  %2596 = vmatprep.subr.mxu0 0.0
  %2597 = vmatpush1.msra.mxu0 0.0
  %2598 = vmatprep.subr.mxu0 0.0
  %2599 = vmatpush1.msra.mxu0 0.0
  %2600 = vmatprep.subr.mxu0 0.0
  %2601 = vmatpush1.msra.mxu0 0.0
  %2602 = vmatprep.subr.mxu0 0.0
  %2603 = vmatpush1.msra.mxu0 0.0
  %2604 = vmatprep.subr.mxu0 0.0
  %2605 = vmatpush1.msra.mxu0 0.0
  %2606 = vmatprep.subr.mxu0 0.0
  %2607 = vmatpush1.msra.mxu0 0.0
  %2608 = vmatprep.subr.mxu0 0.0
  %2609 = vmatpush1.msra.mxu0 0.0
  %2610 = vmatprep.subr.mxu0 0.0
  %2611 = vmatpush1.msra.mxu0 0.0
  %2612 = vmatprep.subr.mxu0 0.0
  %2613 = vmatpush1.msra.mxu0 0.0
  %2614 = vmatprep.subr.mxu0 0.0
  %2615 = vmatpush1.msra.mxu0 0.0
  %2616 = vmatprep.subr.mxu0 0.0
  %2617 = vmatpush1.msra.mxu0 0.0
  %2618 = vmatprep.subr.mxu0 0.0
  %2619 = vmatpush1.msra.mxu0 0.0
  %2620 = vmatprep.subr.mxu0 0.0
  %2621 = vmatpush1.msra.mxu0 0.0
  %2622 = vmatprep.subr.mxu0 0.0
  %2623 = vmatpush1.msra.mxu0 0.0
  %2624 = vmatprep.subr.mxu0 0.0
  %2625 = vmatpush1.msra.mxu0 0.0
  %2626 = vmatprep.subr.mxu0 0.0
  %2627 = vmatpush1.msra.mxu0 0.0
  %2628 = vmatprep.subr.mxu0 0.0
  %2629 = vmatpush1.msra.mxu0 0.0
  %2630 = vmatprep.subr.mxu0 0.0
  %2631 = vmatpush1.msra.mxu0 0.0
  %2632 = vmatprep.subr.mxu0 0.0
  %2633 = vmatpush1.msra.mxu0 0.0
  %2634 = vmatprep.subr.mxu0 0.0
  %2635 = vmatpush1.msra.mxu0 0.0
  %2636 = vmatprep.subr.mxu0 0.0
  %2637 = vmatpush1.msra.mxu0 0.0
  %2638 = vmatprep.mubr.f32.mxu0 0.0
  %2639 = vmatmul.mubr.f32.gmra.mrb[0].mxu0 %v2572
  %v2640 = vpop.f32.mrb[0].mxu0
  %v2641 = vadd.f32 %v2566, %v2640
  %v2642 = vpop.f32.mrb[0].mxu0
  %2643 = vdwg.mxu0
  %v2644 = vmax.f32 %v2641, 0.0
  %2645 = vst.msk [vmem:[#allocation2 + $0x3] sm:$0x1] %vm1966, %v2644
  %2646 = vmatprep.subr.mxu0 0.0
  %2647 = vmatpush1.msra.mxu0 %v1742
  %2648 = vmatprep.subr.mxu0 0.0
  %2649 = vmatpush1.msra.mxu0 0.0
  %2650 = vmatprep.subr.mxu0 0.0
  %2651 = vmatpush1.msra.mxu0 0.0
  %2652 = vmatprep.subr.mxu0 0.0
  %2653 = vmatpush1.msra.mxu0 0.0
  %2654 = vmatprep.subr.mxu0 0.0
  %2655 = vmatpush1.msra.mxu0 0.0
  %2656 = vmatprep.subr.mxu0 0.0
  %2657 = vmatpush1.msra.mxu0 0.0
  %2658 = vmatprep.subr.mxu0 0.0
  %2659 = vmatpush1.msra.mxu0 0.0
  %2660 = vmatprep.subr.mxu0 0.0
  %2661 = vmatpush1.msra.mxu0 0.0
  %2662 = vmatprep.subr.mxu0 0.0
  %2663 = vmatpush1.msra.mxu0 0.0
  %2664 = vmatprep.subr.mxu0 0.0
  %2665 = vmatpush1.msra.mxu0 0.0
  %2666 = vmatprep.subr.mxu0 0.0
  %2667 = vmatpush1.msra.mxu0 0.0
  %2668 = vmatprep.subr.mxu0 0.0
  %2669 = vmatpush1.msra.mxu0 0.0
  %2670 = vmatprep.subr.mxu0 0.0
  %2671 = vmatpush1.msra.mxu0 0.0
  %2672 = vmatprep.subr.mxu0 0.0
  %2673 = vmatpush1.msra.mxu0 0.0
  %2674 = vmatprep.subr.mxu0 0.0
  %2675 = vmatpush1.msra.mxu0 0.0
  %2676 = vmatprep.subr.mxu0 0.0
  %2677 = vmatpush1.msra.mxu0 0.0
  %2678 = vmatprep.subr.mxu0 0.0
  %2679 = vmatpush1.msra.mxu0 0.0
  %2680 = vmatprep.subr.mxu0 0.0
  %2681 = vmatpush1.msra.mxu0 0.0
  %2682 = vmatprep.subr.mxu0 0.0
  %2683 = vmatpush1.msra.mxu0 0.0
  %2684 = vmatprep.subr.mxu0 0.0
  %2685 = vmatpush1.msra.mxu0 0.0
  %2686 = vmatprep.subr.mxu0 0.0
  %2687 = vmatpush1.msra.mxu0 0.0
  %2688 = vmatprep.subr.mxu0 0.0
  %2689 = vmatpush1.msra.mxu0 0.0
  %2690 = vmatprep.subr.mxu0 0.0
  %2691 = vmatpush1.msra.mxu0 0.0
  %2692 = vmatprep.subr.mxu0 0.0
  %2693 = vmatpush1.msra.mxu0 0.0
  %2694 = vmatprep.subr.mxu0 0.0
  %2695 = vmatpush1.msra.mxu0 0.0
  %2696 = vmatprep.subr.mxu0 0.0
  %2697 = vmatpush1.msra.mxu0 0.0
  %2698 = vmatprep.subr.mxu0 0.0
  %2699 = vmatpush1.msra.mxu0 0.0
  %2700 = vmatprep.subr.mxu0 0.0
  %2701 = vmatpush1.msra.mxu0 0.0
  %2702 = vmatprep.subr.mxu0 0.0
  %2703 = vmatpush1.msra.mxu0 0.0
  %2704 = vmatprep.subr.mxu0 0.0
  %2705 = vmatpush1.msra.mxu0 0.0
  %2706 = vmatprep.subr.mxu0 0.0
  %2707 = vmatpush1.msra.mxu0 0.0
  %2708 = vmatprep.subr.mxu0 0.0
  %2709 = vmatpush1.msra.mxu0 0.0
  %2710 = vmatprep.mubr.f32.mxu0 0.0
  %2711 = vmatmul.mubr.f32.gmra.mrb[0].mxu0 %v2572
  %v2712 = vpop.f32.mrb[0].mxu0
  %v2713 = vadd.f32 0.0, %v2712
  %v2714 = vpop.f32.mrb[0].mxu0
  %2715 = vdwg.mxu0
  %2717 = vrot.lane.b32.xlu0 %v2713, 32
  %v2718 = vpop.permute.xlu0 %2717
  %v2720 = vadd.f32 %v1738, %v2718
  %v2721 = vmax.f32 %v2720, 0.0
  %v2723 = vsel %vm1746, %v2644, 0
  %2725 = vmatprep.subr.mxu0 0.0
  %2726 = vmatpush1.msra.mxu0 %v1744
  %2727 = vmatprep.subr.mxu0 0.0
  %2728 = vmatpush1.msra.mxu0 0.0
  %2729 = vmatprep.subr.mxu0 0.0
  %2730 = vmatpush1.msra.mxu0 0.0
  %2731 = vmatprep.subr.mxu0 0.0
  %2732 = vmatpush1.msra.mxu0 0.0
  %2733 = vmatprep.subr.mxu0 0.0
  %2734 = vmatpush1.msra.mxu0 0.0
  %2735 = vmatprep.subr.mxu0 0.0
  %2736 = vmatpush1.msra.mxu0 0.0
  %2737 = vmatprep.subr.mxu0 0.0
  %2738 = vmatpush1.msra.mxu0 0.0
  %2739 = vmatprep.subr.mxu0 0.0
  %2740 = vmatpush1.msra.mxu0 0.0
  %2741 = vmatprep.subr.mxu0 0.0
  %2742 = vmatpush1.msra.mxu0 0.0
  %2743 = vmatprep.subr.mxu0 0.0
  %2744 = vmatpush1.msra.mxu0 0.0
  %2745 = vmatprep.subr.mxu0 0.0
  %2746 = vmatpush1.msra.mxu0 0.0
  %2747 = vmatprep.subr.mxu0 0.0
  %2748 = vmatpush1.msra.mxu0 0.0
  %2749 = vmatprep.subr.mxu0 0.0
  %2750 = vmatpush1.msra.mxu0 0.0
  %2751 = vmatprep.subr.mxu0 0.0
  %2752 = vmatpush1.msra.mxu0 0.0
  %2753 = vmatprep.subr.mxu0 0.0
  %2754 = vmatpush1.msra.mxu0 0.0
  %2755 = vmatprep.subr.mxu0 0.0
  %2756 = vmatpush1.msra.mxu0 0.0
  %2757 = vmatprep.subr.mxu0 0.0
  %2758 = vmatpush1.msra.mxu0 0.0
  %2759 = vmatprep.subr.mxu0 0.0
  %2760 = vmatpush1.msra.mxu0 0.0
  %2761 = vmatprep.subr.mxu0 0.0
  %2762 = vmatpush1.msra.mxu0 0.0
  %2763 = vmatprep.subr.mxu0 0.0
  %2764 = vmatpush1.msra.mxu0 0.0
  %2765 = vmatprep.subr.mxu0 0.0
  %2766 = vmatpush1.msra.mxu0 0.0
  %2767 = vmatprep.subr.mxu0 0.0
  %2768 = vmatpush1.msra.mxu0 0.0
  %2769 = vmatprep.subr.mxu0 0.0
  %2770 = vmatpush1.msra.mxu0 0.0
  %2771 = vmatprep.subr.mxu0 0.0
  %2772 = vmatpush1.msra.mxu0 0.0
  %2773 = vmatprep.subr.mxu0 0.0
  %2774 = vmatpush1.msra.mxu0 0.0
  %2775 = vmatprep.subr.mxu0 0.0
  %2776 = vmatpush1.msra.mxu0 0.0
  %2777 = vmatprep.subr.mxu0 0.0
  %2778 = vmatpush1.msra.mxu0 0.0
  %2779 = vmatprep.subr.mxu0 0.0
  %2780 = vmatpush1.msra.mxu0 0.0
  %2781 = vmatprep.subr.mxu0 0.0
  %2782 = vmatpush1.msra.mxu0 0.0
  %2783 = vmatprep.subr.mxu0 0.0
  %2784 = vmatpush1.msra.mxu0 0.0
  %2785 = vmatprep.subr.mxu0 0.0
  %2786 = vmatpush1.msra.mxu0 0.0
  %2787 = vmatprep.subr.mxu0 0.0
  %2788 = vmatpush1.msra.mxu0 0.0
  %2789 = vmatprep.mubr.f32.mxu0 0.0
  %2790 = vmatmul.mubr.f32.gmra.mrb[0].mxu0 %v2723
  %v2791 = vpop.f32.mrb[0].mxu0
  %v2792 = vadd.f32 %v1745, %v2791
  %v2793 = vpop.f32.mrb[0].mxu0
  %2794 = vdwg.mxu0
  %2796 = vrot.lane.b32.xlu0 %v2721, 96
  %v2797 = vpop.permute.xlu0 %2796
  %v2798 = vsel %vm1746, %v2797, 0
  %2800 = vmatprep.subr.mxu0 0.0
  %2801 = vmatpush1.msra.mxu0 %v1743
  %2802 = vmatprep.subr.mxu0 0.0
  %2803 = vmatpush1.msra.mxu0 0.0
  %2804 = vmatprep.subr.mxu0 0.0
  %2805 = vmatpush1.msra.mxu0 0.0
  %2806 = vmatprep.subr.mxu0 0.0
  %2807 = vmatpush1.msra.mxu0 0.0
  %2808 = vmatprep.subr.mxu0 0.0
  %2809 = vmatpush1.msra.mxu0 0.0
  %2810 = vmatprep.subr.mxu0 0.0
  %2811 = vmatpush1.msra.mxu0 0.0
  %2812 = vmatprep.subr.mxu0 0.0
  %2813 = vmatpush1.msra.mxu0 0.0
  %2814 = vmatprep.subr.mxu0 0.0
  %2815 = vmatpush1.msra.mxu0 0.0
  %2816 = vmatprep.subr.mxu0 0.0
  %2817 = vmatpush1.msra.mxu0 0.0
  %2818 = vmatprep.subr.mxu0 0.0
  %2819 = vmatpush1.msra.mxu0 0.0
  %2820 = vmatprep.subr.mxu0 0.0
  %2821 = vmatpush1.msra.mxu0 0.0
  %2822 = vmatprep.subr.mxu0 0.0
  %2823 = vmatpush1.msra.mxu0 0.0
  %2824 = vmatprep.subr.mxu0 0.0
  %2825 = vmatpush1.msra.mxu0 0.0
  %2826 = vmatprep.subr.mxu0 0.0
  %2827 = vmatpush1.msra.mxu0 0.0
  %2828 = vmatprep.subr.mxu0 0.0
  %2829 = vmatpush1.msra.mxu0 0.0
  %2830 = vmatprep.subr.mxu0 0.0
  %2831 = vmatpush1.msra.mxu0 0.0
  %2832 = vmatprep.subr.mxu0 0.0
  %2833 = vmatpush1.msra.mxu0 0.0
  %2834 = vmatprep.subr.mxu0 0.0
  %2835 = vmatpush1.msra.mxu0 0.0
  %2836 = vmatprep.subr.mxu0 0.0
  %2837 = vmatpush1.msra.mxu0 0.0
  %2838 = vmatprep.subr.mxu0 0.0
  %2839 = vmatpush1.msra.mxu0 0.0
  %2840 = vmatprep.subr.mxu0 0.0
  %2841 = vmatpush1.msra.mxu0 0.0
  %2842 = vmatprep.subr.mxu0 0.0
  %2843 = vmatpush1.msra.mxu0 0.0
  %2844 = vmatprep.subr.mxu0 0.0
  %2845 = vmatpush1.msra.mxu0 0.0
  %2846 = vmatprep.subr.mxu0 0.0
  %2847 = vmatpush1.msra.mxu0 0.0
  %2848 = vmatprep.subr.mxu0 0.0
  %2849 = vmatpush1.msra.mxu0 0.0
  %2850 = vmatprep.subr.mxu0 0.0
  %2851 = vmatpush1.msra.mxu0 0.0
  %2852 = vmatprep.subr.mxu0 0.0
  %2853 = vmatpush1.msra.mxu0 0.0
  %2854 = vmatprep.subr.mxu0 0.0
  %2855 = vmatpush1.msra.mxu0 0.0
  %2856 = vmatprep.subr.mxu0 0.0
  %2857 = vmatpush1.msra.mxu0 0.0
  %2858 = vmatprep.subr.mxu0 0.0
  %2859 = vmatpush1.msra.mxu0 0.0
  %2860 = vmatprep.subr.mxu0 0.0
  %2861 = vmatpush1.msra.mxu0 0.0
  %2862 = vmatprep.subr.mxu0 0.0
  %2863 = vmatpush1.msra.mxu0 0.0
  %2864 = vmatprep.mubr.f32.mxu0 0.0
  %2865 = vmatmul.mubr.f32.gmra.mrb[0].mxu0 %v2798
  %v2866 = vpop.f32.mrb[0].mxu0
  %v2867 = vadd.f32 %v2792, %v2866
  %v2868 = vpop.f32.mrb[0].mxu0
  %2869 = vdwg.mxu0
  %v2870 = vmax.f32 %v2867, 0.0
  %2871 = vst.msk [vmem:[#allocation2 + $0x4] sm:$0x1] %vm1966, %v2870
  %2872 = vmatprep.subr.mxu0 0.0
  %2873 = vmatpush1.msra.mxu0 %v1742
  %2874 = vmatprep.subr.mxu0 0.0
  %2875 = vmatpush1.msra.mxu0 0.0
  %2876 = vmatprep.subr.mxu0 0.0
  %2877 = vmatpush1.msra.mxu0 0.0
  %2878 = vmatprep.subr.mxu0 0.0
  %2879 = vmatpush1.msra.mxu0 0.0
  %2880 = vmatprep.subr.mxu0 0.0
  %2881 = vmatpush1.msra.mxu0 0.0
  %2882 = vmatprep.subr.mxu0 0.0
  %2883 = vmatpush1.msra.mxu0 0.0
  %2884 = vmatprep.subr.mxu0 0.0
  %2885 = vmatpush1.msra.mxu0 0.0
  %2886 = vmatprep.subr.mxu0 0.0
  %2887 = vmatpush1.msra.mxu0 0.0
  %2888 = vmatprep.subr.mxu0 0.0
  %2889 = vmatpush1.msra.mxu0 0.0
  %2890 = vmatprep.subr.mxu0 0.0
  %2891 = vmatpush1.msra.mxu0 0.0
  %2892 = vmatprep.subr.mxu0 0.0
  %2893 = vmatpush1.msra.mxu0 0.0
  %2894 = vmatprep.subr.mxu0 0.0
  %2895 = vmatpush1.msra.mxu0 0.0
  %2896 = vmatprep.subr.mxu0 0.0
  %2897 = vmatpush1.msra.mxu0 0.0
  %2898 = vmatprep.subr.mxu0 0.0
  %2899 = vmatpush1.msra.mxu0 0.0
  %2900 = vmatprep.subr.mxu0 0.0
  %2901 = vmatpush1.msra.mxu0 0.0
  %2902 = vmatprep.subr.mxu0 0.0
  %2903 = vmatpush1.msra.mxu0 0.0
  %2904 = vmatprep.subr.mxu0 0.0
  %2905 = vmatpush1.msra.mxu0 0.0
  %2906 = vmatprep.subr.mxu0 0.0
  %2907 = vmatpush1.msra.mxu0 0.0
  %2908 = vmatprep.subr.mxu0 0.0
  %2909 = vmatpush1.msra.mxu0 0.0
  %2910 = vmatprep.subr.mxu0 0.0
  %2911 = vmatpush1.msra.mxu0 0.0
  %2912 = vmatprep.subr.mxu0 0.0
  %2913 = vmatpush1.msra.mxu0 0.0
  %2914 = vmatprep.subr.mxu0 0.0
  %2915 = vmatpush1.msra.mxu0 0.0
  %2916 = vmatprep.subr.mxu0 0.0
  %2917 = vmatpush1.msra.mxu0 0.0
  %2918 = vmatprep.subr.mxu0 0.0
  %2919 = vmatpush1.msra.mxu0 0.0
  %2920 = vmatprep.subr.mxu0 0.0
  %2921 = vmatpush1.msra.mxu0 0.0
  %2922 = vmatprep.subr.mxu0 0.0
  %2923 = vmatpush1.msra.mxu0 0.0
  %2924 = vmatprep.subr.mxu0 0.0
  %2925 = vmatpush1.msra.mxu0 0.0
  %2926 = vmatprep.subr.mxu0 0.0
  %2927 = vmatpush1.msra.mxu0 0.0
  %2928 = vmatprep.subr.mxu0 0.0
  %2929 = vmatpush1.msra.mxu0 0.0
  %2930 = vmatprep.subr.mxu0 0.0
  %2931 = vmatpush1.msra.mxu0 0.0
  %2932 = vmatprep.subr.mxu0 0.0
  %2933 = vmatpush1.msra.mxu0 0.0
  %2934 = vmatprep.subr.mxu0 0.0
  %2935 = vmatpush1.msra.mxu0 0.0
  %2936 = vmatprep.mubr.f32.mxu0 0.0
  %2937 = vmatmul.mubr.f32.gmra.mrb[0].mxu0 %v2798
  %v2938 = vpop.f32.mrb[0].mxu0
  %v2939 = vadd.f32 0.0, %v2938
  %v2940 = vpop.f32.mrb[0].mxu0
  %2941 = vdwg.mxu0
  %2943 = vrot.lane.b32.xlu0 %v2939, 40
  %v2944 = vpop.permute.xlu0 %2943
  %v2946 = vadd.f32 %v1738, %v2944
  %v2947 = vmax.f32 %v2946, 0.0
  %v2949 = vsel %vm1746, %v2870, 0
  %2951 = vmatprep.subr.mxu0 0.0
  %2952 = vmatpush1.msra.mxu0 %v1744
  %2953 = vmatprep.subr.mxu0 0.0
  %2954 = vmatpush1.msra.mxu0 0.0
  %2955 = vmatprep.subr.mxu0 0.0
  %2956 = vmatpush1.msra.mxu0 0.0
  %2957 = vmatprep.subr.mxu0 0.0
  %2958 = vmatpush1.msra.mxu0 0.0
  %2959 = vmatprep.subr.mxu0 0.0
  %2960 = vmatpush1.msra.mxu0 0.0
  %2961 = vmatprep.subr.mxu0 0.0
  %2962 = vmatpush1.msra.mxu0 0.0
  %2963 = vmatprep.subr.mxu0 0.0
  %2964 = vmatpush1.msra.mxu0 0.0
  %2965 = vmatprep.subr.mxu0 0.0
  %2966 = vmatpush1.msra.mxu0 0.0
  %2967 = vmatprep.subr.mxu0 0.0
  %2968 = vmatpush1.msra.mxu0 0.0
  %2969 = vmatprep.subr.mxu0 0.0
  %2970 = vmatpush1.msra.mxu0 0.0
  %2971 = vmatprep.subr.mxu0 0.0
  %2972 = vmatpush1.msra.mxu0 0.0
  %2973 = vmatprep.subr.mxu0 0.0
  %2974 = vmatpush1.msra.mxu0 0.0
  %2975 = vmatprep.subr.mxu0 0.0
  %2976 = vmatpush1.msra.mxu0 0.0
  %2977 = vmatprep.subr.mxu0 0.0
  %2978 = vmatpush1.msra.mxu0 0.0
  %2979 = vmatprep.subr.mxu0 0.0
  %2980 = vmatpush1.msra.mxu0 0.0
  %2981 = vmatprep.subr.mxu0 0.0
  %2982 = vmatpush1.msra.mxu0 0.0
  %2983 = vmatprep.subr.mxu0 0.0
  %2984 = vmatpush1.msra.mxu0 0.0
  %2985 = vmatprep.subr.mxu0 0.0
  %2986 = vmatpush1.msra.mxu0 0.0
  %2987 = vmatprep.subr.mxu0 0.0
  %2988 = vmatpush1.msra.mxu0 0.0
  %2989 = vmatprep.subr.mxu0 0.0
  %2990 = vmatpush1.msra.mxu0 0.0
  %2991 = vmatprep.subr.mxu0 0.0
  %2992 = vmatpush1.msra.mxu0 0.0
  %2993 = vmatprep.subr.mxu0 0.0
  %2994 = vmatpush1.msra.mxu0 0.0
  %2995 = vmatprep.subr.mxu0 0.0
  %2996 = vmatpush1.msra.mxu0 0.0
  %2997 = vmatprep.subr.mxu0 0.0
  %2998 = vmatpush1.msra.mxu0 0.0
  %2999 = vmatprep.subr.mxu0 0.0
  %3000 = vmatpush1.msra.mxu0 0.0
  %3001 = vmatprep.subr.mxu0 0.0
  %3002 = vmatpush1.msra.mxu0 0.0
  %3003 = vmatprep.subr.mxu0 0.0
  %3004 = vmatpush1.msra.mxu0 0.0
  %3005 = vmatprep.subr.mxu0 0.0
  %3006 = vmatpush1.msra.mxu0 0.0
  %3007 = vmatprep.subr.mxu0 0.0
  %3008 = vmatpush1.msra.mxu0 0.0
  %3009 = vmatprep.subr.mxu0 0.0
  %3010 = vmatpush1.msra.mxu0 0.0
  %3011 = vmatprep.subr.mxu0 0.0
  %3012 = vmatpush1.msra.mxu0 0.0
  %3013 = vmatprep.subr.mxu0 0.0
  %3014 = vmatpush1.msra.mxu0 0.0
  %3015 = vmatprep.mubr.f32.mxu0 0.0
  %3016 = vmatmul.mubr.f32.gmra.mrb[0].mxu0 %v2949
  %v3017 = vpop.f32.mrb[0].mxu0
  %v3018 = vadd.f32 %v1745, %v3017
  %v3019 = vpop.f32.mrb[0].mxu0
  %3020 = vdwg.mxu0
  %3022 = vrot.lane.b32.xlu0 %v2947, 88
  %v3023 = vpop.permute.xlu0 %3022
  %v3024 = vsel %vm1746, %v3023, 0
  %3026 = vmatprep.subr.mxu0 0.0
  %3027 = vmatpush1.msra.mxu0 %v1743
  %3028 = vmatprep.subr.mxu0 0.0
  %3029 = vmatpush1.msra.mxu0 0.0
  %3030 = vmatprep.subr.mxu0 0.0
  %3031 = vmatpush1.msra.mxu0 0.0
  %3032 = vmatprep.subr.mxu0 0.0
  %3033 = vmatpush1.msra.mxu0 0.0
  %3034 = vmatprep.subr.mxu0 0.0
  %3035 = vmatpush1.msra.mxu0 0.0
  %3036 = vmatprep.subr.mxu0 0.0
  %3037 = vmatpush1.msra.mxu0 0.0
  %3038 = vmatprep.subr.mxu0 0.0
  %3039 = vmatpush1.msra.mxu0 0.0
  %3040 = vmatprep.subr.mxu0 0.0
  %3041 = vmatpush1.msra.mxu0 0.0
  %3042 = vmatprep.subr.mxu0 0.0
  %3043 = vmatpush1.msra.mxu0 0.0
  %3044 = vmatprep.subr.mxu0 0.0
  %3045 = vmatpush1.msra.mxu0 0.0
  %3046 = vmatprep.subr.mxu0 0.0
  %3047 = vmatpush1.msra.mxu0 0.0
  %3048 = vmatprep.subr.mxu0 0.0
  %3049 = vmatpush1.msra.mxu0 0.0
  %3050 = vmatprep.subr.mxu0 0.0
  %3051 = vmatpush1.msra.mxu0 0.0
  %3052 = vmatprep.subr.mxu0 0.0
  %3053 = vmatpush1.msra.mxu0 0.0
  %3054 = vmatprep.subr.mxu0 0.0
  %3055 = vmatpush1.msra.mxu0 0.0
  %3056 = vmatprep.subr.mxu0 0.0
  %3057 = vmatpush1.msra.mxu0 0.0
  %3058 = vmatprep.subr.mxu0 0.0
  %3059 = vmatpush1.msra.mxu0 0.0
  %3060 = vmatprep.subr.mxu0 0.0
  %3061 = vmatpush1.msra.mxu0 0.0
  %3062 = vmatprep.subr.mxu0 0.0
  %3063 = vmatpush1.msra.mxu0 0.0
  %3064 = vmatprep.subr.mxu0 0.0
  %3065 = vmatpush1.msra.mxu0 0.0
  %3066 = vmatprep.subr.mxu0 0.0
  %3067 = vmatpush1.msra.mxu0 0.0
  %3068 = vmatprep.subr.mxu0 0.0
  %3069 = vmatpush1.msra.mxu0 0.0
  %3070 = vmatprep.subr.mxu0 0.0
  %3071 = vmatpush1.msra.mxu0 0.0
  %3072 = vmatprep.subr.mxu0 0.0
  %3073 = vmatpush1.msra.mxu0 0.0
  %3074 = vmatprep.subr.mxu0 0.0
  %3075 = vmatpush1.msra.mxu0 0.0
  %3076 = vmatprep.subr.mxu0 0.0
  %3077 = vmatpush1.msra.mxu0 0.0
  %3078 = vmatprep.subr.mxu0 0.0
  %3079 = vmatpush1.msra.mxu0 0.0
  %3080 = vmatprep.subr.mxu0 0.0
  %3081 = vmatpush1.msra.mxu0 0.0
  %3082 = vmatprep.subr.mxu0 0.0
  %3083 = vmatpush1.msra.mxu0 0.0
  %3084 = vmatprep.subr.mxu0 0.0
  %3085 = vmatpush1.msra.mxu0 0.0
  %3086 = vmatprep.subr.mxu0 0.0
  %3087 = vmatpush1.msra.mxu0 0.0
  %3088 = vmatprep.subr.mxu0 0.0
  %3089 = vmatpush1.msra.mxu0 0.0
  %3090 = vmatprep.mubr.f32.mxu0 0.0
  %3091 = vmatmul.mubr.f32.gmra.mrb[0].mxu0 %v3024
  %v3092 = vpop.f32.mrb[0].mxu0
  %v3093 = vadd.f32 %v3018, %v3092
  %v3094 = vpop.f32.mrb[0].mxu0
  %3095 = vdwg.mxu0
  %v3096 = vmax.f32 %v3093, 0.0
  %3097 = vst.msk [vmem:[#allocation2 + $0x5] sm:$0x1] %vm1966, %v3096
  %3098 = vmatprep.subr.mxu0 0.0
  %3099 = vmatpush1.msra.mxu0 %v1742
  %3100 = vmatprep.subr.mxu0 0.0
  %3101 = vmatpush1.msra.mxu0 0.0
  %3102 = vmatprep.subr.mxu0 0.0
  %3103 = vmatpush1.msra.mxu0 0.0
  %3104 = vmatprep.subr.mxu0 0.0
  %3105 = vmatpush1.msra.mxu0 0.0
  %3106 = vmatprep.subr.mxu0 0.0
  %3107 = vmatpush1.msra.mxu0 0.0
  %3108 = vmatprep.subr.mxu0 0.0
  %3109 = vmatpush1.msra.mxu0 0.0
  %3110 = vmatprep.subr.mxu0 0.0
  %3111 = vmatpush1.msra.mxu0 0.0
  %3112 = vmatprep.subr.mxu0 0.0
  %3113 = vmatpush1.msra.mxu0 0.0
  %3114 = vmatprep.subr.mxu0 0.0
  %3115 = vmatpush1.msra.mxu0 0.0
  %3116 = vmatprep.subr.mxu0 0.0
  %3117 = vmatpush1.msra.mxu0 0.0
  %3118 = vmatprep.subr.mxu0 0.0
  %3119 = vmatpush1.msra.mxu0 0.0
  %3120 = vmatprep.subr.mxu0 0.0
  %3121 = vmatpush1.msra.mxu0 0.0
  %3122 = vmatprep.subr.mxu0 0.0
  %3123 = vmatpush1.msra.mxu0 0.0
  %3124 = vmatprep.subr.mxu0 0.0
  %3125 = vmatpush1.msra.mxu0 0.0
  %3126 = vmatprep.subr.mxu0 0.0
  %3127 = vmatpush1.msra.mxu0 0.0
  %3128 = vmatprep.subr.mxu0 0.0
  %3129 = vmatpush1.msra.mxu0 0.0
  %3130 = vmatprep.subr.mxu0 0.0
  %3131 = vmatpush1.msra.mxu0 0.0
  %3132 = vmatprep.subr.mxu0 0.0
  %3133 = vmatpush1.msra.mxu0 0.0
  %3134 = vmatprep.subr.mxu0 0.0
  %3135 = vmatpush1.msra.mxu0 0.0
  %3136 = vmatprep.subr.mxu0 0.0
  %3137 = vmatpush1.msra.mxu0 0.0
  %3138 = vmatprep.subr.mxu0 0.0
  %3139 = vmatpush1.msra.mxu0 0.0
  %3140 = vmatprep.subr.mxu0 0.0
  %3141 = vmatpush1.msra.mxu0 0.0
  %3142 = vmatprep.subr.mxu0 0.0
  %3143 = vmatpush1.msra.mxu0 0.0
  %3144 = vmatprep.subr.mxu0 0.0
  %3145 = vmatpush1.msra.mxu0 0.0
  %3146 = vmatprep.subr.mxu0 0.0
  %3147 = vmatpush1.msra.mxu0 0.0
  %3148 = vmatprep.subr.mxu0 0.0
  %3149 = vmatpush1.msra.mxu0 0.0
  %3150 = vmatprep.subr.mxu0 0.0
  %3151 = vmatpush1.msra.mxu0 0.0
  %3152 = vmatprep.subr.mxu0 0.0
  %3153 = vmatpush1.msra.mxu0 0.0
  %3154 = vmatprep.subr.mxu0 0.0
  %3155 = vmatpush1.msra.mxu0 0.0
  %3156 = vmatprep.subr.mxu0 0.0
  %3157 = vmatpush1.msra.mxu0 0.0
  %3158 = vmatprep.subr.mxu0 0.0
  %3159 = vmatpush1.msra.mxu0 0.0
  %3160 = vmatprep.subr.mxu0 0.0
  %3161 = vmatpush1.msra.mxu0 0.0
  %3162 = vmatprep.mubr.f32.mxu0 0.0
  %3163 = vmatmul.mubr.f32.gmra.mrb[0].mxu0 %v3024
  %v3164 = vpop.f32.mrb[0].mxu0
  %v3165 = vadd.f32 0.0, %v3164
  %v3166 = vpop.f32.mrb[0].mxu0
  %3167 = vdwg.mxu0
  %3169 = vrot.lane.b32.xlu0 %v3165, 48
  %v3170 = vpop.permute.xlu0 %3169
  %v3172 = vadd.f32 %v1738, %v3170
  %v3173 = vmax.f32 %v3172, 0.0
  %v3175 = vsel %vm1746, %v3096, 0
  %3177 = vmatprep.subr.mxu0 0.0
  %3178 = vmatpush1.msra.mxu0 %v1744
  %3179 = vmatprep.subr.mxu0 0.0
  %3180 = vmatpush1.msra.mxu0 0.0
  %3181 = vmatprep.subr.mxu0 0.0
  %3182 = vmatpush1.msra.mxu0 0.0
  %3183 = vmatprep.subr.mxu0 0.0
  %3184 = vmatpush1.msra.mxu0 0.0
  %3185 = vmatprep.subr.mxu0 0.0
  %3186 = vmatpush1.msra.mxu0 0.0
  %3187 = vmatprep.subr.mxu0 0.0
  %3188 = vmatpush1.msra.mxu0 0.0
  %3189 = vmatprep.subr.mxu0 0.0
  %3190 = vmatpush1.msra.mxu0 0.0
  %3191 = vmatprep.subr.mxu0 0.0
  %3192 = vmatpush1.msra.mxu0 0.0
  %3193 = vmatprep.subr.mxu0 0.0
  %3194 = vmatpush1.msra.mxu0 0.0
  %3195 = vmatprep.subr.mxu0 0.0
  %3196 = vmatpush1.msra.mxu0 0.0
  %3197 = vmatprep.subr.mxu0 0.0
  %3198 = vmatpush1.msra.mxu0 0.0
  %3199 = vmatprep.subr.mxu0 0.0
  %3200 = vmatpush1.msra.mxu0 0.0
  %3201 = vmatprep.subr.mxu0 0.0
  %3202 = vmatpush1.msra.mxu0 0.0
  %3203 = vmatprep.subr.mxu0 0.0
  %3204 = vmatpush1.msra.mxu0 0.0
  %3205 = vmatprep.subr.mxu0 0.0
  %3206 = vmatpush1.msra.mxu0 0.0
  %3207 = vmatprep.subr.mxu0 0.0
  %3208 = vmatpush1.msra.mxu0 0.0
  %3209 = vmatprep.subr.mxu0 0.0
  %3210 = vmatpush1.msra.mxu0 0.0
  %3211 = vmatprep.subr.mxu0 0.0
  %3212 = vmatpush1.msra.mxu0 0.0
  %3213 = vmatprep.subr.mxu0 0.0
  %3214 = vmatpush1.msra.mxu0 0.0
  %3215 = vmatprep.subr.mxu0 0.0
  %3216 = vmatpush1.msra.mxu0 0.0
  %3217 = vmatprep.subr.mxu0 0.0
  %3218 = vmatpush1.msra.mxu0 0.0
  %3219 = vmatprep.subr.mxu0 0.0
  %3220 = vmatpush1.msra.mxu0 0.0
  %3221 = vmatprep.subr.mxu0 0.0
  %3222 = vmatpush1.msra.mxu0 0.0
  %3223 = vmatprep.subr.mxu0 0.0
  %3224 = vmatpush1.msra.mxu0 0.0
  %3225 = vmatprep.subr.mxu0 0.0
  %3226 = vmatpush1.msra.mxu0 0.0
  %3227 = vmatprep.subr.mxu0 0.0
  %3228 = vmatpush1.msra.mxu0 0.0
  %3229 = vmatprep.subr.mxu0 0.0
  %3230 = vmatpush1.msra.mxu0 0.0
  %3231 = vmatprep.subr.mxu0 0.0
  %3232 = vmatpush1.msra.mxu0 0.0
  %3233 = vmatprep.subr.mxu0 0.0
  %3234 = vmatpush1.msra.mxu0 0.0
  %3235 = vmatprep.subr.mxu0 0.0
  %3236 = vmatpush1.msra.mxu0 0.0
  %3237 = vmatprep.subr.mxu0 0.0
  %3238 = vmatpush1.msra.mxu0 0.0
  %3239 = vmatprep.subr.mxu0 0.0
  %3240 = vmatpush1.msra.mxu0 0.0
  %3241 = vmatprep.mubr.f32.mxu0 0.0
  %3242 = vmatmul.mubr.f32.gmra.mrb[0].mxu0 %v3175
  %v3243 = vpop.f32.mrb[0].mxu0
  %v3244 = vadd.f32 %v1745, %v3243
  %v3245 = vpop.f32.mrb[0].mxu0
  %3246 = vdwg.mxu0
  %3248 = vrot.lane.b32.xlu0 %v3173, 80
  %v3249 = vpop.permute.xlu0 %3248
  %v3250 = vsel %vm1746, %v3249, 0
  %3252 = vmatprep.subr.mxu0 0.0
  %3253 = vmatpush1.msra.mxu0 %v1743
  %3254 = vmatprep.subr.mxu0 0.0
  %3255 = vmatpush1.msra.mxu0 0.0
  %3256 = vmatprep.subr.mxu0 0.0
  %3257 = vmatpush1.msra.mxu0 0.0
  %3258 = vmatprep.subr.mxu0 0.0
  %3259 = vmatpush1.msra.mxu0 0.0
  %3260 = vmatprep.subr.mxu0 0.0
  %3261 = vmatpush1.msra.mxu0 0.0
  %3262 = vmatprep.subr.mxu0 0.0
  %3263 = vmatpush1.msra.mxu0 0.0
  %3264 = vmatprep.subr.mxu0 0.0
  %3265 = vmatpush1.msra.mxu0 0.0
  %3266 = vmatprep.subr.mxu0 0.0
  %3267 = vmatpush1.msra.mxu0 0.0
  %3268 = vmatprep.subr.mxu0 0.0
  %3269 = vmatpush1.msra.mxu0 0.0
  %3270 = vmatprep.subr.mxu0 0.0
  %3271 = vmatpush1.msra.mxu0 0.0
  %3272 = vmatprep.subr.mxu0 0.0
  %3273 = vmatpush1.msra.mxu0 0.0
  %3274 = vmatprep.subr.mxu0 0.0
  %3275 = vmatpush1.msra.mxu0 0.0
  %3276 = vmatprep.subr.mxu0 0.0
  %3277 = vmatpush1.msra.mxu0 0.0
  %3278 = vmatprep.subr.mxu0 0.0
  %3279 = vmatpush1.msra.mxu0 0.0
  %3280 = vmatprep.subr.mxu0 0.0
  %3281 = vmatpush1.msra.mxu0 0.0
  %3282 = vmatprep.subr.mxu0 0.0
  %3283 = vmatpush1.msra.mxu0 0.0
  %3284 = vmatprep.subr.mxu0 0.0
  %3285 = vmatpush1.msra.mxu0 0.0
  %3286 = vmatprep.subr.mxu0 0.0
  %3287 = vmatpush1.msra.mxu0 0.0
  %3288 = vmatprep.subr.mxu0 0.0
  %3289 = vmatpush1.msra.mxu0 0.0
  %3290 = vmatprep.subr.mxu0 0.0
  %3291 = vmatpush1.msra.mxu0 0.0
  %3292 = vmatprep.subr.mxu0 0.0
  %3293 = vmatpush1.msra.mxu0 0.0
  %3294 = vmatprep.subr.mxu0 0.0
  %3295 = vmatpush1.msra.mxu0 0.0
  %3296 = vmatprep.subr.mxu0 0.0
  %3297 = vmatpush1.msra.mxu0 0.0
  %3298 = vmatprep.subr.mxu0 0.0
  %3299 = vmatpush1.msra.mxu0 0.0
  %3300 = vmatprep.subr.mxu0 0.0
  %3301 = vmatpush1.msra.mxu0 0.0
  %3302 = vmatprep.subr.mxu0 0.0
  %3303 = vmatpush1.msra.mxu0 0.0
  %3304 = vmatprep.subr.mxu0 0.0
  %3305 = vmatpush1.msra.mxu0 0.0
  %3306 = vmatprep.subr.mxu0 0.0
  %3307 = vmatpush1.msra.mxu0 0.0
  %3308 = vmatprep.subr.mxu0 0.0
  %3309 = vmatpush1.msra.mxu0 0.0
  %3310 = vmatprep.subr.mxu0 0.0
  %3311 = vmatpush1.msra.mxu0 0.0
  %3312 = vmatprep.subr.mxu0 0.0
  %3313 = vmatpush1.msra.mxu0 0.0
  %3314 = vmatprep.subr.mxu0 0.0
  %3315 = vmatpush1.msra.mxu0 0.0
  %3316 = vmatprep.mubr.f32.mxu0 0.0
  %3317 = vmatmul.mubr.f32.gmra.mrb[0].mxu0 %v3250
  %v3318 = vpop.f32.mrb[0].mxu0
  %v3319 = vadd.f32 %v3244, %v3318
  %v3320 = vpop.f32.mrb[0].mxu0
  %3321 = vdwg.mxu0
  %v3322 = vmax.f32 %v3319, 0.0
  %3323 = vst.msk [vmem:[#allocation2 + $0x6] sm:$0x1] %vm1966, %v3322
  %3324 = vmatprep.subr.mxu0 0.0
  %3325 = vmatpush1.msra.mxu0 %v1742
  %3326 = vmatprep.subr.mxu0 0.0
  %3327 = vmatpush1.msra.mxu0 0.0
  %3328 = vmatprep.subr.mxu0 0.0
  %3329 = vmatpush1.msra.mxu0 0.0
  %3330 = vmatprep.subr.mxu0 0.0
  %3331 = vmatpush1.msra.mxu0 0.0
  %3332 = vmatprep.subr.mxu0 0.0
  %3333 = vmatpush1.msra.mxu0 0.0
  %3334 = vmatprep.subr.mxu0 0.0
  %3335 = vmatpush1.msra.mxu0 0.0
  %3336 = vmatprep.subr.mxu0 0.0
  %3337 = vmatpush1.msra.mxu0 0.0
  %3338 = vmatprep.subr.mxu0 0.0
  %3339 = vmatpush1.msra.mxu0 0.0
  %3340 = vmatprep.subr.mxu0 0.0
  %3341 = vmatpush1.msra.mxu0 0.0
  %3342 = vmatprep.subr.mxu0 0.0
  %3343 = vmatpush1.msra.mxu0 0.0
  %3344 = vmatprep.subr.mxu0 0.0
  %3345 = vmatpush1.msra.mxu0 0.0
  %3346 = vmatprep.subr.mxu0 0.0
  %3347 = vmatpush1.msra.mxu0 0.0
  %3348 = vmatprep.subr.mxu0 0.0
  %3349 = vmatpush1.msra.mxu0 0.0
  %3350 = vmatprep.subr.mxu0 0.0
  %3351 = vmatpush1.msra.mxu0 0.0
  %3352 = vmatprep.subr.mxu0 0.0
  %3353 = vmatpush1.msra.mxu0 0.0
  %3354 = vmatprep.subr.mxu0 0.0
  %3355 = vmatpush1.msra.mxu0 0.0
  %3356 = vmatprep.subr.mxu0 0.0
  %3357 = vmatpush1.msra.mxu0 0.0
  %3358 = vmatprep.subr.mxu0 0.0
  %3359 = vmatpush1.msra.mxu0 0.0
  %3360 = vmatprep.subr.mxu0 0.0
  %3361 = vmatpush1.msra.mxu0 0.0
  %3362 = vmatprep.subr.mxu0 0.0
  %3363 = vmatpush1.msra.mxu0 0.0
  %3364 = vmatprep.subr.mxu0 0.0
  %3365 = vmatpush1.msra.mxu0 0.0
  %3366 = vmatprep.subr.mxu0 0.0
  %3367 = vmatpush1.msra.mxu0 0.0
  %3368 = vmatprep.subr.mxu0 0.0
  %3369 = vmatpush1.msra.mxu0 0.0
  %3370 = vmatprep.subr.mxu0 0.0
  %3371 = vmatpush1.msra.mxu0 0.0
  %3372 = vmatprep.subr.mxu0 0.0
  %3373 = vmatpush1.msra.mxu0 0.0
  %3374 = vmatprep.subr.mxu0 0.0
  %3375 = vmatpush1.msra.mxu0 0.0
  %3376 = vmatprep.subr.mxu0 0.0
  %3377 = vmatpush1.msra.mxu0 0.0
  %3378 = vmatprep.subr.mxu0 0.0
  %3379 = vmatpush1.msra.mxu0 0.0
  %3380 = vmatprep.subr.mxu0 0.0
  %3381 = vmatpush1.msra.mxu0 0.0
  %3382 = vmatprep.subr.mxu0 0.0
  %3383 = vmatpush1.msra.mxu0 0.0
  %3384 = vmatprep.subr.mxu0 0.0
  %3385 = vmatpush1.msra.mxu0 0.0
  %3386 = vmatprep.subr.mxu0 0.0
  %3387 = vmatpush1.msra.mxu0 0.0
  %3388 = vmatprep.mubr.f32.mxu0 0.0
  %3389 = vmatmul.mubr.f32.gmra.mrb[0].mxu0 %v3250
  %v3390 = vpop.f32.mrb[0].mxu0
  %v3391 = vadd.f32 0.0, %v3390
  %v3392 = vpop.f32.mrb[0].mxu0
  %3393 = vdwg.mxu0
  %3395 = vrot.lane.b32.xlu0 %v3391, 56
  %v3396 = vpop.permute.xlu0 %3395
  %v3398 = vadd.f32 %v1738, %v3396
  %v3399 = vmax.f32 %v3398, 0.0
  %v3401 = vsel %vm1746, %v3322, 0
  %3403 = vmatprep.subr.mxu0 0.0
  %3404 = vmatpush1.msra.mxu0 %v1744
  %3405 = vmatprep.subr.mxu0 0.0
  %3406 = vmatpush1.msra.mxu0 0.0
  %3407 = vmatprep.subr.mxu0 0.0
  %3408 = vmatpush1.msra.mxu0 0.0
  %3409 = vmatprep.subr.mxu0 0.0
  %3410 = vmatpush1.msra.mxu0 0.0
  %3411 = vmatprep.subr.mxu0 0.0
  %3412 = vmatpush1.msra.mxu0 0.0
  %3413 = vmatprep.subr.mxu0 0.0
  %3414 = vmatpush1.msra.mxu0 0.0
  %3415 = vmatprep.subr.mxu0 0.0
  %3416 = vmatpush1.msra.mxu0 0.0
  %3417 = vmatprep.subr.mxu0 0.0
  %3418 = vmatpush1.msra.mxu0 0.0
  %3419 = vmatprep.subr.mxu0 0.0
  %3420 = vmatpush1.msra.mxu0 0.0
  %3421 = vmatprep.subr.mxu0 0.0
  %3422 = vmatpush1.msra.mxu0 0.0
  %3423 = vmatprep.subr.mxu0 0.0
  %3424 = vmatpush1.msra.mxu0 0.0
  %3425 = vmatprep.subr.mxu0 0.0
  %3426 = vmatpush1.msra.mxu0 0.0
  %3427 = vmatprep.subr.mxu0 0.0
  %3428 = vmatpush1.msra.mxu0 0.0
  %3429 = vmatprep.subr.mxu0 0.0
  %3430 = vmatpush1.msra.mxu0 0.0
  %3431 = vmatprep.subr.mxu0 0.0
  %3432 = vmatpush1.msra.mxu0 0.0
  %3433 = vmatprep.subr.mxu0 0.0
  %3434 = vmatpush1.msra.mxu0 0.0
  %3435 = vmatprep.subr.mxu0 0.0
  %3436 = vmatpush1.msra.mxu0 0.0
  %3437 = vmatprep.subr.mxu0 0.0
  %3438 = vmatpush1.msra.mxu0 0.0
  %3439 = vmatprep.subr.mxu0 0.0
  %3440 = vmatpush1.msra.mxu0 0.0
  %3441 = vmatprep.subr.mxu0 0.0
  %3442 = vmatpush1.msra.mxu0 0.0
  %3443 = vmatprep.subr.mxu0 0.0
  %3444 = vmatpush1.msra.mxu0 0.0
  %3445 = vmatprep.subr.mxu0 0.0
  %3446 = vmatpush1.msra.mxu0 0.0
  %3447 = vmatprep.subr.mxu0 0.0
  %3448 = vmatpush1.msra.mxu0 0.0
  %3449 = vmatprep.subr.mxu0 0.0
  %3450 = vmatpush1.msra.mxu0 0.0
  %3451 = vmatprep.subr.mxu0 0.0
  %3452 = vmatpush1.msra.mxu0 0.0
  %3453 = vmatprep.subr.mxu0 0.0
  %3454 = vmatpush1.msra.mxu0 0.0
  %3455 = vmatprep.subr.mxu0 0.0
  %3456 = vmatpush1.msra.mxu0 0.0
  %3457 = vmatprep.subr.mxu0 0.0
  %3458 = vmatpush1.msra.mxu0 0.0
  %3459 = vmatprep.subr.mxu0 0.0
  %3460 = vmatpush1.msra.mxu0 0.0
  %3461 = vmatprep.subr.mxu0 0.0
  %3462 = vmatpush1.msra.mxu0 0.0
  %3463 = vmatprep.subr.mxu0 0.0
  %3464 = vmatpush1.msra.mxu0 0.0
  %3465 = vmatprep.subr.mxu0 0.0
  %3466 = vmatpush1.msra.mxu0 0.0
  %3467 = vmatprep.mubr.f32.mxu0 0.0
  %3468 = vmatmul.mubr.f32.gmra.mrb[0].mxu0 %v3401
  %v3469 = vpop.f32.mrb[0].mxu0
  %v3470 = vadd.f32 %v1745, %v3469
  %v3471 = vpop.f32.mrb[0].mxu0
  %3472 = vdwg.mxu0
  %3474 = vrot.lane.b32.xlu0 %v3399, 72
  %v3475 = vpop.permute.xlu0 %3474
  %v3476 = vsel %vm1746, %v3475, 0
  %3478 = vmatprep.subr.mxu0 0.0
  %3479 = vmatpush1.msra.mxu0 %v1743
  %3480 = vmatprep.subr.mxu0 0.0
  %3481 = vmatpush1.msra.mxu0 0.0
  %3482 = vmatprep.subr.mxu0 0.0
  %3483 = vmatpush1.msra.mxu0 0.0
  %3484 = vmatprep.subr.mxu0 0.0
  %3485 = vmatpush1.msra.mxu0 0.0
  %3486 = vmatprep.subr.mxu0 0.0
  %3487 = vmatpush1.msra.mxu0 0.0
  %3488 = vmatprep.subr.mxu0 0.0
  %3489 = vmatpush1.msra.mxu0 0.0
  %3490 = vmatprep.subr.mxu0 0.0
  %3491 = vmatpush1.msra.mxu0 0.0
  %3492 = vmatprep.subr.mxu0 0.0
  %3493 = vmatpush1.msra.mxu0 0.0
  %3494 = vmatprep.subr.mxu0 0.0
  %3495 = vmatpush1.msra.mxu0 0.0
  %3496 = vmatprep.subr.mxu0 0.0
  %3497 = vmatpush1.msra.mxu0 0.0
  %3498 = vmatprep.subr.mxu0 0.0
  %3499 = vmatpush1.msra.mxu0 0.0
  %3500 = vmatprep.subr.mxu0 0.0
  %3501 = vmatpush1.msra.mxu0 0.0
  %3502 = vmatprep.subr.mxu0 0.0
  %3503 = vmatpush1.msra.mxu0 0.0
  %3504 = vmatprep.subr.mxu0 0.0
  %3505 = vmatpush1.msra.mxu0 0.0
  %3506 = vmatprep.subr.mxu0 0.0
  %3507 = vmatpush1.msra.mxu0 0.0
  %3508 = vmatprep.subr.mxu0 0.0
  %3509 = vmatpush1.msra.mxu0 0.0
  %3510 = vmatprep.subr.mxu0 0.0
  %3511 = vmatpush1.msra.mxu0 0.0
  %3512 = vmatprep.subr.mxu0 0.0
  %3513 = vmatpush1.msra.mxu0 0.0
  %3514 = vmatprep.subr.mxu0 0.0
  %3515 = vmatpush1.msra.mxu0 0.0
  %3516 = vmatprep.subr.mxu0 0.0
  %3517 = vmatpush1.msra.mxu0 0.0
  %3518 = vmatprep.subr.mxu0 0.0
  %3519 = vmatpush1.msra.mxu0 0.0
  %3520 = vmatprep.subr.mxu0 0.0
  %3521 = vmatpush1.msra.mxu0 0.0
  %3522 = vmatprep.subr.mxu0 0.0
  %3523 = vmatpush1.msra.mxu0 0.0
  %3524 = vmatprep.subr.mxu0 0.0
  %3525 = vmatpush1.msra.mxu0 0.0
  %3526 = vmatprep.subr.mxu0 0.0
  %3527 = vmatpush1.msra.mxu0 0.0
  %3528 = vmatprep.subr.mxu0 0.0
  %3529 = vmatpush1.msra.mxu0 0.0
  %3530 = vmatprep.subr.mxu0 0.0
  %3531 = vmatpush1.msra.mxu0 0.0
  %3532 = vmatprep.subr.mxu0 0.0
  %3533 = vmatpush1.msra.mxu0 0.0
  %3534 = vmatprep.subr.mxu0 0.0
  %3535 = vmatpush1.msra.mxu0 0.0
  %3536 = vmatprep.subr.mxu0 0.0
  %3537 = vmatpush1.msra.mxu0 0.0
  %3538 = vmatprep.subr.mxu0 0.0
  %3539 = vmatpush1.msra.mxu0 0.0
  %3540 = vmatprep.subr.mxu0 0.0
  %3541 = vmatpush1.msra.mxu0 0.0
  %3542 = vmatprep.mubr.f32.mxu0 0.0
  %3543 = vmatmul.mubr.f32.gmra.mrb[0].mxu0 %v3476
  %v3544 = vpop.f32.mrb[0].mxu0
  %v3545 = vadd.f32 %v3470, %v3544
  %v3546 = vpop.f32.mrb[0].mxu0
  %3547 = vdwg.mxu0
  %v3548 = vmax.f32 %v3545, 0.0
  %3549 = vst.msk [vmem:[#allocation2 + $0x7] sm:$0x1] %vm1966, %v3548
  %3550 = vmatprep.subr.mxu0 0.0
  %3551 = vmatpush1.msra.mxu0 %v1742
  %3552 = vmatprep.subr.mxu0 0.0
  %3553 = vmatpush1.msra.mxu0 0.0
  %3554 = vmatprep.subr.mxu0 0.0
  %3555 = vmatpush1.msra.mxu0 0.0
  %3556 = vmatprep.subr.mxu0 0.0
  %3557 = vmatpush1.msra.mxu0 0.0
  %3558 = vmatprep.subr.mxu0 0.0
  %3559 = vmatpush1.msra.mxu0 0.0
  %3560 = vmatprep.subr.mxu0 0.0
  %3561 = vmatpush1.msra.mxu0 0.0
  %3562 = vmatprep.subr.mxu0 0.0
  %3563 = vmatpush1.msra.mxu0 0.0
  %3564 = vmatprep.subr.mxu0 0.0
  %3565 = vmatpush1.msra.mxu0 0.0
  %3566 = vmatprep.subr.mxu0 0.0
  %3567 = vmatpush1.msra.mxu0 0.0
  %3568 = vmatprep.subr.mxu0 0.0
  %3569 = vmatpush1.msra.mxu0 0.0
  %3570 = vmatprep.subr.mxu0 0.0
  %3571 = vmatpush1.msra.mxu0 0.0
  %3572 = vmatprep.subr.mxu0 0.0
  %3573 = vmatpush1.msra.mxu0 0.0
  %3574 = vmatprep.subr.mxu0 0.0
  %3575 = vmatpush1.msra.mxu0 0.0
  %3576 = vmatprep.subr.mxu0 0.0
  %3577 = vmatpush1.msra.mxu0 0.0
  %3578 = vmatprep.subr.mxu0 0.0
  %3579 = vmatpush1.msra.mxu0 0.0
  %3580 = vmatprep.subr.mxu0 0.0
  %3581 = vmatpush1.msra.mxu0 0.0
  %3582 = vmatprep.subr.mxu0 0.0
  %3583 = vmatpush1.msra.mxu0 0.0
  %3584 = vmatprep.subr.mxu0 0.0
  %3585 = vmatpush1.msra.mxu0 0.0
  %3586 = vmatprep.subr.mxu0 0.0
  %3587 = vmatpush1.msra.mxu0 0.0
  %3588 = vmatprep.subr.mxu0 0.0
  %3589 = vmatpush1.msra.mxu0 0.0
  %3590 = vmatprep.subr.mxu0 0.0
  %3591 = vmatpush1.msra.mxu0 0.0
  %3592 = vmatprep.subr.mxu0 0.0
  %3593 = vmatpush1.msra.mxu0 0.0
  %3594 = vmatprep.subr.mxu0 0.0
  %3595 = vmatpush1.msra.mxu0 0.0
  %3596 = vmatprep.subr.mxu0 0.0
  %3597 = vmatpush1.msra.mxu0 0.0
  %3598 = vmatprep.subr.mxu0 0.0
  %3599 = vmatpush1.msra.mxu0 0.0
  %3600 = vmatprep.subr.mxu0 0.0
  %3601 = vmatpush1.msra.mxu0 0.0
  %3602 = vmatprep.subr.mxu0 0.0
  %3603 = vmatpush1.msra.mxu0 0.0
  %3604 = vmatprep.subr.mxu0 0.0
  %3605 = vmatpush1.msra.mxu0 0.0
  %3606 = vmatprep.subr.mxu0 0.0
  %3607 = vmatpush1.msra.mxu0 0.0
  %3608 = vmatprep.subr.mxu0 0.0
  %3609 = vmatpush1.msra.mxu0 0.0
  %3610 = vmatprep.subr.mxu0 0.0
  %3611 = vmatpush1.msra.mxu0 0.0
  %3612 = vmatprep.subr.mxu0 0.0
  %3613 = vmatpush1.msra.mxu0 0.0
  %3614 = vmatprep.mubr.f32.mxu0 0.0
  %3615 = vmatmul.mubr.f32.gmra.mrb[0].mxu0 %v3476
  %v3616 = vpop.f32.mrb[0].mxu0
  %v3617 = vadd.f32 0.0, %v3616
  %v3618 = vpop.f32.mrb[0].mxu0
  %3619 = vdwg.mxu0
  %3621 = vrot.lane.b32.xlu0 %v3617, 64
  %v3622 = vpop.permute.xlu0 %3621
  %v3624 = vadd.f32 %v1738, %v3622
  %v3625 = vmax.f32 %v3624, 0.0
  %v3627 = vsel %vm1746, %v3548, 0
  %3629 = vmatprep.subr.mxu0 0.0
  %3630 = vmatpush1.msra.mxu0 %v1744
  %3631 = vmatprep.subr.mxu0 0.0
  %3632 = vmatpush1.msra.mxu0 0.0
  %3633 = vmatprep.subr.mxu0 0.0
  %3634 = vmatpush1.msra.mxu0 0.0
  %3635 = vmatprep.subr.mxu0 0.0
  %3636 = vmatpush1.msra.mxu0 0.0
  %3637 = vmatprep.subr.mxu0 0.0
  %3638 = vmatpush1.msra.mxu0 0.0
  %3639 = vmatprep.subr.mxu0 0.0
  %3640 = vmatpush1.msra.mxu0 0.0
  %3641 = vmatprep.subr.mxu0 0.0
  %3642 = vmatpush1.msra.mxu0 0.0
  %3643 = vmatprep.subr.mxu0 0.0
  %3644 = vmatpush1.msra.mxu0 0.0
  %3645 = vmatprep.subr.mxu0 0.0
  %3646 = vmatpush1.msra.mxu0 0.0
  %3647 = vmatprep.subr.mxu0 0.0
  %3648 = vmatpush1.msra.mxu0 0.0
  %3649 = vmatprep.subr.mxu0 0.0
  %3650 = vmatpush1.msra.mxu0 0.0
  %3651 = vmatprep.subr.mxu0 0.0
  %3652 = vmatpush1.msra.mxu0 0.0
  %3653 = vmatprep.subr.mxu0 0.0
  %3654 = vmatpush1.msra.mxu0 0.0
  %3655 = vmatprep.subr.mxu0 0.0
  %3656 = vmatpush1.msra.mxu0 0.0
  %3657 = vmatprep.subr.mxu0 0.0
  %3658 = vmatpush1.msra.mxu0 0.0
  %3659 = vmatprep.subr.mxu0 0.0
  %3660 = vmatpush1.msra.mxu0 0.0
  %3661 = vmatprep.subr.mxu0 0.0
  %3662 = vmatpush1.msra.mxu0 0.0
  %3663 = vmatprep.subr.mxu0 0.0
  %3664 = vmatpush1.msra.mxu0 0.0
  %3665 = vmatprep.subr.mxu0 0.0
  %3666 = vmatpush1.msra.mxu0 0.0
  %3667 = vmatprep.subr.mxu0 0.0
  %3668 = vmatpush1.msra.mxu0 0.0
  %3669 = vmatprep.subr.mxu0 0.0
  %3670 = vmatpush1.msra.mxu0 0.0
  %3671 = vmatprep.subr.mxu0 0.0
  %3672 = vmatpush1.msra.mxu0 0.0
  %3673 = vmatprep.subr.mxu0 0.0
  %3674 = vmatpush1.msra.mxu0 0.0
  %3675 = vmatprep.subr.mxu0 0.0
  %3676 = vmatpush1.msra.mxu0 0.0
  %3677 = vmatprep.subr.mxu0 0.0
  %3678 = vmatpush1.msra.mxu0 0.0
  %3679 = vmatprep.subr.mxu0 0.0
  %3680 = vmatpush1.msra.mxu0 0.0
  %3681 = vmatprep.subr.mxu0 0.0
  %3682 = vmatpush1.msra.mxu0 0.0
  %3683 = vmatprep.subr.mxu0 0.0
  %3684 = vmatpush1.msra.mxu0 0.0
  %3685 = vmatprep.subr.mxu0 0.0
  %3686 = vmatpush1.msra.mxu0 0.0
  %3687 = vmatprep.subr.mxu0 0.0
  %3688 = vmatpush1.msra.mxu0 0.0
  %3689 = vmatprep.subr.mxu0 0.0
  %3690 = vmatpush1.msra.mxu0 0.0
  %3691 = vmatprep.subr.mxu0 0.0
  %3692 = vmatpush1.msra.mxu0 0.0
  %3693 = vmatprep.mubr.f32.mxu0 0.0
  %3694 = vmatmul.mubr.f32.gmra.mrb[0].mxu0 %v3627
  %v3695 = vpop.f32.mrb[0].mxu0
  %v3696 = vadd.f32 %v1745, %v3695
  %v3697 = vpop.f32.mrb[0].mxu0
  %3698 = vdwg.mxu0
  %3700 = vrot.lane.b32.xlu0 %v3625, 64
  %v3701 = vpop.permute.xlu0 %3700
  %v3702 = vsel %vm1746, %v3701, 0
  %3704 = vmatprep.subr.mxu0 0.0
  %3705 = vmatpush1.msra.mxu0 %v1743
  %3706 = vmatprep.subr.mxu0 0.0
  %3707 = vmatpush1.msra.mxu0 0.0
  %3708 = vmatprep.subr.mxu0 0.0
  %3709 = vmatpush1.msra.mxu0 0.0
  %3710 = vmatprep.subr.mxu0 0.0
  %3711 = vmatpush1.msra.mxu0 0.0
  %3712 = vmatprep.subr.mxu0 0.0
  %3713 = vmatpush1.msra.mxu0 0.0
  %3714 = vmatprep.subr.mxu0 0.0
  %3715 = vmatpush1.msra.mxu0 0.0
  %3716 = vmatprep.subr.mxu0 0.0
  %3717 = vmatpush1.msra.mxu0 0.0
  %3718 = vmatprep.subr.mxu0 0.0
  %3719 = vmatpush1.msra.mxu0 0.0
  %3720 = vmatprep.subr.mxu0 0.0
  %3721 = vmatpush1.msra.mxu0 0.0
  %3722 = vmatprep.subr.mxu0 0.0
  %3723 = vmatpush1.msra.mxu0 0.0
  %3724 = vmatprep.subr.mxu0 0.0
  %3725 = vmatpush1.msra.mxu0 0.0
  %3726 = vmatprep.subr.mxu0 0.0
  %3727 = vmatpush1.msra.mxu0 0.0
  %3728 = vmatprep.subr.mxu0 0.0
  %3729 = vmatpush1.msra.mxu0 0.0
  %3730 = vmatprep.subr.mxu0 0.0
  %3731 = vmatpush1.msra.mxu0 0.0
  %3732 = vmatprep.subr.mxu0 0.0
  %3733 = vmatpush1.msra.mxu0 0.0
  %3734 = vmatprep.subr.mxu0 0.0
  %3735 = vmatpush1.msra.mxu0 0.0
  %3736 = vmatprep.subr.mxu0 0.0
  %3737 = vmatpush1.msra.mxu0 0.0
  %3738 = vmatprep.subr.mxu0 0.0
  %3739 = vmatpush1.msra.mxu0 0.0
  %3740 = vmatprep.subr.mxu0 0.0
  %3741 = vmatpush1.msra.mxu0 0.0
  %3742 = vmatprep.subr.mxu0 0.0
  %3743 = vmatpush1.msra.mxu0 0.0
  %3744 = vmatprep.subr.mxu0 0.0
  %3745 = vmatpush1.msra.mxu0 0.0
  %3746 = vmatprep.subr.mxu0 0.0
  %3747 = vmatpush1.msra.mxu0 0.0
  %3748 = vmatprep.subr.mxu0 0.0
  %3749 = vmatpush1.msra.mxu0 0.0
  %3750 = vmatprep.subr.mxu0 0.0
  %3751 = vmatpush1.msra.mxu0 0.0
  %3752 = vmatprep.subr.mxu0 0.0
  %3753 = vmatpush1.msra.mxu0 0.0
  %3754 = vmatprep.subr.mxu0 0.0
  %3755 = vmatpush1.msra.mxu0 0.0
  %3756 = vmatprep.subr.mxu0 0.0
  %3757 = vmatpush1.msra.mxu0 0.0
  %3758 = vmatprep.subr.mxu0 0.0
  %3759 = vmatpush1.msra.mxu0 0.0
  %3760 = vmatprep.subr.mxu0 0.0
  %3761 = vmatpush1.msra.mxu0 0.0
  %3762 = vmatprep.subr.mxu0 0.0
  %3763 = vmatpush1.msra.mxu0 0.0
  %3764 = vmatprep.subr.mxu0 0.0
  %3765 = vmatpush1.msra.mxu0 0.0
  %3766 = vmatprep.subr.mxu0 0.0
  %3767 = vmatpush1.msra.mxu0 0.0
  %3768 = vmatprep.mubr.f32.mxu0 0.0
  %3769 = vmatmul.mubr.f32.gmra.mrb[0].mxu0 %v3702
  %v3770 = vpop.f32.mrb[0].mxu0
  %v3771 = vadd.f32 %v3696, %v3770
  %v3772 = vpop.f32.mrb[0].mxu0
  %3773 = vdwg.mxu0
  %v3774 = vmax.f32 %v3771, 0.0
  %3775 = vst.msk [vmem:[#allocation2 + $0x8] sm:$0x1] %vm1966, %v3774
  %3776 = vmatprep.subr.mxu0 0.0
  %3777 = vmatpush1.msra.mxu0 %v1742
  %3778 = vmatprep.subr.mxu0 0.0
  %3779 = vmatpush1.msra.mxu0 0.0
  %3780 = vmatprep.subr.mxu0 0.0
  %3781 = vmatpush1.msra.mxu0 0.0
  %3782 = vmatprep.subr.mxu0 0.0
  %3783 = vmatpush1.msra.mxu0 0.0
  %3784 = vmatprep.subr.mxu0 0.0
  %3785 = vmatpush1.msra.mxu0 0.0
  %3786 = vmatprep.subr.mxu0 0.0
  %3787 = vmatpush1.msra.mxu0 0.0
  %3788 = vmatprep.subr.mxu0 0.0
  %3789 = vmatpush1.msra.mxu0 0.0
  %3790 = vmatprep.subr.mxu0 0.0
  %3791 = vmatpush1.msra.mxu0 0.0
  %3792 = vmatprep.subr.mxu0 0.0
  %3793 = vmatpush1.msra.mxu0 0.0
  %3794 = vmatprep.subr.mxu0 0.0
  %3795 = vmatpush1.msra.mxu0 0.0
  %3796 = vmatprep.subr.mxu0 0.0
  %3797 = vmatpush1.msra.mxu0 0.0
  %3798 = vmatprep.subr.mxu0 0.0
  %3799 = vmatpush1.msra.mxu0 0.0
  %3800 = vmatprep.subr.mxu0 0.0
  %3801 = vmatpush1.msra.mxu0 0.0
  %3802 = vmatprep.subr.mxu0 0.0
  %3803 = vmatpush1.msra.mxu0 0.0
  %3804 = vmatprep.subr.mxu0 0.0
  %3805 = vmatpush1.msra.mxu0 0.0
  %3806 = vmatprep.subr.mxu0 0.0
  %3807 = vmatpush1.msra.mxu0 0.0
  %3808 = vmatprep.subr.mxu0 0.0
  %3809 = vmatpush1.msra.mxu0 0.0
  %3810 = vmatprep.subr.mxu0 0.0
  %3811 = vmatpush1.msra.mxu0 0.0
  %3812 = vmatprep.subr.mxu0 0.0
  %3813 = vmatpush1.msra.mxu0 0.0
  %3814 = vmatprep.subr.mxu0 0.0
  %3815 = vmatpush1.msra.mxu0 0.0
  %3816 = vmatprep.subr.mxu0 0.0
  %3817 = vmatpush1.msra.mxu0 0.0
  %3818 = vmatprep.subr.mxu0 0.0
  %3819 = vmatpush1.msra.mxu0 0.0
  %3820 = vmatprep.subr.mxu0 0.0
  %3821 = vmatpush1.msra.mxu0 0.0
  %3822 = vmatprep.subr.mxu0 0.0
  %3823 = vmatpush1.msra.mxu0 0.0
  %3824 = vmatprep.subr.mxu0 0.0
  %3825 = vmatpush1.msra.mxu0 0.0
  %3826 = vmatprep.subr.mxu0 0.0
  %3827 = vmatpush1.msra.mxu0 0.0
  %3828 = vmatprep.subr.mxu0 0.0
  %3829 = vmatpush1.msra.mxu0 0.0
  %3830 = vmatprep.subr.mxu0 0.0
  %3831 = vmatpush1.msra.mxu0 0.0
  %3832 = vmatprep.subr.mxu0 0.0
  %3833 = vmatpush1.msra.mxu0 0.0
  %3834 = vmatprep.subr.mxu0 0.0
  %3835 = vmatpush1.msra.mxu0 0.0
  %3836 = vmatprep.subr.mxu0 0.0
  %3837 = vmatpush1.msra.mxu0 0.0
  %3838 = vmatprep.subr.mxu0 0.0
  %3839 = vmatpush1.msra.mxu0 0.0
  %3840 = vmatprep.mubr.f32.mxu0 0.0
  %3841 = vmatmul.mubr.f32.gmra.mrb[0].mxu0 %v3702
  %v3842 = vpop.f32.mrb[0].mxu0
  %v3843 = vadd.f32 0.0, %v3842
  %v3844 = vpop.f32.mrb[0].mxu0
  %3845 = vdwg.mxu0
  %3847 = vrot.lane.b32.xlu0 %v3843, 72
  %v3848 = vpop.permute.xlu0 %3847
  %v3850 = vadd.f32 %v1738, %v3848
  %v3851 = vmax.f32 %v3850, 0.0
  %v3853 = vsel %vm1746, %v3774, 0
  %3855 = vmatprep.subr.mxu0 0.0
  %3856 = vmatpush1.msra.mxu0 %v1744
  %3857 = vmatprep.subr.mxu0 0.0
  %3858 = vmatpush1.msra.mxu0 0.0
  %3859 = vmatprep.subr.mxu0 0.0
  %3860 = vmatpush1.msra.mxu0 0.0
  %3861 = vmatprep.subr.mxu0 0.0
  %3862 = vmatpush1.msra.mxu0 0.0
  %3863 = vmatprep.subr.mxu0 0.0
  %3864 = vmatpush1.msra.mxu0 0.0
  %3865 = vmatprep.subr.mxu0 0.0
  %3866 = vmatpush1.msra.mxu0 0.0
  %3867 = vmatprep.subr.mxu0 0.0
  %3868 = vmatpush1.msra.mxu0 0.0
  %3869 = vmatprep.subr.mxu0 0.0
  %3870 = vmatpush1.msra.mxu0 0.0
  %3871 = vmatprep.subr.mxu0 0.0
  %3872 = vmatpush1.msra.mxu0 0.0
  %3873 = vmatprep.subr.mxu0 0.0
  %3874 = vmatpush1.msra.mxu0 0.0
  %3875 = vmatprep.subr.mxu0 0.0
  %3876 = vmatpush1.msra.mxu0 0.0
  %3877 = vmatprep.subr.mxu0 0.0
  %3878 = vmatpush1.msra.mxu0 0.0
  %3879 = vmatprep.subr.mxu0 0.0
  %3880 = vmatpush1.msra.mxu0 0.0
  %3881 = vmatprep.subr.mxu0 0.0
  %3882 = vmatpush1.msra.mxu0 0.0
  %3883 = vmatprep.subr.mxu0 0.0
  %3884 = vmatpush1.msra.mxu0 0.0
  %3885 = vmatprep.subr.mxu0 0.0
  %3886 = vmatpush1.msra.mxu0 0.0
  %3887 = vmatprep.subr.mxu0 0.0
  %3888 = vmatpush1.msra.mxu0 0.0
  %3889 = vmatprep.subr.mxu0 0.0
  %3890 = vmatpush1.msra.mxu0 0.0
  %3891 = vmatprep.subr.mxu0 0.0
  %3892 = vmatpush1.msra.mxu0 0.0
  %3893 = vmatprep.subr.mxu0 0.0
  %3894 = vmatpush1.msra.mxu0 0.0
  %3895 = vmatprep.subr.mxu0 0.0
  %3896 = vmatpush1.msra.mxu0 0.0
  %3897 = vmatprep.subr.mxu0 0.0
  %3898 = vmatpush1.msra.mxu0 0.0
  %3899 = vmatprep.subr.mxu0 0.0
  %3900 = vmatpush1.msra.mxu0 0.0
  %3901 = vmatprep.subr.mxu0 0.0
  %3902 = vmatpush1.msra.mxu0 0.0
  %3903 = vmatprep.subr.mxu0 0.0
  %3904 = vmatpush1.msra.mxu0 0.0
  %3905 = vmatprep.subr.mxu0 0.0
  %3906 = vmatpush1.msra.mxu0 0.0
  %3907 = vmatprep.subr.mxu0 0.0
  %3908 = vmatpush1.msra.mxu0 0.0
  %3909 = vmatprep.subr.mxu0 0.0
  %3910 = vmatpush1.msra.mxu0 0.0
  %3911 = vmatprep.subr.mxu0 0.0
  %3912 = vmatpush1.msra.mxu0 0.0
  %3913 = vmatprep.subr.mxu0 0.0
  %3914 = vmatpush1.msra.mxu0 0.0
  %3915 = vmatprep.subr.mxu0 0.0
  %3916 = vmatpush1.msra.mxu0 0.0
  %3917 = vmatprep.subr.mxu0 0.0
  %3918 = vmatpush1.msra.mxu0 0.0
  %3919 = vmatprep.mubr.f32.mxu0 0.0
  %3920 = vmatmul.mubr.f32.gmra.mrb[0].mxu0 %v3853
  %v3921 = vpop.f32.mrb[0].mxu0
  %v3922 = vadd.f32 %v1745, %v3921
  %v3923 = vpop.f32.mrb[0].mxu0
  %3924 = vdwg.mxu0
  %3926 = vrot.lane.b32.xlu0 %v3851, 56
  %v3927 = vpop.permute.xlu0 %3926
  %v3928 = vsel %vm1746, %v3927, 0
  %3930 = vmatprep.subr.mxu0 0.0
  %3931 = vmatpush1.msra.mxu0 %v1743
  %3932 = vmatprep.subr.mxu0 0.0
  %3933 = vmatpush1.msra.mxu0 0.0
  %3934 = vmatprep.subr.mxu0 0.0
  %3935 = vmatpush1.msra.mxu0 0.0
  %3936 = vmatprep.subr.mxu0 0.0
  %3937 = vmatpush1.msra.mxu0 0.0
  %3938 = vmatprep.subr.mxu0 0.0
  %3939 = vmatpush1.msra.mxu0 0.0
  %3940 = vmatprep.subr.mxu0 0.0
  %3941 = vmatpush1.msra.mxu0 0.0
  %3942 = vmatprep.subr.mxu0 0.0
  %3943 = vmatpush1.msra.mxu0 0.0
  %3944 = vmatprep.subr.mxu0 0.0
  %3945 = vmatpush1.msra.mxu0 0.0
  %3946 = vmatprep.subr.mxu0 0.0
  %3947 = vmatpush1.msra.mxu0 0.0
  %3948 = vmatprep.subr.mxu0 0.0
  %3949 = vmatpush1.msra.mxu0 0.0
  %3950 = vmatprep.subr.mxu0 0.0
  %3951 = vmatpush1.msra.mxu0 0.0
  %3952 = vmatprep.subr.mxu0 0.0
  %3953 = vmatpush1.msra.mxu0 0.0
  %3954 = vmatprep.subr.mxu0 0.0
  %3955 = vmatpush1.msra.mxu0 0.0
  %3956 = vmatprep.subr.mxu0 0.0
  %3957 = vmatpush1.msra.mxu0 0.0
  %3958 = vmatprep.subr.mxu0 0.0
  %3959 = vmatpush1.msra.mxu0 0.0
  %3960 = vmatprep.subr.mxu0 0.0
  %3961 = vmatpush1.msra.mxu0 0.0
  %3962 = vmatprep.subr.mxu0 0.0
  %3963 = vmatpush1.msra.mxu0 0.0
  %3964 = vmatprep.subr.mxu0 0.0
  %3965 = vmatpush1.msra.mxu0 0.0
  %3966 = vmatprep.subr.mxu0 0.0
  %3967 = vmatpush1.msra.mxu0 0.0
  %3968 = vmatprep.subr.mxu0 0.0
  %3969 = vmatpush1.msra.mxu0 0.0
  %3970 = vmatprep.subr.mxu0 0.0
  %3971 = vmatpush1.msra.mxu0 0.0
  %3972 = vmatprep.subr.mxu0 0.0
  %3973 = vmatpush1.msra.mxu0 0.0
  %3974 = vmatprep.subr.mxu0 0.0
  %3975 = vmatpush1.msra.mxu0 0.0
  %3976 = vmatprep.subr.mxu0 0.0
  %3977 = vmatpush1.msra.mxu0 0.0
  %3978 = vmatprep.subr.mxu0 0.0
  %3979 = vmatpush1.msra.mxu0 0.0
  %3980 = vmatprep.subr.mxu0 0.0
  %3981 = vmatpush1.msra.mxu0 0.0
  %3982 = vmatprep.subr.mxu0 0.0
  %3983 = vmatpush1.msra.mxu0 0.0
  %3984 = vmatprep.subr.mxu0 0.0
  %3985 = vmatpush1.msra.mxu0 0.0
  %3986 = vmatprep.subr.mxu0 0.0
  %3987 = vmatpush1.msra.mxu0 0.0
  %3988 = vmatprep.subr.mxu0 0.0
  %3989 = vmatpush1.msra.mxu0 0.0
  %3990 = vmatprep.subr.mxu0 0.0
  %3991 = vmatpush1.msra.mxu0 0.0
  %3992 = vmatprep.subr.mxu0 0.0
  %3993 = vmatpush1.msra.mxu0 0.0
  %3994 = vmatprep.mubr.f32.mxu0 0.0
  %3995 = vmatmul.mubr.f32.gmra.mrb[0].mxu0 %v3928
  %v3996 = vpop.f32.mrb[0].mxu0
  %v3997 = vadd.f32 %v3922, %v3996
  %v3998 = vpop.f32.mrb[0].mxu0
  %3999 = vdwg.mxu0
  %v4000 = vmax.f32 %v3997, 0.0
  %4001 = vst.msk [vmem:[#allocation2 + $0x9] sm:$0x1] %vm1966, %v4000
  %4002 = vmatprep.subr.mxu0 0.0
  %4003 = vmatpush1.msra.mxu0 %v1742
  %4004 = vmatprep.subr.mxu0 0.0
  %4005 = vmatpush1.msra.mxu0 0.0
  %4006 = vmatprep.subr.mxu0 0.0
  %4007 = vmatpush1.msra.mxu0 0.0
  %4008 = vmatprep.subr.mxu0 0.0
  %4009 = vmatpush1.msra.mxu0 0.0
  %4010 = vmatprep.subr.mxu0 0.0
  %4011 = vmatpush1.msra.mxu0 0.0
  %4012 = vmatprep.subr.mxu0 0.0
  %4013 = vmatpush1.msra.mxu0 0.0
  %4014 = vmatprep.subr.mxu0 0.0
  %4015 = vmatpush1.msra.mxu0 0.0
  %4016 = vmatprep.subr.mxu0 0.0
  %4017 = vmatpush1.msra.mxu0 0.0
  %4018 = vmatprep.subr.mxu0 0.0
  %4019 = vmatpush1.msra.mxu0 0.0
  %4020 = vmatprep.subr.mxu0 0.0
  %4021 = vmatpush1.msra.mxu0 0.0
  %4022 = vmatprep.subr.mxu0 0.0
  %4023 = vmatpush1.msra.mxu0 0.0
  %4024 = vmatprep.subr.mxu0 0.0
  %4025 = vmatpush1.msra.mxu0 0.0
  %4026 = vmatprep.subr.mxu0 0.0
  %4027 = vmatpush1.msra.mxu0 0.0
  %4028 = vmatprep.subr.mxu0 0.0
  %4029 = vmatpush1.msra.mxu0 0.0
  %4030 = vmatprep.subr.mxu0 0.0
  %4031 = vmatpush1.msra.mxu0 0.0
  %4032 = vmatprep.subr.mxu0 0.0
  %4033 = vmatpush1.msra.mxu0 0.0
  %4034 = vmatprep.subr.mxu0 0.0
  %4035 = vmatpush1.msra.mxu0 0.0
  %4036 = vmatprep.subr.mxu0 0.0
  %4037 = vmatpush1.msra.mxu0 0.0
  %4038 = vmatprep.subr.mxu0 0.0
  %4039 = vmatpush1.msra.mxu0 0.0
  %4040 = vmatprep.subr.mxu0 0.0
  %4041 = vmatpush1.msra.mxu0 0.0
  %4042 = vmatprep.subr.mxu0 0.0
  %4043 = vmatpush1.msra.mxu0 0.0
  %4044 = vmatprep.subr.mxu0 0.0
  %4045 = vmatpush1.msra.mxu0 0.0
  %4046 = vmatprep.subr.mxu0 0.0
  %4047 = vmatpush1.msra.mxu0 0.0
  %4048 = vmatprep.subr.mxu0 0.0
  %4049 = vmatpush1.msra.mxu0 0.0
  %4050 = vmatprep.subr.mxu0 0.0
  %4051 = vmatpush1.msra.mxu0 0.0
  %4052 = vmatprep.subr.mxu0 0.0
  %4053 = vmatpush1.msra.mxu0 0.0
  %4054 = vmatprep.subr.mxu0 0.0
  %4055 = vmatpush1.msra.mxu0 0.0
  %4056 = vmatprep.subr.mxu0 0.0
  %4057 = vmatpush1.msra.mxu0 0.0
  %4058 = vmatprep.subr.mxu0 0.0
  %4059 = vmatpush1.msra.mxu0 0.0
  %4060 = vmatprep.subr.mxu0 0.0
  %4061 = vmatpush1.msra.mxu0 0.0
  %4062 = vmatprep.subr.mxu0 0.0
  %4063 = vmatpush1.msra.mxu0 0.0
  %4064 = vmatprep.subr.mxu0 0.0
  %4065 = vmatpush1.msra.mxu0 0.0
  %4066 = vmatprep.mubr.f32.mxu0 0.0
  %4067 = vmatmul.mubr.f32.gmra.mrb[0].mxu0 %v3928
  %v4068 = vpop.f32.mrb[0].mxu0
  %v4069 = vadd.f32 0.0, %v4068
  %v4070 = vpop.f32.mrb[0].mxu0
  %4071 = vdwg.mxu0
  %4073 = vrot.lane.b32.xlu0 %v4069, 80
  %v4074 = vpop.permute.xlu0 %4073
  %v4076 = vadd.f32 %v1738, %v4074
  %v4077 = vmax.f32 %v4076, 0.0
  %v4079 = vsel %vm1746, %v4000, 0
  %4081 = vmatprep.subr.mxu0 0.0
  %4082 = vmatpush1.msra.mxu0 %v1744
  %4083 = vmatprep.subr.mxu0 0.0
  %4084 = vmatpush1.msra.mxu0 0.0
  %4085 = vmatprep.subr.mxu0 0.0
  %4086 = vmatpush1.msra.mxu0 0.0
  %4087 = vmatprep.subr.mxu0 0.0
  %4088 = vmatpush1.msra.mxu0 0.0
  %4089 = vmatprep.subr.mxu0 0.0
  %4090 = vmatpush1.msra.mxu0 0.0
  %4091 = vmatprep.subr.mxu0 0.0
  %4092 = vmatpush1.msra.mxu0 0.0
  %4093 = vmatprep.subr.mxu0 0.0
  %4094 = vmatpush1.msra.mxu0 0.0
  %4095 = vmatprep.subr.mxu0 0.0
  %4096 = vmatpush1.msra.mxu0 0.0
  %4097 = vmatprep.subr.mxu0 0.0
  %4098 = vmatpush1.msra.mxu0 0.0
  %4099 = vmatprep.subr.mxu0 0.0
  %4100 = vmatpush1.msra.mxu0 0.0
  %4101 = vmatprep.subr.mxu0 0.0
  %4102 = vmatpush1.msra.mxu0 0.0
  %4103 = vmatprep.subr.mxu0 0.0
  %4104 = vmatpush1.msra.mxu0 0.0
  %4105 = vmatprep.subr.mxu0 0.0
  %4106 = vmatpush1.msra.mxu0 0.0
  %4107 = vmatprep.subr.mxu0 0.0
  %4108 = vmatpush1.msra.mxu0 0.0
  %4109 = vmatprep.subr.mxu0 0.0
  %4110 = vmatpush1.msra.mxu0 0.0
  %4111 = vmatprep.subr.mxu0 0.0
  %4112 = vmatpush1.msra.mxu0 0.0
  %4113 = vmatprep.subr.mxu0 0.0
  %4114 = vmatpush1.msra.mxu0 0.0
  %4115 = vmatprep.subr.mxu0 0.0
  %4116 = vmatpush1.msra.mxu0 0.0
  %4117 = vmatprep.subr.mxu0 0.0
  %4118 = vmatpush1.msra.mxu0 0.0
  %4119 = vmatprep.subr.mxu0 0.0
  %4120 = vmatpush1.msra.mxu0 0.0
  %4121 = vmatprep.subr.mxu0 0.0
  %4122 = vmatpush1.msra.mxu0 0.0
  %4123 = vmatprep.subr.mxu0 0.0
  %4124 = vmatpush1.msra.mxu0 0.0
  %4125 = vmatprep.subr.mxu0 0.0
  %4126 = vmatpush1.msra.mxu0 0.0
  %4127 = vmatprep.subr.mxu0 0.0
  %4128 = vmatpush1.msra.mxu0 0.0
  %4129 = vmatprep.subr.mxu0 0.0
  %4130 = vmatpush1.msra.mxu0 0.0
  %4131 = vmatprep.subr.mxu0 0.0
  %4132 = vmatpush1.msra.mxu0 0.0
  %4133 = vmatprep.subr.mxu0 0.0
  %4134 = vmatpush1.msra.mxu0 0.0
  %4135 = vmatprep.subr.mxu0 0.0
  %4136 = vmatpush1.msra.mxu0 0.0
  %4137 = vmatprep.subr.mxu0 0.0
  %4138 = vmatpush1.msra.mxu0 0.0
  %4139 = vmatprep.subr.mxu0 0.0
  %4140 = vmatpush1.msra.mxu0 0.0
  %4141 = vmatprep.subr.mxu0 0.0
  %4142 = vmatpush1.msra.mxu0 0.0
  %4143 = vmatprep.subr.mxu0 0.0
  %4144 = vmatpush1.msra.mxu0 0.0
  %4145 = vmatprep.mubr.f32.mxu0 0.0
  %4146 = vmatmul.mubr.f32.gmra.mrb[0].mxu0 %v4079
  %v4147 = vpop.f32.mrb[0].mxu0
  %v4148 = vadd.f32 %v1745, %v4147
  %v4149 = vpop.f32.mrb[0].mxu0
  %4150 = vdwg.mxu0
  %4152 = vrot.lane.b32.xlu0 %v4077, 48
  %v4153 = vpop.permute.xlu0 %4152
  %v4154 = vsel %vm1746, %v4153, 0
  %4156 = vmatprep.subr.mxu0 0.0
  %4157 = vmatpush1.msra.mxu0 %v1743
  %4158 = vmatprep.subr.mxu0 0.0
  %4159 = vmatpush1.msra.mxu0 0.0
  %4160 = vmatprep.subr.mxu0 0.0
  %4161 = vmatpush1.msra.mxu0 0.0
  %4162 = vmatprep.subr.mxu0 0.0
  %4163 = vmatpush1.msra.mxu0 0.0
  %4164 = vmatprep.subr.mxu0 0.0
  %4165 = vmatpush1.msra.mxu0 0.0
  %4166 = vmatprep.subr.mxu0 0.0
  %4167 = vmatpush1.msra.mxu0 0.0
  %4168 = vmatprep.subr.mxu0 0.0
  %4169 = vmatpush1.msra.mxu0 0.0
  %4170 = vmatprep.subr.mxu0 0.0
  %4171 = vmatpush1.msra.mxu0 0.0
  %4172 = vmatprep.subr.mxu0 0.0
  %4173 = vmatpush1.msra.mxu0 0.0
  %4174 = vmatprep.subr.mxu0 0.0
  %4175 = vmatpush1.msra.mxu0 0.0
  %4176 = vmatprep.subr.mxu0 0.0
  %4177 = vmatpush1.msra.mxu0 0.0
  %4178 = vmatprep.subr.mxu0 0.0
  %4179 = vmatpush1.msra.mxu0 0.0
  %4180 = vmatprep.subr.mxu0 0.0
  %4181 = vmatpush1.msra.mxu0 0.0
  %4182 = vmatprep.subr.mxu0 0.0
  %4183 = vmatpush1.msra.mxu0 0.0
  %4184 = vmatprep.subr.mxu0 0.0
  %4185 = vmatpush1.msra.mxu0 0.0
  %4186 = vmatprep.subr.mxu0 0.0
  %4187 = vmatpush1.msra.mxu0 0.0
  %4188 = vmatprep.subr.mxu0 0.0
  %4189 = vmatpush1.msra.mxu0 0.0
  %4190 = vmatprep.subr.mxu0 0.0
  %4191 = vmatpush1.msra.mxu0 0.0
  %4192 = vmatprep.subr.mxu0 0.0
  %4193 = vmatpush1.msra.mxu0 0.0
  %4194 = vmatprep.subr.mxu0 0.0
  %4195 = vmatpush1.msra.mxu0 0.0
  %4196 = vmatprep.subr.mxu0 0.0
  %4197 = vmatpush1.msra.mxu0 0.0
  %4198 = vmatprep.subr.mxu0 0.0
  %4199 = vmatpush1.msra.mxu0 0.0
  %4200 = vmatprep.subr.mxu0 0.0
  %4201 = vmatpush1.msra.mxu0 0.0
  %4202 = vmatprep.subr.mxu0 0.0
  %4203 = vmatpush1.msra.mxu0 0.0
  %4204 = vmatprep.subr.mxu0 0.0
  %4205 = vmatpush1.msra.mxu0 0.0
  %4206 = vmatprep.subr.mxu0 0.0
  %4207 = vmatpush1.msra.mxu0 0.0
  %4208 = vmatprep.subr.mxu0 0.0
  %4209 = vmatpush1.msra.mxu0 0.0
  %4210 = vmatprep.subr.mxu0 0.0
  %4211 = vmatpush1.msra.mxu0 0.0
  %4212 = vmatprep.subr.mxu0 0.0
  %4213 = vmatpush1.msra.mxu0 0.0
  %4214 = vmatprep.subr.mxu0 0.0
  %4215 = vmatpush1.msra.mxu0 0.0
  %4216 = vmatprep.subr.mxu0 0.0
  %4217 = vmatpush1.msra.mxu0 0.0
  %4218 = vmatprep.subr.mxu0 0.0
  %4219 = vmatpush1.msra.mxu0 0.0
  %4220 = vmatprep.mubr.f32.mxu0 0.0
  %4221 = vmatmul.mubr.f32.gmra.mrb[0].mxu0 %v4154
  %v4222 = vpop.f32.mrb[0].mxu0
  %v4223 = vadd.f32 %v4148, %v4222
  %v4224 = vpop.f32.mrb[0].mxu0
  %4225 = vdwg.mxu0
  %v4226 = vmax.f32 %v4223, 0.0
  %4227 = vst.msk [vmem:[#allocation2 + $0xa] sm:$0x1] %vm1966, %v4226
  %4228 = vmatprep.subr.mxu0 0.0
  %4229 = vmatpush1.msra.mxu0 %v1742
  %4230 = vmatprep.subr.mxu0 0.0
  %4231 = vmatpush1.msra.mxu0 0.0
  %4232 = vmatprep.subr.mxu0 0.0
  %4233 = vmatpush1.msra.mxu0 0.0
  %4234 = vmatprep.subr.mxu0 0.0
  %4235 = vmatpush1.msra.mxu0 0.0
  %4236 = vmatprep.subr.mxu0 0.0
  %4237 = vmatpush1.msra.mxu0 0.0
  %4238 = vmatprep.subr.mxu0 0.0
  %4239 = vmatpush1.msra.mxu0 0.0
  %4240 = vmatprep.subr.mxu0 0.0
  %4241 = vmatpush1.msra.mxu0 0.0
  %4242 = vmatprep.subr.mxu0 0.0
  %4243 = vmatpush1.msra.mxu0 0.0
  %4244 = vmatprep.subr.mxu0 0.0
  %4245 = vmatpush1.msra.mxu0 0.0
  %4246 = vmatprep.subr.mxu0 0.0
  %4247 = vmatpush1.msra.mxu0 0.0
  %4248 = vmatprep.subr.mxu0 0.0
  %4249 = vmatpush1.msra.mxu0 0.0
  %4250 = vmatprep.subr.mxu0 0.0
  %4251 = vmatpush1.msra.mxu0 0.0
  %4252 = vmatprep.subr.mxu0 0.0
  %4253 = vmatpush1.msra.mxu0 0.0
  %4254 = vmatprep.subr.mxu0 0.0
  %4255 = vmatpush1.msra.mxu0 0.0
  %4256 = vmatprep.subr.mxu0 0.0
  %4257 = vmatpush1.msra.mxu0 0.0
  %4258 = vmatprep.subr.mxu0 0.0
  %4259 = vmatpush1.msra.mxu0 0.0
  %4260 = vmatprep.subr.mxu0 0.0
  %4261 = vmatpush1.msra.mxu0 0.0
  %4262 = vmatprep.subr.mxu0 0.0
  %4263 = vmatpush1.msra.mxu0 0.0
  %4264 = vmatprep.subr.mxu0 0.0
  %4265 = vmatpush1.msra.mxu0 0.0
  %4266 = vmatprep.subr.mxu0 0.0
  %4267 = vmatpush1.msra.mxu0 0.0
  %4268 = vmatprep.subr.mxu0 0.0
  %4269 = vmatpush1.msra.mxu0 0.0
  %4270 = vmatprep.subr.mxu0 0.0
  %4271 = vmatpush1.msra.mxu0 0.0
  %4272 = vmatprep.subr.mxu0 0.0
  %4273 = vmatpush1.msra.mxu0 0.0
  %4274 = vmatprep.subr.mxu0 0.0
  %4275 = vmatpush1.msra.mxu0 0.0
  %4276 = vmatprep.subr.mxu0 0.0
  %4277 = vmatpush1.msra.mxu0 0.0
  %4278 = vmatprep.subr.mxu0 0.0
  %4279 = vmatpush1.msra.mxu0 0.0
  %4280 = vmatprep.subr.mxu0 0.0
  %4281 = vmatpush1.msra.mxu0 0.0
  %4282 = vmatprep.subr.mxu0 0.0
  %4283 = vmatpush1.msra.mxu0 0.0
  %4284 = vmatprep.subr.mxu0 0.0
  %4285 = vmatpush1.msra.mxu0 0.0
  %4286 = vmatprep.subr.mxu0 0.0
  %4287 = vmatpush1.msra.mxu0 0.0
  %4288 = vmatprep.subr.mxu0 0.0
  %4289 = vmatpush1.msra.mxu0 0.0
  %4290 = vmatprep.subr.mxu0 0.0
  %4291 = vmatpush1.msra.mxu0 0.0
  %4292 = vmatprep.mubr.f32.mxu0 0.0
  %4293 = vmatmul.mubr.f32.gmra.mrb[0].mxu0 %v4154
  %v4294 = vpop.f32.mrb[0].mxu0
  %v4295 = vadd.f32 0.0, %v4294
  %v4296 = vpop.f32.mrb[0].mxu0
  %4297 = vdwg.mxu0
  %4299 = vrot.lane.b32.xlu0 %v4295, 88
  %v4300 = vpop.permute.xlu0 %4299
  %v4302 = vadd.f32 %v1738, %v4300
  %v4303 = vmax.f32 %v4302, 0.0
  %v4305 = vsel %vm1746, %v4226, 0
  %4307 = vmatprep.subr.mxu0 0.0
  %4308 = vmatpush1.msra.mxu0 %v1744
  %4309 = vmatprep.subr.mxu0 0.0
  %4310 = vmatpush1.msra.mxu0 0.0
  %4311 = vmatprep.subr.mxu0 0.0
  %4312 = vmatpush1.msra.mxu0 0.0
  %4313 = vmatprep.subr.mxu0 0.0
  %4314 = vmatpush1.msra.mxu0 0.0
  %4315 = vmatprep.subr.mxu0 0.0
  %4316 = vmatpush1.msra.mxu0 0.0
  %4317 = vmatprep.subr.mxu0 0.0
  %4318 = vmatpush1.msra.mxu0 0.0
  %4319 = vmatprep.subr.mxu0 0.0
  %4320 = vmatpush1.msra.mxu0 0.0
  %4321 = vmatprep.subr.mxu0 0.0
  %4322 = vmatpush1.msra.mxu0 0.0
  %4323 = vmatprep.subr.mxu0 0.0
  %4324 = vmatpush1.msra.mxu0 0.0
  %4325 = vmatprep.subr.mxu0 0.0
  %4326 = vmatpush1.msra.mxu0 0.0
  %4327 = vmatprep.subr.mxu0 0.0
  %4328 = vmatpush1.msra.mxu0 0.0
  %4329 = vmatprep.subr.mxu0 0.0
  %4330 = vmatpush1.msra.mxu0 0.0
  %4331 = vmatprep.subr.mxu0 0.0
  %4332 = vmatpush1.msra.mxu0 0.0
  %4333 = vmatprep.subr.mxu0 0.0
  %4334 = vmatpush1.msra.mxu0 0.0
  %4335 = vmatprep.subr.mxu0 0.0
  %4336 = vmatpush1.msra.mxu0 0.0
  %4337 = vmatprep.subr.mxu0 0.0
  %4338 = vmatpush1.msra.mxu0 0.0
  %4339 = vmatprep.subr.mxu0 0.0
  %4340 = vmatpush1.msra.mxu0 0.0
  %4341 = vmatprep.subr.mxu0 0.0
  %4342 = vmatpush1.msra.mxu0 0.0
  %4343 = vmatprep.subr.mxu0 0.0
  %4344 = vmatpush1.msra.mxu0 0.0
  %4345 = vmatprep.subr.mxu0 0.0
  %4346 = vmatpush1.msra.mxu0 0.0
  %4347 = vmatprep.subr.mxu0 0.0
  %4348 = vmatpush1.msra.mxu0 0.0
  %4349 = vmatprep.subr.mxu0 0.0
  %4350 = vmatpush1.msra.mxu0 0.0
  %4351 = vmatprep.subr.mxu0 0.0
  %4352 = vmatpush1.msra.mxu0 0.0
  %4353 = vmatprep.subr.mxu0 0.0
  %4354 = vmatpush1.msra.mxu0 0.0
  %4355 = vmatprep.subr.mxu0 0.0
  %4356 = vmatpush1.msra.mxu0 0.0
  %4357 = vmatprep.subr.mxu0 0.0
  %4358 = vmatpush1.msra.mxu0 0.0
  %4359 = vmatprep.subr.mxu0 0.0
  %4360 = vmatpush1.msra.mxu0 0.0
  %4361 = vmatprep.subr.mxu0 0.0
  %4362 = vmatpush1.msra.mxu0 0.0
  %4363 = vmatprep.subr.mxu0 0.0
  %4364 = vmatpush1.msra.mxu0 0.0
  %4365 = vmatprep.subr.mxu0 0.0
  %4366 = vmatpush1.msra.mxu0 0.0
  %4367 = vmatprep.subr.mxu0 0.0
  %4368 = vmatpush1.msra.mxu0 0.0
  %4369 = vmatprep.subr.mxu0 0.0
  %4370 = vmatpush1.msra.mxu0 0.0
  %4371 = vmatprep.mubr.f32.mxu0 0.0
  %4372 = vmatmul.mubr.f32.gmra.mrb[0].mxu0 %v4305
  %v4373 = vpop.f32.mrb[0].mxu0
  %v4374 = vadd.f32 %v1745, %v4373
  %v4375 = vpop.f32.mrb[0].mxu0
  %4376 = vdwg.mxu0
  %4378 = vrot.lane.b32.xlu0 %v4303, 40
  %v4379 = vpop.permute.xlu0 %4378
  %v4380 = vsel %vm1746, %v4379, 0
  %4382 = vmatprep.subr.mxu0 0.0
  %4383 = vmatpush1.msra.mxu0 %v1743
  %4384 = vmatprep.subr.mxu0 0.0
  %4385 = vmatpush1.msra.mxu0 0.0
  %4386 = vmatprep.subr.mxu0 0.0
  %4387 = vmatpush1.msra.mxu0 0.0
  %4388 = vmatprep.subr.mxu0 0.0
  %4389 = vmatpush1.msra.mxu0 0.0
  %4390 = vmatprep.subr.mxu0 0.0
  %4391 = vmatpush1.msra.mxu0 0.0
  %4392 = vmatprep.subr.mxu0 0.0
  %4393 = vmatpush1.msra.mxu0 0.0
  %4394 = vmatprep.subr.mxu0 0.0
  %4395 = vmatpush1.msra.mxu0 0.0
  %4396 = vmatprep.subr.mxu0 0.0
  %4397 = vmatpush1.msra.mxu0 0.0
  %4398 = vmatprep.subr.mxu0 0.0
  %4399 = vmatpush1.msra.mxu0 0.0
  %4400 = vmatprep.subr.mxu0 0.0
  %4401 = vmatpush1.msra.mxu0 0.0
  %4402 = vmatprep.subr.mxu0 0.0
  %4403 = vmatpush1.msra.mxu0 0.0
  %4404 = vmatprep.subr.mxu0 0.0
  %4405 = vmatpush1.msra.mxu0 0.0
  %4406 = vmatprep.subr.mxu0 0.0
  %4407 = vmatpush1.msra.mxu0 0.0
  %4408 = vmatprep.subr.mxu0 0.0
  %4409 = vmatpush1.msra.mxu0 0.0
  %4410 = vmatprep.subr.mxu0 0.0
  %4411 = vmatpush1.msra.mxu0 0.0
  %4412 = vmatprep.subr.mxu0 0.0
  %4413 = vmatpush1.msra.mxu0 0.0
  %4414 = vmatprep.subr.mxu0 0.0
  %4415 = vmatpush1.msra.mxu0 0.0
  %4416 = vmatprep.subr.mxu0 0.0
  %4417 = vmatpush1.msra.mxu0 0.0
  %4418 = vmatprep.subr.mxu0 0.0
  %4419 = vmatpush1.msra.mxu0 0.0
  %4420 = vmatprep.subr.mxu0 0.0
  %4421 = vmatpush1.msra.mxu0 0.0
  %4422 = vmatprep.subr.mxu0 0.0
  %4423 = vmatpush1.msra.mxu0 0.0
  %4424 = vmatprep.subr.mxu0 0.0
  %4425 = vmatpush1.msra.mxu0 0.0
  %4426 = vmatprep.subr.mxu0 0.0
  %4427 = vmatpush1.msra.mxu0 0.0
  %4428 = vmatprep.subr.mxu0 0.0
  %4429 = vmatpush1.msra.mxu0 0.0
  %4430 = vmatprep.subr.mxu0 0.0
  %4431 = vmatpush1.msra.mxu0 0.0
  %4432 = vmatprep.subr.mxu0 0.0
  %4433 = vmatpush1.msra.mxu0 0.0
  %4434 = vmatprep.subr.mxu0 0.0
  %4435 = vmatpush1.msra.mxu0 0.0
  %4436 = vmatprep.subr.mxu0 0.0
  %4437 = vmatpush1.msra.mxu0 0.0
  %4438 = vmatprep.subr.mxu0 0.0
  %4439 = vmatpush1.msra.mxu0 0.0
  %4440 = vmatprep.subr.mxu0 0.0
  %4441 = vmatpush1.msra.mxu0 0.0
  %4442 = vmatprep.subr.mxu0 0.0
  %4443 = vmatpush1.msra.mxu0 0.0
  %4444 = vmatprep.subr.mxu0 0.0
  %4445 = vmatpush1.msra.mxu0 0.0
  %4446 = vmatprep.mubr.f32.mxu0 0.0
  %4447 = vmatmul.mubr.f32.gmra.mrb[0].mxu0 %v4380
  %v4448 = vpop.f32.mrb[0].mxu0
  %v4449 = vadd.f32 %v4374, %v4448
  %v4450 = vpop.f32.mrb[0].mxu0
  %4451 = vdwg.mxu0
  %v4452 = vmax.f32 %v4449, 0.0
  %4453 = vst.msk [vmem:[#allocation2 + $0xb] sm:$0x1] %vm1966, %v4452
  %4454 = vmatprep.subr.mxu0 0.0
  %4455 = vmatpush1.msra.mxu0 %v1742
  %4456 = vmatprep.subr.mxu0 0.0
  %4457 = vmatpush1.msra.mxu0 0.0
  %4458 = vmatprep.subr.mxu0 0.0
  %4459 = vmatpush1.msra.mxu0 0.0
  %4460 = vmatprep.subr.mxu0 0.0
  %4461 = vmatpush1.msra.mxu0 0.0
  %4462 = vmatprep.subr.mxu0 0.0
  %4463 = vmatpush1.msra.mxu0 0.0
  %4464 = vmatprep.subr.mxu0 0.0
  %4465 = vmatpush1.msra.mxu0 0.0
  %4466 = vmatprep.subr.mxu0 0.0
  %4467 = vmatpush1.msra.mxu0 0.0
  %4468 = vmatprep.subr.mxu0 0.0
  %4469 = vmatpush1.msra.mxu0 0.0
  %4470 = vmatprep.subr.mxu0 0.0
  %4471 = vmatpush1.msra.mxu0 0.0
  %4472 = vmatprep.subr.mxu0 0.0
  %4473 = vmatpush1.msra.mxu0 0.0
  %4474 = vmatprep.subr.mxu0 0.0
  %4475 = vmatpush1.msra.mxu0 0.0
  %4476 = vmatprep.subr.mxu0 0.0
  %4477 = vmatpush1.msra.mxu0 0.0
  %4478 = vmatprep.subr.mxu0 0.0
  %4479 = vmatpush1.msra.mxu0 0.0
  %4480 = vmatprep.subr.mxu0 0.0
  %4481 = vmatpush1.msra.mxu0 0.0
  %4482 = vmatprep.subr.mxu0 0.0
  %4483 = vmatpush1.msra.mxu0 0.0
  %4484 = vmatprep.subr.mxu0 0.0
  %4485 = vmatpush1.msra.mxu0 0.0
  %4486 = vmatprep.subr.mxu0 0.0
  %4487 = vmatpush1.msra.mxu0 0.0
  %4488 = vmatprep.subr.mxu0 0.0
  %4489 = vmatpush1.msra.mxu0 0.0
  %4490 = vmatprep.subr.mxu0 0.0
  %4491 = vmatpush1.msra.mxu0 0.0
  %4492 = vmatprep.subr.mxu0 0.0
  %4493 = vmatpush1.msra.mxu0 0.0
  %4494 = vmatprep.subr.mxu0 0.0
  %4495 = vmatpush1.msra.mxu0 0.0
  %4496 = vmatprep.subr.mxu0 0.0
  %4497 = vmatpush1.msra.mxu0 0.0
  %4498 = vmatprep.subr.mxu0 0.0
  %4499 = vmatpush1.msra.mxu0 0.0
  %4500 = vmatprep.subr.mxu0 0.0
  %4501 = vmatpush1.msra.mxu0 0.0
  %4502 = vmatprep.subr.mxu0 0.0
  %4503 = vmatpush1.msra.mxu0 0.0
  %4504 = vmatprep.subr.mxu0 0.0
  %4505 = vmatpush1.msra.mxu0 0.0
  %4506 = vmatprep.subr.mxu0 0.0
  %4507 = vmatpush1.msra.mxu0 0.0
  %4508 = vmatprep.subr.mxu0 0.0
  %4509 = vmatpush1.msra.mxu0 0.0
  %4510 = vmatprep.subr.mxu0 0.0
  %4511 = vmatpush1.msra.mxu0 0.0
  %4512 = vmatprep.subr.mxu0 0.0
  %4513 = vmatpush1.msra.mxu0 0.0
  %4514 = vmatprep.subr.mxu0 0.0
  %4515 = vmatpush1.msra.mxu0 0.0
  %4516 = vmatprep.subr.mxu0 0.0
  %4517 = vmatpush1.msra.mxu0 0.0
  %4518 = vmatprep.mubr.f32.mxu0 0.0
  %4519 = vmatmul.mubr.f32.gmra.mrb[0].mxu0 %v4380
  %v4520 = vpop.f32.mrb[0].mxu0
  %v4521 = vadd.f32 0.0, %v4520
  %v4522 = vpop.f32.mrb[0].mxu0
  %4523 = vdwg.mxu0
  %4525 = vrot.lane.b32.xlu0 %v4521, 96
  %v4526 = vpop.permute.xlu0 %4525
  %v4528 = vadd.f32 %v1738, %v4526
  %v4529 = vmax.f32 %v4528, 0.0
  %v4531 = vsel %vm1746, %v4452, 0
  %4533 = vmatprep.subr.mxu0 0.0
  %4534 = vmatpush1.msra.mxu0 %v1744
  %4535 = vmatprep.subr.mxu0 0.0
  %4536 = vmatpush1.msra.mxu0 0.0
  %4537 = vmatprep.subr.mxu0 0.0
  %4538 = vmatpush1.msra.mxu0 0.0
  %4539 = vmatprep.subr.mxu0 0.0
  %4540 = vmatpush1.msra.mxu0 0.0
  %4541 = vmatprep.subr.mxu0 0.0
  %4542 = vmatpush1.msra.mxu0 0.0
  %4543 = vmatprep.subr.mxu0 0.0
  %4544 = vmatpush1.msra.mxu0 0.0
  %4545 = vmatprep.subr.mxu0 0.0
  %4546 = vmatpush1.msra.mxu0 0.0
  %4547 = vmatprep.subr.mxu0 0.0
  %4548 = vmatpush1.msra.mxu0 0.0
  %4549 = vmatprep.subr.mxu0 0.0
  %4550 = vmatpush1.msra.mxu0 0.0
  %4551 = vmatprep.subr.mxu0 0.0
  %4552 = vmatpush1.msra.mxu0 0.0
  %4553 = vmatprep.subr.mxu0 0.0
  %4554 = vmatpush1.msra.mxu0 0.0
  %4555 = vmatprep.subr.mxu0 0.0
  %4556 = vmatpush1.msra.mxu0 0.0
  %4557 = vmatprep.subr.mxu0 0.0
  %4558 = vmatpush1.msra.mxu0 0.0
  %4559 = vmatprep.subr.mxu0 0.0
  %4560 = vmatpush1.msra.mxu0 0.0
  %4561 = vmatprep.subr.mxu0 0.0
  %4562 = vmatpush1.msra.mxu0 0.0
  %4563 = vmatprep.subr.mxu0 0.0
  %4564 = vmatpush1.msra.mxu0 0.0
  %4565 = vmatprep.subr.mxu0 0.0
  %4566 = vmatpush1.msra.mxu0 0.0
  %4567 = vmatprep.subr.mxu0 0.0
  %4568 = vmatpush1.msra.mxu0 0.0
  %4569 = vmatprep.subr.mxu0 0.0
  %4570 = vmatpush1.msra.mxu0 0.0
  %4571 = vmatprep.subr.mxu0 0.0
  %4572 = vmatpush1.msra.mxu0 0.0
  %4573 = vmatprep.subr.mxu0 0.0
  %4574 = vmatpush1.msra.mxu0 0.0
  %4575 = vmatprep.subr.mxu0 0.0
  %4576 = vmatpush1.msra.mxu0 0.0
  %4577 = vmatprep.subr.mxu0 0.0
  %4578 = vmatpush1.msra.mxu0 0.0
  %4579 = vmatprep.subr.mxu0 0.0
  %4580 = vmatpush1.msra.mxu0 0.0
  %4581 = vmatprep.subr.mxu0 0.0
  %4582 = vmatpush1.msra.mxu0 0.0
  %4583 = vmatprep.subr.mxu0 0.0
  %4584 = vmatpush1.msra.mxu0 0.0
  %4585 = vmatprep.subr.mxu0 0.0
  %4586 = vmatpush1.msra.mxu0 0.0
  %4587 = vmatprep.subr.mxu0 0.0
  %4588 = vmatpush1.msra.mxu0 0.0
  %4589 = vmatprep.subr.mxu0 0.0
  %4590 = vmatpush1.msra.mxu0 0.0
  %4591 = vmatprep.subr.mxu0 0.0
  %4592 = vmatpush1.msra.mxu0 0.0
  %4593 = vmatprep.subr.mxu0 0.0
  %4594 = vmatpush1.msra.mxu0 0.0
  %4595 = vmatprep.subr.mxu0 0.0
  %4596 = vmatpush1.msra.mxu0 0.0
  %4597 = vmatprep.mubr.f32.mxu0 0.0
  %4598 = vmatmul.mubr.f32.gmra.mrb[0].mxu0 %v4531
  %v4599 = vpop.f32.mrb[0].mxu0
  %v4600 = vadd.f32 %v1745, %v4599
  %v4601 = vpop.f32.mrb[0].mxu0
  %4602 = vdwg.mxu0
  %4604 = vrot.lane.b32.xlu0 %v4529, 32
  %v4605 = vpop.permute.xlu0 %4604
  %v4606 = vsel %vm1746, %v4605, 0
  %4608 = vmatprep.subr.mxu0 0.0
  %4609 = vmatpush1.msra.mxu0 %v1743
  %4610 = vmatprep.subr.mxu0 0.0
  %4611 = vmatpush1.msra.mxu0 0.0
  %4612 = vmatprep.subr.mxu0 0.0
  %4613 = vmatpush1.msra.mxu0 0.0
  %4614 = vmatprep.subr.mxu0 0.0
  %4615 = vmatpush1.msra.mxu0 0.0
  %4616 = vmatprep.subr.mxu0 0.0
  %4617 = vmatpush1.msra.mxu0 0.0
  %4618 = vmatprep.subr.mxu0 0.0
  %4619 = vmatpush1.msra.mxu0 0.0
  %4620 = vmatprep.subr.mxu0 0.0
  %4621 = vmatpush1.msra.mxu0 0.0
  %4622 = vmatprep.subr.mxu0 0.0
  %4623 = vmatpush1.msra.mxu0 0.0
  %4624 = vmatprep.subr.mxu0 0.0
  %4625 = vmatpush1.msra.mxu0 0.0
  %4626 = vmatprep.subr.mxu0 0.0
  %4627 = vmatpush1.msra.mxu0 0.0
  %4628 = vmatprep.subr.mxu0 0.0
  %4629 = vmatpush1.msra.mxu0 0.0
  %4630 = vmatprep.subr.mxu0 0.0
  %4631 = vmatpush1.msra.mxu0 0.0
  %4632 = vmatprep.subr.mxu0 0.0
  %4633 = vmatpush1.msra.mxu0 0.0
  %4634 = vmatprep.subr.mxu0 0.0
  %4635 = vmatpush1.msra.mxu0 0.0
  %4636 = vmatprep.subr.mxu0 0.0
  %4637 = vmatpush1.msra.mxu0 0.0
  %4638 = vmatprep.subr.mxu0 0.0
  %4639 = vmatpush1.msra.mxu0 0.0
  %4640 = vmatprep.subr.mxu0 0.0
  %4641 = vmatpush1.msra.mxu0 0.0
  %4642 = vmatprep.subr.mxu0 0.0
  %4643 = vmatpush1.msra.mxu0 0.0
  %4644 = vmatprep.subr.mxu0 0.0
  %4645 = vmatpush1.msra.mxu0 0.0
  %4646 = vmatprep.subr.mxu0 0.0
  %4647 = vmatpush1.msra.mxu0 0.0
  %4648 = vmatprep.subr.mxu0 0.0
  %4649 = vmatpush1.msra.mxu0 0.0
  %4650 = vmatprep.subr.mxu0 0.0
  %4651 = vmatpush1.msra.mxu0 0.0
  %4652 = vmatprep.subr.mxu0 0.0
  %4653 = vmatpush1.msra.mxu0 0.0
  %4654 = vmatprep.subr.mxu0 0.0
  %4655 = vmatpush1.msra.mxu0 0.0
  %4656 = vmatprep.subr.mxu0 0.0
  %4657 = vmatpush1.msra.mxu0 0.0
  %4658 = vmatprep.subr.mxu0 0.0
  %4659 = vmatpush1.msra.mxu0 0.0
  %4660 = vmatprep.subr.mxu0 0.0
  %4661 = vmatpush1.msra.mxu0 0.0
  %4662 = vmatprep.subr.mxu0 0.0
  %4663 = vmatpush1.msra.mxu0 0.0
  %4664 = vmatprep.subr.mxu0 0.0
  %4665 = vmatpush1.msra.mxu0 0.0
  %4666 = vmatprep.subr.mxu0 0.0
  %4667 = vmatpush1.msra.mxu0 0.0
  %4668 = vmatprep.subr.mxu0 0.0
  %4669 = vmatpush1.msra.mxu0 0.0
  %4670 = vmatprep.subr.mxu0 0.0
  %4671 = vmatpush1.msra.mxu0 0.0
  %4672 = vmatprep.mubr.f32.mxu0 0.0
  %4673 = vmatmul.mubr.f32.gmra.mrb[0].mxu0 %v4606
  %v4674 = vpop.f32.mrb[0].mxu0
  %v4675 = vadd.f32 %v4600, %v4674
  %v4676 = vpop.f32.mrb[0].mxu0
  %4677 = vdwg.mxu0
  %v4678 = vmax.f32 %v4675, 0.0
  %4679 = vst.msk [vmem:[#allocation2 + $0xc] sm:$0x1] %vm1966, %v4678
  %4680 = vmatprep.subr.mxu0 0.0
  %4681 = vmatpush1.msra.mxu0 %v1742
  %4682 = vmatprep.subr.mxu0 0.0
  %4683 = vmatpush1.msra.mxu0 0.0
  %4684 = vmatprep.subr.mxu0 0.0
  %4685 = vmatpush1.msra.mxu0 0.0
  %4686 = vmatprep.subr.mxu0 0.0
  %4687 = vmatpush1.msra.mxu0 0.0
  %4688 = vmatprep.subr.mxu0 0.0
  %4689 = vmatpush1.msra.mxu0 0.0
  %4690 = vmatprep.subr.mxu0 0.0
  %4691 = vmatpush1.msra.mxu0 0.0
  %4692 = vmatprep.subr.mxu0 0.0
  %4693 = vmatpush1.msra.mxu0 0.0
  %4694 = vmatprep.subr.mxu0 0.0
  %4695 = vmatpush1.msra.mxu0 0.0
  %4696 = vmatprep.subr.mxu0 0.0
  %4697 = vmatpush1.msra.mxu0 0.0
  %4698 = vmatprep.subr.mxu0 0.0
  %4699 = vmatpush1.msra.mxu0 0.0
  %4700 = vmatprep.subr.mxu0 0.0
  %4701 = vmatpush1.msra.mxu0 0.0
  %4702 = vmatprep.subr.mxu0 0.0
  %4703 = vmatpush1.msra.mxu0 0.0
  %4704 = vmatprep.subr.mxu0 0.0
  %4705 = vmatpush1.msra.mxu0 0.0
  %4706 = vmatprep.subr.mxu0 0.0
  %4707 = vmatpush1.msra.mxu0 0.0
  %4708 = vmatprep.subr.mxu0 0.0
  %4709 = vmatpush1.msra.mxu0 0.0
  %4710 = vmatprep.subr.mxu0 0.0
  %4711 = vmatpush1.msra.mxu0 0.0
  %4712 = vmatprep.subr.mxu0 0.0
  %4713 = vmatpush1.msra.mxu0 0.0
  %4714 = vmatprep.subr.mxu0 0.0
  %4715 = vmatpush1.msra.mxu0 0.0
  %4716 = vmatprep.subr.mxu0 0.0
  %4717 = vmatpush1.msra.mxu0 0.0
  %4718 = vmatprep.subr.mxu0 0.0
  %4719 = vmatpush1.msra.mxu0 0.0
  %4720 = vmatprep.subr.mxu0 0.0
  %4721 = vmatpush1.msra.mxu0 0.0
  %4722 = vmatprep.subr.mxu0 0.0
  %4723 = vmatpush1.msra.mxu0 0.0
  %4724 = vmatprep.subr.mxu0 0.0
  %4725 = vmatpush1.msra.mxu0 0.0
  %4726 = vmatprep.subr.mxu0 0.0
  %4727 = vmatpush1.msra.mxu0 0.0
  %4728 = vmatprep.subr.mxu0 0.0
  %4729 = vmatpush1.msra.mxu0 0.0
  %4730 = vmatprep.subr.mxu0 0.0
  %4731 = vmatpush1.msra.mxu0 0.0
  %4732 = vmatprep.subr.mxu0 0.0
  %4733 = vmatpush1.msra.mxu0 0.0
  %4734 = vmatprep.subr.mxu0 0.0
  %4735 = vmatpush1.msra.mxu0 0.0
  %4736 = vmatprep.subr.mxu0 0.0
  %4737 = vmatpush1.msra.mxu0 0.0
  %4738 = vmatprep.subr.mxu0 0.0
  %4739 = vmatpush1.msra.mxu0 0.0
  %4740 = vmatprep.subr.mxu0 0.0
  %4741 = vmatpush1.msra.mxu0 0.0
  %4742 = vmatprep.subr.mxu0 0.0
  %4743 = vmatpush1.msra.mxu0 0.0
  %4744 = vmatprep.mubr.f32.mxu0 0.0
  %4745 = vmatmul.mubr.f32.gmra.mrb[0].mxu0 %v4606
  %v4746 = vpop.f32.mrb[0].mxu0
  %v4747 = vadd.f32 0.0, %v4746
  %v4748 = vpop.f32.mrb[0].mxu0
  %4749 = vdwg.mxu0
  %4751 = vrot.lane.b32.xlu0 %v4747, 104
  %v4752 = vpop.permute.xlu0 %4751
  %v4754 = vadd.f32 %v1738, %v4752
  %v4755 = vmax.f32 %v4754, 0.0
  %v4757 = vsel %vm1746, %v4678, 0
  %4759 = vmatprep.subr.mxu0 0.0
  %4760 = vmatpush1.msra.mxu0 %v1744
  %4761 = vmatprep.subr.mxu0 0.0
  %4762 = vmatpush1.msra.mxu0 0.0
  %4763 = vmatprep.subr.mxu0 0.0
  %4764 = vmatpush1.msra.mxu0 0.0
  %4765 = vmatprep.subr.mxu0 0.0
  %4766 = vmatpush1.msra.mxu0 0.0
  %4767 = vmatprep.subr.mxu0 0.0
  %4768 = vmatpush1.msra.mxu0 0.0
  %4769 = vmatprep.subr.mxu0 0.0
  %4770 = vmatpush1.msra.mxu0 0.0
  %4771 = vmatprep.subr.mxu0 0.0
  %4772 = vmatpush1.msra.mxu0 0.0
  %4773 = vmatprep.subr.mxu0 0.0
  %4774 = vmatpush1.msra.mxu0 0.0
  %4775 = vmatprep.subr.mxu0 0.0
  %4776 = vmatpush1.msra.mxu0 0.0
  %4777 = vmatprep.subr.mxu0 0.0
  %4778 = vmatpush1.msra.mxu0 0.0
  %4779 = vmatprep.subr.mxu0 0.0
  %4780 = vmatpush1.msra.mxu0 0.0
  %4781 = vmatprep.subr.mxu0 0.0
  %4782 = vmatpush1.msra.mxu0 0.0
  %4783 = vmatprep.subr.mxu0 0.0
  %4784 = vmatpush1.msra.mxu0 0.0
  %4785 = vmatprep.subr.mxu0 0.0
  %4786 = vmatpush1.msra.mxu0 0.0
  %4787 = vmatprep.subr.mxu0 0.0
  %4788 = vmatpush1.msra.mxu0 0.0
  %4789 = vmatprep.subr.mxu0 0.0
  %4790 = vmatpush1.msra.mxu0 0.0
  %4791 = vmatprep.subr.mxu0 0.0
  %4792 = vmatpush1.msra.mxu0 0.0
  %4793 = vmatprep.subr.mxu0 0.0
  %4794 = vmatpush1.msra.mxu0 0.0
  %4795 = vmatprep.subr.mxu0 0.0
  %4796 = vmatpush1.msra.mxu0 0.0
  %4797 = vmatprep.subr.mxu0 0.0
  %4798 = vmatpush1.msra.mxu0 0.0
  %4799 = vmatprep.subr.mxu0 0.0
  %4800 = vmatpush1.msra.mxu0 0.0
  %4801 = vmatprep.subr.mxu0 0.0
  %4802 = vmatpush1.msra.mxu0 0.0
  %4803 = vmatprep.subr.mxu0 0.0
  %4804 = vmatpush1.msra.mxu0 0.0
  %4805 = vmatprep.subr.mxu0 0.0
  %4806 = vmatpush1.msra.mxu0 0.0
  %4807 = vmatprep.subr.mxu0 0.0
  %4808 = vmatpush1.msra.mxu0 0.0
  %4809 = vmatprep.subr.mxu0 0.0
  %4810 = vmatpush1.msra.mxu0 0.0
  %4811 = vmatprep.subr.mxu0 0.0
  %4812 = vmatpush1.msra.mxu0 0.0
  %4813 = vmatprep.subr.mxu0 0.0
  %4814 = vmatpush1.msra.mxu0 0.0
  %4815 = vmatprep.subr.mxu0 0.0
  %4816 = vmatpush1.msra.mxu0 0.0
  %4817 = vmatprep.subr.mxu0 0.0
  %4818 = vmatpush1.msra.mxu0 0.0
  %4819 = vmatprep.subr.mxu0 0.0
  %4820 = vmatpush1.msra.mxu0 0.0
  %4821 = vmatprep.subr.mxu0 0.0
  %4822 = vmatpush1.msra.mxu0 0.0
  %4823 = vmatprep.mubr.f32.mxu0 0.0
  %4824 = vmatmul.mubr.f32.gmra.mrb[0].mxu0 %v4757
  %v4825 = vpop.f32.mrb[0].mxu0
  %v4826 = vadd.f32 %v1745, %v4825
  %v4827 = vpop.f32.mrb[0].mxu0
  %4828 = vdwg.mxu0
  %4830 = vrot.lane.b32.xlu0 %v4755, 24
  %v4831 = vpop.permute.xlu0 %4830
  %v4832 = vsel %vm1746, %v4831, 0
  %4834 = vmatprep.subr.mxu0 0.0
  %4835 = vmatpush1.msra.mxu0 %v1743
  %4836 = vmatprep.subr.mxu0 0.0
  %4837 = vmatpush1.msra.mxu0 0.0
  %4838 = vmatprep.subr.mxu0 0.0
  %4839 = vmatpush1.msra.mxu0 0.0
  %4840 = vmatprep.subr.mxu0 0.0
  %4841 = vmatpush1.msra.mxu0 0.0
  %4842 = vmatprep.subr.mxu0 0.0
  %4843 = vmatpush1.msra.mxu0 0.0
  %4844 = vmatprep.subr.mxu0 0.0
  %4845 = vmatpush1.msra.mxu0 0.0
  %4846 = vmatprep.subr.mxu0 0.0
  %4847 = vmatpush1.msra.mxu0 0.0
  %4848 = vmatprep.subr.mxu0 0.0
  %4849 = vmatpush1.msra.mxu0 0.0
  %4850 = vmatprep.subr.mxu0 0.0
  %4851 = vmatpush1.msra.mxu0 0.0
  %4852 = vmatprep.subr.mxu0 0.0
  %4853 = vmatpush1.msra.mxu0 0.0
  %4854 = vmatprep.subr.mxu0 0.0
  %4855 = vmatpush1.msra.mxu0 0.0
  %4856 = vmatprep.subr.mxu0 0.0
  %4857 = vmatpush1.msra.mxu0 0.0
  %4858 = vmatprep.subr.mxu0 0.0
  %4859 = vmatpush1.msra.mxu0 0.0
  %4860 = vmatprep.subr.mxu0 0.0
  %4861 = vmatpush1.msra.mxu0 0.0
  %4862 = vmatprep.subr.mxu0 0.0
  %4863 = vmatpush1.msra.mxu0 0.0
  %4864 = vmatprep.subr.mxu0 0.0
  %4865 = vmatpush1.msra.mxu0 0.0
  %4866 = vmatprep.subr.mxu0 0.0
  %4867 = vmatpush1.msra.mxu0 0.0
  %4868 = vmatprep.subr.mxu0 0.0
  %4869 = vmatpush1.msra.mxu0 0.0
  %4870 = vmatprep.subr.mxu0 0.0
  %4871 = vmatpush1.msra.mxu0 0.0
  %4872 = vmatprep.subr.mxu0 0.0
  %4873 = vmatpush1.msra.mxu0 0.0
  %4874 = vmatprep.subr.mxu0 0.0
  %4875 = vmatpush1.msra.mxu0 0.0
  %4876 = vmatprep.subr.mxu0 0.0
  %4877 = vmatpush1.msra.mxu0 0.0
  %4878 = vmatprep.subr.mxu0 0.0
  %4879 = vmatpush1.msra.mxu0 0.0
  %4880 = vmatprep.subr.mxu0 0.0
  %4881 = vmatpush1.msra.mxu0 0.0
  %4882 = vmatprep.subr.mxu0 0.0
  %4883 = vmatpush1.msra.mxu0 0.0
  %4884 = vmatprep.subr.mxu0 0.0
  %4885 = vmatpush1.msra.mxu0 0.0
  %4886 = vmatprep.subr.mxu0 0.0
  %4887 = vmatpush1.msra.mxu0 0.0
  %4888 = vmatprep.subr.mxu0 0.0
  %4889 = vmatpush1.msra.mxu0 0.0
  %4890 = vmatprep.subr.mxu0 0.0
  %4891 = vmatpush1.msra.mxu0 0.0
  %4892 = vmatprep.subr.mxu0 0.0
  %4893 = vmatpush1.msra.mxu0 0.0
  %4894 = vmatprep.subr.mxu0 0.0
  %4895 = vmatpush1.msra.mxu0 0.0
  %4896 = vmatprep.subr.mxu0 0.0
  %4897 = vmatpush1.msra.mxu0 0.0
  %4898 = vmatprep.mubr.f32.mxu0 0.0
  %4899 = vmatmul.mubr.f32.gmra.mrb[0].mxu0 %v4832
  %v4900 = vpop.f32.mrb[0].mxu0
  %v4901 = vadd.f32 %v4826, %v4900
  %v4902 = vpop.f32.mrb[0].mxu0
  %4903 = vdwg.mxu0
  %v4904 = vmax.f32 %v4901, 0.0
  %4905 = vst.msk [vmem:[#allocation2 + $0xd] sm:$0x1] %vm1966, %v4904
  %4906 = vmatprep.subr.mxu0 0.0
  %4907 = vmatpush1.msra.mxu0 %v1742
  %4908 = vmatprep.subr.mxu0 0.0
  %4909 = vmatpush1.msra.mxu0 0.0
  %4910 = vmatprep.subr.mxu0 0.0
  %4911 = vmatpush1.msra.mxu0 0.0
  %4912 = vmatprep.subr.mxu0 0.0
  %4913 = vmatpush1.msra.mxu0 0.0
  %4914 = vmatprep.subr.mxu0 0.0
  %4915 = vmatpush1.msra.mxu0 0.0
  %4916 = vmatprep.subr.mxu0 0.0
  %4917 = vmatpush1.msra.mxu0 0.0
  %4918 = vmatprep.subr.mxu0 0.0
  %4919 = vmatpush1.msra.mxu0 0.0
  %4920 = vmatprep.subr.mxu0 0.0
  %4921 = vmatpush1.msra.mxu0 0.0
  %4922 = vmatprep.subr.mxu0 0.0
  %4923 = vmatpush1.msra.mxu0 0.0
  %4924 = vmatprep.subr.mxu0 0.0
  %4925 = vmatpush1.msra.mxu0 0.0
  %4926 = vmatprep.subr.mxu0 0.0
  %4927 = vmatpush1.msra.mxu0 0.0
  %4928 = vmatprep.subr.mxu0 0.0
  %4929 = vmatpush1.msra.mxu0 0.0
  %4930 = vmatprep.subr.mxu0 0.0
  %4931 = vmatpush1.msra.mxu0 0.0
  %4932 = vmatprep.subr.mxu0 0.0
  %4933 = vmatpush1.msra.mxu0 0.0
  %4934 = vmatprep.subr.mxu0 0.0
  %4935 = vmatpush1.msra.mxu0 0.0
  %4936 = vmatprep.subr.mxu0 0.0
  %4937 = vmatpush1.msra.mxu0 0.0
  %4938 = vmatprep.subr.mxu0 0.0
  %4939 = vmatpush1.msra.mxu0 0.0
  %4940 = vmatprep.subr.mxu0 0.0
  %4941 = vmatpush1.msra.mxu0 0.0
  %4942 = vmatprep.subr.mxu0 0.0
  %4943 = vmatpush1.msra.mxu0 0.0
  %4944 = vmatprep.subr.mxu0 0.0
  %4945 = vmatpush1.msra.mxu0 0.0
  %4946 = vmatprep.subr.mxu0 0.0
  %4947 = vmatpush1.msra.mxu0 0.0
  %4948 = vmatprep.subr.mxu0 0.0
  %4949 = vmatpush1.msra.mxu0 0.0
  %4950 = vmatprep.subr.mxu0 0.0
  %4951 = vmatpush1.msra.mxu0 0.0
  %4952 = vmatprep.subr.mxu0 0.0
  %4953 = vmatpush1.msra.mxu0 0.0
  %4954 = vmatprep.subr.mxu0 0.0
  %4955 = vmatpush1.msra.mxu0 0.0
  %4956 = vmatprep.subr.mxu0 0.0
  %4957 = vmatpush1.msra.mxu0 0.0
  %4958 = vmatprep.subr.mxu0 0.0
  %4959 = vmatpush1.msra.mxu0 0.0
  %4960 = vmatprep.subr.mxu0 0.0
  %4961 = vmatpush1.msra.mxu0 0.0
  %4962 = vmatprep.subr.mxu0 0.0
  %4963 = vmatpush1.msra.mxu0 0.0
  %4964 = vmatprep.subr.mxu0 0.0
  %4965 = vmatpush1.msra.mxu0 0.0
  %4966 = vmatprep.subr.mxu0 0.0
  %4967 = vmatpush1.msra.mxu0 0.0
  %4968 = vmatprep.subr.mxu0 0.0
  %4969 = vmatpush1.msra.mxu0 0.0
  %4970 = vmatprep.mubr.f32.mxu0 0.0
  %4971 = vmatmul.mubr.f32.gmra.mrb[0].mxu0 %v4832
  %v4972 = vpop.f32.mrb[0].mxu0
  %v4973 = vadd.f32 0.0, %v4972
  %v4974 = vpop.f32.mrb[0].mxu0
  %4975 = vdwg.mxu0
  %4977 = vrot.lane.b32.xlu0 %v4973, 112
  %v4978 = vpop.permute.xlu0 %4977
  %v4980 = vadd.f32 %v1738, %v4978
  %v4981 = vmax.f32 %v4980, 0.0
  %v4983 = vsel %vm1746, %v4904, 0
  %4985 = vmatprep.subr.mxu0 0.0
  %4986 = vmatpush1.msra.mxu0 %v1744
  %4987 = vmatprep.subr.mxu0 0.0
  %4988 = vmatpush1.msra.mxu0 0.0
  %4989 = vmatprep.subr.mxu0 0.0
  %4990 = vmatpush1.msra.mxu0 0.0
  %4991 = vmatprep.subr.mxu0 0.0
  %4992 = vmatpush1.msra.mxu0 0.0
  %4993 = vmatprep.subr.mxu0 0.0
  %4994 = vmatpush1.msra.mxu0 0.0
  %4995 = vmatprep.subr.mxu0 0.0
  %4996 = vmatpush1.msra.mxu0 0.0
  %4997 = vmatprep.subr.mxu0 0.0
  %4998 = vmatpush1.msra.mxu0 0.0
  %4999 = vmatprep.subr.mxu0 0.0
  %5000 = vmatpush1.msra.mxu0 0.0
  %5001 = vmatprep.subr.mxu0 0.0
  %5002 = vmatpush1.msra.mxu0 0.0
  %5003 = vmatprep.subr.mxu0 0.0
  %5004 = vmatpush1.msra.mxu0 0.0
  %5005 = vmatprep.subr.mxu0 0.0
  %5006 = vmatpush1.msra.mxu0 0.0
  %5007 = vmatprep.subr.mxu0 0.0
  %5008 = vmatpush1.msra.mxu0 0.0
  %5009 = vmatprep.subr.mxu0 0.0
  %5010 = vmatpush1.msra.mxu0 0.0
  %5011 = vmatprep.subr.mxu0 0.0
  %5012 = vmatpush1.msra.mxu0 0.0
  %5013 = vmatprep.subr.mxu0 0.0
  %5014 = vmatpush1.msra.mxu0 0.0
  %5015 = vmatprep.subr.mxu0 0.0
  %5016 = vmatpush1.msra.mxu0 0.0
  %5017 = vmatprep.subr.mxu0 0.0
  %5018 = vmatpush1.msra.mxu0 0.0
  %5019 = vmatprep.subr.mxu0 0.0
  %5020 = vmatpush1.msra.mxu0 0.0
  %5021 = vmatprep.subr.mxu0 0.0
  %5022 = vmatpush1.msra.mxu0 0.0
  %5023 = vmatprep.subr.mxu0 0.0
  %5024 = vmatpush1.msra.mxu0 0.0
  %5025 = vmatprep.subr.mxu0 0.0
  %5026 = vmatpush1.msra.mxu0 0.0
  %5027 = vmatprep.subr.mxu0 0.0
  %5028 = vmatpush1.msra.mxu0 0.0
  %5029 = vmatprep.subr.mxu0 0.0
  %5030 = vmatpush1.msra.mxu0 0.0
  %5031 = vmatprep.subr.mxu0 0.0
  %5032 = vmatpush1.msra.mxu0 0.0
  %5033 = vmatprep.subr.mxu0 0.0
  %5034 = vmatpush1.msra.mxu0 0.0
  %5035 = vmatprep.subr.mxu0 0.0
  %5036 = vmatpush1.msra.mxu0 0.0
  %5037 = vmatprep.subr.mxu0 0.0
  %5038 = vmatpush1.msra.mxu0 0.0
  %5039 = vmatprep.subr.mxu0 0.0
  %5040 = vmatpush1.msra.mxu0 0.0
  %5041 = vmatprep.subr.mxu0 0.0
  %5042 = vmatpush1.msra.mxu0 0.0
  %5043 = vmatprep.subr.mxu0 0.0
  %5044 = vmatpush1.msra.mxu0 0.0
  %5045 = vmatprep.subr.mxu0 0.0
  %5046 = vmatpush1.msra.mxu0 0.0
  %5047 = vmatprep.subr.mxu0 0.0
  %5048 = vmatpush1.msra.mxu0 0.0
  %5049 = vmatprep.mubr.f32.mxu0 0.0
  %5050 = vmatmul.mubr.f32.gmra.mrb[0].mxu0 %v4983
  %v5051 = vpop.f32.mrb[0].mxu0
  %v5052 = vadd.f32 %v1745, %v5051
  %v5053 = vpop.f32.mrb[0].mxu0
  %5054 = vdwg.mxu0
  %5056 = vrot.lane.b32.xlu0 %v4981, 16
  %v5057 = vpop.permute.xlu0 %5056
  %v5058 = vsel %vm1746, %v5057, 0
  %5060 = vmatprep.subr.mxu0 0.0
  %5061 = vmatpush1.msra.mxu0 %v1743
  %5062 = vmatprep.subr.mxu0 0.0
  %5063 = vmatpush1.msra.mxu0 0.0
  %5064 = vmatprep.subr.mxu0 0.0
  %5065 = vmatpush1.msra.mxu0 0.0
  %5066 = vmatprep.subr.mxu0 0.0
  %5067 = vmatpush1.msra.mxu0 0.0
  %5068 = vmatprep.subr.mxu0 0.0
  %5069 = vmatpush1.msra.mxu0 0.0
  %5070 = vmatprep.subr.mxu0 0.0
  %5071 = vmatpush1.msra.mxu0 0.0
  %5072 = vmatprep.subr.mxu0 0.0
  %5073 = vmatpush1.msra.mxu0 0.0
  %5074 = vmatprep.subr.mxu0 0.0
  %5075 = vmatpush1.msra.mxu0 0.0
  %5076 = vmatprep.subr.mxu0 0.0
  %5077 = vmatpush1.msra.mxu0 0.0
  %5078 = vmatprep.subr.mxu0 0.0
  %5079 = vmatpush1.msra.mxu0 0.0
  %5080 = vmatprep.subr.mxu0 0.0
  %5081 = vmatpush1.msra.mxu0 0.0
  %5082 = vmatprep.subr.mxu0 0.0
  %5083 = vmatpush1.msra.mxu0 0.0
  %5084 = vmatprep.subr.mxu0 0.0
  %5085 = vmatpush1.msra.mxu0 0.0
  %5086 = vmatprep.subr.mxu0 0.0
  %5087 = vmatpush1.msra.mxu0 0.0
  %5088 = vmatprep.subr.mxu0 0.0
  %5089 = vmatpush1.msra.mxu0 0.0
  %5090 = vmatprep.subr.mxu0 0.0
  %5091 = vmatpush1.msra.mxu0 0.0
  %5092 = vmatprep.subr.mxu0 0.0
  %5093 = vmatpush1.msra.mxu0 0.0
  %5094 = vmatprep.subr.mxu0 0.0
  %5095 = vmatpush1.msra.mxu0 0.0
  %5096 = vmatprep.subr.mxu0 0.0
  %5097 = vmatpush1.msra.mxu0 0.0
  %5098 = vmatprep.subr.mxu0 0.0
  %5099 = vmatpush1.msra.mxu0 0.0
  %5100 = vmatprep.subr.mxu0 0.0
  %5101 = vmatpush1.msra.mxu0 0.0
  %5102 = vmatprep.subr.mxu0 0.0
  %5103 = vmatpush1.msra.mxu0 0.0
  %5104 = vmatprep.subr.mxu0 0.0
  %5105 = vmatpush1.msra.mxu0 0.0
  %5106 = vmatprep.subr.mxu0 0.0
  %5107 = vmatpush1.msra.mxu0 0.0
  %5108 = vmatprep.subr.mxu0 0.0
  %5109 = vmatpush1.msra.mxu0 0.0
  %5110 = vmatprep.subr.mxu0 0.0
  %5111 = vmatpush1.msra.mxu0 0.0
  %5112 = vmatprep.subr.mxu0 0.0
  %5113 = vmatpush1.msra.mxu0 0.0
  %5114 = vmatprep.subr.mxu0 0.0
  %5115 = vmatpush1.msra.mxu0 0.0
  %5116 = vmatprep.subr.mxu0 0.0
  %5117 = vmatpush1.msra.mxu0 0.0
  %5118 = vmatprep.subr.mxu0 0.0
  %5119 = vmatpush1.msra.mxu0 0.0
  %5120 = vmatprep.subr.mxu0 0.0
  %5121 = vmatpush1.msra.mxu0 0.0
  %5122 = vmatprep.subr.mxu0 0.0
  %5123 = vmatpush1.msra.mxu0 0.0
  %5124 = vmatprep.mubr.f32.mxu0 0.0
  %5125 = vmatmul.mubr.f32.gmra.mrb[0].mxu0 %v5058
  %v5126 = vpop.f32.mrb[0].mxu0
  %v5127 = vadd.f32 %v5052, %v5126
  %v5128 = vpop.f32.mrb[0].mxu0
  %5129 = vdwg.mxu0
  %v5130 = vmax.f32 %v5127, 0.0
  %5131 = vst.msk [vmem:[#allocation2 + $0xe] sm:$0x1] %vm1966, %v5130
  %5132 = vmatprep.subr.mxu0 0.0
  %5133 = vmatpush1.msra.mxu0 %v1742
  %5134 = vmatprep.subr.mxu0 0.0
  %5135 = vmatpush1.msra.mxu0 0.0
  %5136 = vmatprep.subr.mxu0 0.0
  %5137 = vmatpush1.msra.mxu0 0.0
  %5138 = vmatprep.subr.mxu0 0.0
  %5139 = vmatpush1.msra.mxu0 0.0
  %5140 = vmatprep.subr.mxu0 0.0
  %5141 = vmatpush1.msra.mxu0 0.0
  %5142 = vmatprep.subr.mxu0 0.0
  %5143 = vmatpush1.msra.mxu0 0.0
  %5144 = vmatprep.subr.mxu0 0.0
  %5145 = vmatpush1.msra.mxu0 0.0
  %5146 = vmatprep.subr.mxu0 0.0
  %5147 = vmatpush1.msra.mxu0 0.0
  %5148 = vmatprep.subr.mxu0 0.0
  %5149 = vmatpush1.msra.mxu0 0.0
  %5150 = vmatprep.subr.mxu0 0.0
  %5151 = vmatpush1.msra.mxu0 0.0
  %5152 = vmatprep.subr.mxu0 0.0
  %5153 = vmatpush1.msra.mxu0 0.0
  %5154 = vmatprep.subr.mxu0 0.0
  %5155 = vmatpush1.msra.mxu0 0.0
  %5156 = vmatprep.subr.mxu0 0.0
  %5157 = vmatpush1.msra.mxu0 0.0
  %5158 = vmatprep.subr.mxu0 0.0
  %5159 = vmatpush1.msra.mxu0 0.0
  %5160 = vmatprep.subr.mxu0 0.0
  %5161 = vmatpush1.msra.mxu0 0.0
  %5162 = vmatprep.subr.mxu0 0.0
  %5163 = vmatpush1.msra.mxu0 0.0
  %5164 = vmatprep.subr.mxu0 0.0
  %5165 = vmatpush1.msra.mxu0 0.0
  %5166 = vmatprep.subr.mxu0 0.0
  %5167 = vmatpush1.msra.mxu0 0.0
  %5168 = vmatprep.subr.mxu0 0.0
  %5169 = vmatpush1.msra.mxu0 0.0
  %5170 = vmatprep.subr.mxu0 0.0
  %5171 = vmatpush1.msra.mxu0 0.0
  %5172 = vmatprep.subr.mxu0 0.0
  %5173 = vmatpush1.msra.mxu0 0.0
  %5174 = vmatprep.subr.mxu0 0.0
  %5175 = vmatpush1.msra.mxu0 0.0
  %5176 = vmatprep.subr.mxu0 0.0
  %5177 = vmatpush1.msra.mxu0 0.0
  %5178 = vmatprep.subr.mxu0 0.0
  %5179 = vmatpush1.msra.mxu0 0.0
  %5180 = vmatprep.subr.mxu0 0.0
  %5181 = vmatpush1.msra.mxu0 0.0
  %5182 = vmatprep.subr.mxu0 0.0
  %5183 = vmatpush1.msra.mxu0 0.0
  %5184 = vmatprep.subr.mxu0 0.0
  %5185 = vmatpush1.msra.mxu0 0.0
  %5186 = vmatprep.subr.mxu0 0.0
  %5187 = vmatpush1.msra.mxu0 0.0
  %5188 = vmatprep.subr.mxu0 0.0
  %5189 = vmatpush1.msra.mxu0 0.0
  %5190 = vmatprep.subr.mxu0 0.0
  %5191 = vmatpush1.msra.mxu0 0.0
  %5192 = vmatprep.subr.mxu0 0.0
  %5193 = vmatpush1.msra.mxu0 0.0
  %5194 = vmatprep.subr.mxu0 0.0
  %5195 = vmatpush1.msra.mxu0 0.0
  %5196 = vmatprep.mubr.f32.mxu0 0.0
  %5197 = vmatmul.mubr.f32.gmra.mrb[0].mxu0 %v5058
  %v5198 = vpop.f32.mrb[0].mxu0
  %v5199 = vadd.f32 0.0, %v5198
  %v5200 = vpop.f32.mrb[0].mxu0
  %5201 = vdwg.mxu0
  %5203 = vrot.lane.b32.xlu0 %v5199, 120
  %v5204 = vpop.permute.xlu0 %5203
  %v5206 = vadd.f32 %v1738, %v5204
  %v5207 = vmax.f32 %v5206, 0.0
  %v5209 = vsel %vm1746, %v5130, 0
  %5211 = vmatprep.subr.mxu0 0.0
  %5212 = vmatpush1.msra.mxu0 %v1744
  %5213 = vmatprep.subr.mxu0 0.0
  %5214 = vmatpush1.msra.mxu0 0.0
  %5215 = vmatprep.subr.mxu0 0.0
  %5216 = vmatpush1.msra.mxu0 0.0
  %5217 = vmatprep.subr.mxu0 0.0
  %5218 = vmatpush1.msra.mxu0 0.0
  %5219 = vmatprep.subr.mxu0 0.0
  %5220 = vmatpush1.msra.mxu0 0.0
  %5221 = vmatprep.subr.mxu0 0.0
  %5222 = vmatpush1.msra.mxu0 0.0
  %5223 = vmatprep.subr.mxu0 0.0
  %5224 = vmatpush1.msra.mxu0 0.0
  %5225 = vmatprep.subr.mxu0 0.0
  %5226 = vmatpush1.msra.mxu0 0.0
  %5227 = vmatprep.subr.mxu0 0.0
  %5228 = vmatpush1.msra.mxu0 0.0
  %5229 = vmatprep.subr.mxu0 0.0
  %5230 = vmatpush1.msra.mxu0 0.0
  %5231 = vmatprep.subr.mxu0 0.0
  %5232 = vmatpush1.msra.mxu0 0.0
  %5233 = vmatprep.subr.mxu0 0.0
  %5234 = vmatpush1.msra.mxu0 0.0
  %5235 = vmatprep.subr.mxu0 0.0
  %5236 = vmatpush1.msra.mxu0 0.0
  %5237 = vmatprep.subr.mxu0 0.0
  %5238 = vmatpush1.msra.mxu0 0.0
  %5239 = vmatprep.subr.mxu0 0.0
  %5240 = vmatpush1.msra.mxu0 0.0
  %5241 = vmatprep.subr.mxu0 0.0
  %5242 = vmatpush1.msra.mxu0 0.0
  %5243 = vmatprep.subr.mxu0 0.0
  %5244 = vmatpush1.msra.mxu0 0.0
  %5245 = vmatprep.subr.mxu0 0.0
  %5246 = vmatpush1.msra.mxu0 0.0
  %5247 = vmatprep.subr.mxu0 0.0
  %5248 = vmatpush1.msra.mxu0 0.0
  %5249 = vmatprep.subr.mxu0 0.0
  %5250 = vmatpush1.msra.mxu0 0.0
  %5251 = vmatprep.subr.mxu0 0.0
  %5252 = vmatpush1.msra.mxu0 0.0
  %5253 = vmatprep.subr.mxu0 0.0
  %5254 = vmatpush1.msra.mxu0 0.0
  %5255 = vmatprep.subr.mxu0 0.0
  %5256 = vmatpush1.msra.mxu0 0.0
  %5257 = vmatprep.subr.mxu0 0.0
  %5258 = vmatpush1.msra.mxu0 0.0
  %5259 = vmatprep.subr.mxu0 0.0
  %5260 = vmatpush1.msra.mxu0 0.0
  %5261 = vmatprep.subr.mxu0 0.0
  %5262 = vmatpush1.msra.mxu0 0.0
  %5263 = vmatprep.subr.mxu0 0.0
  %5264 = vmatpush1.msra.mxu0 0.0
  %5265 = vmatprep.subr.mxu0 0.0
  %5266 = vmatpush1.msra.mxu0 0.0
  %5267 = vmatprep.subr.mxu0 0.0
  %5268 = vmatpush1.msra.mxu0 0.0
  %5269 = vmatprep.subr.mxu0 0.0
  %5270 = vmatpush1.msra.mxu0 0.0
  %5271 = vmatprep.subr.mxu0 0.0
  %5272 = vmatpush1.msra.mxu0 0.0
  %5273 = vmatprep.subr.mxu0 0.0
  %5274 = vmatpush1.msra.mxu0 0.0
  %5275 = vmatprep.mubr.f32.mxu0 0.0
  %5276 = vmatmul.mubr.f32.gmra.mrb[0].mxu0 %v5209
  %v5277 = vpop.f32.mrb[0].mxu0
  %v5278 = vadd.f32 %v1745, %v5277
  %v5279 = vpop.f32.mrb[0].mxu0
  %5280 = vdwg.mxu0
  %5282 = vrot.lane.b32.xlu0 %v5207, 8
  %v5283 = vpop.permute.xlu0 %5282
  %v5284 = vsel %vm1746, %v5283, 0
  %5286 = vmatprep.subr.mxu0 0.0
  %5287 = vmatpush1.msra.mxu0 %v1743
  %5288 = vmatprep.subr.mxu0 0.0
  %5289 = vmatpush1.msra.mxu0 0.0
  %5290 = vmatprep.subr.mxu0 0.0
  %5291 = vmatpush1.msra.mxu0 0.0
  %5292 = vmatprep.subr.mxu0 0.0
  %5293 = vmatpush1.msra.mxu0 0.0
  %5294 = vmatprep.subr.mxu0 0.0
  %5295 = vmatpush1.msra.mxu0 0.0
  %5296 = vmatprep.subr.mxu0 0.0
  %5297 = vmatpush1.msra.mxu0 0.0
  %5298 = vmatprep.subr.mxu0 0.0
  %5299 = vmatpush1.msra.mxu0 0.0
  %5300 = vmatprep.subr.mxu0 0.0
  %5301 = vmatpush1.msra.mxu0 0.0
  %5302 = vmatprep.subr.mxu0 0.0
  %5303 = vmatpush1.msra.mxu0 0.0
  %5304 = vmatprep.subr.mxu0 0.0
  %5305 = vmatpush1.msra.mxu0 0.0
  %5306 = vmatprep.subr.mxu0 0.0
  %5307 = vmatpush1.msra.mxu0 0.0
  %5308 = vmatprep.subr.mxu0 0.0
  %5309 = vmatpush1.msra.mxu0 0.0
  %5310 = vmatprep.subr.mxu0 0.0
  %5311 = vmatpush1.msra.mxu0 0.0
  %5312 = vmatprep.subr.mxu0 0.0
  %5313 = vmatpush1.msra.mxu0 0.0
  %5314 = vmatprep.subr.mxu0 0.0
  %5315 = vmatpush1.msra.mxu0 0.0
  %5316 = vmatprep.subr.mxu0 0.0
  %5317 = vmatpush1.msra.mxu0 0.0
  %5318 = vmatprep.subr.mxu0 0.0
  %5319 = vmatpush1.msra.mxu0 0.0
  %5320 = vmatprep.subr.mxu0 0.0
  %5321 = vmatpush1.msra.mxu0 0.0
  %5322 = vmatprep.subr.mxu0 0.0
  %5323 = vmatpush1.msra.mxu0 0.0
  %5324 = vmatprep.subr.mxu0 0.0
  %5325 = vmatpush1.msra.mxu0 0.0
  %5326 = vmatprep.subr.mxu0 0.0
  %5327 = vmatpush1.msra.mxu0 0.0
  %5328 = vmatprep.subr.mxu0 0.0
  %5329 = vmatpush1.msra.mxu0 0.0
  %5330 = vmatprep.subr.mxu0 0.0
  %5331 = vmatpush1.msra.mxu0 0.0
  %5332 = vmatprep.subr.mxu0 0.0
  %5333 = vmatpush1.msra.mxu0 0.0
  %5334 = vmatprep.subr.mxu0 0.0
  %5335 = vmatpush1.msra.mxu0 0.0
  %5336 = vmatprep.subr.mxu0 0.0
  %5337 = vmatpush1.msra.mxu0 0.0
  %5338 = vmatprep.subr.mxu0 0.0
  %5339 = vmatpush1.msra.mxu0 0.0
  %5340 = vmatprep.subr.mxu0 0.0
  %5341 = vmatpush1.msra.mxu0 0.0
  %5342 = vmatprep.subr.mxu0 0.0
  %5343 = vmatpush1.msra.mxu0 0.0
  %5344 = vmatprep.subr.mxu0 0.0
  %5345 = vmatpush1.msra.mxu0 0.0
  %5346 = vmatprep.subr.mxu0 0.0
  %5347 = vmatpush1.msra.mxu0 0.0
  %5348 = vmatprep.subr.mxu0 0.0
  %5349 = vmatpush1.msra.mxu0 0.0
  %5350 = vmatprep.mubr.f32.mxu0 0.0
  %5351 = vmatmul.mubr.f32.gmra.mrb[0].mxu0 %v5284
  %v5352 = vpop.f32.mrb[0].mxu0
  %v5353 = vadd.f32 %v5278, %v5352
  %v5354 = vpop.f32.mrb[0].mxu0
  %5355 = vdwg.mxu0
  %v5356 = vmax.f32 %v5353, 0.0
  %5357 = vst.msk [vmem:[#allocation2 + $0xf] sm:$0x1] %vm1966, %v5356
  %5358 = vmatprep.subr.mxu0 0.0
  %5359 = vmatpush1.msra.mxu0 %v1742
  %5360 = vmatprep.subr.mxu0 0.0
  %5361 = vmatpush1.msra.mxu0 0.0
  %5362 = vmatprep.subr.mxu0 0.0
  %5363 = vmatpush1.msra.mxu0 0.0
  %5364 = vmatprep.subr.mxu0 0.0
  %5365 = vmatpush1.msra.mxu0 0.0
  %5366 = vmatprep.subr.mxu0 0.0
  %5367 = vmatpush1.msra.mxu0 0.0
  %5368 = vmatprep.subr.mxu0 0.0
  %5369 = vmatpush1.msra.mxu0 0.0
  %5370 = vmatprep.subr.mxu0 0.0
  %5371 = vmatpush1.msra.mxu0 0.0
  %5372 = vmatprep.subr.mxu0 0.0
  %5373 = vmatpush1.msra.mxu0 0.0
  %5374 = vmatprep.subr.mxu0 0.0
  %5375 = vmatpush1.msra.mxu0 0.0
  %5376 = vmatprep.subr.mxu0 0.0
  %5377 = vmatpush1.msra.mxu0 0.0
  %5378 = vmatprep.subr.mxu0 0.0
  %5379 = vmatpush1.msra.mxu0 0.0
  %5380 = vmatprep.subr.mxu0 0.0
  %5381 = vmatpush1.msra.mxu0 0.0
  %5382 = vmatprep.subr.mxu0 0.0
  %5383 = vmatpush1.msra.mxu0 0.0
  %5384 = vmatprep.subr.mxu0 0.0
  %5385 = vmatpush1.msra.mxu0 0.0
  %5386 = vmatprep.subr.mxu0 0.0
  %5387 = vmatpush1.msra.mxu0 0.0
  %5388 = vmatprep.subr.mxu0 0.0
  %5389 = vmatpush1.msra.mxu0 0.0
  %5390 = vmatprep.subr.mxu0 0.0
  %5391 = vmatpush1.msra.mxu0 0.0
  %5392 = vmatprep.subr.mxu0 0.0
  %5393 = vmatpush1.msra.mxu0 0.0
  %5394 = vmatprep.subr.mxu0 0.0
  %5395 = vmatpush1.msra.mxu0 0.0
  %5396 = vmatprep.subr.mxu0 0.0
  %5397 = vmatpush1.msra.mxu0 0.0
  %5398 = vmatprep.subr.mxu0 0.0
  %5399 = vmatpush1.msra.mxu0 0.0
  %5400 = vmatprep.subr.mxu0 0.0
  %5401 = vmatpush1.msra.mxu0 0.0
  %5402 = vmatprep.subr.mxu0 0.0
  %5403 = vmatpush1.msra.mxu0 0.0
  %5404 = vmatprep.subr.mxu0 0.0
  %5405 = vmatpush1.msra.mxu0 0.0
  %5406 = vmatprep.subr.mxu0 0.0
  %5407 = vmatpush1.msra.mxu0 0.0
  %5408 = vmatprep.subr.mxu0 0.0
  %5409 = vmatpush1.msra.mxu0 0.0
  %5410 = vmatprep.subr.mxu0 0.0
  %5411 = vmatpush1.msra.mxu0 0.0
  %5412 = vmatprep.subr.mxu0 0.0
  %5413 = vmatpush1.msra.mxu0 0.0
  %5414 = vmatprep.subr.mxu0 0.0
  %5415 = vmatpush1.msra.mxu0 0.0
  %5416 = vmatprep.subr.mxu0 0.0
  %5417 = vmatpush1.msra.mxu0 0.0
  %5418 = vmatprep.subr.mxu0 0.0
  %5419 = vmatpush1.msra.mxu0 0.0
  %5420 = vmatprep.subr.mxu0 0.0
  %5421 = vmatpush1.msra.mxu0 0.0
  %5422 = vmatprep.mubr.f32.mxu0 0.0
  %5423 = vmatmul.mubr.f32.gmra.mrb[0].mxu0 %v5284
  %v5424 = vpop.f32.mrb[0].mxu0
  %v5425 = vadd.f32 0.0, %v5424
  %v5426 = vpop.f32.mrb[0].mxu0
  %5427 = vdwg.mxu0
  %v5428 = vadd.f32 %v1740, %v5425
  %v5429 = vmax.f32 %v5428, 0.0
  %v5431 = vsel %vm1746, %v5356, 0
  %5433 = vmatprep.subr.mxu0 0.0
  %5434 = vmatpush1.msra.mxu0 %v1744
  %5435 = vmatprep.subr.mxu0 0.0
  %5436 = vmatpush1.msra.mxu0 0.0
  %5437 = vmatprep.subr.mxu0 0.0
  %5438 = vmatpush1.msra.mxu0 0.0
  %5439 = vmatprep.subr.mxu0 0.0
  %5440 = vmatpush1.msra.mxu0 0.0
  %5441 = vmatprep.subr.mxu0 0.0
  %5442 = vmatpush1.msra.mxu0 0.0
  %5443 = vmatprep.subr.mxu0 0.0
  %5444 = vmatpush1.msra.mxu0 0.0
  %5445 = vmatprep.subr.mxu0 0.0
  %5446 = vmatpush1.msra.mxu0 0.0
  %5447 = vmatprep.subr.mxu0 0.0
  %5448 = vmatpush1.msra.mxu0 0.0
  %5449 = vmatprep.subr.mxu0 0.0
  %5450 = vmatpush1.msra.mxu0 0.0
  %5451 = vmatprep.subr.mxu0 0.0
  %5452 = vmatpush1.msra.mxu0 0.0
  %5453 = vmatprep.subr.mxu0 0.0
  %5454 = vmatpush1.msra.mxu0 0.0
  %5455 = vmatprep.subr.mxu0 0.0
  %5456 = vmatpush1.msra.mxu0 0.0
  %5457 = vmatprep.subr.mxu0 0.0
  %5458 = vmatpush1.msra.mxu0 0.0
  %5459 = vmatprep.subr.mxu0 0.0
  %5460 = vmatpush1.msra.mxu0 0.0
  %5461 = vmatprep.subr.mxu0 0.0
  %5462 = vmatpush1.msra.mxu0 0.0
  %5463 = vmatprep.subr.mxu0 0.0
  %5464 = vmatpush1.msra.mxu0 0.0
  %5465 = vmatprep.subr.mxu0 0.0
  %5466 = vmatpush1.msra.mxu0 0.0
  %5467 = vmatprep.subr.mxu0 0.0
  %5468 = vmatpush1.msra.mxu0 0.0
  %5469 = vmatprep.subr.mxu0 0.0
  %5470 = vmatpush1.msra.mxu0 0.0
  %5471 = vmatprep.subr.mxu0 0.0
  %5472 = vmatpush1.msra.mxu0 0.0
  %5473 = vmatprep.subr.mxu0 0.0
  %5474 = vmatpush1.msra.mxu0 0.0
  %5475 = vmatprep.subr.mxu0 0.0
  %5476 = vmatpush1.msra.mxu0 0.0
  %5477 = vmatprep.subr.mxu0 0.0
  %5478 = vmatpush1.msra.mxu0 0.0
  %5479 = vmatprep.subr.mxu0 0.0
  %5480 = vmatpush1.msra.mxu0 0.0
  %5481 = vmatprep.subr.mxu0 0.0
  %5482 = vmatpush1.msra.mxu0 0.0
  %5483 = vmatprep.subr.mxu0 0.0
  %5484 = vmatpush1.msra.mxu0 0.0
  %5485 = vmatprep.subr.mxu0 0.0
  %5486 = vmatpush1.msra.mxu0 0.0
  %5487 = vmatprep.subr.mxu0 0.0
  %5488 = vmatpush1.msra.mxu0 0.0
  %5489 = vmatprep.subr.mxu0 0.0
  %5490 = vmatpush1.msra.mxu0 0.0
  %5491 = vmatprep.subr.mxu0 0.0
  %5492 = vmatpush1.msra.mxu0 0.0
  %5493 = vmatprep.subr.mxu0 0.0
  %5494 = vmatpush1.msra.mxu0 0.0
  %5495 = vmatprep.subr.mxu0 0.0
  %5496 = vmatpush1.msra.mxu0 0.0
  %5497 = vmatprep.mubr.f32.mxu0 0.0
  %5498 = vmatmul.mubr.f32.gmra.mrb[0].mxu0 %v5431
  %v5499 = vpop.f32.mrb[0].mxu0
  %v5500 = vadd.f32 %v1745, %v5499
  %v5501 = vpop.f32.mrb[0].mxu0
  %5502 = vdwg.mxu0
  %v5504 = vsel %vm1746, %v5429, 0
  %5506 = vmatprep.subr.mxu0 0.0
  %5507 = vmatpush1.msra.mxu0 %v1743
  %5508 = vmatprep.subr.mxu0 0.0
  %5509 = vmatpush1.msra.mxu0 0.0
  %5510 = vmatprep.subr.mxu0 0.0
  %5511 = vmatpush1.msra.mxu0 0.0
  %5512 = vmatprep.subr.mxu0 0.0
  %5513 = vmatpush1.msra.mxu0 0.0
  %5514 = vmatprep.subr.mxu0 0.0
  %5515 = vmatpush1.msra.mxu0 0.0
  %5516 = vmatprep.subr.mxu0 0.0
  %5517 = vmatpush1.msra.mxu0 0.0
  %5518 = vmatprep.subr.mxu0 0.0
  %5519 = vmatpush1.msra.mxu0 0.0
  %5520 = vmatprep.subr.mxu0 0.0
  %5521 = vmatpush1.msra.mxu0 0.0
  %5522 = vmatprep.subr.mxu0 0.0
  %5523 = vmatpush1.msra.mxu0 0.0
  %5524 = vmatprep.subr.mxu0 0.0
  %5525 = vmatpush1.msra.mxu0 0.0
  %5526 = vmatprep.subr.mxu0 0.0
  %5527 = vmatpush1.msra.mxu0 0.0
  %5528 = vmatprep.subr.mxu0 0.0
  %5529 = vmatpush1.msra.mxu0 0.0
  %5530 = vmatprep.subr.mxu0 0.0
  %5531 = vmatpush1.msra.mxu0 0.0
  %5532 = vmatprep.subr.mxu0 0.0
  %5533 = vmatpush1.msra.mxu0 0.0
  %5534 = vmatprep.subr.mxu0 0.0
  %5535 = vmatpush1.msra.mxu0 0.0
  %5536 = vmatprep.subr.mxu0 0.0
  %5537 = vmatpush1.msra.mxu0 0.0
  %5538 = vmatprep.subr.mxu0 0.0
  %5539 = vmatpush1.msra.mxu0 0.0
  %5540 = vmatprep.subr.mxu0 0.0
  %5541 = vmatpush1.msra.mxu0 0.0
  %5542 = vmatprep.subr.mxu0 0.0
  %5543 = vmatpush1.msra.mxu0 0.0
  %5544 = vmatprep.subr.mxu0 0.0
  %5545 = vmatpush1.msra.mxu0 0.0
  %5546 = vmatprep.subr.mxu0 0.0
  %5547 = vmatpush1.msra.mxu0 0.0
  %5548 = vmatprep.subr.mxu0 0.0
  %5549 = vmatpush1.msra.mxu0 0.0
  %5550 = vmatprep.subr.mxu0 0.0
  %5551 = vmatpush1.msra.mxu0 0.0
  %5552 = vmatprep.subr.mxu0 0.0
  %5553 = vmatpush1.msra.mxu0 0.0
  %5554 = vmatprep.subr.mxu0 0.0
  %5555 = vmatpush1.msra.mxu0 0.0
  %5556 = vmatprep.subr.mxu0 0.0
  %5557 = vmatpush1.msra.mxu0 0.0
  %5558 = vmatprep.subr.mxu0 0.0
  %5559 = vmatpush1.msra.mxu0 0.0
  %5560 = vmatprep.subr.mxu0 0.0
  %5561 = vmatpush1.msra.mxu0 0.0
  %5562 = vmatprep.subr.mxu0 0.0
  %5563 = vmatpush1.msra.mxu0 0.0
  %5564 = vmatprep.subr.mxu0 0.0
  %5565 = vmatpush1.msra.mxu0 0.0
  %5566 = vmatprep.subr.mxu0 0.0
  %5567 = vmatpush1.msra.mxu0 0.0
  %5568 = vmatprep.subr.mxu0 0.0
  %5569 = vmatpush1.msra.mxu0 0.0
  %5570 = vmatprep.mubr.f32.mxu0 0.0
  %5571 = vmatmul.mubr.f32.gmra.mrb[0].mxu0 %v5504
  %v5572 = vpop.f32.mrb[0].mxu0
  %v5573 = vadd.f32 %v5500, %v5572
  %v5574 = vpop.f32.mrb[0].mxu0
  %5575 = vdwg.mxu0
  %v5576 = vmax.f32 %v5573, 0.0
  %5577 = vst.msk [vmem:[#allocation2 + $0x10] sm:$0x1] %vm1966, %v5576
  %5578 = vmatprep.subr.mxu0 0.0
  %5579 = vmatpush1.msra.mxu0 %v1742
  %5580 = vmatprep.subr.mxu0 0.0
  %5581 = vmatpush1.msra.mxu0 0.0
  %5582 = vmatprep.subr.mxu0 0.0
  %5583 = vmatpush1.msra.mxu0 0.0
  %5584 = vmatprep.subr.mxu0 0.0
  %5585 = vmatpush1.msra.mxu0 0.0
  %5586 = vmatprep.subr.mxu0 0.0
  %5587 = vmatpush1.msra.mxu0 0.0
  %5588 = vmatprep.subr.mxu0 0.0
  %5589 = vmatpush1.msra.mxu0 0.0
  %5590 = vmatprep.subr.mxu0 0.0
  %5591 = vmatpush1.msra.mxu0 0.0
  %5592 = vmatprep.subr.mxu0 0.0
  %5593 = vmatpush1.msra.mxu0 0.0
  %5594 = vmatprep.subr.mxu0 0.0
  %5595 = vmatpush1.msra.mxu0 0.0
  %5596 = vmatprep.subr.mxu0 0.0
  %5597 = vmatpush1.msra.mxu0 0.0
  %5598 = vmatprep.subr.mxu0 0.0
  %5599 = vmatpush1.msra.mxu0 0.0
  %5600 = vmatprep.subr.mxu0 0.0
  %5601 = vmatpush1.msra.mxu0 0.0
  %5602 = vmatprep.subr.mxu0 0.0
  %5603 = vmatpush1.msra.mxu0 0.0
  %5604 = vmatprep.subr.mxu0 0.0
  %5605 = vmatpush1.msra.mxu0 0.0
  %5606 = vmatprep.subr.mxu0 0.0
  %5607 = vmatpush1.msra.mxu0 0.0
  %5608 = vmatprep.subr.mxu0 0.0
  %5609 = vmatpush1.msra.mxu0 0.0
  %5610 = vmatprep.subr.mxu0 0.0
  %5611 = vmatpush1.msra.mxu0 0.0
  %5612 = vmatprep.subr.mxu0 0.0
  %5613 = vmatpush1.msra.mxu0 0.0
  %5614 = vmatprep.subr.mxu0 0.0
  %5615 = vmatpush1.msra.mxu0 0.0
  %5616 = vmatprep.subr.mxu0 0.0
  %5617 = vmatpush1.msra.mxu0 0.0
  %5618 = vmatprep.subr.mxu0 0.0
  %5619 = vmatpush1.msra.mxu0 0.0
  %5620 = vmatprep.subr.mxu0 0.0
  %5621 = vmatpush1.msra.mxu0 0.0
  %5622 = vmatprep.subr.mxu0 0.0
  %5623 = vmatpush1.msra.mxu0 0.0
  %5624 = vmatprep.subr.mxu0 0.0
  %5625 = vmatpush1.msra.mxu0 0.0
  %5626 = vmatprep.subr.mxu0 0.0
  %5627 = vmatpush1.msra.mxu0 0.0
  %5628 = vmatprep.subr.mxu0 0.0
  %5629 = vmatpush1.msra.mxu0 0.0
  %5630 = vmatprep.subr.mxu0 0.0
  %5631 = vmatpush1.msra.mxu0 0.0
  %5632 = vmatprep.subr.mxu0 0.0
  %5633 = vmatpush1.msra.mxu0 0.0
  %5634 = vmatprep.subr.mxu0 0.0
  %5635 = vmatpush1.msra.mxu0 0.0
  %5636 = vmatprep.subr.mxu0 0.0
  %5637 = vmatpush1.msra.mxu0 0.0
  %5638 = vmatprep.subr.mxu0 0.0
  %5639 = vmatpush1.msra.mxu0 0.0
  %5640 = vmatprep.subr.mxu0 0.0
  %5641 = vmatpush1.msra.mxu0 0.0
  %5642 = vmatprep.mubr.f32.mxu0 0.0
  %5643 = vmatmul.mubr.f32.gmra.mrb[0].mxu0 %v5504
  %v5644 = vpop.f32.mrb[0].mxu0
  %v5645 = vadd.f32 0.0, %v5644
  %v5646 = vpop.f32.mrb[0].mxu0
  %5647 = vdwg.mxu0
  %5649 = vrot.lane.b32.xlu0 %v5645, 8
  %v5650 = vpop.permute.xlu0 %5649
  %v5652 = vadd.f32 %v1740, %v5650
  %v5653 = vmax.f32 %v5652, 0.0
  %v5655 = vsel %vm1746, %v5576, 0
  %5657 = vmatprep.subr.mxu0 0.0
  %5658 = vmatpush1.msra.mxu0 %v1744
  %5659 = vmatprep.subr.mxu0 0.0
  %5660 = vmatpush1.msra.mxu0 0.0
  %5661 = vmatprep.subr.mxu0 0.0
  %5662 = vmatpush1.msra.mxu0 0.0
  %5663 = vmatprep.subr.mxu0 0.0
  %5664 = vmatpush1.msra.mxu0 0.0
  %5665 = vmatprep.subr.mxu0 0.0
  %5666 = vmatpush1.msra.mxu0 0.0
  %5667 = vmatprep.subr.mxu0 0.0
  %5668 = vmatpush1.msra.mxu0 0.0
  %5669 = vmatprep.subr.mxu0 0.0
  %5670 = vmatpush1.msra.mxu0 0.0
  %5671 = vmatprep.subr.mxu0 0.0
  %5672 = vmatpush1.msra.mxu0 0.0
  %5673 = vmatprep.subr.mxu0 0.0
  %5674 = vmatpush1.msra.mxu0 0.0
  %5675 = vmatprep.subr.mxu0 0.0
  %5676 = vmatpush1.msra.mxu0 0.0
  %5677 = vmatprep.subr.mxu0 0.0
  %5678 = vmatpush1.msra.mxu0 0.0
  %5679 = vmatprep.subr.mxu0 0.0
  %5680 = vmatpush1.msra.mxu0 0.0
  %5681 = vmatprep.subr.mxu0 0.0
  %5682 = vmatpush1.msra.mxu0 0.0
  %5683 = vmatprep.subr.mxu0 0.0
  %5684 = vmatpush1.msra.mxu0 0.0
  %5685 = vmatprep.subr.mxu0 0.0
  %5686 = vmatpush1.msra.mxu0 0.0
  %5687 = vmatprep.subr.mxu0 0.0
  %5688 = vmatpush1.msra.mxu0 0.0
  %5689 = vmatprep.subr.mxu0 0.0
  %5690 = vmatpush1.msra.mxu0 0.0
  %5691 = vmatprep.subr.mxu0 0.0
  %5692 = vmatpush1.msra.mxu0 0.0
  %5693 = vmatprep.subr.mxu0 0.0
  %5694 = vmatpush1.msra.mxu0 0.0
  %5695 = vmatprep.subr.mxu0 0.0
  %5696 = vmatpush1.msra.mxu0 0.0
  %5697 = vmatprep.subr.mxu0 0.0
  %5698 = vmatpush1.msra.mxu0 0.0
  %5699 = vmatprep.subr.mxu0 0.0
  %5700 = vmatpush1.msra.mxu0 0.0
  %5701 = vmatprep.subr.mxu0 0.0
  %5702 = vmatpush1.msra.mxu0 0.0
  %5703 = vmatprep.subr.mxu0 0.0
  %5704 = vmatpush1.msra.mxu0 0.0
  %5705 = vmatprep.subr.mxu0 0.0
  %5706 = vmatpush1.msra.mxu0 0.0
  %5707 = vmatprep.subr.mxu0 0.0
  %5708 = vmatpush1.msra.mxu0 0.0
  %5709 = vmatprep.subr.mxu0 0.0
  %5710 = vmatpush1.msra.mxu0 0.0
  %5711 = vmatprep.subr.mxu0 0.0
  %5712 = vmatpush1.msra.mxu0 0.0
  %5713 = vmatprep.subr.mxu0 0.0
  %5714 = vmatpush1.msra.mxu0 0.0
  %5715 = vmatprep.subr.mxu0 0.0
  %5716 = vmatpush1.msra.mxu0 0.0
  %5717 = vmatprep.subr.mxu0 0.0
  %5718 = vmatpush1.msra.mxu0 0.0
  %5719 = vmatprep.subr.mxu0 0.0
  %5720 = vmatpush1.msra.mxu0 0.0
  %5721 = vmatprep.mubr.f32.mxu0 0.0
  %5722 = vmatmul.mubr.f32.gmra.mrb[0].mxu0 %v5655
  %v5723 = vpop.f32.mrb[0].mxu0
  %v5724 = vadd.f32 %v1745, %v5723
  %v5725 = vpop.f32.mrb[0].mxu0
  %5726 = vdwg.mxu0
  %5728 = vrot.lane.b32.xlu0 %v5653, 120
  %v5729 = vpop.permute.xlu0 %5728
  %v5730 = vsel %vm1746, %v5729, 0
  %5732 = vmatprep.subr.mxu0 0.0
  %5733 = vmatpush1.msra.mxu0 %v1743
  %5734 = vmatprep.subr.mxu0 0.0
  %5735 = vmatpush1.msra.mxu0 0.0
  %5736 = vmatprep.subr.mxu0 0.0
  %5737 = vmatpush1.msra.mxu0 0.0
  %5738 = vmatprep.subr.mxu0 0.0
  %5739 = vmatpush1.msra.mxu0 0.0
  %5740 = vmatprep.subr.mxu0 0.0
  %5741 = vmatpush1.msra.mxu0 0.0
  %5742 = vmatprep.subr.mxu0 0.0
  %5743 = vmatpush1.msra.mxu0 0.0
  %5744 = vmatprep.subr.mxu0 0.0
  %5745 = vmatpush1.msra.mxu0 0.0
  %5746 = vmatprep.subr.mxu0 0.0
  %5747 = vmatpush1.msra.mxu0 0.0
  %5748 = vmatprep.subr.mxu0 0.0
  %5749 = vmatpush1.msra.mxu0 0.0
  %5750 = vmatprep.subr.mxu0 0.0
  %5751 = vmatpush1.msra.mxu0 0.0
  %5752 = vmatprep.subr.mxu0 0.0
  %5753 = vmatpush1.msra.mxu0 0.0
  %5754 = vmatprep.subr.mxu0 0.0
  %5755 = vmatpush1.msra.mxu0 0.0
  %5756 = vmatprep.subr.mxu0 0.0
  %5757 = vmatpush1.msra.mxu0 0.0
  %5758 = vmatprep.subr.mxu0 0.0
  %5759 = vmatpush1.msra.mxu0 0.0
  %5760 = vmatprep.subr.mxu0 0.0
  %5761 = vmatpush1.msra.mxu0 0.0
  %5762 = vmatprep.subr.mxu0 0.0
  %5763 = vmatpush1.msra.mxu0 0.0
  %5764 = vmatprep.subr.mxu0 0.0
  %5765 = vmatpush1.msra.mxu0 0.0
  %5766 = vmatprep.subr.mxu0 0.0
  %5767 = vmatpush1.msra.mxu0 0.0
  %5768 = vmatprep.subr.mxu0 0.0
  %5769 = vmatpush1.msra.mxu0 0.0
  %5770 = vmatprep.subr.mxu0 0.0
  %5771 = vmatpush1.msra.mxu0 0.0
  %5772 = vmatprep.subr.mxu0 0.0
  %5773 = vmatpush1.msra.mxu0 0.0
  %5774 = vmatprep.subr.mxu0 0.0
  %5775 = vmatpush1.msra.mxu0 0.0
  %5776 = vmatprep.subr.mxu0 0.0
  %5777 = vmatpush1.msra.mxu0 0.0
  %5778 = vmatprep.subr.mxu0 0.0
  %5779 = vmatpush1.msra.mxu0 0.0
  %5780 = vmatprep.subr.mxu0 0.0
  %5781 = vmatpush1.msra.mxu0 0.0
  %5782 = vmatprep.subr.mxu0 0.0
  %5783 = vmatpush1.msra.mxu0 0.0
  %5784 = vmatprep.subr.mxu0 0.0
  %5785 = vmatpush1.msra.mxu0 0.0
  %5786 = vmatprep.subr.mxu0 0.0
  %5787 = vmatpush1.msra.mxu0 0.0
  %5788 = vmatprep.subr.mxu0 0.0
  %5789 = vmatpush1.msra.mxu0 0.0
  %5790 = vmatprep.subr.mxu0 0.0
  %5791 = vmatpush1.msra.mxu0 0.0
  %5792 = vmatprep.subr.mxu0 0.0
  %5793 = vmatpush1.msra.mxu0 0.0
  %5794 = vmatprep.subr.mxu0 0.0
  %5795 = vmatpush1.msra.mxu0 0.0
  %5796 = vmatprep.mubr.f32.mxu0 0.0
  %5797 = vmatmul.mubr.f32.gmra.mrb[0].mxu0 %v5730
  %v5798 = vpop.f32.mrb[0].mxu0
  %v5799 = vadd.f32 %v5724, %v5798
  %v5800 = vpop.f32.mrb[0].mxu0
  %5801 = vdwg.mxu0
  %v5802 = vmax.f32 %v5799, 0.0
  %5803 = vst.msk [vmem:[#allocation2 + $0x11] sm:$0x1] %vm1966, %v5802
  %v5804 = vld [vmem:[#allocation2] sm:$0xff]
  %v5805 = vld [vmem:[#allocation2 + $0x8] sm:$0xff]
  %v5806 = vld [vmem:[#allocation2 + $0x10] sm:$0x3]
  %v5807 = vld [vmem:[%s20] sm:$0xff]
  %v5808 = vld [vmem:[%s21] sm:$0x1]
  %v5810 = vlaneseq
  %v5811 = vshrl.u32 %v5810, 7
  %v5812 = vsub.s32 0, %v5811
  %v5813 = vrot.slane %v5808, %v5812
  %v5816 = vsel %vm1746, %v5804, 0
  %v5819 = vsel %vm1746, %v5805, 0
  %v5822 = vsel %vm1746, %v5806, 0
  %5824 = vmatprep.subr.mxu0 0.0
  %5825 = vmatpush1.msra.mxu0 %v5807
  %5826 = vmatprep.subr.mxu0 0.0
  %5827 = vmatpush1.msra.mxu0 0.0
  %5828 = vmatprep.subr.mxu0 0.0
  %5829 = vmatpush1.msra.mxu0 0.0
  %5830 = vmatprep.subr.mxu0 0.0
  %5831 = vmatpush1.msra.mxu0 0.0
  %5832 = vmatprep.subr.mxu0 0.0
  %5833 = vmatpush1.msra.mxu0 0.0
  %5834 = vmatprep.subr.mxu0 0.0
  %5835 = vmatpush1.msra.mxu0 0.0
  %5836 = vmatprep.subr.mxu0 0.0
  %5837 = vmatpush1.msra.mxu0 0.0
  %5838 = vmatprep.subr.mxu0 0.0
  %5839 = vmatpush1.msra.mxu0 0.0
  %5840 = vmatprep.subr.mxu0 0.0
  %5841 = vmatpush1.msra.mxu0 0.0
  %5842 = vmatprep.subr.mxu0 0.0
  %5843 = vmatpush1.msra.mxu0 0.0
  %5844 = vmatprep.subr.mxu0 0.0
  %5845 = vmatpush1.msra.mxu0 0.0
  %5846 = vmatprep.subr.mxu0 0.0
  %5847 = vmatpush1.msra.mxu0 0.0
  %5848 = vmatprep.subr.mxu0 0.0
  %5849 = vmatpush1.msra.mxu0 0.0
  %5850 = vmatprep.subr.mxu0 0.0
  %5851 = vmatpush1.msra.mxu0 0.0
  %5852 = vmatprep.subr.mxu0 0.0
  %5853 = vmatpush1.msra.mxu0 0.0
  %5854 = vmatprep.subr.mxu0 0.0
  %5855 = vmatpush1.msra.mxu0 0.0
  %5856 = vmatprep.subr.mxu0 0.0
  %5857 = vmatpush1.msra.mxu0 0.0
  %5858 = vmatprep.subr.mxu0 0.0
  %5859 = vmatpush1.msra.mxu0 0.0
  %5860 = vmatprep.subr.mxu0 0.0
  %5861 = vmatpush1.msra.mxu0 0.0
  %5862 = vmatprep.subr.mxu0 0.0
  %5863 = vmatpush1.msra.mxu0 0.0
  %5864 = vmatprep.subr.mxu0 0.0
  %5865 = vmatpush1.msra.mxu0 0.0
  %5866 = vmatprep.subr.mxu0 0.0
  %5867 = vmatpush1.msra.mxu0 0.0
  %5868 = vmatprep.subr.mxu0 0.0
  %5869 = vmatpush1.msra.mxu0 0.0
  %5870 = vmatprep.subr.mxu0 0.0
  %5871 = vmatpush1.msra.mxu0 0.0
  %5872 = vmatprep.subr.mxu0 0.0
  %5873 = vmatpush1.msra.mxu0 0.0
  %5874 = vmatprep.subr.mxu0 0.0
  %5875 = vmatpush1.msra.mxu0 0.0
  %5876 = vmatprep.subr.mxu0 0.0
  %5877 = vmatpush1.msra.mxu0 0.0
  %5878 = vmatprep.subr.mxu0 0.0
  %5879 = vmatpush1.msra.mxu0 0.0
  %5880 = vmatprep.subr.mxu0 0.0
  %5881 = vmatpush1.msra.mxu0 0.0
  %5882 = vmatprep.subr.mxu0 0.0
  %5883 = vmatpush1.msra.mxu0 0.0
  %5884 = vmatprep.subr.mxu0 0.0
  %5885 = vmatpush1.msra.mxu0 0.0
  %5886 = vmatprep.subr.mxu0 0.0
  %5887 = vmatpush1.msra.mxu0 0.0
  %5888 = vmatprep.mubr.f32.mxu0 0.0
  %5889 = vmatmul.mubr.f32.gmra.mrb[0].mxu0 %v5816
  %v5890 = vpop.f32.mrb[0].mxu0
  %v5891 = vadd.f32 %v5813, %v5890
  %v5892 = vpop.f32.mrb[0].mxu0
  %5893 = vmatprep.mubr.f32.mxu0 0.0
  %5894 = vmatmul.mubr.f32.gmra.mrb[0].mxu0 %v5819
  %v5895 = vpop.f32.mrb[0].mxu0
  %v5896 = vadd.f32 %v5813, %v5895
  %v5897 = vpop.f32.mrb[0].mxu0
  %5898 = vmatprep.mubr.f32.mxu0 0.0
  %5899 = vmatmul.mubr.f32.gmra.mrb[0].mxu0 %v5822
  %v5900 = vpop.f32.mrb[0].mxu0
  %v5901 = vadd.f32 %v5813, %v5900
  %v5902 = vpop.f32.mrb[0].mxu0
  %5903 = vdwg.mxu0
  %vm5904 = vcmask 31744
  %v5905 = vsel %vm5904, %v5891, -inf
  %v5906 = vsel %vm5904, %v5896, -inf
  %vm5907 = vcmask 25600
  %v5908 = vsel %vm5907, %v5901, -inf
  %v5909 = vmax.f32 %v5905, %v5906
  %v5910 = vmax.f32 %v5909, %v5908
  %v5911 = vrot.slane %v5910, 4
  %v5912 = vmax.f32 %v5910, %v5911
  %v5913 = vrot.slane %v5912, 2
  %v5914 = vmax.f32 %v5912, %v5913
  %v5915 = vrot.slane %v5914, 1
  %v5916 = vmax.f32 %v5914, %v5915
  %v5917 = vsub.f32 %v5891, %v5916
  %v5918 = vsub.f32 %v5896, %v5916
  %v5919 = vsub.f32 %v5901, %v5916
  %v5920 = vmul.f32 %v5917, 1.442695
  %v5921 = vpow.pop %v5920
  %v5922 = vmul.f32 %v5918, 1.442695
  %v5923 = vpow.pop %v5922
  %v5924 = vmul.f32 %v5919, 1.442695
  %v5925 = vpow.pop %v5924
  %v5926 = vsel %vm5904, %v5921, 0.0
  %v5927 = vsel %vm5904, %v5923, 0.0
  %v5928 = vadd.f32 %v5926, %v5927
  %v5929 = vsel %vm5907, %v5925, 0.0
  %v5930 = vadd.f32 %v5928, %v5929
  %v5931 = vrot.slane %v5930, 4
  %v5932 = vadd.f32 %v5930, %v5931
  %v5933 = vrot.slane %v5932, 2
  %v5934 = vadd.f32 %v5932, %v5933
  %v5935 = vrot.slane %v5934, 1
  %v5936 = vadd.f32 %v5934, %v5935
  %v5937 = vrcp.pop %v5936
  %v5938 = vmul.f32 %v5921, %v5937
  %v5939 = vmul.f32 %v5923, %v5937
  %v5940 = vmul.f32 %v5925, %v5937
  %5941 = vst.msk [vmem:[%s22] sm:$0xff] %vm5904, %v5938
  %5942 = vst.msk [vmem:[%s22 + $0x8] sm:$0xff] %vm5904, %v5939
  %5943 = vst.msk [vmem:[%s22 + $0x10] sm:$0x3] %vm5907, %v5940
  // Predicated region
  $region90: #{cnn_forward.1} parent=0 // pred_check
    _
  $region91: #{cnn_forward.1} parent=0 // pred_check_branch
    %5945 = sbr.rel (0) target = $region93
  $region92: #{cnn_forward.1} parent=0 // pred_region
    _
  $region93: #{cnn_forward.1} parent=0 // pred_fallthru
    _
  // Predicated region
  $region94: #{cnn_forward.1} parent=0 // pred_check
    _
  $region95: #{cnn_forward.1} parent=0 // pred_check_branch
    %5947 = sbr.rel (0) target = $region97
  $region96: #{cnn_forward.1} parent=0 // pred_region
    _
  $region97: #{cnn_forward.1} parent=0 // pred_fallthru
    _

</llo_original>
